<compile_context>
chip_gen: v7x
topology: tpu7x:2x2x1
jax: 0.10.0
libtpu: 0.0.40
codegen_flags: <defaults>
</compile_context>

<pallas_src>
import numpy as np
import jax
import jax.numpy as jnp
from jax import lax
from jax.experimental import pallas as pl
from jax.experimental.pallas import tpu as pltpu

# full-f32 matmuls everywhere (reference and in-kernel) so the check is tight
jax.config.update("jax_default_matmul_precision", "highest")


# --------------------------------------------------------------------------- #
# static bilinear (align_corners=True) upsample matrix, built with numpy so it
# is a compile-time constant (no runtime scatter inside the jitted graph)
# --------------------------------------------------------------------------- #

def _bilinear_matrix(hs, ws, H, W):
    """(hs*ws, H*W) weight matrix: upsampling becomes a tiny matmul that is
    fused into the Pallas kernel."""
    def axis(src, dst):
        if dst == 1:
            f = np.zeros((1,), np.float64)
        else:
            f = np.arange(dst, dtype=np.float64) * ((src - 1) / (dst - 1))
        i0 = np.clip(np.floor(f).astype(np.int64), 0, src - 1)
        i1 = np.clip(i0 + 1, 0, src - 1)
        w1 = f - i0
        return i0, i1, 1.0 - w1, w1

    y0, y1, wy0, wy1 = axis(hs, H)
    x0, x1, wx0, wx1 = axis(ws, W)
    oy = np.arange(H * W) // W
    ox = np.arange(H * W) % W
    cols = np.arange(H * W)
    M = np.zeros((hs * ws, H * W), np.float64)
    for sy, wy in ((y0, wy0), (y1, wy1)):
        for sx, wx in ((x0, wx0), (x1, wx1)):
            np.add.at(M, (sy[oy] * ws + sx[ox], cols), wy[oy] * wx[ox])
    return jnp.asarray(M, jnp.float32)


# --------------------------------------------------------------------------- #
# single fused Pallas kernel: everything after the depthwise downsample
# --------------------------------------------------------------------------- #

def _dualgcn_fused_pallas(x_flat, loc_flat, w_pt, b_pt,
                          w_adj, b_adj_row, w_wg, b_wg_col,
                          w_c3, b_c3_col,
                          wqkv, bqkv, wwg_sg, bwg_sg, wout_sg, bout_sg,
                          wgt, wfin, bfin, pr, c):
    B, P, HW = x_flat.shape
    hw_s = loc_flat.shape[2]
    two_pr = 2 * pr
    three_pr = 3 * pr
    three_c = 3 * c
    # NOTE: the sublane split of the fused phi||theta projection below is
    # tile-aligned because 2*pr (= 8 here) is a multiple of 8; pad 2*pr up to
    # a multiple of 8 for other planes/ratio combinations.

    def kernel(x_ref, loc_ref, wpt_ref, bpt_ref, wadj_ref, badj_ref,
               wwg_ref, bwg_ref, wc3_ref, bc3_ref,
               wqkv_ref, bqkv_ref, swg_w_ref, swg_b_ref,
               sout_w_ref, sout_b_ref, wgt_ref, wfin_ref, bfin_ref,
               o_ref, cat_ref):
        x = x_ref[0]                                                 # (P, HW)

        # ---- SpatialGCN on the downsampled local map (all sub-vreg, VMEM) --
        loc = loc_ref[0]                                             # (P, hw_s)
        qkv = jnp.dot(wqkv_ref[...], loc,
                      preferred_element_type=jnp.float32) + bqkv_ref[...]
        q = qkv[0:c]
        k = qkv[c:2 * c]
        v = qkv[2 * c:3 * c]
        # attT[j,i] = sum_n v[j,n] q[i,n]  (== AV[i,j] of the torch code)
        attT = lax.dot_general(v, q, (((1,), (1,)), ((), ())),
                               preferred_element_type=jnp.float32)   # (c, c)
        # softmax over torch dim=2  ==  axis 0 of attT
        attT = attT - jnp.max(attT, axis=0, keepdims=True)
        e = jnp.exp(attT)
        attT = e / jnp.sum(e, axis=0, keepdims=True)
        # (K @ AV)^T  ==  attT @ k ; then conv_wg+bn_wg, out conv+bn, residual
        avw = jnp.dot(attT, k, preferred_element_type=jnp.float32)   # (c, hw_s)
        avw = jnp.dot(swg_w_ref[...], avw,
                      preferred_element_type=jnp.float32) + swg_b_ref[...]
        loc_att = jnp.maximum(
            jnp.dot(sout_w_ref[...], avw,
                    preferred_element_type=jnp.float32) + sout_b_ref[...] + loc,
            0.0)                                                     # (P, hw_s)

        # ---- fused phi||theta projection (one matmul, BN folded) -----------
        qt = jnp.dot(wpt_ref[...], x,
                     preferred_element_type=jnp.float32) + bpt_ref[...]
        xs = qt[:two_pr]             # x_sqz  (2Pr, HW)  -- never hits HBM
        bt = qt[two_pr:]             # theta  (Pr, HW)   -- never hits HBM

        # ---- z_idt + tiny adjacency GCN, all VMEM-resident -----------------
        z_idt = lax.dot_general(xs, bt, (((1,), (1,)), ((), ())),
                                preferred_element_type=jnp.float32)  # (2Pr, Pr)
        # z_idt @ w_adj^T  ==  (w_adj @ z_idt^T)^T : avoids an XLU transpose
        z2 = lax.dot_general(z_idt, wadj_ref[...], (((1,), (1,)), ((), ())),
                             preferred_element_type=jnp.float32)
        z2 = z2 + badj_ref[...] + z_idt
        z3 = jnp.dot(wwg_ref[...], z2,
                     preferred_element_type=jnp.float32) + bwg_ref[...]
        wyb = jnp.dot(wc3_ref[...], z3,
                      preferred_element_type=jnp.float32)            # (P, Pr)
        # y = bn3(conv3(z @ b)) ; residual relu
        y = jnp.dot(wyb, bt,
                    preferred_element_type=jnp.float32) + bc3_ref[...]
        g = jnp.maximum(x + y, 0.0)                                  # g_out

        # ---- bilinear upsample (matmul) + spatial_local_feat ---------------
        lup = jnp.dot(loc_att, wgt_ref[...],
                      preferred_element_type=jnp.float32)            # (P, HW)
        slf = x * lup + x

        # ---- concat + final 1x1 conv + BN as one stacked K=2P matmul -------
        cat_ref[0:P, :] = slf
        cat_ref[P:2 * P, :] = g
        o_ref[0] = jnp.dot(wfin_ref[...], cat_ref[...],
                           preferred_element_type=jnp.float32) + bfin_ref[...]

    def _const_spec(shape):
        nd = len(shape)
        return pl.BlockSpec(shape, lambda b, nd=nd: (0,) * nd)

    return pl.pallas_call(
        kernel,
        out_shape=jax.ShapeDtypeStruct((B, P, HW), jnp.float32),
        grid_spec=pltpu.PrefetchScalarGridSpec(
            num_scalar_prefetch=0,
            grid=(B,),
            in_specs=[
                pl.BlockSpec((1, P, HW), lambda b: (b, 0, 0)),
                pl.BlockSpec((1, P, hw_s), lambda b: (b, 0, 0)),
                _const_spec((three_pr, P)),
                _const_spec((three_pr, 1)),
                _const_spec((pr, pr)),
                _const_spec((1, pr)),
                _const_spec((two_pr, two_pr)),
                _const_spec((two_pr, 1)),
                _const_spec((P, two_pr)),
                _const_spec((P, 1)),
                _const_spec((three_c, P)),
                _const_spec((three_c, 1)),
                _const_spec((c, c)),
                _const_spec((c, 1)),
                _const_spec((P, c)),
                _const_spec((P, 1)),
                _const_spec((hw_s, HW)),
                _const_spec((P, 2 * P)),
                _const_spec((P, 1)),
            ],
            out_specs=pl.BlockSpec((1, P, HW), lambda b: (b, 0, 0)),
            scratch_shapes=[pltpu.VMEM((2 * P, HW), jnp.float32)],
        ),
        compiler_params=pltpu.CompilerParams(
            dimension_semantics=("parallel",)),
    )(x_flat, loc_flat, w_pt, b_pt, w_adj, b_adj_row, w_wg, b_wg_col,
      w_c3, b_c3_col, wqkv, bqkv, wwg_sg, bwg_sg, wout_sg, bout_sg,
      wgt, wfin, bfin)


# --------------------------------------------------------------------------- #
# DualGCN forward (Pallas path)
# --------------------------------------------------------------------------- #

def dualgcn_forward(x, p, ratio=4):
    B, P, H, W = x.shape
    Pr = P // ratio
    HW = H * W
    c = P // 2
    x_flat = x.reshape(B, P, HW)

    # ---- local branch downsample -------------------------------------------
    # TODO(synk): the three 3x3 depthwise stride-2 convs (16x16 -> 2x2) stay
    # in XLA; they are sub-vreg stencils with no clean 1x1/matmul mapping.
    loc = x
    for w_dw, s, b in p["local"]:
        loc = lax.conv_general_dilated(
            loc, w_dw, (2, 2), ((1, 1), (1, 1)),
            dimension_numbers=("NCHW", "OIHW", "NCHW"), feature_group_count=P)
        loc = loc * s[None, :, None, None] + b[None, :, None, None]
    hs, ws = loc.shape[2], loc.shape[3]
    hw_s = hs * ws
    loc_flat = loc.reshape(B, P, hw_s)

    # ---- fold BNs / biases into matmul weights (eval mode) -----------------
    w_pt = jnp.concatenate([p["s_phi"][:, None] * p["w_phi"],
                            p["s_theta"][:, None] * p["w_theta"]], axis=0)
    b_pt = jnp.concatenate([p["b_phi"], p["b_theta"]], axis=0)[:, None]
    w_adj_s = p["s_adj"][:, None] * p["w_adj"]
    b_adj_row = p["b_adj"][None, :]
    w_wg_s = p["s_wg"][:, None] * p["w_wg"]
    b_wg_col = p["b_wg"][:, None]
    w_c3_s = p["s_c3"][:, None] * p["w_c3"]
    b_c3_col = p["b_c3"][:, None]

    sg = p["sgcn"]
    wqkv = jnp.concatenate([sg["w_q"], sg["w_k"], sg["w_v"]], axis=0)
    bqkv = jnp.concatenate([sg["b_q"], sg["b_k"], sg["b_v"]], axis=0)[:, None]
    wwg_sg = sg["s_wg"][:, None] * sg["w_wg"]
    bwg_sg = sg["b_wg"][:, None]
    wout_sg = sg["s_out"][:, None] * sg["w_out"]
    bout_sg = (sg["s_out"] * sg["bc_out"] + sg["b_out"])[:, None]

    wgt = _bilinear_matrix(hs, ws, H, W)                  # (hw_s, HW)
    wfin_s = p["s_fin"][:, None] * p["w_fin"]             # (P, 2P)
    bfin = p["b_fin"][:, None]

    out_flat = _dualgcn_fused_pallas(
        x_flat, loc_flat, w_pt, b_pt, w_adj_s, b_adj_row, w_wg_s, b_wg_col,
        w_c3_s, b_c3_col, wqkv, bqkv, wwg_sg, bwg_sg, wout_sg, bout_sg,
        wgt, wfin_s, bfin, Pr, c)
    return out_flat.reshape(B, P, H, W)


# --------------------------------------------------------------------------- #
# parameter init (deterministic) with eval-mode BN folding
# --------------------------------------------------------------------------- #

class _KeyGen:
    def __init__(self, key):
        self.key = key

    def __call__(self):
        self.key, sub = jax.random.split(self.key)
        return sub


def init_params(key, planes, ratio=4):
    Pr = planes // ratio
    inter = planes // 2
    kg = _KeyGen(key)

    def w2d(cout, cin):
        return jax.random.normal(kg(), (cout, cin), jnp.float32) / (cin ** 0.5)

    def wdw(ch):
        return jax.random.normal(kg(), (ch, 1, 3, 3), jnp.float32) / 3.0

    def bias(cc):
        return 0.1 * jax.random.normal(kg(), (cc,), jnp.float32)

    def bn_fold(cc):
        gamma = 1.0 + 0.1 * jax.random.normal(kg(), (cc,), jnp.float32)
        beta = 0.1 * jax.random.normal(kg(), (cc,), jnp.float32)
        mean = 0.1 * jax.random.normal(kg(), (cc,), jnp.float32)
        var = jax.random.uniform(kg(), (cc,), jnp.float32, minval=0.5, maxval=1.5)
        s = gamma * lax.rsqrt(var + 1e-5)
        return s, beta - s * mean

    p = {}
    p["w_phi"] = w2d(2 * Pr, planes); p["s_phi"], p["b_phi"] = bn_fold(2 * Pr)
    p["w_theta"] = w2d(Pr, planes); p["s_theta"], p["b_theta"] = bn_fold(Pr)
    p["w_adj"] = w2d(Pr, Pr); p["s_adj"], p["b_adj"] = bn_fold(Pr)
    p["w_wg"] = w2d(2 * Pr, 2 * Pr); p["s_wg"], p["b_wg"] = bn_fold(2 * Pr)
    p["w_c3"] = w2d(planes, 2 * Pr); p["s_c3"], p["b_c3"] = bn_fold(planes)
    p["local"] = []
    for _ in range(3):
        w_dw = wdw(planes)
        s, b = bn_fold(planes)
        p["local"].append((w_dw, s, b))
    p["w_fin"] = w2d(planes, 2 * planes); p["s_fin"], p["b_fin"] = bn_fold(planes)

    sg = {}
    sg["w_q"] = w2d(inter, planes); sg["b_q"] = bias(inter)
    sg["w_k"] = w2d(inter, planes); sg["b_k"] = bias(inter)
    sg["w_v"] = w2d(inter, planes); sg["b_v"] = bias(inter)
    sg["w_wg"] = w2d(inter, inter); sg["s_wg"], sg["b_wg"] = bn_fold(inter)
    sg["w_out"] = w2d(planes, inter); sg["bc_out"] = bias(planes)
    sg["s_out"], sg["b_out"] = bn_fold(planes)
    p["sgcn"] = sg
    return p


# --------------------------------------------------------------------------- #
# pure-JAX reference (mirrors the torch graph op-for-op, eval-mode BN)
# --------------------------------------------------------------------------- #

def _sgcn_reference(x, sg):
    B, P, h, w = x.shape
    hw = h * w
    xm = x.reshape(B, P, hw)
    q = jnp.einsum("oc,bcn->bon", sg["w_q"], xm) + sg["b_q"][None, :, None]
    k = jnp.einsum("oc,bcn->bon", sg["w_k"], xm) + sg["b_k"][None, :, None]
    v = jnp.einsum("oc,bcn->bon", sg["w_v"], xm) + sg["b_v"][None, :, None]
    K = jnp.swapaxes(k, 1, 2)
    V = jnp.swapaxes(v, 1, 2)
    av = jnp.einsum("bcn,bnd->bcd", q, V)
    av = jax.nn.softmax(av, axis=2)
    av = jnp.einsum("bnc,bcd->bnd", K, av)
    av = jnp.swapaxes(av, 1, 2)
    av = jnp.einsum("oi,bin->bon", sg["w_wg"], av)
    av = av * sg["s_wg"][None, :, None] + sg["b_wg"][None, :, None]
    out = jnp.einsum("oc,bcn->bon", sg["w_out"], av) + sg["bc_out"][None, :, None]
    out = out * sg["s_out"][None, :, None] + sg["b_out"][None, :, None]
    return jnp.maximum(out.reshape(B, P, h, w) + x, 0.0)


def reference_forward(x, p, ratio=4):
    B, P, H, W = x.shape
    Pr = P // ratio
    loc = x
    for w_dw, s, b in p["local"]:
        loc = lax.conv_general_dilated(
            loc, w_dw, (2, 2), ((1, 1), (1, 1)),
            dimension_numbers=("NCHW", "OIHW", "NCHW"), feature_group_count=P)
        loc = loc * s[None, :, None, None] + b[None, :, None, None]
    loc = _sgcn_reference(loc, p["sgcn"])
    hs, ws = loc.shape[2], loc.shape[3]
    M = _bilinear_matrix(hs, ws, H, W)
    loc_up = jnp.einsum("bcs,sn->bcn", loc.reshape(B, P, hs * ws), M)
    loc_up = loc_up.reshape(B, P, H, W)
    slf = x * loc_up + x

    x_sqz = jnp.einsum("oc,bchw->bohw", p["w_phi"], x)
    x_sqz = x_sqz * p["s_phi"][None, :, None, None] + p["b_phi"][None, :, None, None]
    bth = jnp.einsum("oc,bchw->bohw", p["w_theta"], x)
    bth = bth * p["s_theta"][None, :, None, None] + p["b_theta"][None, :, None, None]
    x_sqz = x_sqz.reshape(B, 2 * Pr, H * W)
    bth = bth.reshape(B, Pr, H * W)
    z_idt = jnp.einsum("bon,bpn->bop", x_sqz, bth)
    z = jnp.swapaxes(z_idt, 1, 2)
    z = jnp.einsum("oi,bil->bol", p["w_adj"], z)
    z = z * p["s_adj"][None, :, None] + p["b_adj"][None, :, None]
    z = jnp.swapaxes(z, 1, 2) + z_idt
    z = jnp.einsum("oi,bil->bol", p["w_wg"], z)
    z = z * p["s_wg"][None, :, None] + p["b_wg"][None, :, None]
    y = jnp.einsum("bop,bpn->bon", z, bth)
    y = jnp.einsum("po,bon->bpn", p["w_c3"], y)
    y = y * p["s_c3"][None, :, None] + p["b_c3"][None, :, None]
    y = y.reshape(B, P, H, W)
    g = jnp.maximum(x + y, 0.0)
    cat = jnp.concatenate([slf, g], axis=1)
    out = jnp.einsum("oc,bchw->bohw", p["w_fin"], cat)
    out = out * p["s_fin"][None, :, None, None] + p["b_fin"][None, :, None, None]
    return out


# --------------------------------------------------------------------------- #
# main
# --------------------------------------------------------------------------- #

if __name__ == "__main__":
    B, planes, H, W = 2, 16, 16, 16
    key = jax.random.PRNGKey(0)
    kx, kp = jax.random.split(key)
    x = jax.random.normal(kx, (B, planes, H, W), jnp.float32)
    params = init_params(kp, planes, ratio=4)

    out = jax.jit(dualgcn_forward)(x, params)
    out = jax.block_until_ready(out)

    ref = reference_forward(x, params)
    assert out.shape == (B, planes, H, W)
    rel_err = float(jnp.max(jnp.abs(out - ref)) /
                    jnp.maximum(jnp.max(jnp.abs(ref)), 1.0))
    assert rel_err < 2e-3, f"relative error too large: {rel_err}"
    print("KERNEL_OK")
</pallas_src>

<mosaic_0001>
module attributes {stable_mosaic.version = 11 : i64} {
  func.func @kernel(%arg0: i32, %arg1: memref<1x16x256xf32, #tpu.memory_space<vmem>>, %arg2: memref<1x16x4xf32, #tpu.memory_space<vmem>>, %arg3: memref<12x16xf32, #tpu.memory_space<vmem>>, %arg4: memref<12x1xf32, #tpu.memory_space<vmem>>, %arg5: memref<4x4xf32, #tpu.memory_space<vmem>>, %arg6: memref<1x4xf32, #tpu.memory_space<vmem>>, %arg7: memref<8x8xf32, #tpu.memory_space<vmem>>, %arg8: memref<8x1xf32, #tpu.memory_space<vmem>>, %arg9: memref<16x8xf32, #tpu.memory_space<vmem>>, %arg10: memref<16x1xf32, #tpu.memory_space<vmem>>, %arg11: memref<24x16xf32, #tpu.memory_space<vmem>>, %arg12: memref<24x1xf32, #tpu.memory_space<vmem>>, %arg13: memref<8x8xf32, #tpu.memory_space<vmem>>, %arg14: memref<8x1xf32, #tpu.memory_space<vmem>>, %arg15: memref<16x8xf32, #tpu.memory_space<vmem>>, %arg16: memref<16x1xf32, #tpu.memory_space<vmem>>, %arg17: memref<4x256xf32, #tpu.memory_space<vmem>>, %arg18: memref<16x32xf32, #tpu.memory_space<vmem>>, %arg19: memref<16x1xf32, #tpu.memory_space<vmem>>, %arg20: memref<1x16x256xf32, #tpu.memory_space<vmem>>, %arg21: memref<32x256xf32, #tpu.memory_space<vmem>>) attributes {dimension_semantics = [#tpu.dimension_semantics<parallel>], iteration_bounds = array<i64: 2>, scalar_prefetch = 0 : i64, scratch_operands = 1 : i64, tpu.core_type = #tpu.core_type<tc>, window_params = [{transform_indices = @transform_0, window_bounds = array<i64: 1, 16, 256>}, {transform_indices = @transform_1, window_bounds = array<i64: 1, 16, 4>}, {pipeline_mode = #tpu.pipeline_mode<synchronous>, transform_indices = @transform_2, window_bounds = array<i64: 12, 16>}, {pipeline_mode = #tpu.pipeline_mode<synchronous>, transform_indices = @transform_3, window_bounds = array<i64: 12, 1>}, {pipeline_mode = #tpu.pipeline_mode<synchronous>, transform_indices = @transform_4, window_bounds = array<i64: 4, 4>}, {pipeline_mode = #tpu.pipeline_mode<synchronous>, transform_indices = @transform_5, window_bounds = array<i64: 1, 4>}, {pipeline_mode = #tpu.pipeline_mode<synchronous>, transform_indices = @transform_6, window_bounds = array<i64: 8, 8>}, {pipeline_mode = #tpu.pipeline_mode<synchronous>, transform_indices = @transform_7, window_bounds = array<i64: 8, 1>}, {pipeline_mode = #tpu.pipeline_mode<synchronous>, transform_indices = @transform_8, window_bounds = array<i64: 16, 8>}, {pipeline_mode = #tpu.pipeline_mode<synchronous>, transform_indices = @transform_9, window_bounds = array<i64: 16, 1>}, {pipeline_mode = #tpu.pipeline_mode<synchronous>, transform_indices = @transform_10, window_bounds = array<i64: 24, 16>}, {pipeline_mode = #tpu.pipeline_mode<synchronous>, transform_indices = @transform_11, window_bounds = array<i64: 24, 1>}, {pipeline_mode = #tpu.pipeline_mode<synchronous>, transform_indices = @transform_12, window_bounds = array<i64: 8, 8>}, {pipeline_mode = #tpu.pipeline_mode<synchronous>, transform_indices = @transform_13, window_bounds = array<i64: 8, 1>}, {pipeline_mode = #tpu.pipeline_mode<synchronous>, transform_indices = @transform_14, window_bounds = array<i64: 16, 8>}, {pipeline_mode = #tpu.pipeline_mode<synchronous>, transform_indices = @transform_15, window_bounds = array<i64: 16, 1>}, {pipeline_mode = #tpu.pipeline_mode<synchronous>, transform_indices = @transform_16, window_bounds = array<i64: 4, 256>}, {pipeline_mode = #tpu.pipeline_mode<synchronous>, transform_indices = @transform_17, window_bounds = array<i64: 16, 32>}, {pipeline_mode = #tpu.pipeline_mode<synchronous>, transform_indices = @transform_18, window_bounds = array<i64: 16, 1>}, {transform_indices = @transform_19, window_bounds = array<i64: 1, 16, 256>}]} {
    %c0 = arith.constant 0 : index
    %c0_0 = arith.constant 0 : index
    %c0_1 = arith.constant 0 : index
    %0 = vector.load %arg1[%c0, %c0_0, %c0_1] : memref<1x16x256xf32, #tpu.memory_space<vmem>>, vector<1x16x256xf32>
    %1 = vector.shape_cast %0 : vector<1x16x256xf32> to vector<16x256xf32>
    %c0_2 = arith.constant 0 : index
    %c0_3 = arith.constant 0 : index
    %c0_4 = arith.constant 0 : index
    %2 = vector.load %arg2[%c0_2, %c0_3, %c0_4] : memref<1x16x4xf32, #tpu.memory_space<vmem>>, vector<1x16x4xf32>
    %3 = vector.shape_cast %2 : vector<1x16x4xf32> to vector<16x4xf32>
    %c0_5 = arith.constant 0 : index
    %c0_6 = arith.constant 0 : index
    %4 = vector.load %arg11[%c0_5, %c0_6] : memref<24x16xf32, #tpu.memory_space<vmem>>, vector<24x16xf32>
    %cst = arith.constant dense<0.000000e+00> : vector<24x4xf32>
    %5 = tpu.matmul %4, %3, %cst {dimension_numbers = #tpu.dot_dimension_numbers<[1], [0], [0], [1], [0, 0, 1, 1], [], []>, precision = #tpu.contract_precision<fp32>} : vector<24x16xf32>, vector<16x4xf32>, vector<24x4xf32> -> vector<24x4xf32>
    %c0_7 = arith.constant 0 : index
    %c0_8 = arith.constant 0 : index
    %6 = vector.load %arg12[%c0_7, %c0_8] : memref<24x1xf32, #tpu.memory_space<vmem>>, vector<24x1xf32>
    %7 = vector.broadcast %6 : vector<24x1xf32> to vector<24x4xf32>
    %8 = arith.addf %5, %7 : vector<24x4xf32>
    %9 = vector.extract_strided_slice %8 {offsets = [0, 0], sizes = [8, 4], strides = [1, 1]} : vector<24x4xf32> to vector<8x4xf32>
    %10 = vector.extract_strided_slice %8 {offsets = [8, 0], sizes = [8, 4], strides = [1, 1]} : vector<24x4xf32> to vector<8x4xf32>
    %11 = vector.extract_strided_slice %8 {offsets = [16, 0], sizes = [8, 4], strides = [1, 1]} : vector<24x4xf32> to vector<8x4xf32>
    %cst_9 = arith.constant dense<0.000000e+00> : vector<8x8xf32>
    %12 = tpu.matmul %11, %9, %cst_9 {dimension_numbers = #tpu.dot_dimension_numbers<[1], [1], [0], [0], [0, 0, 1, 0], [], []>, precision = #tpu.contract_precision<fp32>} : vector<8x4xf32>, vector<8x4xf32>, vector<8x8xf32> -> vector<8x8xf32>
    %cst_10 = arith.constant dense<0xFF800000> : vector<8xf32>
    %13 = vector.multi_reduction <maximumf>, %12, %cst_10 [0] : vector<8x8xf32> to vector<8xf32>
    %14 = vector.shape_cast %13 : vector<8xf32> to vector<1x8xf32>
    %15 = vector.broadcast %14 : vector<1x8xf32> to vector<8x8xf32>
    %16 = arith.subf %12, %15 : vector<8x8xf32>
    %17 = math.exp %16 : vector<8x8xf32>
    %cst_11 = arith.constant dense<0.000000e+00> : vector<8xf32>
    %18 = vector.multi_reduction <add>, %17, %cst_11 [0] : vector<8x8xf32> to vector<8xf32>
    %19 = vector.shape_cast %18 : vector<8xf32> to vector<1x8xf32>
    %20 = vector.broadcast %19 : vector<1x8xf32> to vector<8x8xf32>
    %21 = arith.divf %17, %20 : vector<8x8xf32>
    %cst_12 = arith.constant dense<0.000000e+00> : vector<8x4xf32>
    %22 = tpu.matmul %21, %10, %cst_12 {dimension_numbers = #tpu.dot_dimension_numbers<[1], [0], [0], [1], [0, 0, 1, 1], [], []>, precision = #tpu.contract_precision<fp32>} : vector<8x8xf32>, vector<8x4xf32>, vector<8x4xf32> -> vector<8x4xf32>
    %c0_13 = arith.constant 0 : index
    %c0_14 = arith.constant 0 : index
    %23 = vector.load %arg13[%c0_13, %c0_14] : memref<8x8xf32, #tpu.memory_space<vmem>>, vector<8x8xf32>
    %cst_15 = arith.constant dense<0.000000e+00> : vector<8x4xf32>
    %24 = tpu.matmul %23, %22, %cst_15 {dimension_numbers = #tpu.dot_dimension_numbers<[1], [0], [0], [1], [0, 0, 1, 1], [], []>, precision = #tpu.contract_precision<fp32>} : vector<8x8xf32>, vector<8x4xf32>, vector<8x4xf32> -> vector<8x4xf32>
    %c0_16 = arith.constant 0 : index
    %c0_17 = arith.constant 0 : index
    %25 = vector.load %arg14[%c0_16, %c0_17] : memref<8x1xf32, #tpu.memory_space<vmem>>, vector<8x1xf32>
    %26 = vector.broadcast %25 : vector<8x1xf32> to vector<8x4xf32>
    %27 = arith.addf %24, %26 : vector<8x4xf32>
    %c0_18 = arith.constant 0 : index
    %c0_19 = arith.constant 0 : index
    %28 = vector.load %arg15[%c0_18, %c0_19] : memref<16x8xf32, #tpu.memory_space<vmem>>, vector<16x8xf32>
    %cst_20 = arith.constant dense<0.000000e+00> : vector<16x4xf32>
    %29 = tpu.matmul %28, %27, %cst_20 {dimension_numbers = #tpu.dot_dimension_numbers<[1], [0], [0], [1], [0, 0, 1, 1], [], []>, precision = #tpu.contract_precision<fp32>} : vector<16x8xf32>, vector<8x4xf32>, vector<16x4xf32> -> vector<16x4xf32>
    %c0_21 = arith.constant 0 : index
    %c0_22 = arith.constant 0 : index
    %30 = vector.load %arg16[%c0_21, %c0_22] : memref<16x1xf32, #tpu.memory_space<vmem>>, vector<16x1xf32>
    %31 = vector.broadcast %30 : vector<16x1xf32> to vector<16x4xf32>
    %32 = arith.addf %29, %31 : vector<16x4xf32>
    %33 = arith.addf %32, %3 : vector<16x4xf32>
    %cst_23 = arith.constant 0.000000e+00 : f32
    %34 = vector.broadcast %cst_23 : f32 to vector<16x4xf32>
    %35 = arith.maximumf %33, %34 : vector<16x4xf32>
    %c0_24 = arith.constant 0 : index
    %c0_25 = arith.constant 0 : index
    %36 = vector.load %arg3[%c0_24, %c0_25] : memref<12x16xf32, #tpu.memory_space<vmem>>, vector<12x16xf32>
    %cst_26 = arith.constant dense<0.000000e+00> : vector<12x256xf32>
    %37 = tpu.matmul %36, %1, %cst_26 {dimension_numbers = #tpu.dot_dimension_numbers<[1], [0], [0], [1], [0, 0, 1, 1], [], []>, precision = #tpu.contract_precision<fp32>} : vector<12x16xf32>, vector<16x256xf32>, vector<12x256xf32> -> vector<12x256xf32>
    %c0_27 = arith.constant 0 : index
    %c0_28 = arith.constant 0 : index
    %38 = vector.load %arg4[%c0_27, %c0_28] : memref<12x1xf32, #tpu.memory_space<vmem>>, vector<12x1xf32>
    %39 = vector.broadcast %38 : vector<12x1xf32> to vector<12x256xf32>
    %40 = arith.addf %37, %39 : vector<12x256xf32>
    %41 = vector.extract_strided_slice %40 {offsets = [0, 0], sizes = [8, 256], strides = [1, 1]} : vector<12x256xf32> to vector<8x256xf32>
    %42 = vector.extract_strided_slice %40 {offsets = [8, 0], sizes = [4, 256], strides = [1, 1]} : vector<12x256xf32> to vector<4x256xf32>
    %cst_29 = arith.constant dense<0.000000e+00> : vector<8x4xf32>
    %43 = tpu.matmul %41, %42, %cst_29 {dimension_numbers = #tpu.dot_dimension_numbers<[1], [1], [0], [0], [0, 0, 1, 0], [], []>, precision = #tpu.contract_precision<fp32>} : vector<8x256xf32>, vector<4x256xf32>, vector<8x4xf32> -> vector<8x4xf32>
    %c0_30 = arith.constant 0 : index
    %c0_31 = arith.constant 0 : index
    %44 = vector.load %arg5[%c0_30, %c0_31] : memref<4x4xf32, #tpu.memory_space<vmem>>, vector<4x4xf32>
    %cst_32 = arith.constant dense<0.000000e+00> : vector<8x4xf32>
    %45 = tpu.matmul %43, %44, %cst_32 {dimension_numbers = #tpu.dot_dimension_numbers<[1], [1], [0], [0], [0, 0, 1, 0], [], []>, precision = #tpu.contract_precision<fp32>} : vector<8x4xf32>, vector<4x4xf32>, vector<8x4xf32> -> vector<8x4xf32>
    %c0_33 = arith.constant 0 : index
    %c0_34 = arith.constant 0 : index
    %46 = vector.load %arg6[%c0_33, %c0_34] : memref<1x4xf32, #tpu.memory_space<vmem>>, vector<1x4xf32>
    %47 = vector.broadcast %46 : vector<1x4xf32> to vector<8x4xf32>
    %48 = arith.addf %45, %47 : vector<8x4xf32>
    %49 = arith.addf %48, %43 : vector<8x4xf32>
    %c0_35 = arith.constant 0 : index
    %c0_36 = arith.constant 0 : index
    %50 = vector.load %arg7[%c0_35, %c0_36] : memref<8x8xf32, #tpu.memory_space<vmem>>, vector<8x8xf32>
    %cst_37 = arith.constant dense<0.000000e+00> : vector<8x4xf32>
    %51 = tpu.matmul %50, %49, %cst_37 {dimension_numbers = #tpu.dot_dimension_numbers<[1], [0], [0], [1], [0, 0, 1, 1], [], []>, precision = #tpu.contract_precision<fp32>} : vector<8x8xf32>, vector<8x4xf32>, vector<8x4xf32> -> vector<8x4xf32>
    %c0_38 = arith.constant 0 : index
    %c0_39 = arith.constant 0 : index
    %52 = vector.load %arg8[%c0_38, %c0_39] : memref<8x1xf32, #tpu.memory_space<vmem>>, vector<8x1xf32>
    %53 = vector.broadcast %52 : vector<8x1xf32> to vector<8x4xf32>
    %54 = arith.addf %51, %53 : vector<8x4xf32>
    %c0_40 = arith.constant 0 : index
    %c0_41 = arith.constant 0 : index
    %55 = vector.load %arg9[%c0_40, %c0_41] : memref<16x8xf32, #tpu.memory_space<vmem>>, vector<16x8xf32>
    %cst_42 = arith.constant dense<0.000000e+00> : vector<16x4xf32>
    %56 = tpu.matmul %55, %54, %cst_42 {dimension_numbers = #tpu.dot_dimension_numbers<[1], [0], [0], [1], [0, 0, 1, 1], [], []>, precision = #tpu.contract_precision<fp32>} : vector<16x8xf32>, vector<8x4xf32>, vector<16x4xf32> -> vector<16x4xf32>
    %cst_43 = arith.constant dense<0.000000e+00> : vector<16x256xf32>
    %57 = tpu.matmul %56, %42, %cst_43 {dimension_numbers = #tpu.dot_dimension_numbers<[1], [0], [0], [1], [0, 0, 1, 1], [], []>, precision = #tpu.contract_precision<fp32>} : vector<16x4xf32>, vector<4x256xf32>, vector<16x256xf32> -> vector<16x256xf32>
    %c0_44 = arith.constant 0 : index
    %c0_45 = arith.constant 0 : index
    %58 = vector.load %arg10[%c0_44, %c0_45] : memref<16x1xf32, #tpu.memory_space<vmem>>, vector<16x1xf32>
    %59 = vector.broadcast %58 : vector<16x1xf32> to vector<16x256xf32>
    %60 = arith.addf %57, %59 : vector<16x256xf32>
    %61 = arith.addf %1, %60 : vector<16x256xf32>
    %cst_46 = arith.constant 0.000000e+00 : f32
    %62 = vector.broadcast %cst_46 : f32 to vector<16x256xf32>
    %63 = arith.maximumf %61, %62 : vector<16x256xf32>
    %c0_47 = arith.constant 0 : index
    %c0_48 = arith.constant 0 : index
    %64 = vector.load %arg17[%c0_47, %c0_48] : memref<4x256xf32, #tpu.memory_space<vmem>>, vector<4x256xf32>
    %cst_49 = arith.constant dense<0.000000e+00> : vector<16x256xf32>
    %65 = tpu.matmul %35, %64, %cst_49 {dimension_numbers = #tpu.dot_dimension_numbers<[1], [0], [0], [1], [0, 0, 1, 1], [], []>, precision = #tpu.contract_precision<fp32>} : vector<16x4xf32>, vector<4x256xf32>, vector<16x256xf32> -> vector<16x256xf32>
    %66 = arith.mulf %1, %65 : vector<16x256xf32>
    %67 = arith.addf %66, %1 : vector<16x256xf32>
    %c0_50 = arith.constant 0 : index
    %c0_51 = arith.constant 0 : index
    %68 = vector.load %arg21[%c0_50, %c0_51] : memref<32x256xf32, #tpu.memory_space<vmem>>, vector<16x256xf32>
    tpu.vector_store %arg21[%c0_50, %c0_51], %67 {strides = array<i32>} : memref<32x256xf32, #tpu.memory_space<vmem>>, vector<16x256xf32>,
    %c16 = arith.constant 16 : index
    %c0_52 = arith.constant 0 : index
    %69 = vector.load %arg21[%c16, %c0_52] : memref<32x256xf32, #tpu.memory_space<vmem>>, vector<16x256xf32>
    tpu.vector_store %arg21[%c16, %c0_52], %63 {strides = array<i32>} : memref<32x256xf32, #tpu.memory_space<vmem>>, vector<16x256xf32>,
    %c0_53 = arith.constant 0 : index
    %c0_54 = arith.constant 0 : index
    %70 = vector.load %arg18[%c0_53, %c0_54] : memref<16x32xf32, #tpu.memory_space<vmem>>, vector<16x32xf32>
    %c0_55 = arith.constant 0 : index
    %c0_56 = arith.constant 0 : index
    %71 = vector.load %arg21[%c0_55, %c0_56] : memref<32x256xf32, #tpu.memory_space<vmem>>, vector<32x256xf32>
    %cst_57 = arith.constant dense<0.000000e+00> : vector<16x256xf32>
    %72 = tpu.matmul %70, %71, %cst_57 {dimension_numbers = #tpu.dot_dimension_numbers<[1], [0], [0], [1], [0, 0, 1, 1], [], []>, precision = #tpu.contract_precision<fp32>} : vector<16x32xf32>, vector<32x256xf32>, vector<16x256xf32> -> vector<16x256xf32>
    %c0_58 = arith.constant 0 : index
    %c0_59 = arith.constant 0 : index
    %73 = vector.load %arg19[%c0_58, %c0_59] : memref<16x1xf32, #tpu.memory_space<vmem>>, vector<16x1xf32>
    %74 = vector.broadcast %73 : vector<16x1xf32> to vector<16x256xf32>
    %75 = arith.addf %72, %74 : vector<16x256xf32>
    %c0_60 = arith.constant 0 : index
    %c0_61 = arith.constant 0 : index
    %c0_62 = arith.constant 0 : index
    %76 = vector.load %arg20[%c0_60, %c0_61, %c0_62] : memref<1x16x256xf32, #tpu.memory_space<vmem>>, vector<1x16x256xf32>
    %77 = vector.shape_cast %76 : vector<1x16x256xf32> to vector<16x256xf32>
    %78 = vector.shape_cast %75 : vector<16x256xf32> to vector<1x16x256xf32>
    tpu.vector_store %arg20[%c0_60, %c0_61, %c0_62], %78 {strides = array<i32>} : memref<1x16x256xf32, #tpu.memory_space<vmem>>, vector<1x16x256xf32>,
    return
  }
  func.func @transform_0(%arg0: i32) -> (i32, i32, i32) {
    %c0_i32 = arith.constant 0 : i32
    %c0_i32_0 = arith.constant 0 : i32
    %c0_i32_1 = arith.constant 0 : i32
    return %arg0, %c0_i32, %c0_i32_0 : i32, i32, i32
  }
  func.func @transform_1(%arg0: i32) -> (i32, i32, i32) {
    %c0_i32 = arith.constant 0 : i32
    %c0_i32_0 = arith.constant 0 : i32
    %c0_i32_1 = arith.constant 0 : i32
    return %arg0, %c0_i32, %c0_i32_0 : i32, i32, i32
  }
  func.func @transform_2(%arg0: i32) -> (i32, i32) {
    %c0_i32 = arith.constant 0 : i32
    %c0_i32_0 = arith.constant 0 : i32
    %c0_i32_1 = arith.constant 0 : i32
    return %c0_i32, %c0_i32_0 : i32, i32
  }
  func.func @transform_3(%arg0: i32) -> (i32, i32) {
    %c0_i32 = arith.constant 0 : i32
    %c0_i32_0 = arith.constant 0 : i32
    %c0_i32_1 = arith.constant 0 : i32
    return %c0_i32, %c0_i32_0 : i32, i32
  }
  func.func @transform_4(%arg0: i32) -> (i32, i32) {
    %c0_i32 = arith.constant 0 : i32
    %c0_i32_0 = arith.constant 0 : i32
    %c0_i32_1 = arith.constant 0 : i32
    return %c0_i32, %c0_i32_0 : i32, i32
  }
  func.func @transform_5(%arg0: i32) -> (i32, i32) {
    %c0_i32 = arith.constant 0 : i32
    %c0_i32_0 = arith.constant 0 : i32
    %c0_i32_1 = arith.constant 0 : i32
    return %c0_i32, %c0_i32_0 : i32, i32
  }
  func.func @transform_6(%arg0: i32) -> (i32, i32) {
    %c0_i32 = arith.constant 0 : i32
    %c0_i32_0 = arith.constant 0 : i32
    %c0_i32_1 = arith.constant 0 : i32
    return %c0_i32, %c0_i32_0 : i32, i32
  }
  func.func @transform_7(%arg0: i32) -> (i32, i32) {
    %c0_i32 = arith.constant 0 : i32
    %c0_i32_0 = arith.constant 0 : i32
    %c0_i32_1 = arith.constant 0 : i32
    return %c0_i32, %c0_i32_0 : i32, i32
  }
  func.func @transform_8(%arg0: i32) -> (i32, i32) {
    %c0_i32 = arith.constant 0 : i32
    %c0_i32_0 = arith.constant 0 : i32
    %c0_i32_1 = arith.constant 0 : i32
    return %c0_i32, %c0_i32_0 : i32, i32
  }
  func.func @transform_9(%arg0: i32) -> (i32, i32) {
    %c0_i32 = arith.constant 0 : i32
    %c0_i32_0 = arith.constant 0 : i32
    %c0_i32_1 = arith.constant 0 : i32
    return %c0_i32, %c0_i32_0 : i32, i32
  }
  func.func @transform_10(%arg0: i32) -> (i32, i32) {
    %c0_i32 = arith.constant 0 : i32
    %c0_i32_0 = arith.constant 0 : i32
    %c0_i32_1 = arith.constant 0 : i32
    return %c0_i32, %c0_i32_0 : i32, i32
  }
  func.func @transform_11(%arg0: i32) -> (i32, i32) {
    %c0_i32 = arith.constant 0 : i32
    %c0_i32_0 = arith.constant 0 : i32
    %c0_i32_1 = arith.constant 0 : i32
    return %c0_i32, %c0_i32_0 : i32, i32
  }
  func.func @transform_12(%arg0: i32) -> (i32, i32) {
    %c0_i32 = arith.constant 0 : i32
    %c0_i32_0 = arith.constant 0 : i32
    %c0_i32_1 = arith.constant 0 : i32
    return %c0_i32, %c0_i32_0 : i32, i32
  }
  func.func @transform_13(%arg0: i32) -> (i32, i32) {
    %c0_i32 = arith.constant 0 : i32
    %c0_i32_0 = arith.constant 0 : i32
    %c0_i32_1 = arith.constant 0 : i32
    return %c0_i32, %c0_i32_0 : i32, i32
  }
  func.func @transform_14(%arg0: i32) -> (i32, i32) {
    %c0_i32 = arith.constant 0 : i32
    %c0_i32_0 = arith.constant 0 : i32
    %c0_i32_1 = arith.constant 0 : i32
    return %c0_i32, %c0_i32_0 : i32, i32
  }
  func.func @transform_15(%arg0: i32) -> (i32, i32) {
    %c0_i32 = arith.constant 0 : i32
    %c0_i32_0 = arith.constant 0 : i32
    %c0_i32_1 = arith.constant 0 : i32
    return %c0_i32, %c0_i32_0 : i32, i32
  }
  func.func @transform_16(%arg0: i32) -> (i32, i32) {
    %c0_i32 = arith.constant 0 : i32
    %c0_i32_0 = arith.constant 0 : i32
    %c0_i32_1 = arith.constant 0 : i32
    return %c0_i32, %c0_i32_0 : i32, i32
  }
  func.func @transform_17(%arg0: i32) -> (i32, i32) {
    %c0_i32 = arith.constant 0 : i32
    %c0_i32_0 = arith.constant 0 : i32
    %c0_i32_1 = arith.constant 0 : i32
    return %c0_i32, %c0_i32_0 : i32, i32
  }
  func.func @transform_18(%arg0: i32) -> (i32, i32) {
    %c0_i32 = arith.constant 0 : i32
    %c0_i32_0 = arith.constant 0 : i32
    %c0_i32_1 = arith.constant 0 : i32
    return %c0_i32, %c0_i32_0 : i32, i32
  }
  func.func @transform_19(%arg0: i32) -> (i32, i32, i32) {
    %c0_i32 = arith.constant 0 : i32
    %c0_i32_0 = arith.constant 0 : i32
    %c0_i32_1 = arith.constant 0 : i32
    return %arg0, %c0_i32, %c0_i32_0 : i32, i32, i32
  }
}

</mosaic_0001>

<llo_original>
// kernel: dualgcn_forward.1
$region0: #{dualgcn_forward.1}
  #allocation0 [shape = 'u32[]', space=smem, size = 0x4, offset = 0x4, fixed_abs, tag = 'smem constant byte address 0x4 - core index']
  #allocation1 [shape = 'u32[144,128]{1,0:T(1,128)}', space=vmem, size = 0x12000, scoped, tag = 'internal scratch']
  #allocation2 [shape = 'f32[32,256]{1,0:T(8,128)}', space=vmem, size = 0x8000, scoped, tag = 'scratch operand']
  %s0 = inlined_call_operand.vmem [shape: f32[2,16,256], index: 0, kind: input, shape index: {}]
  %s1 = inlined_call_operand.vmem [shape: f32[2,16,4], index: 1, kind: input, shape index: {}]
  %s2 = inlined_call_operand.vmem [shape: f32[12,16], index: 2, kind: input, shape index: {}]
  %s3 = inlined_call_operand.vmem [shape: f32[12,1], index: 3, kind: input, shape index: {}]
  %s4 = inlined_call_operand.vmem [shape: f32[4,4], index: 4, kind: input, shape index: {}]
  %s5 = inlined_call_operand.vmem [shape: f32[1,4], index: 5, kind: input, shape index: {}]
  %s6 = inlined_call_operand.vmem [shape: f32[8,8], index: 6, kind: input, shape index: {}]
  %s7 = inlined_call_operand.vmem [shape: f32[8,1], index: 7, kind: input, shape index: {}]
  %s8 = inlined_call_operand.vmem [shape: f32[16,8], index: 8, kind: input, shape index: {}]
  %s9 = inlined_call_operand.vmem [shape: f32[16,1], index: 9, kind: input, shape index: {}]
  %s10 = inlined_call_operand.vmem [shape: f32[24,16], index: 10, kind: input, shape index: {}]
  %s11 = inlined_call_operand.vmem [shape: f32[24,1], index: 11, kind: input, shape index: {}]
  %s12 = inlined_call_operand.vmem [shape: f32[8,8], index: 12, kind: input, shape index: {}]
  %s13 = inlined_call_operand.vmem [shape: f32[8,1], index: 13, kind: input, shape index: {}]
  %s14 = inlined_call_operand.vmem [shape: f32[16,8], index: 14, kind: input, shape index: {}]
  %s15 = inlined_call_operand.vmem [shape: f32[16,1], index: 15, kind: input, shape index: {}]
  %s16 = inlined_call_operand.vmem [shape: f32[4,256], index: 16, kind: input, shape index: {}]
  %s17 = inlined_call_operand.vmem [shape: f32[16,32], index: 17, kind: input, shape index: {}]
  %s18 = inlined_call_operand.vmem [shape: f32[16,1], index: 18, kind: input, shape index: {}]
  %s19 = inlined_call_operand.vmem [shape: f32[2,16,256], index: 19, kind: output, shape index: {}]
  %s20 = sld [smem:[#allocation0]]
  $region109: #{dualgcn_forward.1} parent=0
    _
  %s22 = ssub.s32 1, %s20
  %s23 = scalar_select 0, %s22, %s20
  loop: start=0, step=1, limit=4
  $region2: #{dualgcn_forward.1} parent=0 // loop_pre_header
    _
  $region3: #{dualgcn_forward.1} parent=0 // loop_header
    %s25 = sphi 0, %s29
    %p26 = scmp.ge.s32.totalorder %s25, 4
    %s35 = sphi 0, %s37
    %s38 = sphi 0, %s35
    %s39 = sphi 0, %s38
    %s55 = sphi 0, %s39
    %s61 = sphi 0, %s63
    %s64 = sphi 0, %s61
    %s65 = sphi 0, %s64
    %s81 = sphi 0, %s65
    %s85 = sphi 0, %s85
    %s87 = sphi 0, %s85
    %s88 = sphi 0, %s87
    %s102 = sphi 0, %s88
    %s106 = sphi 0, %s106
    %s108 = sphi 0, %s106
    %s109 = sphi 0, %s108
    %s123 = sphi 0, %s109
    %s127 = sphi 0, %s127
    %s129 = sphi 0, %s127
    %s130 = sphi 0, %s129
    %s144 = sphi 0, %s130
    %s148 = sphi 0, %s148
    %s150 = sphi 0, %s148
    %s151 = sphi 0, %s150
    %s165 = sphi 0, %s151
    %s169 = sphi 0, %s169
    %s171 = sphi 0, %s169
    %s172 = sphi 0, %s171
    %s186 = sphi 0, %s172
    %s190 = sphi 0, %s190
    %s192 = sphi 0, %s190
    %s193 = sphi 0, %s192
    %s207 = sphi 0, %s193
    %s211 = sphi 0, %s211
    %s213 = sphi 0, %s211
    %s214 = sphi 0, %s213
    %s228 = sphi 0, %s214
    %s232 = sphi 0, %s232
    %s234 = sphi 0, %s232
    %s235 = sphi 0, %s234
    %s249 = sphi 0, %s235
    %s253 = sphi 0, %s253
    %s255 = sphi 0, %s253
    %s256 = sphi 0, %s255
    %s270 = sphi 0, %s256
    %s274 = sphi 0, %s274
    %s276 = sphi 0, %s274
    %s277 = sphi 0, %s276
    %s291 = sphi 0, %s277
    %s295 = sphi 0, %s295
    %s297 = sphi 0, %s295
    %s298 = sphi 0, %s297
    %s312 = sphi 0, %s298
    %s316 = sphi 0, %s316
    %s318 = sphi 0, %s316
    %s319 = sphi 0, %s318
    %s333 = sphi 0, %s319
    %s337 = sphi 0, %s337
    %s339 = sphi 0, %s337
    %s340 = sphi 0, %s339
    %s354 = sphi 0, %s340
    %s358 = sphi 0, %s358
    %s360 = sphi 0, %s358
    %s361 = sphi 0, %s360
    %s375 = sphi 0, %s361
    %s379 = sphi 0, %s379
    %s381 = sphi 0, %s379
    %s382 = sphi 0, %s381
    %s396 = sphi 0, %s382
    %s400 = sphi 0, %s400
    %s402 = sphi 0, %s400
    %s403 = sphi 0, %s402
    %s417 = sphi 0, %s403
    %s421 = sphi 0, %s421
    %s423 = sphi 0, %s421
    %s424 = sphi 0, %s423
    %s438 = sphi 0, %s424
    %s444 = sphi 0, %s446
    %s447 = sphi 0, %s444
    %s448 = sphi 0, %s447
    %s464 = sphi 0, %s448
  $region4: #{dualgcn_forward.1} parent=0 // loop_header_branch
    %28 = sbr.rel (%p26) target = $region8
  $region5: #{dualgcn_forward.1} parent=0 // loop_body
    %s30 = ssub.s32 %s25, 1
    %s31 = ssub.s32 %s25, 2
    %s32 = sadd.s32 %s25, 1
    %s33 = ssub.s32 %s25, %s32
    %p34 = scmp.eq.s32.totalorder %s33, 0
    %s36 = sadd.s32 %s35, 1
    %s37 = scalar_select %p34, %s35, %s36
    %p40 = pneg %p34
    %p41 = scmp.eq.s32.totalorder %s25, 1
    %p42 = por %p40, %p41
    %p43 = scmp.ne.s32.totalorder %s35, %s38
    %p44 = scmp.eq.s32.totalorder %s25, 0
    %p45 = por %p43, %p44
    %p46 = scmp.ne.s32.totalorder %s35, %s38
    %p47 = scmp.eq.s32.totalorder %s30, 1
    %p48 = por %p46, %p47
    %p49 = scmp.ne.s32.totalorder %s38, %s39
    %p50 = scmp.eq.s32.totalorder %s30, 0
    %p51 = por %p49, %p50
    %p52 = scmp.ne.s32.totalorder %s38, %s39
    %p53 = scmp.eq.s32.totalorder %s31, 1
    %p54 = por %p52, %p53
    %p56 = scmp.ne.s32.totalorder %s39, %s55
    %p57 = scmp.eq.s32.totalorder %s31, 0
    %p58 = por %p56, %p57
    %s59 = ssub.s32 %s25, %s32
    %p60 = scmp.eq.s32.totalorder %s59, 0
    %s62 = sadd.s32 %s61, 1
    %s63 = scalar_select %p60, %s61, %s62
    %p66 = pneg %p60
    %p67 = scmp.eq.s32.totalorder %s25, 1
    %p68 = por %p66, %p67
    %p69 = scmp.ne.s32.totalorder %s61, %s64
    %p70 = scmp.eq.s32.totalorder %s25, 0
    %p71 = por %p69, %p70
    %p72 = scmp.ne.s32.totalorder %s61, %s64
    %p73 = scmp.eq.s32.totalorder %s30, 1
    %p74 = por %p72, %p73
    %p75 = scmp.ne.s32.totalorder %s64, %s65
    %p76 = scmp.eq.s32.totalorder %s30, 0
    %p77 = por %p75, %p76
    %p78 = scmp.ne.s32.totalorder %s64, %s65
    %p79 = scmp.eq.s32.totalorder %s31, 1
    %p80 = por %p78, %p79
    %p82 = scmp.ne.s32.totalorder %s65, %s81
    %p83 = scmp.eq.s32.totalorder %s31, 0
    %p84 = por %p82, %p83
    %s86 = sadd.s32 %s85, 1
    %p89 = scmp.eq.s32.totalorder %s25, 1
    %p90 = scmp.ne.s32.totalorder %s85, %s87
    %p91 = scmp.eq.s32.totalorder %s25, 0
    %p92 = por %p90, %p91
    %p93 = scmp.ne.s32.totalorder %s85, %s87
    %p94 = scmp.eq.s32.totalorder %s30, 1
    %p95 = por %p93, %p94
    %p96 = scmp.ne.s32.totalorder %s87, %s88
    %p97 = scmp.eq.s32.totalorder %s30, 0
    %p98 = por %p96, %p97
    %p99 = scmp.ne.s32.totalorder %s87, %s88
    %p100 = scmp.eq.s32.totalorder %s31, 1
    %p101 = por %p99, %p100
    %p103 = scmp.ne.s32.totalorder %s88, %s102
    %p104 = scmp.eq.s32.totalorder %s31, 0
    %p105 = por %p103, %p104
    %s107 = sadd.s32 %s106, 1
    %p110 = scmp.eq.s32.totalorder %s25, 1
    %p111 = scmp.ne.s32.totalorder %s106, %s108
    %p112 = scmp.eq.s32.totalorder %s25, 0
    %p113 = por %p111, %p112
    %p114 = scmp.ne.s32.totalorder %s106, %s108
    %p115 = scmp.eq.s32.totalorder %s30, 1
    %p116 = por %p114, %p115
    %p117 = scmp.ne.s32.totalorder %s108, %s109
    %p118 = scmp.eq.s32.totalorder %s30, 0
    %p119 = por %p117, %p118
    %p120 = scmp.ne.s32.totalorder %s108, %s109
    %p121 = scmp.eq.s32.totalorder %s31, 1
    %p122 = por %p120, %p121
    %p124 = scmp.ne.s32.totalorder %s109, %s123
    %p125 = scmp.eq.s32.totalorder %s31, 0
    %p126 = por %p124, %p125
    %s128 = sadd.s32 %s127, 1
    %p131 = scmp.eq.s32.totalorder %s25, 1
    %p132 = scmp.ne.s32.totalorder %s127, %s129
    %p133 = scmp.eq.s32.totalorder %s25, 0
    %p134 = por %p132, %p133
    %p135 = scmp.ne.s32.totalorder %s127, %s129
    %p136 = scmp.eq.s32.totalorder %s30, 1
    %p137 = por %p135, %p136
    %p138 = scmp.ne.s32.totalorder %s129, %s130
    %p139 = scmp.eq.s32.totalorder %s30, 0
    %p140 = por %p138, %p139
    %p141 = scmp.ne.s32.totalorder %s129, %s130
    %p142 = scmp.eq.s32.totalorder %s31, 1
    %p143 = por %p141, %p142
    %p145 = scmp.ne.s32.totalorder %s130, %s144
    %p146 = scmp.eq.s32.totalorder %s31, 0
    %p147 = por %p145, %p146
    %s149 = sadd.s32 %s148, 1
    %p152 = scmp.eq.s32.totalorder %s25, 1
    %p153 = scmp.ne.s32.totalorder %s148, %s150
    %p154 = scmp.eq.s32.totalorder %s25, 0
    %p155 = por %p153, %p154
    %p156 = scmp.ne.s32.totalorder %s148, %s150
    %p157 = scmp.eq.s32.totalorder %s30, 1
    %p158 = por %p156, %p157
    %p159 = scmp.ne.s32.totalorder %s150, %s151
    %p160 = scmp.eq.s32.totalorder %s30, 0
    %p161 = por %p159, %p160
    %p162 = scmp.ne.s32.totalorder %s150, %s151
    %p163 = scmp.eq.s32.totalorder %s31, 1
    %p164 = por %p162, %p163
    %p166 = scmp.ne.s32.totalorder %s151, %s165
    %p167 = scmp.eq.s32.totalorder %s31, 0
    %p168 = por %p166, %p167
    %s170 = sadd.s32 %s169, 1
    %p173 = scmp.eq.s32.totalorder %s25, 1
    %p174 = scmp.ne.s32.totalorder %s169, %s171
    %p175 = scmp.eq.s32.totalorder %s25, 0
    %p176 = por %p174, %p175
    %p177 = scmp.ne.s32.totalorder %s169, %s171
    %p178 = scmp.eq.s32.totalorder %s30, 1
    %p179 = por %p177, %p178
    %p180 = scmp.ne.s32.totalorder %s171, %s172
    %p181 = scmp.eq.s32.totalorder %s30, 0
    %p182 = por %p180, %p181
    %p183 = scmp.ne.s32.totalorder %s171, %s172
    %p184 = scmp.eq.s32.totalorder %s31, 1
    %p185 = por %p183, %p184
    %p187 = scmp.ne.s32.totalorder %s172, %s186
    %p188 = scmp.eq.s32.totalorder %s31, 0
    %p189 = por %p187, %p188
    %s191 = sadd.s32 %s190, 1
    %p194 = scmp.eq.s32.totalorder %s25, 1
    %p195 = scmp.ne.s32.totalorder %s190, %s192
    %p196 = scmp.eq.s32.totalorder %s25, 0
    %p197 = por %p195, %p196
    %p198 = scmp.ne.s32.totalorder %s190, %s192
    %p199 = scmp.eq.s32.totalorder %s30, 1
    %p200 = por %p198, %p199
    %p201 = scmp.ne.s32.totalorder %s192, %s193
    %p202 = scmp.eq.s32.totalorder %s30, 0
    %p203 = por %p201, %p202
    %p204 = scmp.ne.s32.totalorder %s192, %s193
    %p205 = scmp.eq.s32.totalorder %s31, 1
    %p206 = por %p204, %p205
    %p208 = scmp.ne.s32.totalorder %s193, %s207
    %p209 = scmp.eq.s32.totalorder %s31, 0
    %p210 = por %p208, %p209
    %s212 = sadd.s32 %s211, 1
    %p215 = scmp.eq.s32.totalorder %s25, 1
    %p216 = scmp.ne.s32.totalorder %s211, %s213
    %p217 = scmp.eq.s32.totalorder %s25, 0
    %p218 = por %p216, %p217
    %p219 = scmp.ne.s32.totalorder %s211, %s213
    %p220 = scmp.eq.s32.totalorder %s30, 1
    %p221 = por %p219, %p220
    %p222 = scmp.ne.s32.totalorder %s213, %s214
    %p223 = scmp.eq.s32.totalorder %s30, 0
    %p224 = por %p222, %p223
    %p225 = scmp.ne.s32.totalorder %s213, %s214
    %p226 = scmp.eq.s32.totalorder %s31, 1
    %p227 = por %p225, %p226
    %p229 = scmp.ne.s32.totalorder %s214, %s228
    %p230 = scmp.eq.s32.totalorder %s31, 0
    %p231 = por %p229, %p230
    %s233 = sadd.s32 %s232, 1
    %p236 = scmp.eq.s32.totalorder %s25, 1
    %p237 = scmp.ne.s32.totalorder %s232, %s234
    %p238 = scmp.eq.s32.totalorder %s25, 0
    %p239 = por %p237, %p238
    %p240 = scmp.ne.s32.totalorder %s232, %s234
    %p241 = scmp.eq.s32.totalorder %s30, 1
    %p242 = por %p240, %p241
    %p243 = scmp.ne.s32.totalorder %s234, %s235
    %p244 = scmp.eq.s32.totalorder %s30, 0
    %p245 = por %p243, %p244
    %p246 = scmp.ne.s32.totalorder %s234, %s235
    %p247 = scmp.eq.s32.totalorder %s31, 1
    %p248 = por %p246, %p247
    %p250 = scmp.ne.s32.totalorder %s235, %s249
    %p251 = scmp.eq.s32.totalorder %s31, 0
    %p252 = por %p250, %p251
    %s254 = sadd.s32 %s253, 1
    %p257 = scmp.eq.s32.totalorder %s25, 1
    %p258 = scmp.ne.s32.totalorder %s253, %s255
    %p259 = scmp.eq.s32.totalorder %s25, 0
    %p260 = por %p258, %p259
    %p261 = scmp.ne.s32.totalorder %s253, %s255
    %p262 = scmp.eq.s32.totalorder %s30, 1
    %p263 = por %p261, %p262
    %p264 = scmp.ne.s32.totalorder %s255, %s256
    %p265 = scmp.eq.s32.totalorder %s30, 0
    %p266 = por %p264, %p265
    %p267 = scmp.ne.s32.totalorder %s255, %s256
    %p268 = scmp.eq.s32.totalorder %s31, 1
    %p269 = por %p267, %p268
    %p271 = scmp.ne.s32.totalorder %s256, %s270
    %p272 = scmp.eq.s32.totalorder %s31, 0
    %p273 = por %p271, %p272
    %s275 = sadd.s32 %s274, 1
    %p278 = scmp.eq.s32.totalorder %s25, 1
    %p279 = scmp.ne.s32.totalorder %s274, %s276
    %p280 = scmp.eq.s32.totalorder %s25, 0
    %p281 = por %p279, %p280
    %p282 = scmp.ne.s32.totalorder %s274, %s276
    %p283 = scmp.eq.s32.totalorder %s30, 1
    %p284 = por %p282, %p283
    %p285 = scmp.ne.s32.totalorder %s276, %s277
    %p286 = scmp.eq.s32.totalorder %s30, 0
    %p287 = por %p285, %p286
    %p288 = scmp.ne.s32.totalorder %s276, %s277
    %p289 = scmp.eq.s32.totalorder %s31, 1
    %p290 = por %p288, %p289
    %p292 = scmp.ne.s32.totalorder %s277, %s291
    %p293 = scmp.eq.s32.totalorder %s31, 0
    %p294 = por %p292, %p293
    %s296 = sadd.s32 %s295, 1
    %p299 = scmp.eq.s32.totalorder %s25, 1
    %p300 = scmp.ne.s32.totalorder %s295, %s297
    %p301 = scmp.eq.s32.totalorder %s25, 0
    %p302 = por %p300, %p301
    %p303 = scmp.ne.s32.totalorder %s295, %s297
    %p304 = scmp.eq.s32.totalorder %s30, 1
    %p305 = por %p303, %p304
    %p306 = scmp.ne.s32.totalorder %s297, %s298
    %p307 = scmp.eq.s32.totalorder %s30, 0
    %p308 = por %p306, %p307
    %p309 = scmp.ne.s32.totalorder %s297, %s298
    %p310 = scmp.eq.s32.totalorder %s31, 1
    %p311 = por %p309, %p310
    %p313 = scmp.ne.s32.totalorder %s298, %s312
    %p314 = scmp.eq.s32.totalorder %s31, 0
    %p315 = por %p313, %p314
    %s317 = sadd.s32 %s316, 1
    %p320 = scmp.eq.s32.totalorder %s25, 1
    %p321 = scmp.ne.s32.totalorder %s316, %s318
    %p322 = scmp.eq.s32.totalorder %s25, 0
    %p323 = por %p321, %p322
    %p324 = scmp.ne.s32.totalorder %s316, %s318
    %p325 = scmp.eq.s32.totalorder %s30, 1
    %p326 = por %p324, %p325
    %p327 = scmp.ne.s32.totalorder %s318, %s319
    %p328 = scmp.eq.s32.totalorder %s30, 0
    %p329 = por %p327, %p328
    %p330 = scmp.ne.s32.totalorder %s318, %s319
    %p331 = scmp.eq.s32.totalorder %s31, 1
    %p332 = por %p330, %p331
    %p334 = scmp.ne.s32.totalorder %s319, %s333
    %p335 = scmp.eq.s32.totalorder %s31, 0
    %p336 = por %p334, %p335
    %s338 = sadd.s32 %s337, 1
    %p341 = scmp.eq.s32.totalorder %s25, 1
    %p342 = scmp.ne.s32.totalorder %s337, %s339
    %p343 = scmp.eq.s32.totalorder %s25, 0
    %p344 = por %p342, %p343
    %p345 = scmp.ne.s32.totalorder %s337, %s339
    %p346 = scmp.eq.s32.totalorder %s30, 1
    %p347 = por %p345, %p346
    %p348 = scmp.ne.s32.totalorder %s339, %s340
    %p349 = scmp.eq.s32.totalorder %s30, 0
    %p350 = por %p348, %p349
    %p351 = scmp.ne.s32.totalorder %s339, %s340
    %p352 = scmp.eq.s32.totalorder %s31, 1
    %p353 = por %p351, %p352
    %p355 = scmp.ne.s32.totalorder %s340, %s354
    %p356 = scmp.eq.s32.totalorder %s31, 0
    %p357 = por %p355, %p356
    %s359 = sadd.s32 %s358, 1
    %p362 = scmp.eq.s32.totalorder %s25, 1
    %p363 = scmp.ne.s32.totalorder %s358, %s360
    %p364 = scmp.eq.s32.totalorder %s25, 0
    %p365 = por %p363, %p364
    %p366 = scmp.ne.s32.totalorder %s358, %s360
    %p367 = scmp.eq.s32.totalorder %s30, 1
    %p368 = por %p366, %p367
    %p369 = scmp.ne.s32.totalorder %s360, %s361
    %p370 = scmp.eq.s32.totalorder %s30, 0
    %p371 = por %p369, %p370
    %p372 = scmp.ne.s32.totalorder %s360, %s361
    %p373 = scmp.eq.s32.totalorder %s31, 1
    %p374 = por %p372, %p373
    %p376 = scmp.ne.s32.totalorder %s361, %s375
    %p377 = scmp.eq.s32.totalorder %s31, 0
    %p378 = por %p376, %p377
    %s380 = sadd.s32 %s379, 1
    %p383 = scmp.eq.s32.totalorder %s25, 1
    %p384 = scmp.ne.s32.totalorder %s379, %s381
    %p385 = scmp.eq.s32.totalorder %s25, 0
    %p386 = por %p384, %p385
    %p387 = scmp.ne.s32.totalorder %s379, %s381
    %p388 = scmp.eq.s32.totalorder %s30, 1
    %p389 = por %p387, %p388
    %p390 = scmp.ne.s32.totalorder %s381, %s382
    %p391 = scmp.eq.s32.totalorder %s30, 0
    %p392 = por %p390, %p391
    %p393 = scmp.ne.s32.totalorder %s381, %s382
    %p394 = scmp.eq.s32.totalorder %s31, 1
    %p395 = por %p393, %p394
    %p397 = scmp.ne.s32.totalorder %s382, %s396
    %p398 = scmp.eq.s32.totalorder %s31, 0
    %p399 = por %p397, %p398
    %s401 = sadd.s32 %s400, 1
    %p404 = scmp.eq.s32.totalorder %s25, 1
    %p405 = scmp.ne.s32.totalorder %s400, %s402
    %p406 = scmp.eq.s32.totalorder %s25, 0
    %p407 = por %p405, %p406
    %p408 = scmp.ne.s32.totalorder %s400, %s402
    %p409 = scmp.eq.s32.totalorder %s30, 1
    %p410 = por %p408, %p409
    %p411 = scmp.ne.s32.totalorder %s402, %s403
    %p412 = scmp.eq.s32.totalorder %s30, 0
    %p413 = por %p411, %p412
    %p414 = scmp.ne.s32.totalorder %s402, %s403
    %p415 = scmp.eq.s32.totalorder %s31, 1
    %p416 = por %p414, %p415
    %p418 = scmp.ne.s32.totalorder %s403, %s417
    %p419 = scmp.eq.s32.totalorder %s31, 0
    %p420 = por %p418, %p419
    %s422 = sadd.s32 %s421, 1
    %p425 = scmp.eq.s32.totalorder %s25, 1
    %p426 = scmp.ne.s32.totalorder %s421, %s423
    %p427 = scmp.eq.s32.totalorder %s25, 0
    %p428 = por %p426, %p427
    %p429 = scmp.ne.s32.totalorder %s421, %s423
    %p430 = scmp.eq.s32.totalorder %s30, 1
    %p431 = por %p429, %p430
    %p432 = scmp.ne.s32.totalorder %s423, %s424
    %p433 = scmp.eq.s32.totalorder %s30, 0
    %p434 = por %p432, %p433
    %p435 = scmp.ne.s32.totalorder %s423, %s424
    %p436 = scmp.eq.s32.totalorder %s31, 1
    %p437 = por %p435, %p436
    %p439 = scmp.ne.s32.totalorder %s424, %s438
    %p440 = scmp.eq.s32.totalorder %s31, 0
    %p441 = por %p439, %p440
    %s442 = ssub.s32 %s25, %s32
    %p443 = scmp.eq.s32.totalorder %s442, 0
    %s445 = sadd.s32 %s444, 1
    %s446 = scalar_select %p443, %s444, %s445
    %p449 = pneg %p443
    %p450 = scmp.eq.s32.totalorder %s25, 1
    %p451 = por %p449, %p450
    %p452 = scmp.ne.s32.totalorder %s444, %s447
    %p453 = scmp.eq.s32.totalorder %s25, 0
    %p454 = por %p452, %p453
    %p455 = scmp.ne.s32.totalorder %s444, %s447
    %p456 = scmp.eq.s32.totalorder %s30, 1
    %p457 = por %p455, %p456
    %p458 = scmp.ne.s32.totalorder %s447, %s448
    %p459 = scmp.eq.s32.totalorder %s30, 0
    %p460 = por %p458, %p459
    %p461 = scmp.ne.s32.totalorder %s447, %s448
    %p462 = scmp.eq.s32.totalorder %s31, 1
    %p463 = por %p461, %p462
    %p465 = scmp.ne.s32.totalorder %s448, %s464
    %p466 = scmp.eq.s32.totalorder %s31, 0
    %p467 = por %p465, %p466
    %p468 = scmp.le.s32.totalorder 1, %s25
    %p469 = scmp.lt.s32.totalorder %s25, 3
    %p470 = pnand %p468, %p469
    %p471 = pneg %p470
    // Predicated region
    $region9: #{dualgcn_forward.1} parent=5 // pred_check
      _
    $region10: #{dualgcn_forward.1} parent=5 // pred_check_branch
      %473 = sbr.rel (%p470) target = $region12
    $region11: #{dualgcn_forward.1} parent=5 // pred_region
      %s474 = ssub.s32 %s25, 1
      // Predicated region
      $region13: #{dualgcn_forward.1} parent=11 // pred_check
        %p475 = pneg %p98
      $region14: #{dualgcn_forward.1} parent=11 // pred_check_branch
        %477 = sbr.rel (%p475) target = $region16
      $region15: #{dualgcn_forward.1} parent=11 // pred_region
        _
      $region16: #{dualgcn_forward.1} parent=11 // pred_fallthru
        _
      // Predicated region
      $region17: #{dualgcn_forward.1} parent=11 // pred_check
        %p478 = pneg %p119
      $region18: #{dualgcn_forward.1} parent=11 // pred_check_branch
        %480 = sbr.rel (%p478) target = $region20
      $region19: #{dualgcn_forward.1} parent=11 // pred_region
        _
      $region20: #{dualgcn_forward.1} parent=11 // pred_fallthru
        _
      // Predicated region
      $region21: #{dualgcn_forward.1} parent=11 // pred_check
        %p481 = pneg %p140
      $region22: #{dualgcn_forward.1} parent=11 // pred_check_branch
        %483 = sbr.rel (%p481) target = $region24
      $region23: #{dualgcn_forward.1} parent=11 // pred_region
        _
      $region24: #{dualgcn_forward.1} parent=11 // pred_fallthru
        _
      // Predicated region
      $region25: #{dualgcn_forward.1} parent=11 // pred_check
        %p484 = pneg %p161
      $region26: #{dualgcn_forward.1} parent=11 // pred_check_branch
        %486 = sbr.rel (%p484) target = $region28
      $region27: #{dualgcn_forward.1} parent=11 // pred_region
        _
      $region28: #{dualgcn_forward.1} parent=11 // pred_fallthru
        _
      // Predicated region
      $region29: #{dualgcn_forward.1} parent=11 // pred_check
        %p487 = pneg %p182
      $region30: #{dualgcn_forward.1} parent=11 // pred_check_branch
        %489 = sbr.rel (%p487) target = $region32
      $region31: #{dualgcn_forward.1} parent=11 // pred_region
        _
      $region32: #{dualgcn_forward.1} parent=11 // pred_fallthru
        _
      // Predicated region
      $region33: #{dualgcn_forward.1} parent=11 // pred_check
        %p490 = pneg %p203
      $region34: #{dualgcn_forward.1} parent=11 // pred_check_branch
        %492 = sbr.rel (%p490) target = $region36
      $region35: #{dualgcn_forward.1} parent=11 // pred_region
        _
      $region36: #{dualgcn_forward.1} parent=11 // pred_fallthru
        _
      // Predicated region
      $region37: #{dualgcn_forward.1} parent=11 // pred_check
        %p493 = pneg %p224
      $region38: #{dualgcn_forward.1} parent=11 // pred_check_branch
        %495 = sbr.rel (%p493) target = $region40
      $region39: #{dualgcn_forward.1} parent=11 // pred_region
        _
      $region40: #{dualgcn_forward.1} parent=11 // pred_fallthru
        _
      // Predicated region
      $region41: #{dualgcn_forward.1} parent=11 // pred_check
        %p496 = pneg %p245
      $region42: #{dualgcn_forward.1} parent=11 // pred_check_branch
        %498 = sbr.rel (%p496) target = $region44
      $region43: #{dualgcn_forward.1} parent=11 // pred_region
        _
      $region44: #{dualgcn_forward.1} parent=11 // pred_fallthru
        _
      // Predicated region
      $region45: #{dualgcn_forward.1} parent=11 // pred_check
        %p499 = pneg %p266
      $region46: #{dualgcn_forward.1} parent=11 // pred_check_branch
        %501 = sbr.rel (%p499) target = $region48
      $region47: #{dualgcn_forward.1} parent=11 // pred_region
        _
      $region48: #{dualgcn_forward.1} parent=11 // pred_fallthru
        _
      // Predicated region
      $region49: #{dualgcn_forward.1} parent=11 // pred_check
        %p502 = pneg %p287
      $region50: #{dualgcn_forward.1} parent=11 // pred_check_branch
        %504 = sbr.rel (%p502) target = $region52
      $region51: #{dualgcn_forward.1} parent=11 // pred_region
        _
      $region52: #{dualgcn_forward.1} parent=11 // pred_fallthru
        _
      // Predicated region
      $region53: #{dualgcn_forward.1} parent=11 // pred_check
        %p505 = pneg %p308
      $region54: #{dualgcn_forward.1} parent=11 // pred_check_branch
        %507 = sbr.rel (%p505) target = $region56
      $region55: #{dualgcn_forward.1} parent=11 // pred_region
        _
      $region56: #{dualgcn_forward.1} parent=11 // pred_fallthru
        _
      // Predicated region
      $region57: #{dualgcn_forward.1} parent=11 // pred_check
        %p508 = pneg %p329
      $region58: #{dualgcn_forward.1} parent=11 // pred_check_branch
        %510 = sbr.rel (%p508) target = $region60
      $region59: #{dualgcn_forward.1} parent=11 // pred_region
        _
      $region60: #{dualgcn_forward.1} parent=11 // pred_fallthru
        _
      // Predicated region
      $region61: #{dualgcn_forward.1} parent=11 // pred_check
        %p511 = pneg %p350
      $region62: #{dualgcn_forward.1} parent=11 // pred_check_branch
        %513 = sbr.rel (%p511) target = $region64
      $region63: #{dualgcn_forward.1} parent=11 // pred_region
        _
      $region64: #{dualgcn_forward.1} parent=11 // pred_fallthru
        _
      // Predicated region
      $region65: #{dualgcn_forward.1} parent=11 // pred_check
        %p514 = pneg %p371
      $region66: #{dualgcn_forward.1} parent=11 // pred_check_branch
        %516 = sbr.rel (%p514) target = $region68
      $region67: #{dualgcn_forward.1} parent=11 // pred_region
        _
      $region68: #{dualgcn_forward.1} parent=11 // pred_fallthru
        _
      // Predicated region
      $region69: #{dualgcn_forward.1} parent=11 // pred_check
        %p517 = pneg %p392
      $region70: #{dualgcn_forward.1} parent=11 // pred_check_branch
        %519 = sbr.rel (%p517) target = $region72
      $region71: #{dualgcn_forward.1} parent=11 // pred_region
        _
      $region72: #{dualgcn_forward.1} parent=11 // pred_fallthru
        _
      // Predicated region
      $region73: #{dualgcn_forward.1} parent=11 // pred_check
        %p520 = pneg %p413
      $region74: #{dualgcn_forward.1} parent=11 // pred_check_branch
        %522 = sbr.rel (%p520) target = $region76
      $region75: #{dualgcn_forward.1} parent=11 // pred_region
        _
      $region76: #{dualgcn_forward.1} parent=11 // pred_fallthru
        _
      // Predicated region
      $region77: #{dualgcn_forward.1} parent=11 // pred_check
        %p523 = pneg %p434
      $region78: #{dualgcn_forward.1} parent=11 // pred_check_branch
        %525 = sbr.rel (%p523) target = $region80
      $region79: #{dualgcn_forward.1} parent=11 // pred_region
        _
      $region80: #{dualgcn_forward.1} parent=11 // pred_fallthru
        _
    $region12: #{dualgcn_forward.1} parent=5 // pred_fallthru
      _
    %p526 = scmp.lt.s32.totalorder %s25, 2
    // Predicated region
    $region81: #{dualgcn_forward.1} parent=5 // pred_check
      %p527 = pneg %p526
    $region82: #{dualgcn_forward.1} parent=5 // pred_check_branch
      %529 = sbr.rel (%p527) target = $region84
    $region83: #{dualgcn_forward.1} parent=5 // pred_region
      // Predicated region
      $region85: #{dualgcn_forward.1} parent=83 // pred_check
        %p530 = pneg %p45
      $region86: #{dualgcn_forward.1} parent=83 // pred_check_branch
        %532 = sbr.rel (%p530) target = $region88
      $region87: #{dualgcn_forward.1} parent=83 // pred_region
        %p533 = scmp.lt.s32.totalorder %s25, 1
        %s534 = scalar_select %p533, %s25, 1
        %s535 = smul.addr %s534, 4
        %s536 = smul.addr %s535, 8
        %s537 = scalar_lea.vmem %s0, %s536
      $region88: #{dualgcn_forward.1} parent=83 // pred_fallthru
        _
      // Predicated region
      $region89: #{dualgcn_forward.1} parent=83 // pred_check
        %p538 = pneg %p71
      $region90: #{dualgcn_forward.1} parent=83 // pred_check_branch
        %540 = sbr.rel (%p538) target = $region92
      $region91: #{dualgcn_forward.1} parent=83 // pred_region
        %p541 = scmp.lt.s32.totalorder %s25, 1
        %s542 = scalar_select %p541, %s25, 1
        %s543 = smul.addr %s542, 2
        %s544 = smul.addr %s543, 8
        %s545 = scalar_lea.vmem %s1, %s544
      $region92: #{dualgcn_forward.1} parent=83 // pred_fallthru
        _
    $region84: #{dualgcn_forward.1} parent=5 // pred_fallthru
      _
    %p546 = scmp.le.s32.totalorder 1, %s25
    %p547 = scmp.lt.s32.totalorder %s25, 3
    %p548 = pnand %p546, %p547
    %p549 = pneg %p548
    // Predicated region
    $region93: #{dualgcn_forward.1} parent=5 // pred_check
      _
    $region94: #{dualgcn_forward.1} parent=5 // pred_check_branch
      %551 = sbr.rel (%p548) target = $region96
    $region95: #{dualgcn_forward.1} parent=5 // pred_region
      %s552 = ssub.s32 %s25, 1
      %p553 = scmp.lt.s32.totalorder %s30, 1
      %s554 = scalar_select %p553, %s30, 1
      %s555 = smul.addr %s554, 4
      %s556 = smul.addr %s555, 8
      %s557 = scalar_lea.vmem %s0, %s556
      %p558 = pneg %p51
      %p559 = pneg %p48
      %p560 = scmp.lt.s32.totalorder %s30, 1
      %s561 = scalar_select %p560, %s30, 1
      %s562 = smul.addr %s561, 2
      %s563 = smul.addr %s562, 8
      %s564 = scalar_lea.vmem %s1, %s563
      %p565 = pneg %p77
      %p566 = pneg %p74
      %p567 = pneg %p98
      %p568 = pneg %p95
      %p569 = pneg %p119
      %p570 = pneg %p116
      %p571 = pneg %p140
      %p572 = pneg %p137
      %p573 = pneg %p161
      %p574 = pneg %p158
      %p575 = pneg %p182
      %p576 = pneg %p179
      %p577 = pneg %p203
      %p578 = pneg %p200
      %p579 = pneg %p224
      %p580 = pneg %p221
      %p581 = pneg %p245
      %p582 = pneg %p242
      %p583 = pneg %p266
      %p584 = pneg %p263
      %p585 = pneg %p287
      %p586 = pneg %p284
      %p587 = pneg %p308
      %p588 = pneg %p305
      %p589 = pneg %p329
      %p590 = pneg %p326
      %p591 = pneg %p350
      %p592 = pneg %p347
      %p593 = pneg %p371
      %p594 = pneg %p368
      %p595 = pneg %p392
      %p596 = pneg %p389
      %p597 = pneg %p413
      %p598 = pneg %p410
      %p599 = pneg %p434
      %p600 = pneg %p431
      %p601 = pneg %p460
      %p602 = pneg %p457
      %p603 = scmp.lt.s32.totalorder %s30, 1
      %s604 = scalar_select %p603, %s30, 1
      %s605 = smul.addr %s604, 4
      %s606 = smul.addr %s605, 8
      %s607 = scalar_lea.vmem %s19, %s606
      %p608 = scmp.lt.s32.totalorder %s30, 1
      %s609 = scalar_select %p608, %s30, 1
      %s610 = smul.addr %s609, 4
      %s611 = smul.addr %s610, 8
      %s612 = scalar_lea.vmem %s0, %s611
      %p613 = scmp.lt.s32.totalorder %s30, 1
      %s614 = scalar_select %p613, %s30, 1
      %s615 = smul.addr %s614, 2
      %s616 = smul.addr %s615, 8
      %s617 = scalar_lea.vmem %s1, %s616
      %p618 = scmp.lt.s32.totalorder %s30, 1
      %s619 = scalar_select %p618, %s30, 1
      %s620 = smul.addr %s619, 4
      %s621 = smul.addr %s620, 8
      %s622 = scalar_lea.vmem %s19, %s621
      %v623 = vld [vmem:[%s612] sm:$0xff]
      %v624 = vld [vmem:[%s612 + $0x8] sm:$0xff]
      %v625 = vld [vmem:[%s612 + $0x10] sm:$0xff]
      %v626 = vld [vmem:[%s612 + $0x18] sm:$0xff]
      %v627 = vld [vmem:[%s617] sm:$0xff]
      %v628 = vld [vmem:[%s617 + $0x8] sm:$0xff]
      %v629 = vld [vmem:[%s10] sm:$0xff]
      %v630 = vld [vmem:[%s10 + $0x8] sm:$0xff]
      %v631 = vld [vmem:[%s10 + $0x10] sm:$0xff]
      %v632 = vld [vmem:[%s11] sm:$0xff]
      %v633 = vld [vmem:[%s11 + $0x8] sm:$0xff]
      %v634 = vld [vmem:[%s11 + $0x10] sm:$0xff]
      %636 = vset.pattern.permute.xlu0 0
      %637 = vperm.xlu0 %636, %v632
      %v638 = vpop.permute.xlu0 %637
      %641 = vset.pattern.permute.xlu0 0
      %642 = vperm.xlu0 %641, %v633
      %v643 = vpop.permute.xlu0 %642
      %646 = vset.pattern.permute.xlu0 0
      %647 = vperm.xlu0 %646, %v634
      %v648 = vpop.permute.xlu0 %647
      %vm650 = vcmask 130048
      %v652 = vsel %vm650, %v629, 0
      %v655 = vsel %vm650, %v630, 0
      %v658 = vsel %vm650, %v631, 0
      %660 = vmatprep.subr.mxu0 0.0
      %v661 = vand.u32 %v627, 4294901760
      %662 = vmatpush1.msra.mxu0 %v661
      %663 = vmatprep.subr.mxu0 0.0
      %v664 = vand.u32 %v628, 4294901760
      %665 = vmatpush1.msra.mxu0 %v664
      %666 = vmatprep.subr.mxu0 0.0
      %667 = vmatpush1.msra.mxu0 0.0
      %668 = vmatprep.subr.mxu0 0.0
      %669 = vmatpush1.msra.mxu0 0.0
      %670 = vmatprep.subr.mxu0 0.0
      %671 = vmatpush1.msra.mxu0 0.0
      %672 = vmatprep.subr.mxu0 0.0
      %673 = vmatpush1.msra.mxu0 0.0
      %674 = vmatprep.subr.mxu0 0.0
      %675 = vmatpush1.msra.mxu0 0.0
      %676 = vmatprep.subr.mxu0 0.0
      %677 = vmatpush1.msra.mxu0 0.0
      %678 = vmatprep.subr.mxu0 0.0
      %679 = vmatpush1.msra.mxu0 0.0
      %680 = vmatprep.subr.mxu0 0.0
      %681 = vmatpush1.msra.mxu0 0.0
      %682 = vmatprep.subr.mxu0 0.0
      %683 = vmatpush1.msra.mxu0 0.0
      %684 = vmatprep.subr.mxu0 0.0
      %685 = vmatpush1.msra.mxu0 0.0
      %686 = vmatprep.subr.mxu0 0.0
      %687 = vmatpush1.msra.mxu0 0.0
      %688 = vmatprep.subr.mxu0 0.0
      %689 = vmatpush1.msra.mxu0 0.0
      %690 = vmatprep.subr.mxu0 0.0
      %691 = vmatpush1.msra.mxu0 0.0
      %692 = vmatprep.subr.mxu0 0.0
      %693 = vmatpush1.msra.mxu0 0.0
      %694 = vmatprep.subr.mxu0 0.0
      %695 = vmatpush1.msra.mxu0 0.0
      %696 = vmatprep.subr.mxu0 0.0
      %697 = vmatpush1.msra.mxu0 0.0
      %698 = vmatprep.subr.mxu0 0.0
      %699 = vmatpush1.msra.mxu0 0.0
      %700 = vmatprep.subr.mxu0 0.0
      %701 = vmatpush1.msra.mxu0 0.0
      %702 = vmatprep.subr.mxu0 0.0
      %703 = vmatpush1.msra.mxu0 0.0
      %704 = vmatprep.subr.mxu0 0.0
      %705 = vmatpush1.msra.mxu0 0.0
      %706 = vmatprep.subr.mxu0 0.0
      %707 = vmatpush1.msra.mxu0 0.0
      %708 = vmatprep.subr.mxu0 0.0
      %709 = vmatpush1.msra.mxu0 0.0
      %710 = vmatprep.subr.mxu0 0.0
      %711 = vmatpush1.msra.mxu0 0.0
      %712 = vmatprep.subr.mxu0 0.0
      %713 = vmatpush1.msra.mxu0 0.0
      %714 = vmatprep.subr.mxu0 0.0
      %715 = vmatpush1.msra.mxu0 0.0
      %716 = vmatprep.subr.mxu0 0.0
      %717 = vmatpush1.msra.mxu0 0.0
      %718 = vmatprep.subr.mxu0 0.0
      %719 = vmatpush1.msra.mxu0 0.0
      %720 = vmatprep.subr.mxu0 0.0
      %721 = vmatpush1.msra.mxu0 0.0
      %722 = vmatprep.subr.mxu0 0.0
      %723 = vmatpush1.msra.mxu0 0.0
      %724 = vmatprep.subr.mxu0 0.0
      %725 = vmatpush1.msra.mxu0 0.0
      %726 = vmatprep.mubr.f32.mxu0 0.0
      %v727 = vand.u32 %v652, 4294901760
      %v728 = vsub.f32 %v652, %v727
      %v729 = vand.u32 %v728, 4294901760
      %v730 = vsub.f32 %v728, %v729
      %v731 = vand.u32 %v730, 4294901760
      %732 = vmatmul.mubr.f32.gmra.mrb[0].mxu0 %v731
      %v733 = vpop.f32.mrb[0].mxu0
      %v734 = vadd.f32 %v638, %v733
      %v735 = vpop.f32.mrb[0].mxu0
      %736 = vmatprep.mubr.f32.mxu0 0.0
      %v737 = vand.u32 %v655, 4294901760
      %v738 = vsub.f32 %v655, %v737
      %v739 = vand.u32 %v738, 4294901760
      %v740 = vsub.f32 %v738, %v739
      %v741 = vand.u32 %v740, 4294901760
      %742 = vmatmul.mubr.f32.gmra.mrb[0].mxu0 %v741
      %v743 = vpop.f32.mrb[0].mxu0
      %v744 = vadd.f32 %v643, %v743
      %v745 = vpop.f32.mrb[0].mxu0
      %746 = vmatprep.mubr.f32.mxu0 0.0
      %v747 = vand.u32 %v658, 4294901760
      %v748 = vsub.f32 %v658, %v747
      %v749 = vand.u32 %v748, 4294901760
      %v750 = vsub.f32 %v748, %v749
      %v751 = vand.u32 %v750, 4294901760
      %752 = vmatmul.mubr.f32.gmra.mrb[0].mxu0 %v751
      %v753 = vpop.f32.mrb[0].mxu0
      %v754 = vadd.f32 %v648, %v753
      %v755 = vpop.f32.mrb[0].mxu0
      %756 = vdwg.mxu0
      %757 = vmatprep.subr.mxu0 0.0
      %v758 = vand.u32 %v627, 4294901760
      %v759 = vsub.f32 %v627, %v758
      %v760 = vand.u32 %v759, 4294901760
      %v761 = vsub.f32 %v759, %v760
      %v762 = vand.u32 %v761, 4294901760
      %763 = vmatpush1.msra.mxu0 %v762
      %764 = vmatprep.subr.mxu0 0.0
      %v765 = vand.u32 %v628, 4294901760
      %v766 = vsub.f32 %v628, %v765
      %v767 = vand.u32 %v766, 4294901760
      %v768 = vsub.f32 %v766, %v767
      %v769 = vand.u32 %v768, 4294901760
      %770 = vmatpush1.msra.mxu0 %v769
      %771 = vmatprep.subr.mxu0 0.0
      %772 = vmatpush1.msra.mxu0 0.0
      %773 = vmatprep.subr.mxu0 0.0
      %774 = vmatpush1.msra.mxu0 0.0
      %775 = vmatprep.subr.mxu0 0.0
      %776 = vmatpush1.msra.mxu0 0.0
      %777 = vmatprep.subr.mxu0 0.0
      %778 = vmatpush1.msra.mxu0 0.0
      %779 = vmatprep.subr.mxu0 0.0
      %780 = vmatpush1.msra.mxu0 0.0
      %781 = vmatprep.subr.mxu0 0.0
      %782 = vmatpush1.msra.mxu0 0.0
      %783 = vmatprep.subr.mxu0 0.0
      %784 = vmatpush1.msra.mxu0 0.0
      %785 = vmatprep.subr.mxu0 0.0
      %786 = vmatpush1.msra.mxu0 0.0
      %787 = vmatprep.subr.mxu0 0.0
      %788 = vmatpush1.msra.mxu0 0.0
      %789 = vmatprep.subr.mxu0 0.0
      %790 = vmatpush1.msra.mxu0 0.0
      %791 = vmatprep.subr.mxu0 0.0
      %792 = vmatpush1.msra.mxu0 0.0
      %793 = vmatprep.subr.mxu0 0.0
      %794 = vmatpush1.msra.mxu0 0.0
      %795 = vmatprep.subr.mxu0 0.0
      %796 = vmatpush1.msra.mxu0 0.0
      %797 = vmatprep.subr.mxu0 0.0
      %798 = vmatpush1.msra.mxu0 0.0
      %799 = vmatprep.subr.mxu0 0.0
      %800 = vmatpush1.msra.mxu0 0.0
      %801 = vmatprep.subr.mxu0 0.0
      %802 = vmatpush1.msra.mxu0 0.0
      %803 = vmatprep.subr.mxu0 0.0
      %804 = vmatpush1.msra.mxu0 0.0
      %805 = vmatprep.subr.mxu0 0.0
      %806 = vmatpush1.msra.mxu0 0.0
      %807 = vmatprep.subr.mxu0 0.0
      %808 = vmatpush1.msra.mxu0 0.0
      %809 = vmatprep.subr.mxu0 0.0
      %810 = vmatpush1.msra.mxu0 0.0
      %811 = vmatprep.subr.mxu0 0.0
      %812 = vmatpush1.msra.mxu0 0.0
      %813 = vmatprep.subr.mxu0 0.0
      %814 = vmatpush1.msra.mxu0 0.0
      %815 = vmatprep.subr.mxu0 0.0
      %816 = vmatpush1.msra.mxu0 0.0
      %817 = vmatprep.subr.mxu0 0.0
      %818 = vmatpush1.msra.mxu0 0.0
      %819 = vmatprep.subr.mxu0 0.0
      %820 = vmatpush1.msra.mxu0 0.0
      %821 = vmatprep.subr.mxu0 0.0
      %822 = vmatpush1.msra.mxu0 0.0
      %823 = vmatprep.subr.mxu0 0.0
      %824 = vmatpush1.msra.mxu0 0.0
      %825 = vmatprep.subr.mxu0 0.0
      %826 = vmatpush1.msra.mxu0 0.0
      %827 = vmatprep.subr.mxu0 0.0
      %828 = vmatpush1.msra.mxu0 0.0
      %829 = vmatprep.subr.mxu0 0.0
      %830 = vmatpush1.msra.mxu0 0.0
      %831 = vmatprep.mubr.f32.mxu0 0.0
      %v832 = vand.u32 %v652, 4294901760
      %833 = vmatmul.mubr.f32.gmra.mrb[0].mxu0 %v832
      %v834 = vpop.f32.mrb[0].mxu0
      %v835 = vadd.f32 %v734, %v834
      %v836 = vpop.f32.mrb[0].mxu0
      %837 = vmatprep.mubr.f32.mxu0 0.0
      %v838 = vand.u32 %v655, 4294901760
      %839 = vmatmul.mubr.f32.gmra.mrb[0].mxu0 %v838
      %v840 = vpop.f32.mrb[0].mxu0
      %v841 = vadd.f32 %v744, %v840
      %v842 = vpop.f32.mrb[0].mxu0
      %843 = vmatprep.mubr.f32.mxu0 0.0
      %v844 = vand.u32 %v658, 4294901760
      %845 = vmatmul.mubr.f32.gmra.mrb[0].mxu0 %v844
      %v846 = vpop.f32.mrb[0].mxu0
      %v847 = vadd.f32 %v754, %v846
      %v848 = vpop.f32.mrb[0].mxu0
      %849 = vdwg.mxu0
      %850 = vmatprep.subr.mxu0 0.0
      %v851 = vand.u32 %v627, 4294901760
      %v852 = vsub.f32 %v627, %v851
      %853 = vmatpush1.msra.mxu0 %v852
      %854 = vmatprep.subr.mxu0 0.0
      %v855 = vand.u32 %v628, 4294901760
      %v856 = vsub.f32 %v628, %v855
      %857 = vmatpush1.msra.mxu0 %v856
      %858 = vmatprep.subr.mxu0 0.0
      %859 = vmatpush1.msra.mxu0 0.0
      %860 = vmatprep.subr.mxu0 0.0
      %861 = vmatpush1.msra.mxu0 0.0
      %862 = vmatprep.subr.mxu0 0.0
      %863 = vmatpush1.msra.mxu0 0.0
      %864 = vmatprep.subr.mxu0 0.0
      %865 = vmatpush1.msra.mxu0 0.0
      %866 = vmatprep.subr.mxu0 0.0
      %867 = vmatpush1.msra.mxu0 0.0
      %868 = vmatprep.subr.mxu0 0.0
      %869 = vmatpush1.msra.mxu0 0.0
      %870 = vmatprep.subr.mxu0 0.0
      %871 = vmatpush1.msra.mxu0 0.0
      %872 = vmatprep.subr.mxu0 0.0
      %873 = vmatpush1.msra.mxu0 0.0
      %874 = vmatprep.subr.mxu0 0.0
      %875 = vmatpush1.msra.mxu0 0.0
      %876 = vmatprep.subr.mxu0 0.0
      %877 = vmatpush1.msra.mxu0 0.0
      %878 = vmatprep.subr.mxu0 0.0
      %879 = vmatpush1.msra.mxu0 0.0
      %880 = vmatprep.subr.mxu0 0.0
      %881 = vmatpush1.msra.mxu0 0.0
      %882 = vmatprep.subr.mxu0 0.0
      %883 = vmatpush1.msra.mxu0 0.0
      %884 = vmatprep.subr.mxu0 0.0
      %885 = vmatpush1.msra.mxu0 0.0
      %886 = vmatprep.subr.mxu0 0.0
      %887 = vmatpush1.msra.mxu0 0.0
      %888 = vmatprep.subr.mxu0 0.0
      %889 = vmatpush1.msra.mxu0 0.0
      %890 = vmatprep.subr.mxu0 0.0
      %891 = vmatpush1.msra.mxu0 0.0
      %892 = vmatprep.subr.mxu0 0.0
      %893 = vmatpush1.msra.mxu0 0.0
      %894 = vmatprep.subr.mxu0 0.0
      %895 = vmatpush1.msra.mxu0 0.0
      %896 = vmatprep.subr.mxu0 0.0
      %897 = vmatpush1.msra.mxu0 0.0
      %898 = vmatprep.subr.mxu0 0.0
      %899 = vmatpush1.msra.mxu0 0.0
      %900 = vmatprep.subr.mxu0 0.0
      %901 = vmatpush1.msra.mxu0 0.0
      %902 = vmatprep.subr.mxu0 0.0
      %903 = vmatpush1.msra.mxu0 0.0
      %904 = vmatprep.subr.mxu0 0.0
      %905 = vmatpush1.msra.mxu0 0.0
      %906 = vmatprep.subr.mxu0 0.0
      %907 = vmatpush1.msra.mxu0 0.0
      %908 = vmatprep.subr.mxu0 0.0
      %909 = vmatpush1.msra.mxu0 0.0
      %910 = vmatprep.subr.mxu0 0.0
      %911 = vmatpush1.msra.mxu0 0.0
      %912 = vmatprep.subr.mxu0 0.0
      %913 = vmatpush1.msra.mxu0 0.0
      %914 = vmatprep.subr.mxu0 0.0
      %915 = vmatpush1.msra.mxu0 0.0
      %916 = vmatprep.subr.mxu0 0.0
      %917 = vmatpush1.msra.mxu0 0.0
      %918 = vmatprep.mubr.f32.mxu0 0.0
      %v919 = vand.u32 %v652, 4294901760
      %v920 = vsub.f32 %v652, %v919
      %921 = vmatmul.mubr.f32.gmra.mrb[0].mxu0 %v920
      %v922 = vpop.f32.mrb[0].mxu0
      %v923 = vadd.f32 %v835, %v922
      %v924 = vpop.f32.mrb[0].mxu0
      %925 = vmatprep.mubr.f32.mxu0 0.0
      %v926 = vand.u32 %v655, 4294901760
      %v927 = vsub.f32 %v655, %v926
      %928 = vmatmul.mubr.f32.gmra.mrb[0].mxu0 %v927
      %v929 = vpop.f32.mrb[0].mxu0
      %v930 = vadd.f32 %v841, %v929
      %v931 = vpop.f32.mrb[0].mxu0
      %932 = vmatprep.mubr.f32.mxu0 0.0
      %v933 = vand.u32 %v658, 4294901760
      %v934 = vsub.f32 %v658, %v933
      %935 = vmatmul.mubr.f32.gmra.mrb[0].mxu0 %v934
      %v936 = vpop.f32.mrb[0].mxu0
      %v937 = vadd.f32 %v847, %v936
      %v938 = vpop.f32.mrb[0].mxu0
      %939 = vdwg.mxu0
      %940 = vmatprep.subr.mxu0 0.0
      %v941 = vand.u32 %v627, 4294901760
      %942 = vmatpush1.msra.mxu0 %v941
      %943 = vmatprep.subr.mxu0 0.0
      %v944 = vand.u32 %v628, 4294901760
      %945 = vmatpush1.msra.mxu0 %v944
      %946 = vmatprep.subr.mxu0 0.0
      %947 = vmatpush1.msra.mxu0 0.0
      %948 = vmatprep.subr.mxu0 0.0
      %949 = vmatpush1.msra.mxu0 0.0
      %950 = vmatprep.subr.mxu0 0.0
      %951 = vmatpush1.msra.mxu0 0.0
      %952 = vmatprep.subr.mxu0 0.0
      %953 = vmatpush1.msra.mxu0 0.0
      %954 = vmatprep.subr.mxu0 0.0
      %955 = vmatpush1.msra.mxu0 0.0
      %956 = vmatprep.subr.mxu0 0.0
      %957 = vmatpush1.msra.mxu0 0.0
      %958 = vmatprep.subr.mxu0 0.0
      %959 = vmatpush1.msra.mxu0 0.0
      %960 = vmatprep.subr.mxu0 0.0
      %961 = vmatpush1.msra.mxu0 0.0
      %962 = vmatprep.subr.mxu0 0.0
      %963 = vmatpush1.msra.mxu0 0.0
      %964 = vmatprep.subr.mxu0 0.0
      %965 = vmatpush1.msra.mxu0 0.0
      %966 = vmatprep.subr.mxu0 0.0
      %967 = vmatpush1.msra.mxu0 0.0
      %968 = vmatprep.subr.mxu0 0.0
      %969 = vmatpush1.msra.mxu0 0.0
      %970 = vmatprep.subr.mxu0 0.0
      %971 = vmatpush1.msra.mxu0 0.0
      %972 = vmatprep.subr.mxu0 0.0
      %973 = vmatpush1.msra.mxu0 0.0
      %974 = vmatprep.subr.mxu0 0.0
      %975 = vmatpush1.msra.mxu0 0.0
      %976 = vmatprep.subr.mxu0 0.0
      %977 = vmatpush1.msra.mxu0 0.0
      %978 = vmatprep.subr.mxu0 0.0
      %979 = vmatpush1.msra.mxu0 0.0
      %980 = vmatprep.subr.mxu0 0.0
      %981 = vmatpush1.msra.mxu0 0.0
      %982 = vmatprep.subr.mxu0 0.0
      %983 = vmatpush1.msra.mxu0 0.0
      %984 = vmatprep.subr.mxu0 0.0
      %985 = vmatpush1.msra.mxu0 0.0
      %986 = vmatprep.subr.mxu0 0.0
      %987 = vmatpush1.msra.mxu0 0.0
      %988 = vmatprep.subr.mxu0 0.0
      %989 = vmatpush1.msra.mxu0 0.0
      %990 = vmatprep.subr.mxu0 0.0
      %991 = vmatpush1.msra.mxu0 0.0
      %992 = vmatprep.subr.mxu0 0.0
      %993 = vmatpush1.msra.mxu0 0.0
      %994 = vmatprep.subr.mxu0 0.0
      %995 = vmatpush1.msra.mxu0 0.0
      %996 = vmatprep.subr.mxu0 0.0
      %997 = vmatpush1.msra.mxu0 0.0
      %998 = vmatprep.subr.mxu0 0.0
      %999 = vmatpush1.msra.mxu0 0.0
      %1000 = vmatprep.subr.mxu0 0.0
      %1001 = vmatpush1.msra.mxu0 0.0
      %1002 = vmatprep.subr.mxu0 0.0
      %1003 = vmatpush1.msra.mxu0 0.0
      %1004 = vmatprep.subr.mxu0 0.0
      %1005 = vmatpush1.msra.mxu0 0.0
      %1006 = vmatprep.mubr.f32.mxu0 0.0
      %v1007 = vand.u32 %v652, 4294901760
      %v1008 = vsub.f32 %v652, %v1007
      %v1009 = vand.u32 %v1008, 4294901760
      %1010 = vmatmul.mubr.f32.gmra.mrb[0].mxu0 %v1009
      %v1011 = vpop.f32.mrb[0].mxu0
      %v1012 = vadd.f32 %v923, %v1011
      %v1013 = vpop.f32.mrb[0].mxu0
      %1014 = vmatprep.mubr.f32.mxu0 0.0
      %v1015 = vand.u32 %v655, 4294901760
      %v1016 = vsub.f32 %v655, %v1015
      %v1017 = vand.u32 %v1016, 4294901760
      %1018 = vmatmul.mubr.f32.gmra.mrb[0].mxu0 %v1017
      %v1019 = vpop.f32.mrb[0].mxu0
      %v1020 = vadd.f32 %v930, %v1019
      %v1021 = vpop.f32.mrb[0].mxu0
      %1022 = vmatprep.mubr.f32.mxu0 0.0
      %v1023 = vand.u32 %v658, 4294901760
      %v1024 = vsub.f32 %v658, %v1023
      %v1025 = vand.u32 %v1024, 4294901760
      %1026 = vmatmul.mubr.f32.gmra.mrb[0].mxu0 %v1025
      %v1027 = vpop.f32.mrb[0].mxu0
      %v1028 = vadd.f32 %v937, %v1027
      %v1029 = vpop.f32.mrb[0].mxu0
      %1030 = vdwg.mxu0
      %1031 = vmatprep.subr.mxu0 0.0
      %v1032 = vand.u32 %v627, 4294901760
      %v1033 = vsub.f32 %v627, %v1032
      %v1034 = vand.u32 %v1033, 4294901760
      %1035 = vmatpush1.msra.mxu0 %v1034
      %1036 = vmatprep.subr.mxu0 0.0
      %v1037 = vand.u32 %v628, 4294901760
      %v1038 = vsub.f32 %v628, %v1037
      %v1039 = vand.u32 %v1038, 4294901760
      %1040 = vmatpush1.msra.mxu0 %v1039
      %1041 = vmatprep.subr.mxu0 0.0
      %1042 = vmatpush1.msra.mxu0 0.0
      %1043 = vmatprep.subr.mxu0 0.0
      %1044 = vmatpush1.msra.mxu0 0.0
      %1045 = vmatprep.subr.mxu0 0.0
      %1046 = vmatpush1.msra.mxu0 0.0
      %1047 = vmatprep.subr.mxu0 0.0
      %1048 = vmatpush1.msra.mxu0 0.0
      %1049 = vmatprep.subr.mxu0 0.0
      %1050 = vmatpush1.msra.mxu0 0.0
      %1051 = vmatprep.subr.mxu0 0.0
      %1052 = vmatpush1.msra.mxu0 0.0
      %1053 = vmatprep.subr.mxu0 0.0
      %1054 = vmatpush1.msra.mxu0 0.0
      %1055 = vmatprep.subr.mxu0 0.0
      %1056 = vmatpush1.msra.mxu0 0.0
      %1057 = vmatprep.subr.mxu0 0.0
      %1058 = vmatpush1.msra.mxu0 0.0
      %1059 = vmatprep.subr.mxu0 0.0
      %1060 = vmatpush1.msra.mxu0 0.0
      %1061 = vmatprep.subr.mxu0 0.0
      %1062 = vmatpush1.msra.mxu0 0.0
      %1063 = vmatprep.subr.mxu0 0.0
      %1064 = vmatpush1.msra.mxu0 0.0
      %1065 = vmatprep.subr.mxu0 0.0
      %1066 = vmatpush1.msra.mxu0 0.0
      %1067 = vmatprep.subr.mxu0 0.0
      %1068 = vmatpush1.msra.mxu0 0.0
      %1069 = vmatprep.subr.mxu0 0.0
      %1070 = vmatpush1.msra.mxu0 0.0
      %1071 = vmatprep.subr.mxu0 0.0
      %1072 = vmatpush1.msra.mxu0 0.0
      %1073 = vmatprep.subr.mxu0 0.0
      %1074 = vmatpush1.msra.mxu0 0.0
      %1075 = vmatprep.subr.mxu0 0.0
      %1076 = vmatpush1.msra.mxu0 0.0
      %1077 = vmatprep.subr.mxu0 0.0
      %1078 = vmatpush1.msra.mxu0 0.0
      %1079 = vmatprep.subr.mxu0 0.0
      %1080 = vmatpush1.msra.mxu0 0.0
      %1081 = vmatprep.subr.mxu0 0.0
      %1082 = vmatpush1.msra.mxu0 0.0
      %1083 = vmatprep.subr.mxu0 0.0
      %1084 = vmatpush1.msra.mxu0 0.0
      %1085 = vmatprep.subr.mxu0 0.0
      %1086 = vmatpush1.msra.mxu0 0.0
      %1087 = vmatprep.subr.mxu0 0.0
      %1088 = vmatpush1.msra.mxu0 0.0
      %1089 = vmatprep.subr.mxu0 0.0
      %1090 = vmatpush1.msra.mxu0 0.0
      %1091 = vmatprep.subr.mxu0 0.0
      %1092 = vmatpush1.msra.mxu0 0.0
      %1093 = vmatprep.subr.mxu0 0.0
      %1094 = vmatpush1.msra.mxu0 0.0
      %1095 = vmatprep.subr.mxu0 0.0
      %1096 = vmatpush1.msra.mxu0 0.0
      %1097 = vmatprep.subr.mxu0 0.0
      %1098 = vmatpush1.msra.mxu0 0.0
      %1099 = vmatprep.subr.mxu0 0.0
      %1100 = vmatpush1.msra.mxu0 0.0
      %1101 = vmatprep.mubr.f32.mxu0 0.0
      %v1102 = vand.u32 %v652, 4294901760
      %1103 = vmatmul.mubr.f32.gmra.mrb[0].mxu0 %v1102
      %v1104 = vpop.f32.mrb[0].mxu0
      %v1105 = vadd.f32 %v1012, %v1104
      %v1106 = vpop.f32.mrb[0].mxu0
      %1107 = vmatprep.mubr.f32.mxu0 0.0
      %v1108 = vand.u32 %v655, 4294901760
      %1109 = vmatmul.mubr.f32.gmra.mrb[0].mxu0 %v1108
      %v1110 = vpop.f32.mrb[0].mxu0
      %v1111 = vadd.f32 %v1020, %v1110
      %v1112 = vpop.f32.mrb[0].mxu0
      %1113 = vmatprep.mubr.f32.mxu0 0.0
      %v1114 = vand.u32 %v658, 4294901760
      %1115 = vmatmul.mubr.f32.gmra.mrb[0].mxu0 %v1114
      %v1116 = vpop.f32.mrb[0].mxu0
      %v1117 = vadd.f32 %v1028, %v1116
      %v1118 = vpop.f32.mrb[0].mxu0
      %1119 = vdwg.mxu0
      %1120 = vmatprep.subr.mxu0 0.0
      %v1121 = vand.u32 %v627, 4294901760
      %1122 = vmatpush1.msra.mxu0 %v1121
      %1123 = vmatprep.subr.mxu0 0.0
      %v1124 = vand.u32 %v628, 4294901760
      %1125 = vmatpush1.msra.mxu0 %v1124
      %1126 = vmatprep.subr.mxu0 0.0
      %1127 = vmatpush1.msra.mxu0 0.0
      %1128 = vmatprep.subr.mxu0 0.0
      %1129 = vmatpush1.msra.mxu0 0.0
      %1130 = vmatprep.subr.mxu0 0.0
      %1131 = vmatpush1.msra.mxu0 0.0
      %1132 = vmatprep.subr.mxu0 0.0
      %1133 = vmatpush1.msra.mxu0 0.0
      %1134 = vmatprep.subr.mxu0 0.0
      %1135 = vmatpush1.msra.mxu0 0.0
      %1136 = vmatprep.subr.mxu0 0.0
      %1137 = vmatpush1.msra.mxu0 0.0
      %1138 = vmatprep.subr.mxu0 0.0
      %1139 = vmatpush1.msra.mxu0 0.0
      %1140 = vmatprep.subr.mxu0 0.0
      %1141 = vmatpush1.msra.mxu0 0.0
      %1142 = vmatprep.subr.mxu0 0.0
      %1143 = vmatpush1.msra.mxu0 0.0
      %1144 = vmatprep.subr.mxu0 0.0
      %1145 = vmatpush1.msra.mxu0 0.0
      %1146 = vmatprep.subr.mxu0 0.0
      %1147 = vmatpush1.msra.mxu0 0.0
      %1148 = vmatprep.subr.mxu0 0.0
      %1149 = vmatpush1.msra.mxu0 0.0
      %1150 = vmatprep.subr.mxu0 0.0
      %1151 = vmatpush1.msra.mxu0 0.0
      %1152 = vmatprep.subr.mxu0 0.0
      %1153 = vmatpush1.msra.mxu0 0.0
      %1154 = vmatprep.subr.mxu0 0.0
      %1155 = vmatpush1.msra.mxu0 0.0
      %1156 = vmatprep.subr.mxu0 0.0
      %1157 = vmatpush1.msra.mxu0 0.0
      %1158 = vmatprep.subr.mxu0 0.0
      %1159 = vmatpush1.msra.mxu0 0.0
      %1160 = vmatprep.subr.mxu0 0.0
      %1161 = vmatpush1.msra.mxu0 0.0
      %1162 = vmatprep.subr.mxu0 0.0
      %1163 = vmatpush1.msra.mxu0 0.0
      %1164 = vmatprep.subr.mxu0 0.0
      %1165 = vmatpush1.msra.mxu0 0.0
      %1166 = vmatprep.subr.mxu0 0.0
      %1167 = vmatpush1.msra.mxu0 0.0
      %1168 = vmatprep.subr.mxu0 0.0
      %1169 = vmatpush1.msra.mxu0 0.0
      %1170 = vmatprep.subr.mxu0 0.0
      %1171 = vmatpush1.msra.mxu0 0.0
      %1172 = vmatprep.subr.mxu0 0.0
      %1173 = vmatpush1.msra.mxu0 0.0
      %1174 = vmatprep.subr.mxu0 0.0
      %1175 = vmatpush1.msra.mxu0 0.0
      %1176 = vmatprep.subr.mxu0 0.0
      %1177 = vmatpush1.msra.mxu0 0.0
      %1178 = vmatprep.subr.mxu0 0.0
      %1179 = vmatpush1.msra.mxu0 0.0
      %1180 = vmatprep.subr.mxu0 0.0
      %1181 = vmatpush1.msra.mxu0 0.0
      %1182 = vmatprep.subr.mxu0 0.0
      %1183 = vmatpush1.msra.mxu0 0.0
      %1184 = vmatprep.subr.mxu0 0.0
      %1185 = vmatpush1.msra.mxu0 0.0
      %1186 = vmatprep.mubr.f32.mxu0 0.0
      %v1187 = vand.u32 %v652, 4294901760
      %1188 = vmatmul.mubr.f32.gmra.mrb[0].mxu0 %v1187
      %v1189 = vpop.f32.mrb[0].mxu0
      %v1190 = vadd.f32 %v1105, %v1189
      %v1191 = vpop.f32.mrb[0].mxu0
      %1192 = vmatprep.mubr.f32.mxu0 0.0
      %v1193 = vand.u32 %v655, 4294901760
      %1194 = vmatmul.mubr.f32.gmra.mrb[0].mxu0 %v1193
      %v1195 = vpop.f32.mrb[0].mxu0
      %v1196 = vadd.f32 %v1111, %v1195
      %v1197 = vpop.f32.mrb[0].mxu0
      %1198 = vmatprep.mubr.f32.mxu0 0.0
      %v1199 = vand.u32 %v658, 4294901760
      %1200 = vmatmul.mubr.f32.gmra.mrb[0].mxu0 %v1199
      %v1201 = vpop.f32.mrb[0].mxu0
      %v1202 = vadd.f32 %v1117, %v1201
      %v1203 = vpop.f32.mrb[0].mxu0
      %1204 = vdwg.mxu0
      %vm1205 = vcmask 31744
      %v1207 = vsel %vm1205, %v1202, 0
      %v1210 = vsel %vm1205, %v1190, 0
      %1212 = vmatprep.subr.mxu0 0.0
      %v1213 = vand.u32 %v1210, 4294901760
      %1214 = vmatpush1.xpose.msra.mxu0 %v1213
      %1215 = vmatprep.subr.mxu0 0.0
      %1216 = vmatpush1.xpose.msra.mxu0 0.0
      %1217 = vmatprep.subr.mxu0 0.0
      %1218 = vmatpush1.xpose.msra.mxu0 0.0
      %1219 = vmatprep.subr.mxu0 0.0
      %1220 = vmatpush1.xpose.msra.mxu0 0.0
      %1221 = vmatprep.subr.mxu0 0.0
      %1222 = vmatpush1.xpose.msra.mxu0 0.0
      %1223 = vmatprep.subr.mxu0 0.0
      %1224 = vmatpush1.xpose.msra.mxu0 0.0
      %1225 = vmatprep.subr.mxu0 0.0
      %1226 = vmatpush1.xpose.msra.mxu0 0.0
      %1227 = vmatprep.subr.mxu0 0.0
      %1228 = vmatpush1.xpose.msra.mxu0 0.0
      %1229 = vmatprep.subr.mxu0 0.0
      %1230 = vmatpush1.xpose.msra.mxu0 0.0
      %1231 = vmatprep.subr.mxu0 0.0
      %1232 = vmatpush1.xpose.msra.mxu0 0.0
      %1233 = vmatprep.subr.mxu0 0.0
      %1234 = vmatpush1.xpose.msra.mxu0 0.0
      %1235 = vmatprep.subr.mxu0 0.0
      %1236 = vmatpush1.xpose.msra.mxu0 0.0
      %1237 = vmatprep.subr.mxu0 0.0
      %1238 = vmatpush1.xpose.msra.mxu0 0.0
      %1239 = vmatprep.subr.mxu0 0.0
      %1240 = vmatpush1.xpose.msra.mxu0 0.0
      %1241 = vmatprep.subr.mxu0 0.0
      %1242 = vmatpush1.xpose.msra.mxu0 0.0
      %1243 = vmatprep.subr.mxu0 0.0
      %1244 = vmatpush1.xpose.msra.mxu0 0.0
      %1245 = vmatprep.subr.mxu0 0.0
      %1246 = vmatpush1.xpose.msra.mxu0 0.0
      %1247 = vmatprep.subr.mxu0 0.0
      %1248 = vmatpush1.xpose.msra.mxu0 0.0
      %1249 = vmatprep.subr.mxu0 0.0
      %1250 = vmatpush1.xpose.msra.mxu0 0.0
      %1251 = vmatprep.subr.mxu0 0.0
      %1252 = vmatpush1.xpose.msra.mxu0 0.0
      %1253 = vmatprep.subr.mxu0 0.0
      %1254 = vmatpush1.xpose.msra.mxu0 0.0
      %1255 = vmatprep.subr.mxu0 0.0
      %1256 = vmatpush1.xpose.msra.mxu0 0.0
      %1257 = vmatprep.subr.mxu0 0.0
      %1258 = vmatpush1.xpose.msra.mxu0 0.0
      %1259 = vmatprep.subr.mxu0 0.0
      %1260 = vmatpush1.xpose.msra.mxu0 0.0
      %1261 = vmatprep.subr.mxu0 0.0
      %1262 = vmatpush1.xpose.msra.mxu0 0.0
      %1263 = vmatprep.subr.mxu0 0.0
      %1264 = vmatpush1.xpose.msra.mxu0 0.0
      %1265 = vmatprep.subr.mxu0 0.0
      %1266 = vmatpush1.xpose.msra.mxu0 0.0
      %1267 = vmatprep.subr.mxu0 0.0
      %1268 = vmatpush1.xpose.msra.mxu0 0.0
      %1269 = vmatprep.subr.mxu0 0.0
      %1270 = vmatpush1.xpose.msra.mxu0 0.0
      %1271 = vmatprep.subr.mxu0 0.0
      %1272 = vmatpush1.xpose.msra.mxu0 0.0
      %1273 = vmatprep.subr.mxu0 0.0
      %1274 = vmatpush1.xpose.msra.mxu0 0.0
      %1275 = vmatprep.subr.mxu0 0.0
      %1276 = vmatpush1.xpose.msra.mxu0 0.0
      %1277 = vmatprep.mubr.f32.mxu0 0.0
      %v1278 = vand.u32 %v1207, 4294901760
      %v1279 = vsub.f32 %v1207, %v1278
      %v1280 = vand.u32 %v1279, 4294901760
      %v1281 = vsub.f32 %v1279, %v1280
      %v1282 = vand.u32 %v1281, 4294901760
      %1283 = vmatmul.mubr.f32.gmra.mrb[0].mxu0 %v1282
      %v1284 = vpop.f32.mrb[0].mxu0
      %v1285 = vadd.f32 0.0, %v1284
      %v1286 = vpop.f32.mrb[0].mxu0
      %1287 = vdwg.mxu0
      %1288 = vmatprep.subr.mxu0 0.0
      %v1289 = vand.u32 %v1210, 4294901760
      %v1290 = vsub.f32 %v1210, %v1289
      %v1291 = vand.u32 %v1290, 4294901760
      %v1292 = vsub.f32 %v1290, %v1291
      %v1293 = vand.u32 %v1292, 4294901760
      %1294 = vmatpush1.xpose.msra.mxu0 %v1293
      %1295 = vmatprep.subr.mxu0 0.0
      %1296 = vmatpush1.xpose.msra.mxu0 0.0
      %1297 = vmatprep.subr.mxu0 0.0
      %1298 = vmatpush1.xpose.msra.mxu0 0.0
      %1299 = vmatprep.subr.mxu0 0.0
      %1300 = vmatpush1.xpose.msra.mxu0 0.0
      %1301 = vmatprep.subr.mxu0 0.0
      %1302 = vmatpush1.xpose.msra.mxu0 0.0
      %1303 = vmatprep.subr.mxu0 0.0
      %1304 = vmatpush1.xpose.msra.mxu0 0.0
      %1305 = vmatprep.subr.mxu0 0.0
      %1306 = vmatpush1.xpose.msra.mxu0 0.0
      %1307 = vmatprep.subr.mxu0 0.0
      %1308 = vmatpush1.xpose.msra.mxu0 0.0
      %1309 = vmatprep.subr.mxu0 0.0
      %1310 = vmatpush1.xpose.msra.mxu0 0.0
      %1311 = vmatprep.subr.mxu0 0.0
      %1312 = vmatpush1.xpose.msra.mxu0 0.0
      %1313 = vmatprep.subr.mxu0 0.0
      %1314 = vmatpush1.xpose.msra.mxu0 0.0
      %1315 = vmatprep.subr.mxu0 0.0
      %1316 = vmatpush1.xpose.msra.mxu0 0.0
      %1317 = vmatprep.subr.mxu0 0.0
      %1318 = vmatpush1.xpose.msra.mxu0 0.0
      %1319 = vmatprep.subr.mxu0 0.0
      %1320 = vmatpush1.xpose.msra.mxu0 0.0
      %1321 = vmatprep.subr.mxu0 0.0
      %1322 = vmatpush1.xpose.msra.mxu0 0.0
      %1323 = vmatprep.subr.mxu0 0.0
      %1324 = vmatpush1.xpose.msra.mxu0 0.0
      %1325 = vmatprep.subr.mxu0 0.0
      %1326 = vmatpush1.xpose.msra.mxu0 0.0
      %1327 = vmatprep.subr.mxu0 0.0
      %1328 = vmatpush1.xpose.msra.mxu0 0.0
      %1329 = vmatprep.subr.mxu0 0.0
      %1330 = vmatpush1.xpose.msra.mxu0 0.0
      %1331 = vmatprep.subr.mxu0 0.0
      %1332 = vmatpush1.xpose.msra.mxu0 0.0
      %1333 = vmatprep.subr.mxu0 0.0
      %1334 = vmatpush1.xpose.msra.mxu0 0.0
      %1335 = vmatprep.subr.mxu0 0.0
      %1336 = vmatpush1.xpose.msra.mxu0 0.0
      %1337 = vmatprep.subr.mxu0 0.0
      %1338 = vmatpush1.xpose.msra.mxu0 0.0
      %1339 = vmatprep.subr.mxu0 0.0
      %1340 = vmatpush1.xpose.msra.mxu0 0.0
      %1341 = vmatprep.subr.mxu0 0.0
      %1342 = vmatpush1.xpose.msra.mxu0 0.0
      %1343 = vmatprep.subr.mxu0 0.0
      %1344 = vmatpush1.xpose.msra.mxu0 0.0
      %1345 = vmatprep.subr.mxu0 0.0
      %1346 = vmatpush1.xpose.msra.mxu0 0.0
      %1347 = vmatprep.subr.mxu0 0.0
      %1348 = vmatpush1.xpose.msra.mxu0 0.0
      %1349 = vmatprep.subr.mxu0 0.0
      %1350 = vmatpush1.xpose.msra.mxu0 0.0
      %1351 = vmatprep.subr.mxu0 0.0
      %1352 = vmatpush1.xpose.msra.mxu0 0.0
      %1353 = vmatprep.subr.mxu0 0.0
      %1354 = vmatpush1.xpose.msra.mxu0 0.0
      %1355 = vmatprep.subr.mxu0 0.0
      %1356 = vmatpush1.xpose.msra.mxu0 0.0
      %1357 = vmatprep.mubr.f32.mxu0 0.0
      %v1358 = vand.u32 %v1207, 4294901760
      %1359 = vmatmul.mubr.f32.gmra.mrb[0].mxu0 %v1358
      %v1360 = vpop.f32.mrb[0].mxu0
      %v1361 = vadd.f32 %v1285, %v1360
      %v1362 = vpop.f32.mrb[0].mxu0
      %1363 = vdwg.mxu0
      %1364 = vmatprep.subr.mxu0 0.0
      %v1365 = vand.u32 %v1210, 4294901760
      %v1366 = vsub.f32 %v1210, %v1365
      %1367 = vmatpush1.xpose.msra.mxu0 %v1366
      %1368 = vmatprep.subr.mxu0 0.0
      %1369 = vmatpush1.xpose.msra.mxu0 0.0
      %1370 = vmatprep.subr.mxu0 0.0
      %1371 = vmatpush1.xpose.msra.mxu0 0.0
      %1372 = vmatprep.subr.mxu0 0.0
      %1373 = vmatpush1.xpose.msra.mxu0 0.0
      %1374 = vmatprep.subr.mxu0 0.0
      %1375 = vmatpush1.xpose.msra.mxu0 0.0
      %1376 = vmatprep.subr.mxu0 0.0
      %1377 = vmatpush1.xpose.msra.mxu0 0.0
      %1378 = vmatprep.subr.mxu0 0.0
      %1379 = vmatpush1.xpose.msra.mxu0 0.0
      %1380 = vmatprep.subr.mxu0 0.0
      %1381 = vmatpush1.xpose.msra.mxu0 0.0
      %1382 = vmatprep.subr.mxu0 0.0
      %1383 = vmatpush1.xpose.msra.mxu0 0.0
      %1384 = vmatprep.subr.mxu0 0.0
      %1385 = vmatpush1.xpose.msra.mxu0 0.0
      %1386 = vmatprep.subr.mxu0 0.0
      %1387 = vmatpush1.xpose.msra.mxu0 0.0
      %1388 = vmatprep.subr.mxu0 0.0
      %1389 = vmatpush1.xpose.msra.mxu0 0.0
      %1390 = vmatprep.subr.mxu0 0.0
      %1391 = vmatpush1.xpose.msra.mxu0 0.0
      %1392 = vmatprep.subr.mxu0 0.0
      %1393 = vmatpush1.xpose.msra.mxu0 0.0
      %1394 = vmatprep.subr.mxu0 0.0
      %1395 = vmatpush1.xpose.msra.mxu0 0.0
      %1396 = vmatprep.subr.mxu0 0.0
      %1397 = vmatpush1.xpose.msra.mxu0 0.0
      %1398 = vmatprep.subr.mxu0 0.0
      %1399 = vmatpush1.xpose.msra.mxu0 0.0
      %1400 = vmatprep.subr.mxu0 0.0
      %1401 = vmatpush1.xpose.msra.mxu0 0.0
      %1402 = vmatprep.subr.mxu0 0.0
      %1403 = vmatpush1.xpose.msra.mxu0 0.0
      %1404 = vmatprep.subr.mxu0 0.0
      %1405 = vmatpush1.xpose.msra.mxu0 0.0
      %1406 = vmatprep.subr.mxu0 0.0
      %1407 = vmatpush1.xpose.msra.mxu0 0.0
      %1408 = vmatprep.subr.mxu0 0.0
      %1409 = vmatpush1.xpose.msra.mxu0 0.0
      %1410 = vmatprep.subr.mxu0 0.0
      %1411 = vmatpush1.xpose.msra.mxu0 0.0
      %1412 = vmatprep.subr.mxu0 0.0
      %1413 = vmatpush1.xpose.msra.mxu0 0.0
      %1414 = vmatprep.subr.mxu0 0.0
      %1415 = vmatpush1.xpose.msra.mxu0 0.0
      %1416 = vmatprep.subr.mxu0 0.0
      %1417 = vmatpush1.xpose.msra.mxu0 0.0
      %1418 = vmatprep.subr.mxu0 0.0
      %1419 = vmatpush1.xpose.msra.mxu0 0.0
      %1420 = vmatprep.subr.mxu0 0.0
      %1421 = vmatpush1.xpose.msra.mxu0 0.0
      %1422 = vmatprep.subr.mxu0 0.0
      %1423 = vmatpush1.xpose.msra.mxu0 0.0
      %1424 = vmatprep.subr.mxu0 0.0
      %1425 = vmatpush1.xpose.msra.mxu0 0.0
      %1426 = vmatprep.subr.mxu0 0.0
      %1427 = vmatpush1.xpose.msra.mxu0 0.0
      %1428 = vmatprep.subr.mxu0 0.0
      %1429 = vmatpush1.xpose.msra.mxu0 0.0
      %1430 = vmatprep.mubr.f32.mxu0 0.0
      %v1431 = vand.u32 %v1207, 4294901760
      %v1432 = vsub.f32 %v1207, %v1431
      %1433 = vmatmul.mubr.f32.gmra.mrb[0].mxu0 %v1432
      %v1434 = vpop.f32.mrb[0].mxu0
      %v1435 = vadd.f32 %v1361, %v1434
      %v1436 = vpop.f32.mrb[0].mxu0
      %1437 = vdwg.mxu0
      %1438 = vmatprep.subr.mxu0 0.0
      %v1439 = vand.u32 %v1210, 4294901760
      %1440 = vmatpush1.xpose.msra.mxu0 %v1439
      %1441 = vmatprep.subr.mxu0 0.0
      %1442 = vmatpush1.xpose.msra.mxu0 0.0
      %1443 = vmatprep.subr.mxu0 0.0
      %1444 = vmatpush1.xpose.msra.mxu0 0.0
      %1445 = vmatprep.subr.mxu0 0.0
      %1446 = vmatpush1.xpose.msra.mxu0 0.0
      %1447 = vmatprep.subr.mxu0 0.0
      %1448 = vmatpush1.xpose.msra.mxu0 0.0
      %1449 = vmatprep.subr.mxu0 0.0
      %1450 = vmatpush1.xpose.msra.mxu0 0.0
      %1451 = vmatprep.subr.mxu0 0.0
      %1452 = vmatpush1.xpose.msra.mxu0 0.0
      %1453 = vmatprep.subr.mxu0 0.0
      %1454 = vmatpush1.xpose.msra.mxu0 0.0
      %1455 = vmatprep.subr.mxu0 0.0
      %1456 = vmatpush1.xpose.msra.mxu0 0.0
      %1457 = vmatprep.subr.mxu0 0.0
      %1458 = vmatpush1.xpose.msra.mxu0 0.0
      %1459 = vmatprep.subr.mxu0 0.0
      %1460 = vmatpush1.xpose.msra.mxu0 0.0
      %1461 = vmatprep.subr.mxu0 0.0
      %1462 = vmatpush1.xpose.msra.mxu0 0.0
      %1463 = vmatprep.subr.mxu0 0.0
      %1464 = vmatpush1.xpose.msra.mxu0 0.0
      %1465 = vmatprep.subr.mxu0 0.0
      %1466 = vmatpush1.xpose.msra.mxu0 0.0
      %1467 = vmatprep.subr.mxu0 0.0
      %1468 = vmatpush1.xpose.msra.mxu0 0.0
      %1469 = vmatprep.subr.mxu0 0.0
      %1470 = vmatpush1.xpose.msra.mxu0 0.0
      %1471 = vmatprep.subr.mxu0 0.0
      %1472 = vmatpush1.xpose.msra.mxu0 0.0
      %1473 = vmatprep.subr.mxu0 0.0
      %1474 = vmatpush1.xpose.msra.mxu0 0.0
      %1475 = vmatprep.subr.mxu0 0.0
      %1476 = vmatpush1.xpose.msra.mxu0 0.0
      %1477 = vmatprep.subr.mxu0 0.0
      %1478 = vmatpush1.xpose.msra.mxu0 0.0
      %1479 = vmatprep.subr.mxu0 0.0
      %1480 = vmatpush1.xpose.msra.mxu0 0.0
      %1481 = vmatprep.subr.mxu0 0.0
      %1482 = vmatpush1.xpose.msra.mxu0 0.0
      %1483 = vmatprep.subr.mxu0 0.0
      %1484 = vmatpush1.xpose.msra.mxu0 0.0
      %1485 = vmatprep.subr.mxu0 0.0
      %1486 = vmatpush1.xpose.msra.mxu0 0.0
      %1487 = vmatprep.subr.mxu0 0.0
      %1488 = vmatpush1.xpose.msra.mxu0 0.0
      %1489 = vmatprep.subr.mxu0 0.0
      %1490 = vmatpush1.xpose.msra.mxu0 0.0
      %1491 = vmatprep.subr.mxu0 0.0
      %1492 = vmatpush1.xpose.msra.mxu0 0.0
      %1493 = vmatprep.subr.mxu0 0.0
      %1494 = vmatpush1.xpose.msra.mxu0 0.0
      %1495 = vmatprep.subr.mxu0 0.0
      %1496 = vmatpush1.xpose.msra.mxu0 0.0
      %1497 = vmatprep.subr.mxu0 0.0
      %1498 = vmatpush1.xpose.msra.mxu0 0.0
      %1499 = vmatprep.subr.mxu0 0.0
      %1500 = vmatpush1.xpose.msra.mxu0 0.0
      %1501 = vmatprep.subr.mxu0 0.0
      %1502 = vmatpush1.xpose.msra.mxu0 0.0
      %1503 = vmatprep.mubr.f32.mxu0 0.0
      %v1504 = vand.u32 %v1207, 4294901760
      %v1505 = vsub.f32 %v1207, %v1504
      %v1506 = vand.u32 %v1505, 4294901760
      %1507 = vmatmul.mubr.f32.gmra.mrb[0].mxu0 %v1506
      %v1508 = vpop.f32.mrb[0].mxu0
      %v1509 = vadd.f32 %v1435, %v1508
      %v1510 = vpop.f32.mrb[0].mxu0
      %1511 = vdwg.mxu0
      %1512 = vmatprep.subr.mxu0 0.0
      %v1513 = vand.u32 %v1210, 4294901760
      %v1514 = vsub.f32 %v1210, %v1513
      %v1515 = vand.u32 %v1514, 4294901760
      %1516 = vmatpush1.xpose.msra.mxu0 %v1515
      %1517 = vmatprep.subr.mxu0 0.0
      %1518 = vmatpush1.xpose.msra.mxu0 0.0
      %1519 = vmatprep.subr.mxu0 0.0
      %1520 = vmatpush1.xpose.msra.mxu0 0.0
      %1521 = vmatprep.subr.mxu0 0.0
      %1522 = vmatpush1.xpose.msra.mxu0 0.0
      %1523 = vmatprep.subr.mxu0 0.0
      %1524 = vmatpush1.xpose.msra.mxu0 0.0
      %1525 = vmatprep.subr.mxu0 0.0
      %1526 = vmatpush1.xpose.msra.mxu0 0.0
      %1527 = vmatprep.subr.mxu0 0.0
      %1528 = vmatpush1.xpose.msra.mxu0 0.0
      %1529 = vmatprep.subr.mxu0 0.0
      %1530 = vmatpush1.xpose.msra.mxu0 0.0
      %1531 = vmatprep.subr.mxu0 0.0
      %1532 = vmatpush1.xpose.msra.mxu0 0.0
      %1533 = vmatprep.subr.mxu0 0.0
      %1534 = vmatpush1.xpose.msra.mxu0 0.0
      %1535 = vmatprep.subr.mxu0 0.0
      %1536 = vmatpush1.xpose.msra.mxu0 0.0
      %1537 = vmatprep.subr.mxu0 0.0
      %1538 = vmatpush1.xpose.msra.mxu0 0.0
      %1539 = vmatprep.subr.mxu0 0.0
      %1540 = vmatpush1.xpose.msra.mxu0 0.0
      %1541 = vmatprep.subr.mxu0 0.0
      %1542 = vmatpush1.xpose.msra.mxu0 0.0
      %1543 = vmatprep.subr.mxu0 0.0
      %1544 = vmatpush1.xpose.msra.mxu0 0.0
      %1545 = vmatprep.subr.mxu0 0.0
      %1546 = vmatpush1.xpose.msra.mxu0 0.0
      %1547 = vmatprep.subr.mxu0 0.0
      %1548 = vmatpush1.xpose.msra.mxu0 0.0
      %1549 = vmatprep.subr.mxu0 0.0
      %1550 = vmatpush1.xpose.msra.mxu0 0.0
      %1551 = vmatprep.subr.mxu0 0.0
      %1552 = vmatpush1.xpose.msra.mxu0 0.0
      %1553 = vmatprep.subr.mxu0 0.0
      %1554 = vmatpush1.xpose.msra.mxu0 0.0
      %1555 = vmatprep.subr.mxu0 0.0
      %1556 = vmatpush1.xpose.msra.mxu0 0.0
      %1557 = vmatprep.subr.mxu0 0.0
      %1558 = vmatpush1.xpose.msra.mxu0 0.0
      %1559 = vmatprep.subr.mxu0 0.0
      %1560 = vmatpush1.xpose.msra.mxu0 0.0
      %1561 = vmatprep.subr.mxu0 0.0
      %1562 = vmatpush1.xpose.msra.mxu0 0.0
      %1563 = vmatprep.subr.mxu0 0.0
      %1564 = vmatpush1.xpose.msra.mxu0 0.0
      %1565 = vmatprep.subr.mxu0 0.0
      %1566 = vmatpush1.xpose.msra.mxu0 0.0
      %1567 = vmatprep.subr.mxu0 0.0
      %1568 = vmatpush1.xpose.msra.mxu0 0.0
      %1569 = vmatprep.subr.mxu0 0.0
      %1570 = vmatpush1.xpose.msra.mxu0 0.0
      %1571 = vmatprep.subr.mxu0 0.0
      %1572 = vmatpush1.xpose.msra.mxu0 0.0
      %1573 = vmatprep.subr.mxu0 0.0
      %1574 = vmatpush1.xpose.msra.mxu0 0.0
      %1575 = vmatprep.subr.mxu0 0.0
      %1576 = vmatpush1.xpose.msra.mxu0 0.0
      %1577 = vmatprep.subr.mxu0 0.0
      %1578 = vmatpush1.xpose.msra.mxu0 0.0
      %1579 = vmatprep.mubr.f32.mxu0 0.0
      %v1580 = vand.u32 %v1207, 4294901760
      %1581 = vmatmul.mubr.f32.gmra.mrb[0].mxu0 %v1580
      %v1582 = vpop.f32.mrb[0].mxu0
      %v1583 = vadd.f32 %v1509, %v1582
      %v1584 = vpop.f32.mrb[0].mxu0
      %1585 = vdwg.mxu0
      %1586 = vmatprep.subr.mxu0 0.0
      %v1587 = vand.u32 %v1210, 4294901760
      %1588 = vmatpush1.xpose.msra.mxu0 %v1587
      %1589 = vmatprep.subr.mxu0 0.0
      %1590 = vmatpush1.xpose.msra.mxu0 0.0
      %1591 = vmatprep.subr.mxu0 0.0
      %1592 = vmatpush1.xpose.msra.mxu0 0.0
      %1593 = vmatprep.subr.mxu0 0.0
      %1594 = vmatpush1.xpose.msra.mxu0 0.0
      %1595 = vmatprep.subr.mxu0 0.0
      %1596 = vmatpush1.xpose.msra.mxu0 0.0
      %1597 = vmatprep.subr.mxu0 0.0
      %1598 = vmatpush1.xpose.msra.mxu0 0.0
      %1599 = vmatprep.subr.mxu0 0.0
      %1600 = vmatpush1.xpose.msra.mxu0 0.0
      %1601 = vmatprep.subr.mxu0 0.0
      %1602 = vmatpush1.xpose.msra.mxu0 0.0
      %1603 = vmatprep.subr.mxu0 0.0
      %1604 = vmatpush1.xpose.msra.mxu0 0.0
      %1605 = vmatprep.subr.mxu0 0.0
      %1606 = vmatpush1.xpose.msra.mxu0 0.0
      %1607 = vmatprep.subr.mxu0 0.0
      %1608 = vmatpush1.xpose.msra.mxu0 0.0
      %1609 = vmatprep.subr.mxu0 0.0
      %1610 = vmatpush1.xpose.msra.mxu0 0.0
      %1611 = vmatprep.subr.mxu0 0.0
      %1612 = vmatpush1.xpose.msra.mxu0 0.0
      %1613 = vmatprep.subr.mxu0 0.0
      %1614 = vmatpush1.xpose.msra.mxu0 0.0
      %1615 = vmatprep.subr.mxu0 0.0
      %1616 = vmatpush1.xpose.msra.mxu0 0.0
      %1617 = vmatprep.subr.mxu0 0.0
      %1618 = vmatpush1.xpose.msra.mxu0 0.0
      %1619 = vmatprep.subr.mxu0 0.0
      %1620 = vmatpush1.xpose.msra.mxu0 0.0
      %1621 = vmatprep.subr.mxu0 0.0
      %1622 = vmatpush1.xpose.msra.mxu0 0.0
      %1623 = vmatprep.subr.mxu0 0.0
      %1624 = vmatpush1.xpose.msra.mxu0 0.0
      %1625 = vmatprep.subr.mxu0 0.0
      %1626 = vmatpush1.xpose.msra.mxu0 0.0
      %1627 = vmatprep.subr.mxu0 0.0
      %1628 = vmatpush1.xpose.msra.mxu0 0.0
      %1629 = vmatprep.subr.mxu0 0.0
      %1630 = vmatpush1.xpose.msra.mxu0 0.0
      %1631 = vmatprep.subr.mxu0 0.0
      %1632 = vmatpush1.xpose.msra.mxu0 0.0
      %1633 = vmatprep.subr.mxu0 0.0
      %1634 = vmatpush1.xpose.msra.mxu0 0.0
      %1635 = vmatprep.subr.mxu0 0.0
      %1636 = vmatpush1.xpose.msra.mxu0 0.0
      %1637 = vmatprep.subr.mxu0 0.0
      %1638 = vmatpush1.xpose.msra.mxu0 0.0
      %1639 = vmatprep.subr.mxu0 0.0
      %1640 = vmatpush1.xpose.msra.mxu0 0.0
      %1641 = vmatprep.subr.mxu0 0.0
      %1642 = vmatpush1.xpose.msra.mxu0 0.0
      %1643 = vmatprep.subr.mxu0 0.0
      %1644 = vmatpush1.xpose.msra.mxu0 0.0
      %1645 = vmatprep.subr.mxu0 0.0
      %1646 = vmatpush1.xpose.msra.mxu0 0.0
      %1647 = vmatprep.subr.mxu0 0.0
      %1648 = vmatpush1.xpose.msra.mxu0 0.0
      %1649 = vmatprep.subr.mxu0 0.0
      %1650 = vmatpush1.xpose.msra.mxu0 0.0
      %1651 = vmatprep.mubr.f32.mxu0 0.0
      %v1652 = vand.u32 %v1207, 4294901760
      %1653 = vmatmul.mubr.f32.gmra.mrb[0].mxu0 %v1652
      %v1654 = vpop.f32.mrb[0].mxu0
      %v1655 = vadd.f32 %v1583, %v1654
      %v1656 = vpop.f32.mrb[0].mxu0
      %1657 = vdwg.mxu0
      %vm1658 = vcmask 64512
      %v1659 = vsel %vm1658, %v1655, -inf
      %v1660 = vrot.slane %v1659, 4
      %v1661 = vmax.f32 %v1659, %v1660
      %v1662 = vrot.slane %v1661, 2
      %v1663 = vmax.f32 %v1661, %v1662
      %v1664 = vrot.slane %v1663, 1
      %v1665 = vmax.f32 %v1663, %v1664
      %v1666 = vsub.f32 %v1655, %v1665
      %v1667 = vmul.f32 %v1666, 1.442695
      %v1668 = vpow.pop %v1667
      %v1669 = vsel %vm1658, %v1668, 0.0
      %v1670 = vrot.slane %v1669, 4
      %v1671 = vadd.f32 %v1669, %v1670
      %v1672 = vrot.slane %v1671, 2
      %v1673 = vadd.f32 %v1671, %v1672
      %v1674 = vrot.slane %v1673, 1
      %v1675 = vadd.f32 %v1673, %v1674
      %v1676 = vrcp.pop %v1675
      %v1677 = vmul.f32 %v1668, %v1676
      %v1679 = vsel %vm1658, %v1677, 0
      %1681 = vmatprep.subr.mxu0 0.0
      %v1682 = vand.u32 %v1196, 4294901760
      %1683 = vmatpush1.msra.mxu0 %v1682
      %1684 = vmatprep.subr.mxu0 0.0
      %1685 = vmatpush1.msra.mxu0 0.0
      %1686 = vmatprep.subr.mxu0 0.0
      %1687 = vmatpush1.msra.mxu0 0.0
      %1688 = vmatprep.subr.mxu0 0.0
      %1689 = vmatpush1.msra.mxu0 0.0
      %1690 = vmatprep.subr.mxu0 0.0
      %1691 = vmatpush1.msra.mxu0 0.0
      %1692 = vmatprep.subr.mxu0 0.0
      %1693 = vmatpush1.msra.mxu0 0.0
      %1694 = vmatprep.subr.mxu0 0.0
      %1695 = vmatpush1.msra.mxu0 0.0
      %1696 = vmatprep.subr.mxu0 0.0
      %1697 = vmatpush1.msra.mxu0 0.0
      %1698 = vmatprep.subr.mxu0 0.0
      %1699 = vmatpush1.msra.mxu0 0.0
      %1700 = vmatprep.subr.mxu0 0.0
      %1701 = vmatpush1.msra.mxu0 0.0
      %1702 = vmatprep.subr.mxu0 0.0
      %1703 = vmatpush1.msra.mxu0 0.0
      %1704 = vmatprep.subr.mxu0 0.0
      %1705 = vmatpush1.msra.mxu0 0.0
      %1706 = vmatprep.subr.mxu0 0.0
      %1707 = vmatpush1.msra.mxu0 0.0
      %1708 = vmatprep.subr.mxu0 0.0
      %1709 = vmatpush1.msra.mxu0 0.0
      %1710 = vmatprep.subr.mxu0 0.0
      %1711 = vmatpush1.msra.mxu0 0.0
      %1712 = vmatprep.subr.mxu0 0.0
      %1713 = vmatpush1.msra.mxu0 0.0
      %1714 = vmatprep.subr.mxu0 0.0
      %1715 = vmatpush1.msra.mxu0 0.0
      %1716 = vmatprep.subr.mxu0 0.0
      %1717 = vmatpush1.msra.mxu0 0.0
      %1718 = vmatprep.subr.mxu0 0.0
      %1719 = vmatpush1.msra.mxu0 0.0
      %1720 = vmatprep.subr.mxu0 0.0
      %1721 = vmatpush1.msra.mxu0 0.0
      %1722 = vmatprep.subr.mxu0 0.0
      %1723 = vmatpush1.msra.mxu0 0.0
      %1724 = vmatprep.subr.mxu0 0.0
      %1725 = vmatpush1.msra.mxu0 0.0
      %1726 = vmatprep.subr.mxu0 0.0
      %1727 = vmatpush1.msra.mxu0 0.0
      %1728 = vmatprep.subr.mxu0 0.0
      %1729 = vmatpush1.msra.mxu0 0.0
      %1730 = vmatprep.subr.mxu0 0.0
      %1731 = vmatpush1.msra.mxu0 0.0
      %1732 = vmatprep.subr.mxu0 0.0
      %1733 = vmatpush1.msra.mxu0 0.0
      %1734 = vmatprep.subr.mxu0 0.0
      %1735 = vmatpush1.msra.mxu0 0.0
      %1736 = vmatprep.subr.mxu0 0.0
      %1737 = vmatpush1.msra.mxu0 0.0
      %1738 = vmatprep.subr.mxu0 0.0
      %1739 = vmatpush1.msra.mxu0 0.0
      %1740 = vmatprep.subr.mxu0 0.0
      %1741 = vmatpush1.msra.mxu0 0.0
      %1742 = vmatprep.subr.mxu0 0.0
      %1743 = vmatpush1.msra.mxu0 0.0
      %1744 = vmatprep.subr.mxu0 0.0
      %1745 = vmatpush1.msra.mxu0 0.0
      %1746 = vmatprep.mubr.f32.mxu0 0.0
      %v1747 = vand.u32 %v1679, 4294901760
      %v1748 = vsub.f32 %v1679, %v1747
      %v1749 = vand.u32 %v1748, 4294901760
      %v1750 = vsub.f32 %v1748, %v1749
      %v1751 = vand.u32 %v1750, 4294901760
      %1752 = vmatmul.mubr.f32.gmra.mrb[0].mxu0 %v1751
      %v1753 = vpop.f32.mrb[0].mxu0
      %v1754 = vadd.f32 0.0, %v1753
      %v1755 = vpop.f32.mrb[0].mxu0
      %1756 = vdwg.mxu0
      %1757 = vmatprep.subr.mxu0 0.0
      %v1758 = vand.u32 %v1196, 4294901760
      %v1759 = vsub.f32 %v1196, %v1758
      %v1760 = vand.u32 %v1759, 4294901760
      %v1761 = vsub.f32 %v1759, %v1760
      %v1762 = vand.u32 %v1761, 4294901760
      %1763 = vmatpush1.msra.mxu0 %v1762
      %1764 = vmatprep.subr.mxu0 0.0
      %1765 = vmatpush1.msra.mxu0 0.0
      %1766 = vmatprep.subr.mxu0 0.0
      %1767 = vmatpush1.msra.mxu0 0.0
      %1768 = vmatprep.subr.mxu0 0.0
      %1769 = vmatpush1.msra.mxu0 0.0
      %1770 = vmatprep.subr.mxu0 0.0
      %1771 = vmatpush1.msra.mxu0 0.0
      %1772 = vmatprep.subr.mxu0 0.0
      %1773 = vmatpush1.msra.mxu0 0.0
      %1774 = vmatprep.subr.mxu0 0.0
      %1775 = vmatpush1.msra.mxu0 0.0
      %1776 = vmatprep.subr.mxu0 0.0
      %1777 = vmatpush1.msra.mxu0 0.0
      %1778 = vmatprep.subr.mxu0 0.0
      %1779 = vmatpush1.msra.mxu0 0.0
      %1780 = vmatprep.subr.mxu0 0.0
      %1781 = vmatpush1.msra.mxu0 0.0
      %1782 = vmatprep.subr.mxu0 0.0
      %1783 = vmatpush1.msra.mxu0 0.0
      %1784 = vmatprep.subr.mxu0 0.0
      %1785 = vmatpush1.msra.mxu0 0.0
      %1786 = vmatprep.subr.mxu0 0.0
      %1787 = vmatpush1.msra.mxu0 0.0
      %1788 = vmatprep.subr.mxu0 0.0
      %1789 = vmatpush1.msra.mxu0 0.0
      %1790 = vmatprep.subr.mxu0 0.0
      %1791 = vmatpush1.msra.mxu0 0.0
      %1792 = vmatprep.subr.mxu0 0.0
      %1793 = vmatpush1.msra.mxu0 0.0
      %1794 = vmatprep.subr.mxu0 0.0
      %1795 = vmatpush1.msra.mxu0 0.0
      %1796 = vmatprep.subr.mxu0 0.0
      %1797 = vmatpush1.msra.mxu0 0.0
      %1798 = vmatprep.subr.mxu0 0.0
      %1799 = vmatpush1.msra.mxu0 0.0
      %1800 = vmatprep.subr.mxu0 0.0
      %1801 = vmatpush1.msra.mxu0 0.0
      %1802 = vmatprep.subr.mxu0 0.0
      %1803 = vmatpush1.msra.mxu0 0.0
      %1804 = vmatprep.subr.mxu0 0.0
      %1805 = vmatpush1.msra.mxu0 0.0
      %1806 = vmatprep.subr.mxu0 0.0
      %1807 = vmatpush1.msra.mxu0 0.0
      %1808 = vmatprep.subr.mxu0 0.0
      %1809 = vmatpush1.msra.mxu0 0.0
      %1810 = vmatprep.subr.mxu0 0.0
      %1811 = vmatpush1.msra.mxu0 0.0
      %1812 = vmatprep.subr.mxu0 0.0
      %1813 = vmatpush1.msra.mxu0 0.0
      %1814 = vmatprep.subr.mxu0 0.0
      %1815 = vmatpush1.msra.mxu0 0.0
      %1816 = vmatprep.subr.mxu0 0.0
      %1817 = vmatpush1.msra.mxu0 0.0
      %1818 = vmatprep.subr.mxu0 0.0
      %1819 = vmatpush1.msra.mxu0 0.0
      %1820 = vmatprep.subr.mxu0 0.0
      %1821 = vmatpush1.msra.mxu0 0.0
      %1822 = vmatprep.subr.mxu0 0.0
      %1823 = vmatpush1.msra.mxu0 0.0
      %1824 = vmatprep.subr.mxu0 0.0
      %1825 = vmatpush1.msra.mxu0 0.0
      %1826 = vmatprep.mubr.f32.mxu0 0.0
      %v1827 = vand.u32 %v1679, 4294901760
      %1828 = vmatmul.mubr.f32.gmra.mrb[0].mxu0 %v1827
      %v1829 = vpop.f32.mrb[0].mxu0
      %v1830 = vadd.f32 %v1754, %v1829
      %v1831 = vpop.f32.mrb[0].mxu0
      %1832 = vdwg.mxu0
      %1833 = vmatprep.subr.mxu0 0.0
      %v1834 = vand.u32 %v1196, 4294901760
      %v1835 = vsub.f32 %v1196, %v1834
      %1836 = vmatpush1.msra.mxu0 %v1835
      %1837 = vmatprep.subr.mxu0 0.0
      %1838 = vmatpush1.msra.mxu0 0.0
      %1839 = vmatprep.subr.mxu0 0.0
      %1840 = vmatpush1.msra.mxu0 0.0
      %1841 = vmatprep.subr.mxu0 0.0
      %1842 = vmatpush1.msra.mxu0 0.0
      %1843 = vmatprep.subr.mxu0 0.0
      %1844 = vmatpush1.msra.mxu0 0.0
      %1845 = vmatprep.subr.mxu0 0.0
      %1846 = vmatpush1.msra.mxu0 0.0
      %1847 = vmatprep.subr.mxu0 0.0
      %1848 = vmatpush1.msra.mxu0 0.0
      %1849 = vmatprep.subr.mxu0 0.0
      %1850 = vmatpush1.msra.mxu0 0.0
      %1851 = vmatprep.subr.mxu0 0.0
      %1852 = vmatpush1.msra.mxu0 0.0
      %1853 = vmatprep.subr.mxu0 0.0
      %1854 = vmatpush1.msra.mxu0 0.0
      %1855 = vmatprep.subr.mxu0 0.0
      %1856 = vmatpush1.msra.mxu0 0.0
      %1857 = vmatprep.subr.mxu0 0.0
      %1858 = vmatpush1.msra.mxu0 0.0
      %1859 = vmatprep.subr.mxu0 0.0
      %1860 = vmatpush1.msra.mxu0 0.0
      %1861 = vmatprep.subr.mxu0 0.0
      %1862 = vmatpush1.msra.mxu0 0.0
      %1863 = vmatprep.subr.mxu0 0.0
      %1864 = vmatpush1.msra.mxu0 0.0
      %1865 = vmatprep.subr.mxu0 0.0
      %1866 = vmatpush1.msra.mxu0 0.0
      %1867 = vmatprep.subr.mxu0 0.0
      %1868 = vmatpush1.msra.mxu0 0.0
      %1869 = vmatprep.subr.mxu0 0.0
      %1870 = vmatpush1.msra.mxu0 0.0
      %1871 = vmatprep.subr.mxu0 0.0
      %1872 = vmatpush1.msra.mxu0 0.0
      %1873 = vmatprep.subr.mxu0 0.0
      %1874 = vmatpush1.msra.mxu0 0.0
      %1875 = vmatprep.subr.mxu0 0.0
      %1876 = vmatpush1.msra.mxu0 0.0
      %1877 = vmatprep.subr.mxu0 0.0
      %1878 = vmatpush1.msra.mxu0 0.0
      %1879 = vmatprep.subr.mxu0 0.0
      %1880 = vmatpush1.msra.mxu0 0.0
      %1881 = vmatprep.subr.mxu0 0.0
      %1882 = vmatpush1.msra.mxu0 0.0
      %1883 = vmatprep.subr.mxu0 0.0
      %1884 = vmatpush1.msra.mxu0 0.0
      %1885 = vmatprep.subr.mxu0 0.0
      %1886 = vmatpush1.msra.mxu0 0.0
      %1887 = vmatprep.subr.mxu0 0.0
      %1888 = vmatpush1.msra.mxu0 0.0
      %1889 = vmatprep.subr.mxu0 0.0
      %1890 = vmatpush1.msra.mxu0 0.0
      %1891 = vmatprep.subr.mxu0 0.0
      %1892 = vmatpush1.msra.mxu0 0.0
      %1893 = vmatprep.subr.mxu0 0.0
      %1894 = vmatpush1.msra.mxu0 0.0
      %1895 = vmatprep.subr.mxu0 0.0
      %1896 = vmatpush1.msra.mxu0 0.0
      %1897 = vmatprep.subr.mxu0 0.0
      %1898 = vmatpush1.msra.mxu0 0.0
      %1899 = vmatprep.mubr.f32.mxu0 0.0
      %v1900 = vand.u32 %v1679, 4294901760
      %v1901 = vsub.f32 %v1679, %v1900
      %1902 = vmatmul.mubr.f32.gmra.mrb[0].mxu0 %v1901
      %v1903 = vpop.f32.mrb[0].mxu0
      %v1904 = vadd.f32 %v1830, %v1903
      %v1905 = vpop.f32.mrb[0].mxu0
      %1906 = vdwg.mxu0
      %1907 = vmatprep.subr.mxu0 0.0
      %v1908 = vand.u32 %v1196, 4294901760
      %1909 = vmatpush1.msra.mxu0 %v1908
      %1910 = vmatprep.subr.mxu0 0.0
      %1911 = vmatpush1.msra.mxu0 0.0
      %1912 = vmatprep.subr.mxu0 0.0
      %1913 = vmatpush1.msra.mxu0 0.0
      %1914 = vmatprep.subr.mxu0 0.0
      %1915 = vmatpush1.msra.mxu0 0.0
      %1916 = vmatprep.subr.mxu0 0.0
      %1917 = vmatpush1.msra.mxu0 0.0
      %1918 = vmatprep.subr.mxu0 0.0
      %1919 = vmatpush1.msra.mxu0 0.0
      %1920 = vmatprep.subr.mxu0 0.0
      %1921 = vmatpush1.msra.mxu0 0.0
      %1922 = vmatprep.subr.mxu0 0.0
      %1923 = vmatpush1.msra.mxu0 0.0
      %1924 = vmatprep.subr.mxu0 0.0
      %1925 = vmatpush1.msra.mxu0 0.0
      %1926 = vmatprep.subr.mxu0 0.0
      %1927 = vmatpush1.msra.mxu0 0.0
      %1928 = vmatprep.subr.mxu0 0.0
      %1929 = vmatpush1.msra.mxu0 0.0
      %1930 = vmatprep.subr.mxu0 0.0
      %1931 = vmatpush1.msra.mxu0 0.0
      %1932 = vmatprep.subr.mxu0 0.0
      %1933 = vmatpush1.msra.mxu0 0.0
      %1934 = vmatprep.subr.mxu0 0.0
      %1935 = vmatpush1.msra.mxu0 0.0
      %1936 = vmatprep.subr.mxu0 0.0
      %1937 = vmatpush1.msra.mxu0 0.0
      %1938 = vmatprep.subr.mxu0 0.0
      %1939 = vmatpush1.msra.mxu0 0.0
      %1940 = vmatprep.subr.mxu0 0.0
      %1941 = vmatpush1.msra.mxu0 0.0
      %1942 = vmatprep.subr.mxu0 0.0
      %1943 = vmatpush1.msra.mxu0 0.0
      %1944 = vmatprep.subr.mxu0 0.0
      %1945 = vmatpush1.msra.mxu0 0.0
      %1946 = vmatprep.subr.mxu0 0.0
      %1947 = vmatpush1.msra.mxu0 0.0
      %1948 = vmatprep.subr.mxu0 0.0
      %1949 = vmatpush1.msra.mxu0 0.0
      %1950 = vmatprep.subr.mxu0 0.0
      %1951 = vmatpush1.msra.mxu0 0.0
      %1952 = vmatprep.subr.mxu0 0.0
      %1953 = vmatpush1.msra.mxu0 0.0
      %1954 = vmatprep.subr.mxu0 0.0
      %1955 = vmatpush1.msra.mxu0 0.0
      %1956 = vmatprep.subr.mxu0 0.0
      %1957 = vmatpush1.msra.mxu0 0.0
      %1958 = vmatprep.subr.mxu0 0.0
      %1959 = vmatpush1.msra.mxu0 0.0
      %1960 = vmatprep.subr.mxu0 0.0
      %1961 = vmatpush1.msra.mxu0 0.0
      %1962 = vmatprep.subr.mxu0 0.0
      %1963 = vmatpush1.msra.mxu0 0.0
      %1964 = vmatprep.subr.mxu0 0.0
      %1965 = vmatpush1.msra.mxu0 0.0
      %1966 = vmatprep.subr.mxu0 0.0
      %1967 = vmatpush1.msra.mxu0 0.0
      %1968 = vmatprep.subr.mxu0 0.0
      %1969 = vmatpush1.msra.mxu0 0.0
      %1970 = vmatprep.subr.mxu0 0.0
      %1971 = vmatpush1.msra.mxu0 0.0
      %1972 = vmatprep.mubr.f32.mxu0 0.0
      %v1973 = vand.u32 %v1679, 4294901760
      %v1974 = vsub.f32 %v1679, %v1973
      %v1975 = vand.u32 %v1974, 4294901760
      %1976 = vmatmul.mubr.f32.gmra.mrb[0].mxu0 %v1975
      %v1977 = vpop.f32.mrb[0].mxu0
      %v1978 = vadd.f32 %v1904, %v1977
      %v1979 = vpop.f32.mrb[0].mxu0
      %1980 = vdwg.mxu0
      %1981 = vmatprep.subr.mxu0 0.0
      %v1982 = vand.u32 %v1196, 4294901760
      %v1983 = vsub.f32 %v1196, %v1982
      %v1984 = vand.u32 %v1983, 4294901760
      %1985 = vmatpush1.msra.mxu0 %v1984
      %1986 = vmatprep.subr.mxu0 0.0
      %1987 = vmatpush1.msra.mxu0 0.0
      %1988 = vmatprep.subr.mxu0 0.0
      %1989 = vmatpush1.msra.mxu0 0.0
      %1990 = vmatprep.subr.mxu0 0.0
      %1991 = vmatpush1.msra.mxu0 0.0
      %1992 = vmatprep.subr.mxu0 0.0
      %1993 = vmatpush1.msra.mxu0 0.0
      %1994 = vmatprep.subr.mxu0 0.0
      %1995 = vmatpush1.msra.mxu0 0.0
      %1996 = vmatprep.subr.mxu0 0.0
      %1997 = vmatpush1.msra.mxu0 0.0
      %1998 = vmatprep.subr.mxu0 0.0
      %1999 = vmatpush1.msra.mxu0 0.0
      %2000 = vmatprep.subr.mxu0 0.0
      %2001 = vmatpush1.msra.mxu0 0.0
      %2002 = vmatprep.subr.mxu0 0.0
      %2003 = vmatpush1.msra.mxu0 0.0
      %2004 = vmatprep.subr.mxu0 0.0
      %2005 = vmatpush1.msra.mxu0 0.0
      %2006 = vmatprep.subr.mxu0 0.0
      %2007 = vmatpush1.msra.mxu0 0.0
      %2008 = vmatprep.subr.mxu0 0.0
      %2009 = vmatpush1.msra.mxu0 0.0
      %2010 = vmatprep.subr.mxu0 0.0
      %2011 = vmatpush1.msra.mxu0 0.0
      %2012 = vmatprep.subr.mxu0 0.0
      %2013 = vmatpush1.msra.mxu0 0.0
      %2014 = vmatprep.subr.mxu0 0.0
      %2015 = vmatpush1.msra.mxu0 0.0
      %2016 = vmatprep.subr.mxu0 0.0
      %2017 = vmatpush1.msra.mxu0 0.0
      %2018 = vmatprep.subr.mxu0 0.0
      %2019 = vmatpush1.msra.mxu0 0.0
      %2020 = vmatprep.subr.mxu0 0.0
      %2021 = vmatpush1.msra.mxu0 0.0
      %2022 = vmatprep.subr.mxu0 0.0
      %2023 = vmatpush1.msra.mxu0 0.0
      %2024 = vmatprep.subr.mxu0 0.0
      %2025 = vmatpush1.msra.mxu0 0.0
      %2026 = vmatprep.subr.mxu0 0.0
      %2027 = vmatpush1.msra.mxu0 0.0
      %2028 = vmatprep.subr.mxu0 0.0
      %2029 = vmatpush1.msra.mxu0 0.0
      %2030 = vmatprep.subr.mxu0 0.0
      %2031 = vmatpush1.msra.mxu0 0.0
      %2032 = vmatprep.subr.mxu0 0.0
      %2033 = vmatpush1.msra.mxu0 0.0
      %2034 = vmatprep.subr.mxu0 0.0
      %2035 = vmatpush1.msra.mxu0 0.0
      %2036 = vmatprep.subr.mxu0 0.0
      %2037 = vmatpush1.msra.mxu0 0.0
      %2038 = vmatprep.subr.mxu0 0.0
      %2039 = vmatpush1.msra.mxu0 0.0
      %2040 = vmatprep.subr.mxu0 0.0
      %2041 = vmatpush1.msra.mxu0 0.0
      %2042 = vmatprep.subr.mxu0 0.0
      %2043 = vmatpush1.msra.mxu0 0.0
      %2044 = vmatprep.subr.mxu0 0.0
      %2045 = vmatpush1.msra.mxu0 0.0
      %2046 = vmatprep.subr.mxu0 0.0
      %2047 = vmatpush1.msra.mxu0 0.0
      %2048 = vmatprep.mubr.f32.mxu0 0.0
      %v2049 = vand.u32 %v1679, 4294901760
      %2050 = vmatmul.mubr.f32.gmra.mrb[0].mxu0 %v2049
      %v2051 = vpop.f32.mrb[0].mxu0
      %v2052 = vadd.f32 %v1978, %v2051
      %v2053 = vpop.f32.mrb[0].mxu0
      %2054 = vdwg.mxu0
      %2055 = vmatprep.subr.mxu0 0.0
      %v2056 = vand.u32 %v1196, 4294901760
      %2057 = vmatpush1.msra.mxu0 %v2056
      %2058 = vmatprep.subr.mxu0 0.0
      %2059 = vmatpush1.msra.mxu0 0.0
      %2060 = vmatprep.subr.mxu0 0.0
      %2061 = vmatpush1.msra.mxu0 0.0
      %2062 = vmatprep.subr.mxu0 0.0
      %2063 = vmatpush1.msra.mxu0 0.0
      %2064 = vmatprep.subr.mxu0 0.0
      %2065 = vmatpush1.msra.mxu0 0.0
      %2066 = vmatprep.subr.mxu0 0.0
      %2067 = vmatpush1.msra.mxu0 0.0
      %2068 = vmatprep.subr.mxu0 0.0
      %2069 = vmatpush1.msra.mxu0 0.0
      %2070 = vmatprep.subr.mxu0 0.0
      %2071 = vmatpush1.msra.mxu0 0.0
      %2072 = vmatprep.subr.mxu0 0.0
      %2073 = vmatpush1.msra.mxu0 0.0
      %2074 = vmatprep.subr.mxu0 0.0
      %2075 = vmatpush1.msra.mxu0 0.0
      %2076 = vmatprep.subr.mxu0 0.0
      %2077 = vmatpush1.msra.mxu0 0.0
      %2078 = vmatprep.subr.mxu0 0.0
      %2079 = vmatpush1.msra.mxu0 0.0
      %2080 = vmatprep.subr.mxu0 0.0
      %2081 = vmatpush1.msra.mxu0 0.0
      %2082 = vmatprep.subr.mxu0 0.0
      %2083 = vmatpush1.msra.mxu0 0.0
      %2084 = vmatprep.subr.mxu0 0.0
      %2085 = vmatpush1.msra.mxu0 0.0
      %2086 = vmatprep.subr.mxu0 0.0
      %2087 = vmatpush1.msra.mxu0 0.0
      %2088 = vmatprep.subr.mxu0 0.0
      %2089 = vmatpush1.msra.mxu0 0.0
      %2090 = vmatprep.subr.mxu0 0.0
      %2091 = vmatpush1.msra.mxu0 0.0
      %2092 = vmatprep.subr.mxu0 0.0
      %2093 = vmatpush1.msra.mxu0 0.0
      %2094 = vmatprep.subr.mxu0 0.0
      %2095 = vmatpush1.msra.mxu0 0.0
      %2096 = vmatprep.subr.mxu0 0.0
      %2097 = vmatpush1.msra.mxu0 0.0
      %2098 = vmatprep.subr.mxu0 0.0
      %2099 = vmatpush1.msra.mxu0 0.0
      %2100 = vmatprep.subr.mxu0 0.0
      %2101 = vmatpush1.msra.mxu0 0.0
      %2102 = vmatprep.subr.mxu0 0.0
      %2103 = vmatpush1.msra.mxu0 0.0
      %2104 = vmatprep.subr.mxu0 0.0
      %2105 = vmatpush1.msra.mxu0 0.0
      %2106 = vmatprep.subr.mxu0 0.0
      %2107 = vmatpush1.msra.mxu0 0.0
      %2108 = vmatprep.subr.mxu0 0.0
      %2109 = vmatpush1.msra.mxu0 0.0
      %2110 = vmatprep.subr.mxu0 0.0
      %2111 = vmatpush1.msra.mxu0 0.0
      %2112 = vmatprep.subr.mxu0 0.0
      %2113 = vmatpush1.msra.mxu0 0.0
      %2114 = vmatprep.subr.mxu0 0.0
      %2115 = vmatpush1.msra.mxu0 0.0
      %2116 = vmatprep.subr.mxu0 0.0
      %2117 = vmatpush1.msra.mxu0 0.0
      %2118 = vmatprep.subr.mxu0 0.0
      %2119 = vmatpush1.msra.mxu0 0.0
      %2120 = vmatprep.mubr.f32.mxu0 0.0
      %v2121 = vand.u32 %v1679, 4294901760
      %2122 = vmatmul.mubr.f32.gmra.mrb[0].mxu0 %v2121
      %v2123 = vpop.f32.mrb[0].mxu0
      %v2124 = vadd.f32 %v2052, %v2123
      %v2125 = vpop.f32.mrb[0].mxu0
      %2126 = vdwg.mxu0
      %v2127 = vld [vmem:[%s12] sm:$0xff]
      %v2128 = vld [vmem:[%s13] sm:$0xff]
      %2130 = vset.pattern.permute.xlu0 0
      %2131 = vperm.xlu0 %2130, %v2128
      %v2132 = vpop.permute.xlu0 %2131
      %v2135 = vsel %vm1658, %v2127, 0
      %2137 = vmatprep.subr.mxu0 0.0
      %v2138 = vand.u32 %v2124, 4294901760
      %2139 = vmatpush1.msra.mxu0 %v2138
      %2140 = vmatprep.subr.mxu0 0.0
      %2141 = vmatpush1.msra.mxu0 0.0
      %2142 = vmatprep.subr.mxu0 0.0
      %2143 = vmatpush1.msra.mxu0 0.0
      %2144 = vmatprep.subr.mxu0 0.0
      %2145 = vmatpush1.msra.mxu0 0.0
      %2146 = vmatprep.subr.mxu0 0.0
      %2147 = vmatpush1.msra.mxu0 0.0
      %2148 = vmatprep.subr.mxu0 0.0
      %2149 = vmatpush1.msra.mxu0 0.0
      %2150 = vmatprep.subr.mxu0 0.0
      %2151 = vmatpush1.msra.mxu0 0.0
      %2152 = vmatprep.subr.mxu0 0.0
      %2153 = vmatpush1.msra.mxu0 0.0
      %2154 = vmatprep.subr.mxu0 0.0
      %2155 = vmatpush1.msra.mxu0 0.0
      %2156 = vmatprep.subr.mxu0 0.0
      %2157 = vmatpush1.msra.mxu0 0.0
      %2158 = vmatprep.subr.mxu0 0.0
      %2159 = vmatpush1.msra.mxu0 0.0
      %2160 = vmatprep.subr.mxu0 0.0
      %2161 = vmatpush1.msra.mxu0 0.0
      %2162 = vmatprep.subr.mxu0 0.0
      %2163 = vmatpush1.msra.mxu0 0.0
      %2164 = vmatprep.subr.mxu0 0.0
      %2165 = vmatpush1.msra.mxu0 0.0
      %2166 = vmatprep.subr.mxu0 0.0
      %2167 = vmatpush1.msra.mxu0 0.0
      %2168 = vmatprep.subr.mxu0 0.0
      %2169 = vmatpush1.msra.mxu0 0.0
      %2170 = vmatprep.subr.mxu0 0.0
      %2171 = vmatpush1.msra.mxu0 0.0
      %2172 = vmatprep.subr.mxu0 0.0
      %2173 = vmatpush1.msra.mxu0 0.0
      %2174 = vmatprep.subr.mxu0 0.0
      %2175 = vmatpush1.msra.mxu0 0.0
      %2176 = vmatprep.subr.mxu0 0.0
      %2177 = vmatpush1.msra.mxu0 0.0
      %2178 = vmatprep.subr.mxu0 0.0
      %2179 = vmatpush1.msra.mxu0 0.0
      %2180 = vmatprep.subr.mxu0 0.0
      %2181 = vmatpush1.msra.mxu0 0.0
      %2182 = vmatprep.subr.mxu0 0.0
      %2183 = vmatpush1.msra.mxu0 0.0
      %2184 = vmatprep.subr.mxu0 0.0
      %2185 = vmatpush1.msra.mxu0 0.0
      %2186 = vmatprep.subr.mxu0 0.0
      %2187 = vmatpush1.msra.mxu0 0.0
      %2188 = vmatprep.subr.mxu0 0.0
      %2189 = vmatpush1.msra.mxu0 0.0
      %2190 = vmatprep.subr.mxu0 0.0
      %2191 = vmatpush1.msra.mxu0 0.0
      %2192 = vmatprep.subr.mxu0 0.0
      %2193 = vmatpush1.msra.mxu0 0.0
      %2194 = vmatprep.subr.mxu0 0.0
      %2195 = vmatpush1.msra.mxu0 0.0
      %2196 = vmatprep.subr.mxu0 0.0
      %2197 = vmatpush1.msra.mxu0 0.0
      %2198 = vmatprep.subr.mxu0 0.0
      %2199 = vmatpush1.msra.mxu0 0.0
      %2200 = vmatprep.subr.mxu0 0.0
      %2201 = vmatpush1.msra.mxu0 0.0
      %2202 = vmatprep.mubr.f32.mxu0 0.0
      %v2203 = vand.u32 %v2135, 4294901760
      %v2204 = vsub.f32 %v2135, %v2203
      %v2205 = vand.u32 %v2204, 4294901760
      %v2206 = vsub.f32 %v2204, %v2205
      %v2207 = vand.u32 %v2206, 4294901760
      %2208 = vmatmul.mubr.f32.gmra.mrb[0].mxu0 %v2207
      %v2209 = vpop.f32.mrb[0].mxu0
      %v2210 = vadd.f32 %v2132, %v2209
      %v2211 = vpop.f32.mrb[0].mxu0
      %2212 = vdwg.mxu0
      %2213 = vmatprep.subr.mxu0 0.0
      %v2214 = vand.u32 %v2124, 4294901760
      %v2215 = vsub.f32 %v2124, %v2214
      %v2216 = vand.u32 %v2215, 4294901760
      %v2217 = vsub.f32 %v2215, %v2216
      %v2218 = vand.u32 %v2217, 4294901760
      %2219 = vmatpush1.msra.mxu0 %v2218
      %2220 = vmatprep.subr.mxu0 0.0
      %2221 = vmatpush1.msra.mxu0 0.0
      %2222 = vmatprep.subr.mxu0 0.0
      %2223 = vmatpush1.msra.mxu0 0.0
      %2224 = vmatprep.subr.mxu0 0.0
      %2225 = vmatpush1.msra.mxu0 0.0
      %2226 = vmatprep.subr.mxu0 0.0
      %2227 = vmatpush1.msra.mxu0 0.0
      %2228 = vmatprep.subr.mxu0 0.0
      %2229 = vmatpush1.msra.mxu0 0.0
      %2230 = vmatprep.subr.mxu0 0.0
      %2231 = vmatpush1.msra.mxu0 0.0
      %2232 = vmatprep.subr.mxu0 0.0
      %2233 = vmatpush1.msra.mxu0 0.0
      %2234 = vmatprep.subr.mxu0 0.0
      %2235 = vmatpush1.msra.mxu0 0.0
      %2236 = vmatprep.subr.mxu0 0.0
      %2237 = vmatpush1.msra.mxu0 0.0
      %2238 = vmatprep.subr.mxu0 0.0
      %2239 = vmatpush1.msra.mxu0 0.0
      %2240 = vmatprep.subr.mxu0 0.0
      %2241 = vmatpush1.msra.mxu0 0.0
      %2242 = vmatprep.subr.mxu0 0.0
      %2243 = vmatpush1.msra.mxu0 0.0
      %2244 = vmatprep.subr.mxu0 0.0
      %2245 = vmatpush1.msra.mxu0 0.0
      %2246 = vmatprep.subr.mxu0 0.0
      %2247 = vmatpush1.msra.mxu0 0.0
      %2248 = vmatprep.subr.mxu0 0.0
      %2249 = vmatpush1.msra.mxu0 0.0
      %2250 = vmatprep.subr.mxu0 0.0
      %2251 = vmatpush1.msra.mxu0 0.0
      %2252 = vmatprep.subr.mxu0 0.0
      %2253 = vmatpush1.msra.mxu0 0.0
      %2254 = vmatprep.subr.mxu0 0.0
      %2255 = vmatpush1.msra.mxu0 0.0
      %2256 = vmatprep.subr.mxu0 0.0
      %2257 = vmatpush1.msra.mxu0 0.0
      %2258 = vmatprep.subr.mxu0 0.0
      %2259 = vmatpush1.msra.mxu0 0.0
      %2260 = vmatprep.subr.mxu0 0.0
      %2261 = vmatpush1.msra.mxu0 0.0
      %2262 = vmatprep.subr.mxu0 0.0
      %2263 = vmatpush1.msra.mxu0 0.0
      %2264 = vmatprep.subr.mxu0 0.0
      %2265 = vmatpush1.msra.mxu0 0.0
      %2266 = vmatprep.subr.mxu0 0.0
      %2267 = vmatpush1.msra.mxu0 0.0
      %2268 = vmatprep.subr.mxu0 0.0
      %2269 = vmatpush1.msra.mxu0 0.0
      %2270 = vmatprep.subr.mxu0 0.0
      %2271 = vmatpush1.msra.mxu0 0.0
      %2272 = vmatprep.subr.mxu0 0.0
      %2273 = vmatpush1.msra.mxu0 0.0
      %2274 = vmatprep.subr.mxu0 0.0
      %2275 = vmatpush1.msra.mxu0 0.0
      %2276 = vmatprep.subr.mxu0 0.0
      %2277 = vmatpush1.msra.mxu0 0.0
      %2278 = vmatprep.subr.mxu0 0.0
      %2279 = vmatpush1.msra.mxu0 0.0
      %2280 = vmatprep.subr.mxu0 0.0
      %2281 = vmatpush1.msra.mxu0 0.0
      %2282 = vmatprep.mubr.f32.mxu0 0.0
      %v2283 = vand.u32 %v2135, 4294901760
      %2284 = vmatmul.mubr.f32.gmra.mrb[0].mxu0 %v2283
      %v2285 = vpop.f32.mrb[0].mxu0
      %v2286 = vadd.f32 %v2210, %v2285
      %v2287 = vpop.f32.mrb[0].mxu0
      %2288 = vdwg.mxu0
      %2289 = vmatprep.subr.mxu0 0.0
      %v2290 = vand.u32 %v2124, 4294901760
      %v2291 = vsub.f32 %v2124, %v2290
      %2292 = vmatpush1.msra.mxu0 %v2291
      %2293 = vmatprep.subr.mxu0 0.0
      %2294 = vmatpush1.msra.mxu0 0.0
      %2295 = vmatprep.subr.mxu0 0.0
      %2296 = vmatpush1.msra.mxu0 0.0
      %2297 = vmatprep.subr.mxu0 0.0
      %2298 = vmatpush1.msra.mxu0 0.0
      %2299 = vmatprep.subr.mxu0 0.0
      %2300 = vmatpush1.msra.mxu0 0.0
      %2301 = vmatprep.subr.mxu0 0.0
      %2302 = vmatpush1.msra.mxu0 0.0
      %2303 = vmatprep.subr.mxu0 0.0
      %2304 = vmatpush1.msra.mxu0 0.0
      %2305 = vmatprep.subr.mxu0 0.0
      %2306 = vmatpush1.msra.mxu0 0.0
      %2307 = vmatprep.subr.mxu0 0.0
      %2308 = vmatpush1.msra.mxu0 0.0
      %2309 = vmatprep.subr.mxu0 0.0
      %2310 = vmatpush1.msra.mxu0 0.0
      %2311 = vmatprep.subr.mxu0 0.0
      %2312 = vmatpush1.msra.mxu0 0.0
      %2313 = vmatprep.subr.mxu0 0.0
      %2314 = vmatpush1.msra.mxu0 0.0
      %2315 = vmatprep.subr.mxu0 0.0
      %2316 = vmatpush1.msra.mxu0 0.0
      %2317 = vmatprep.subr.mxu0 0.0
      %2318 = vmatpush1.msra.mxu0 0.0
      %2319 = vmatprep.subr.mxu0 0.0
      %2320 = vmatpush1.msra.mxu0 0.0
      %2321 = vmatprep.subr.mxu0 0.0
      %2322 = vmatpush1.msra.mxu0 0.0
      %2323 = vmatprep.subr.mxu0 0.0
      %2324 = vmatpush1.msra.mxu0 0.0
      %2325 = vmatprep.subr.mxu0 0.0
      %2326 = vmatpush1.msra.mxu0 0.0
      %2327 = vmatprep.subr.mxu0 0.0
      %2328 = vmatpush1.msra.mxu0 0.0
      %2329 = vmatprep.subr.mxu0 0.0
      %2330 = vmatpush1.msra.mxu0 0.0
      %2331 = vmatprep.subr.mxu0 0.0
      %2332 = vmatpush1.msra.mxu0 0.0
      %2333 = vmatprep.subr.mxu0 0.0
      %2334 = vmatpush1.msra.mxu0 0.0
      %2335 = vmatprep.subr.mxu0 0.0
      %2336 = vmatpush1.msra.mxu0 0.0
      %2337 = vmatprep.subr.mxu0 0.0
      %2338 = vmatpush1.msra.mxu0 0.0
      %2339 = vmatprep.subr.mxu0 0.0
      %2340 = vmatpush1.msra.mxu0 0.0
      %2341 = vmatprep.subr.mxu0 0.0
      %2342 = vmatpush1.msra.mxu0 0.0
      %2343 = vmatprep.subr.mxu0 0.0
      %2344 = vmatpush1.msra.mxu0 0.0
      %2345 = vmatprep.subr.mxu0 0.0
      %2346 = vmatpush1.msra.mxu0 0.0
      %2347 = vmatprep.subr.mxu0 0.0
      %2348 = vmatpush1.msra.mxu0 0.0
      %2349 = vmatprep.subr.mxu0 0.0
      %2350 = vmatpush1.msra.mxu0 0.0
      %2351 = vmatprep.subr.mxu0 0.0
      %2352 = vmatpush1.msra.mxu0 0.0
      %2353 = vmatprep.subr.mxu0 0.0
      %2354 = vmatpush1.msra.mxu0 0.0
      %2355 = vmatprep.mubr.f32.mxu0 0.0
      %v2356 = vand.u32 %v2135, 4294901760
      %v2357 = vsub.f32 %v2135, %v2356
      %2358 = vmatmul.mubr.f32.gmra.mrb[0].mxu0 %v2357
      %v2359 = vpop.f32.mrb[0].mxu0
      %v2360 = vadd.f32 %v2286, %v2359
      %v2361 = vpop.f32.mrb[0].mxu0
      %2362 = vdwg.mxu0
      %2363 = vmatprep.subr.mxu0 0.0
      %v2364 = vand.u32 %v2124, 4294901760
      %2365 = vmatpush1.msra.mxu0 %v2364
      %2366 = vmatprep.subr.mxu0 0.0
      %2367 = vmatpush1.msra.mxu0 0.0
      %2368 = vmatprep.subr.mxu0 0.0
      %2369 = vmatpush1.msra.mxu0 0.0
      %2370 = vmatprep.subr.mxu0 0.0
      %2371 = vmatpush1.msra.mxu0 0.0
      %2372 = vmatprep.subr.mxu0 0.0
      %2373 = vmatpush1.msra.mxu0 0.0
      %2374 = vmatprep.subr.mxu0 0.0
      %2375 = vmatpush1.msra.mxu0 0.0
      %2376 = vmatprep.subr.mxu0 0.0
      %2377 = vmatpush1.msra.mxu0 0.0
      %2378 = vmatprep.subr.mxu0 0.0
      %2379 = vmatpush1.msra.mxu0 0.0
      %2380 = vmatprep.subr.mxu0 0.0
      %2381 = vmatpush1.msra.mxu0 0.0
      %2382 = vmatprep.subr.mxu0 0.0
      %2383 = vmatpush1.msra.mxu0 0.0
      %2384 = vmatprep.subr.mxu0 0.0
      %2385 = vmatpush1.msra.mxu0 0.0
      %2386 = vmatprep.subr.mxu0 0.0
      %2387 = vmatpush1.msra.mxu0 0.0
      %2388 = vmatprep.subr.mxu0 0.0
      %2389 = vmatpush1.msra.mxu0 0.0
      %2390 = vmatprep.subr.mxu0 0.0
      %2391 = vmatpush1.msra.mxu0 0.0
      %2392 = vmatprep.subr.mxu0 0.0
      %2393 = vmatpush1.msra.mxu0 0.0
      %2394 = vmatprep.subr.mxu0 0.0
      %2395 = vmatpush1.msra.mxu0 0.0
      %2396 = vmatprep.subr.mxu0 0.0
      %2397 = vmatpush1.msra.mxu0 0.0
      %2398 = vmatprep.subr.mxu0 0.0
      %2399 = vmatpush1.msra.mxu0 0.0
      %2400 = vmatprep.subr.mxu0 0.0
      %2401 = vmatpush1.msra.mxu0 0.0
      %2402 = vmatprep.subr.mxu0 0.0
      %2403 = vmatpush1.msra.mxu0 0.0
      %2404 = vmatprep.subr.mxu0 0.0
      %2405 = vmatpush1.msra.mxu0 0.0
      %2406 = vmatprep.subr.mxu0 0.0
      %2407 = vmatpush1.msra.mxu0 0.0
      %2408 = vmatprep.subr.mxu0 0.0
      %2409 = vmatpush1.msra.mxu0 0.0
      %2410 = vmatprep.subr.mxu0 0.0
      %2411 = vmatpush1.msra.mxu0 0.0
      %2412 = vmatprep.subr.mxu0 0.0
      %2413 = vmatpush1.msra.mxu0 0.0
      %2414 = vmatprep.subr.mxu0 0.0
      %2415 = vmatpush1.msra.mxu0 0.0
      %2416 = vmatprep.subr.mxu0 0.0
      %2417 = vmatpush1.msra.mxu0 0.0
      %2418 = vmatprep.subr.mxu0 0.0
      %2419 = vmatpush1.msra.mxu0 0.0
      %2420 = vmatprep.subr.mxu0 0.0
      %2421 = vmatpush1.msra.mxu0 0.0
      %2422 = vmatprep.subr.mxu0 0.0
      %2423 = vmatpush1.msra.mxu0 0.0
      %2424 = vmatprep.subr.mxu0 0.0
      %2425 = vmatpush1.msra.mxu0 0.0
      %2426 = vmatprep.subr.mxu0 0.0
      %2427 = vmatpush1.msra.mxu0 0.0
      %2428 = vmatprep.mubr.f32.mxu0 0.0
      %v2429 = vand.u32 %v2135, 4294901760
      %v2430 = vsub.f32 %v2135, %v2429
      %v2431 = vand.u32 %v2430, 4294901760
      %2432 = vmatmul.mubr.f32.gmra.mrb[0].mxu0 %v2431
      %v2433 = vpop.f32.mrb[0].mxu0
      %v2434 = vadd.f32 %v2360, %v2433
      %v2435 = vpop.f32.mrb[0].mxu0
      %2436 = vdwg.mxu0
      %2437 = vmatprep.subr.mxu0 0.0
      %v2438 = vand.u32 %v2124, 4294901760
      %v2439 = vsub.f32 %v2124, %v2438
      %v2440 = vand.u32 %v2439, 4294901760
      %2441 = vmatpush1.msra.mxu0 %v2440
      %2442 = vmatprep.subr.mxu0 0.0
      %2443 = vmatpush1.msra.mxu0 0.0
      %2444 = vmatprep.subr.mxu0 0.0
      %2445 = vmatpush1.msra.mxu0 0.0
      %2446 = vmatprep.subr.mxu0 0.0
      %2447 = vmatpush1.msra.mxu0 0.0
      %2448 = vmatprep.subr.mxu0 0.0
      %2449 = vmatpush1.msra.mxu0 0.0
      %2450 = vmatprep.subr.mxu0 0.0
      %2451 = vmatpush1.msra.mxu0 0.0
      %2452 = vmatprep.subr.mxu0 0.0
      %2453 = vmatpush1.msra.mxu0 0.0
      %2454 = vmatprep.subr.mxu0 0.0
      %2455 = vmatpush1.msra.mxu0 0.0
      %2456 = vmatprep.subr.mxu0 0.0
      %2457 = vmatpush1.msra.mxu0 0.0
      %2458 = vmatprep.subr.mxu0 0.0
      %2459 = vmatpush1.msra.mxu0 0.0
      %2460 = vmatprep.subr.mxu0 0.0
      %2461 = vmatpush1.msra.mxu0 0.0
      %2462 = vmatprep.subr.mxu0 0.0
      %2463 = vmatpush1.msra.mxu0 0.0
      %2464 = vmatprep.subr.mxu0 0.0
      %2465 = vmatpush1.msra.mxu0 0.0
      %2466 = vmatprep.subr.mxu0 0.0
      %2467 = vmatpush1.msra.mxu0 0.0
      %2468 = vmatprep.subr.mxu0 0.0
      %2469 = vmatpush1.msra.mxu0 0.0
      %2470 = vmatprep.subr.mxu0 0.0
      %2471 = vmatpush1.msra.mxu0 0.0
      %2472 = vmatprep.subr.mxu0 0.0
      %2473 = vmatpush1.msra.mxu0 0.0
      %2474 = vmatprep.subr.mxu0 0.0
      %2475 = vmatpush1.msra.mxu0 0.0
      %2476 = vmatprep.subr.mxu0 0.0
      %2477 = vmatpush1.msra.mxu0 0.0
      %2478 = vmatprep.subr.mxu0 0.0
      %2479 = vmatpush1.msra.mxu0 0.0
      %2480 = vmatprep.subr.mxu0 0.0
      %2481 = vmatpush1.msra.mxu0 0.0
      %2482 = vmatprep.subr.mxu0 0.0
      %2483 = vmatpush1.msra.mxu0 0.0
      %2484 = vmatprep.subr.mxu0 0.0
      %2485 = vmatpush1.msra.mxu0 0.0
      %2486 = vmatprep.subr.mxu0 0.0
      %2487 = vmatpush1.msra.mxu0 0.0
      %2488 = vmatprep.subr.mxu0 0.0
      %2489 = vmatpush1.msra.mxu0 0.0
      %2490 = vmatprep.subr.mxu0 0.0
      %2491 = vmatpush1.msra.mxu0 0.0
      %2492 = vmatprep.subr.mxu0 0.0
      %2493 = vmatpush1.msra.mxu0 0.0
      %2494 = vmatprep.subr.mxu0 0.0
      %2495 = vmatpush1.msra.mxu0 0.0
      %2496 = vmatprep.subr.mxu0 0.0
      %2497 = vmatpush1.msra.mxu0 0.0
      %2498 = vmatprep.subr.mxu0 0.0
      %2499 = vmatpush1.msra.mxu0 0.0
      %2500 = vmatprep.subr.mxu0 0.0
      %2501 = vmatpush1.msra.mxu0 0.0
      %2502 = vmatprep.subr.mxu0 0.0
      %2503 = vmatpush1.msra.mxu0 0.0
      %2504 = vmatprep.mubr.f32.mxu0 0.0
      %v2505 = vand.u32 %v2135, 4294901760
      %2506 = vmatmul.mubr.f32.gmra.mrb[0].mxu0 %v2505
      %v2507 = vpop.f32.mrb[0].mxu0
      %v2508 = vadd.f32 %v2434, %v2507
      %v2509 = vpop.f32.mrb[0].mxu0
      %2510 = vdwg.mxu0
      %2511 = vmatprep.subr.mxu0 0.0
      %v2512 = vand.u32 %v2124, 4294901760
      %2513 = vmatpush1.msra.mxu0 %v2512
      %2514 = vmatprep.subr.mxu0 0.0
      %2515 = vmatpush1.msra.mxu0 0.0
      %2516 = vmatprep.subr.mxu0 0.0
      %2517 = vmatpush1.msra.mxu0 0.0
      %2518 = vmatprep.subr.mxu0 0.0
      %2519 = vmatpush1.msra.mxu0 0.0
      %2520 = vmatprep.subr.mxu0 0.0
      %2521 = vmatpush1.msra.mxu0 0.0
      %2522 = vmatprep.subr.mxu0 0.0
      %2523 = vmatpush1.msra.mxu0 0.0
      %2524 = vmatprep.subr.mxu0 0.0
      %2525 = vmatpush1.msra.mxu0 0.0
      %2526 = vmatprep.subr.mxu0 0.0
      %2527 = vmatpush1.msra.mxu0 0.0
      %2528 = vmatprep.subr.mxu0 0.0
      %2529 = vmatpush1.msra.mxu0 0.0
      %2530 = vmatprep.subr.mxu0 0.0
      %2531 = vmatpush1.msra.mxu0 0.0
      %2532 = vmatprep.subr.mxu0 0.0
      %2533 = vmatpush1.msra.mxu0 0.0
      %2534 = vmatprep.subr.mxu0 0.0
      %2535 = vmatpush1.msra.mxu0 0.0
      %2536 = vmatprep.subr.mxu0 0.0
      %2537 = vmatpush1.msra.mxu0 0.0
      %2538 = vmatprep.subr.mxu0 0.0
      %2539 = vmatpush1.msra.mxu0 0.0
      %2540 = vmatprep.subr.mxu0 0.0
      %2541 = vmatpush1.msra.mxu0 0.0
      %2542 = vmatprep.subr.mxu0 0.0
      %2543 = vmatpush1.msra.mxu0 0.0
      %2544 = vmatprep.subr.mxu0 0.0
      %2545 = vmatpush1.msra.mxu0 0.0
      %2546 = vmatprep.subr.mxu0 0.0
      %2547 = vmatpush1.msra.mxu0 0.0
      %2548 = vmatprep.subr.mxu0 0.0
      %2549 = vmatpush1.msra.mxu0 0.0
      %2550 = vmatprep.subr.mxu0 0.0
      %2551 = vmatpush1.msra.mxu0 0.0
      %2552 = vmatprep.subr.mxu0 0.0
      %2553 = vmatpush1.msra.mxu0 0.0
      %2554 = vmatprep.subr.mxu0 0.0
      %2555 = vmatpush1.msra.mxu0 0.0
      %2556 = vmatprep.subr.mxu0 0.0
      %2557 = vmatpush1.msra.mxu0 0.0
      %2558 = vmatprep.subr.mxu0 0.0
      %2559 = vmatpush1.msra.mxu0 0.0
      %2560 = vmatprep.subr.mxu0 0.0
      %2561 = vmatpush1.msra.mxu0 0.0
      %2562 = vmatprep.subr.mxu0 0.0
      %2563 = vmatpush1.msra.mxu0 0.0
      %2564 = vmatprep.subr.mxu0 0.0
      %2565 = vmatpush1.msra.mxu0 0.0
      %2566 = vmatprep.subr.mxu0 0.0
      %2567 = vmatpush1.msra.mxu0 0.0
      %2568 = vmatprep.subr.mxu0 0.0
      %2569 = vmatpush1.msra.mxu0 0.0
      %2570 = vmatprep.subr.mxu0 0.0
      %2571 = vmatpush1.msra.mxu0 0.0
      %2572 = vmatprep.subr.mxu0 0.0
      %2573 = vmatpush1.msra.mxu0 0.0
      %2574 = vmatprep.subr.mxu0 0.0
      %2575 = vmatpush1.msra.mxu0 0.0
      %2576 = vmatprep.mubr.f32.mxu0 0.0
      %v2577 = vand.u32 %v2135, 4294901760
      %2578 = vmatmul.mubr.f32.gmra.mrb[0].mxu0 %v2577
      %v2579 = vpop.f32.mrb[0].mxu0
      %v2580 = vadd.f32 %v2508, %v2579
      %v2581 = vpop.f32.mrb[0].mxu0
      %2582 = vdwg.mxu0
      %v2583 = vld [vmem:[%s14] sm:$0xff]
      %v2584 = vld [vmem:[%s14 + $0x8] sm:$0xff]
      %v2585 = vld [vmem:[%s15] sm:$0xff]
      %v2586 = vld [vmem:[%s15 + $0x8] sm:$0xff]
      %2588 = vset.pattern.permute.xlu0 0
      %2589 = vperm.xlu0 %2588, %v2585
      %v2590 = vpop.permute.xlu0 %2589
      %2593 = vset.pattern.permute.xlu0 0
      %2594 = vperm.xlu0 %2593, %v2586
      %v2595 = vpop.permute.xlu0 %2594
      %v2598 = vsel %vm1658, %v2583, 0
      %v2601 = vsel %vm1658, %v2584, 0
      %2603 = vmatprep.subr.mxu0 0.0
      %v2604 = vand.u32 %v2580, 4294901760
      %2605 = vmatpush1.msra.mxu0 %v2604
      %2606 = vmatprep.subr.mxu0 0.0
      %2607 = vmatpush1.msra.mxu0 0.0
      %2608 = vmatprep.subr.mxu0 0.0
      %2609 = vmatpush1.msra.mxu0 0.0
      %2610 = vmatprep.subr.mxu0 0.0
      %2611 = vmatpush1.msra.mxu0 0.0
      %2612 = vmatprep.subr.mxu0 0.0
      %2613 = vmatpush1.msra.mxu0 0.0
      %2614 = vmatprep.subr.mxu0 0.0
      %2615 = vmatpush1.msra.mxu0 0.0
      %2616 = vmatprep.subr.mxu0 0.0
      %2617 = vmatpush1.msra.mxu0 0.0
      %2618 = vmatprep.subr.mxu0 0.0
      %2619 = vmatpush1.msra.mxu0 0.0
      %2620 = vmatprep.subr.mxu0 0.0
      %2621 = vmatpush1.msra.mxu0 0.0
      %2622 = vmatprep.subr.mxu0 0.0
      %2623 = vmatpush1.msra.mxu0 0.0
      %2624 = vmatprep.subr.mxu0 0.0
      %2625 = vmatpush1.msra.mxu0 0.0
      %2626 = vmatprep.subr.mxu0 0.0
      %2627 = vmatpush1.msra.mxu0 0.0
      %2628 = vmatprep.subr.mxu0 0.0
      %2629 = vmatpush1.msra.mxu0 0.0
      %2630 = vmatprep.subr.mxu0 0.0
      %2631 = vmatpush1.msra.mxu0 0.0
      %2632 = vmatprep.subr.mxu0 0.0
      %2633 = vmatpush1.msra.mxu0 0.0
      %2634 = vmatprep.subr.mxu0 0.0
      %2635 = vmatpush1.msra.mxu0 0.0
      %2636 = vmatprep.subr.mxu0 0.0
      %2637 = vmatpush1.msra.mxu0 0.0
      %2638 = vmatprep.subr.mxu0 0.0
      %2639 = vmatpush1.msra.mxu0 0.0
      %2640 = vmatprep.subr.mxu0 0.0
      %2641 = vmatpush1.msra.mxu0 0.0
      %2642 = vmatprep.subr.mxu0 0.0
      %2643 = vmatpush1.msra.mxu0 0.0
      %2644 = vmatprep.subr.mxu0 0.0
      %2645 = vmatpush1.msra.mxu0 0.0
      %2646 = vmatprep.subr.mxu0 0.0
      %2647 = vmatpush1.msra.mxu0 0.0
      %2648 = vmatprep.subr.mxu0 0.0
      %2649 = vmatpush1.msra.mxu0 0.0
      %2650 = vmatprep.subr.mxu0 0.0
      %2651 = vmatpush1.msra.mxu0 0.0
      %2652 = vmatprep.subr.mxu0 0.0
      %2653 = vmatpush1.msra.mxu0 0.0
      %2654 = vmatprep.subr.mxu0 0.0
      %2655 = vmatpush1.msra.mxu0 0.0
      %2656 = vmatprep.subr.mxu0 0.0
      %2657 = vmatpush1.msra.mxu0 0.0
      %2658 = vmatprep.subr.mxu0 0.0
      %2659 = vmatpush1.msra.mxu0 0.0
      %2660 = vmatprep.subr.mxu0 0.0
      %2661 = vmatpush1.msra.mxu0 0.0
      %2662 = vmatprep.subr.mxu0 0.0
      %2663 = vmatpush1.msra.mxu0 0.0
      %2664 = vmatprep.subr.mxu0 0.0
      %2665 = vmatpush1.msra.mxu0 0.0
      %2666 = vmatprep.subr.mxu0 0.0
      %2667 = vmatpush1.msra.mxu0 0.0
      %2668 = vmatprep.mubr.f32.mxu0 0.0
      %v2669 = vand.u32 %v2598, 4294901760
      %v2670 = vsub.f32 %v2598, %v2669
      %v2671 = vand.u32 %v2670, 4294901760
      %v2672 = vsub.f32 %v2670, %v2671
      %v2673 = vand.u32 %v2672, 4294901760
      %2674 = vmatmul.mubr.f32.gmra.mrb[0].mxu0 %v2673
      %v2675 = vpop.f32.mrb[0].mxu0
      %v2676 = vadd.f32 %v2590, %v2675
      %v2677 = vpop.f32.mrb[0].mxu0
      %2678 = vmatprep.mubr.f32.mxu0 0.0
      %v2679 = vand.u32 %v2601, 4294901760
      %v2680 = vsub.f32 %v2601, %v2679
      %v2681 = vand.u32 %v2680, 4294901760
      %v2682 = vsub.f32 %v2680, %v2681
      %v2683 = vand.u32 %v2682, 4294901760
      %2684 = vmatmul.mubr.f32.gmra.mrb[0].mxu0 %v2683
      %v2685 = vpop.f32.mrb[0].mxu0
      %v2686 = vadd.f32 %v2595, %v2685
      %v2687 = vpop.f32.mrb[0].mxu0
      %2688 = vdwg.mxu0
      %2689 = vmatprep.subr.mxu0 0.0
      %v2690 = vand.u32 %v2580, 4294901760
      %v2691 = vsub.f32 %v2580, %v2690
      %v2692 = vand.u32 %v2691, 4294901760
      %v2693 = vsub.f32 %v2691, %v2692
      %v2694 = vand.u32 %v2693, 4294901760
      %2695 = vmatpush1.msra.mxu0 %v2694
      %2696 = vmatprep.subr.mxu0 0.0
      %2697 = vmatpush1.msra.mxu0 0.0
      %2698 = vmatprep.subr.mxu0 0.0
      %2699 = vmatpush1.msra.mxu0 0.0
      %2700 = vmatprep.subr.mxu0 0.0
      %2701 = vmatpush1.msra.mxu0 0.0
      %2702 = vmatprep.subr.mxu0 0.0
      %2703 = vmatpush1.msra.mxu0 0.0
      %2704 = vmatprep.subr.mxu0 0.0
      %2705 = vmatpush1.msra.mxu0 0.0
      %2706 = vmatprep.subr.mxu0 0.0
      %2707 = vmatpush1.msra.mxu0 0.0
      %2708 = vmatprep.subr.mxu0 0.0
      %2709 = vmatpush1.msra.mxu0 0.0
      %2710 = vmatprep.subr.mxu0 0.0
      %2711 = vmatpush1.msra.mxu0 0.0
      %2712 = vmatprep.subr.mxu0 0.0
      %2713 = vmatpush1.msra.mxu0 0.0
      %2714 = vmatprep.subr.mxu0 0.0
      %2715 = vmatpush1.msra.mxu0 0.0
      %2716 = vmatprep.subr.mxu0 0.0
      %2717 = vmatpush1.msra.mxu0 0.0
      %2718 = vmatprep.subr.mxu0 0.0
      %2719 = vmatpush1.msra.mxu0 0.0
      %2720 = vmatprep.subr.mxu0 0.0
      %2721 = vmatpush1.msra.mxu0 0.0
      %2722 = vmatprep.subr.mxu0 0.0
      %2723 = vmatpush1.msra.mxu0 0.0
      %2724 = vmatprep.subr.mxu0 0.0
      %2725 = vmatpush1.msra.mxu0 0.0
      %2726 = vmatprep.subr.mxu0 0.0
      %2727 = vmatpush1.msra.mxu0 0.0
      %2728 = vmatprep.subr.mxu0 0.0
      %2729 = vmatpush1.msra.mxu0 0.0
      %2730 = vmatprep.subr.mxu0 0.0
      %2731 = vmatpush1.msra.mxu0 0.0
      %2732 = vmatprep.subr.mxu0 0.0
      %2733 = vmatpush1.msra.mxu0 0.0
      %2734 = vmatprep.subr.mxu0 0.0
      %2735 = vmatpush1.msra.mxu0 0.0
      %2736 = vmatprep.subr.mxu0 0.0
      %2737 = vmatpush1.msra.mxu0 0.0
      %2738 = vmatprep.subr.mxu0 0.0
      %2739 = vmatpush1.msra.mxu0 0.0
      %2740 = vmatprep.subr.mxu0 0.0
      %2741 = vmatpush1.msra.mxu0 0.0
      %2742 = vmatprep.subr.mxu0 0.0
      %2743 = vmatpush1.msra.mxu0 0.0
      %2744 = vmatprep.subr.mxu0 0.0
      %2745 = vmatpush1.msra.mxu0 0.0
      %2746 = vmatprep.subr.mxu0 0.0
      %2747 = vmatpush1.msra.mxu0 0.0
      %2748 = vmatprep.subr.mxu0 0.0
      %2749 = vmatpush1.msra.mxu0 0.0
      %2750 = vmatprep.subr.mxu0 0.0
      %2751 = vmatpush1.msra.mxu0 0.0
      %2752 = vmatprep.subr.mxu0 0.0
      %2753 = vmatpush1.msra.mxu0 0.0
      %2754 = vmatprep.subr.mxu0 0.0
      %2755 = vmatpush1.msra.mxu0 0.0
      %2756 = vmatprep.subr.mxu0 0.0
      %2757 = vmatpush1.msra.mxu0 0.0
      %2758 = vmatprep.mubr.f32.mxu0 0.0
      %v2759 = vand.u32 %v2598, 4294901760
      %2760 = vmatmul.mubr.f32.gmra.mrb[0].mxu0 %v2759
      %v2761 = vpop.f32.mrb[0].mxu0
      %v2762 = vadd.f32 %v2676, %v2761
      %v2763 = vpop.f32.mrb[0].mxu0
      %2764 = vmatprep.mubr.f32.mxu0 0.0
      %v2765 = vand.u32 %v2601, 4294901760
      %2766 = vmatmul.mubr.f32.gmra.mrb[0].mxu0 %v2765
      %v2767 = vpop.f32.mrb[0].mxu0
      %v2768 = vadd.f32 %v2686, %v2767
      %v2769 = vpop.f32.mrb[0].mxu0
      %2770 = vdwg.mxu0
      %2771 = vmatprep.subr.mxu0 0.0
      %v2772 = vand.u32 %v2580, 4294901760
      %v2773 = vsub.f32 %v2580, %v2772
      %2774 = vmatpush1.msra.mxu0 %v2773
      %2775 = vmatprep.subr.mxu0 0.0
      %2776 = vmatpush1.msra.mxu0 0.0
      %2777 = vmatprep.subr.mxu0 0.0
      %2778 = vmatpush1.msra.mxu0 0.0
      %2779 = vmatprep.subr.mxu0 0.0
      %2780 = vmatpush1.msra.mxu0 0.0
      %2781 = vmatprep.subr.mxu0 0.0
      %2782 = vmatpush1.msra.mxu0 0.0
      %2783 = vmatprep.subr.mxu0 0.0
      %2784 = vmatpush1.msra.mxu0 0.0
      %2785 = vmatprep.subr.mxu0 0.0
      %2786 = vmatpush1.msra.mxu0 0.0
      %2787 = vmatprep.subr.mxu0 0.0
      %2788 = vmatpush1.msra.mxu0 0.0
      %2789 = vmatprep.subr.mxu0 0.0
      %2790 = vmatpush1.msra.mxu0 0.0
      %2791 = vmatprep.subr.mxu0 0.0
      %2792 = vmatpush1.msra.mxu0 0.0
      %2793 = vmatprep.subr.mxu0 0.0
      %2794 = vmatpush1.msra.mxu0 0.0
      %2795 = vmatprep.subr.mxu0 0.0
      %2796 = vmatpush1.msra.mxu0 0.0
      %2797 = vmatprep.subr.mxu0 0.0
      %2798 = vmatpush1.msra.mxu0 0.0
      %2799 = vmatprep.subr.mxu0 0.0
      %2800 = vmatpush1.msra.mxu0 0.0
      %2801 = vmatprep.subr.mxu0 0.0
      %2802 = vmatpush1.msra.mxu0 0.0
      %2803 = vmatprep.subr.mxu0 0.0
      %2804 = vmatpush1.msra.mxu0 0.0
      %2805 = vmatprep.subr.mxu0 0.0
      %2806 = vmatpush1.msra.mxu0 0.0
      %2807 = vmatprep.subr.mxu0 0.0
      %2808 = vmatpush1.msra.mxu0 0.0
      %2809 = vmatprep.subr.mxu0 0.0
      %2810 = vmatpush1.msra.mxu0 0.0
      %2811 = vmatprep.subr.mxu0 0.0
      %2812 = vmatpush1.msra.mxu0 0.0
      %2813 = vmatprep.subr.mxu0 0.0
      %2814 = vmatpush1.msra.mxu0 0.0
      %2815 = vmatprep.subr.mxu0 0.0
      %2816 = vmatpush1.msra.mxu0 0.0
      %2817 = vmatprep.subr.mxu0 0.0
      %2818 = vmatpush1.msra.mxu0 0.0
      %2819 = vmatprep.subr.mxu0 0.0
      %2820 = vmatpush1.msra.mxu0 0.0
      %2821 = vmatprep.subr.mxu0 0.0
      %2822 = vmatpush1.msra.mxu0 0.0
      %2823 = vmatprep.subr.mxu0 0.0
      %2824 = vmatpush1.msra.mxu0 0.0
      %2825 = vmatprep.subr.mxu0 0.0
      %2826 = vmatpush1.msra.mxu0 0.0
      %2827 = vmatprep.subr.mxu0 0.0
      %2828 = vmatpush1.msra.mxu0 0.0
      %2829 = vmatprep.subr.mxu0 0.0
      %2830 = vmatpush1.msra.mxu0 0.0
      %2831 = vmatprep.subr.mxu0 0.0
      %2832 = vmatpush1.msra.mxu0 0.0
      %2833 = vmatprep.subr.mxu0 0.0
      %2834 = vmatpush1.msra.mxu0 0.0
      %2835 = vmatprep.subr.mxu0 0.0
      %2836 = vmatpush1.msra.mxu0 0.0
      %2837 = vmatprep.mubr.f32.mxu0 0.0
      %v2838 = vand.u32 %v2598, 4294901760
      %v2839 = vsub.f32 %v2598, %v2838
      %2840 = vmatmul.mubr.f32.gmra.mrb[0].mxu0 %v2839
      %v2841 = vpop.f32.mrb[0].mxu0
      %v2842 = vadd.f32 %v2762, %v2841
      %v2843 = vpop.f32.mrb[0].mxu0
      %2844 = vmatprep.mubr.f32.mxu0 0.0
      %v2845 = vand.u32 %v2601, 4294901760
      %v2846 = vsub.f32 %v2601, %v2845
      %2847 = vmatmul.mubr.f32.gmra.mrb[0].mxu0 %v2846
      %v2848 = vpop.f32.mrb[0].mxu0
      %v2849 = vadd.f32 %v2768, %v2848
      %v2850 = vpop.f32.mrb[0].mxu0
      %2851 = vdwg.mxu0
      %2852 = vmatprep.subr.mxu0 0.0
      %v2853 = vand.u32 %v2580, 4294901760
      %2854 = vmatpush1.msra.mxu0 %v2853
      %2855 = vmatprep.subr.mxu0 0.0
      %2856 = vmatpush1.msra.mxu0 0.0
      %2857 = vmatprep.subr.mxu0 0.0
      %2858 = vmatpush1.msra.mxu0 0.0
      %2859 = vmatprep.subr.mxu0 0.0
      %2860 = vmatpush1.msra.mxu0 0.0
      %2861 = vmatprep.subr.mxu0 0.0
      %2862 = vmatpush1.msra.mxu0 0.0
      %2863 = vmatprep.subr.mxu0 0.0
      %2864 = vmatpush1.msra.mxu0 0.0
      %2865 = vmatprep.subr.mxu0 0.0
      %2866 = vmatpush1.msra.mxu0 0.0
      %2867 = vmatprep.subr.mxu0 0.0
      %2868 = vmatpush1.msra.mxu0 0.0
      %2869 = vmatprep.subr.mxu0 0.0
      %2870 = vmatpush1.msra.mxu0 0.0
      %2871 = vmatprep.subr.mxu0 0.0
      %2872 = vmatpush1.msra.mxu0 0.0
      %2873 = vmatprep.subr.mxu0 0.0
      %2874 = vmatpush1.msra.mxu0 0.0
      %2875 = vmatprep.subr.mxu0 0.0
      %2876 = vmatpush1.msra.mxu0 0.0
      %2877 = vmatprep.subr.mxu0 0.0
      %2878 = vmatpush1.msra.mxu0 0.0
      %2879 = vmatprep.subr.mxu0 0.0
      %2880 = vmatpush1.msra.mxu0 0.0
      %2881 = vmatprep.subr.mxu0 0.0
      %2882 = vmatpush1.msra.mxu0 0.0
      %2883 = vmatprep.subr.mxu0 0.0
      %2884 = vmatpush1.msra.mxu0 0.0
      %2885 = vmatprep.subr.mxu0 0.0
      %2886 = vmatpush1.msra.mxu0 0.0
      %2887 = vmatprep.subr.mxu0 0.0
      %2888 = vmatpush1.msra.mxu0 0.0
      %2889 = vmatprep.subr.mxu0 0.0
      %2890 = vmatpush1.msra.mxu0 0.0
      %2891 = vmatprep.subr.mxu0 0.0
      %2892 = vmatpush1.msra.mxu0 0.0
      %2893 = vmatprep.subr.mxu0 0.0
      %2894 = vmatpush1.msra.mxu0 0.0
      %2895 = vmatprep.subr.mxu0 0.0
      %2896 = vmatpush1.msra.mxu0 0.0
      %2897 = vmatprep.subr.mxu0 0.0
      %2898 = vmatpush1.msra.mxu0 0.0
      %2899 = vmatprep.subr.mxu0 0.0
      %2900 = vmatpush1.msra.mxu0 0.0
      %2901 = vmatprep.subr.mxu0 0.0
      %2902 = vmatpush1.msra.mxu0 0.0
      %2903 = vmatprep.subr.mxu0 0.0
      %2904 = vmatpush1.msra.mxu0 0.0
      %2905 = vmatprep.subr.mxu0 0.0
      %2906 = vmatpush1.msra.mxu0 0.0
      %2907 = vmatprep.subr.mxu0 0.0
      %2908 = vmatpush1.msra.mxu0 0.0
      %2909 = vmatprep.subr.mxu0 0.0
      %2910 = vmatpush1.msra.mxu0 0.0
      %2911 = vmatprep.subr.mxu0 0.0
      %2912 = vmatpush1.msra.mxu0 0.0
      %2913 = vmatprep.subr.mxu0 0.0
      %2914 = vmatpush1.msra.mxu0 0.0
      %2915 = vmatprep.subr.mxu0 0.0
      %2916 = vmatpush1.msra.mxu0 0.0
      %2917 = vmatprep.mubr.f32.mxu0 0.0
      %v2918 = vand.u32 %v2598, 4294901760
      %v2919 = vsub.f32 %v2598, %v2918
      %v2920 = vand.u32 %v2919, 4294901760
      %2921 = vmatmul.mubr.f32.gmra.mrb[0].mxu0 %v2920
      %v2922 = vpop.f32.mrb[0].mxu0
      %v2923 = vadd.f32 %v2842, %v2922
      %v2924 = vpop.f32.mrb[0].mxu0
      %2925 = vmatprep.mubr.f32.mxu0 0.0
      %v2926 = vand.u32 %v2601, 4294901760
      %v2927 = vsub.f32 %v2601, %v2926
      %v2928 = vand.u32 %v2927, 4294901760
      %2929 = vmatmul.mubr.f32.gmra.mrb[0].mxu0 %v2928
      %v2930 = vpop.f32.mrb[0].mxu0
      %v2931 = vadd.f32 %v2849, %v2930
      %v2932 = vpop.f32.mrb[0].mxu0
      %2933 = vdwg.mxu0
      %2934 = vmatprep.subr.mxu0 0.0
      %v2935 = vand.u32 %v2580, 4294901760
      %v2936 = vsub.f32 %v2580, %v2935
      %v2937 = vand.u32 %v2936, 4294901760
      %2938 = vmatpush1.msra.mxu0 %v2937
      %2939 = vmatprep.subr.mxu0 0.0
      %2940 = vmatpush1.msra.mxu0 0.0
      %2941 = vmatprep.subr.mxu0 0.0
      %2942 = vmatpush1.msra.mxu0 0.0
      %2943 = vmatprep.subr.mxu0 0.0
      %2944 = vmatpush1.msra.mxu0 0.0
      %2945 = vmatprep.subr.mxu0 0.0
      %2946 = vmatpush1.msra.mxu0 0.0
      %2947 = vmatprep.subr.mxu0 0.0
      %2948 = vmatpush1.msra.mxu0 0.0
      %2949 = vmatprep.subr.mxu0 0.0
      %2950 = vmatpush1.msra.mxu0 0.0
      %2951 = vmatprep.subr.mxu0 0.0
      %2952 = vmatpush1.msra.mxu0 0.0
      %2953 = vmatprep.subr.mxu0 0.0
      %2954 = vmatpush1.msra.mxu0 0.0
      %2955 = vmatprep.subr.mxu0 0.0
      %2956 = vmatpush1.msra.mxu0 0.0
      %2957 = vmatprep.subr.mxu0 0.0
      %2958 = vmatpush1.msra.mxu0 0.0
      %2959 = vmatprep.subr.mxu0 0.0
      %2960 = vmatpush1.msra.mxu0 0.0
      %2961 = vmatprep.subr.mxu0 0.0
      %2962 = vmatpush1.msra.mxu0 0.0
      %2963 = vmatprep.subr.mxu0 0.0
      %2964 = vmatpush1.msra.mxu0 0.0
      %2965 = vmatprep.subr.mxu0 0.0
      %2966 = vmatpush1.msra.mxu0 0.0
      %2967 = vmatprep.subr.mxu0 0.0
      %2968 = vmatpush1.msra.mxu0 0.0
      %2969 = vmatprep.subr.mxu0 0.0
      %2970 = vmatpush1.msra.mxu0 0.0
      %2971 = vmatprep.subr.mxu0 0.0
      %2972 = vmatpush1.msra.mxu0 0.0
      %2973 = vmatprep.subr.mxu0 0.0
      %2974 = vmatpush1.msra.mxu0 0.0
      %2975 = vmatprep.subr.mxu0 0.0
      %2976 = vmatpush1.msra.mxu0 0.0
      %2977 = vmatprep.subr.mxu0 0.0
      %2978 = vmatpush1.msra.mxu0 0.0
      %2979 = vmatprep.subr.mxu0 0.0
      %2980 = vmatpush1.msra.mxu0 0.0
      %2981 = vmatprep.subr.mxu0 0.0
      %2982 = vmatpush1.msra.mxu0 0.0
      %2983 = vmatprep.subr.mxu0 0.0
      %2984 = vmatpush1.msra.mxu0 0.0
      %2985 = vmatprep.subr.mxu0 0.0
      %2986 = vmatpush1.msra.mxu0 0.0
      %2987 = vmatprep.subr.mxu0 0.0
      %2988 = vmatpush1.msra.mxu0 0.0
      %2989 = vmatprep.subr.mxu0 0.0
      %2990 = vmatpush1.msra.mxu0 0.0
      %2991 = vmatprep.subr.mxu0 0.0
      %2992 = vmatpush1.msra.mxu0 0.0
      %2993 = vmatprep.subr.mxu0 0.0
      %2994 = vmatpush1.msra.mxu0 0.0
      %2995 = vmatprep.subr.mxu0 0.0
      %2996 = vmatpush1.msra.mxu0 0.0
      %2997 = vmatprep.subr.mxu0 0.0
      %2998 = vmatpush1.msra.mxu0 0.0
      %2999 = vmatprep.subr.mxu0 0.0
      %3000 = vmatpush1.msra.mxu0 0.0
      %3001 = vmatprep.mubr.f32.mxu0 0.0
      %v3002 = vand.u32 %v2598, 4294901760
      %3003 = vmatmul.mubr.f32.gmra.mrb[0].mxu0 %v3002
      %v3004 = vpop.f32.mrb[0].mxu0
      %v3005 = vadd.f32 %v2923, %v3004
      %v3006 = vpop.f32.mrb[0].mxu0
      %3007 = vmatprep.mubr.f32.mxu0 0.0
      %v3008 = vand.u32 %v2601, 4294901760
      %3009 = vmatmul.mubr.f32.gmra.mrb[0].mxu0 %v3008
      %v3010 = vpop.f32.mrb[0].mxu0
      %v3011 = vadd.f32 %v2931, %v3010
      %v3012 = vpop.f32.mrb[0].mxu0
      %3013 = vdwg.mxu0
      %3014 = vmatprep.subr.mxu0 0.0
      %v3015 = vand.u32 %v2580, 4294901760
      %3016 = vmatpush1.msra.mxu0 %v3015
      %3017 = vmatprep.subr.mxu0 0.0
      %3018 = vmatpush1.msra.mxu0 0.0
      %3019 = vmatprep.subr.mxu0 0.0
      %3020 = vmatpush1.msra.mxu0 0.0
      %3021 = vmatprep.subr.mxu0 0.0
      %3022 = vmatpush1.msra.mxu0 0.0
      %3023 = vmatprep.subr.mxu0 0.0
      %3024 = vmatpush1.msra.mxu0 0.0
      %3025 = vmatprep.subr.mxu0 0.0
      %3026 = vmatpush1.msra.mxu0 0.0
      %3027 = vmatprep.subr.mxu0 0.0
      %3028 = vmatpush1.msra.mxu0 0.0
      %3029 = vmatprep.subr.mxu0 0.0
      %3030 = vmatpush1.msra.mxu0 0.0
      %3031 = vmatprep.subr.mxu0 0.0
      %3032 = vmatpush1.msra.mxu0 0.0
      %3033 = vmatprep.subr.mxu0 0.0
      %3034 = vmatpush1.msra.mxu0 0.0
      %3035 = vmatprep.subr.mxu0 0.0
      %3036 = vmatpush1.msra.mxu0 0.0
      %3037 = vmatprep.subr.mxu0 0.0
      %3038 = vmatpush1.msra.mxu0 0.0
      %3039 = vmatprep.subr.mxu0 0.0
      %3040 = vmatpush1.msra.mxu0 0.0
      %3041 = vmatprep.subr.mxu0 0.0
      %3042 = vmatpush1.msra.mxu0 0.0
      %3043 = vmatprep.subr.mxu0 0.0
      %3044 = vmatpush1.msra.mxu0 0.0
      %3045 = vmatprep.subr.mxu0 0.0
      %3046 = vmatpush1.msra.mxu0 0.0
      %3047 = vmatprep.subr.mxu0 0.0
      %3048 = vmatpush1.msra.mxu0 0.0
      %3049 = vmatprep.subr.mxu0 0.0
      %3050 = vmatpush1.msra.mxu0 0.0
      %3051 = vmatprep.subr.mxu0 0.0
      %3052 = vmatpush1.msra.mxu0 0.0
      %3053 = vmatprep.subr.mxu0 0.0
      %3054 = vmatpush1.msra.mxu0 0.0
      %3055 = vmatprep.subr.mxu0 0.0
      %3056 = vmatpush1.msra.mxu0 0.0
      %3057 = vmatprep.subr.mxu0 0.0
      %3058 = vmatpush1.msra.mxu0 0.0
      %3059 = vmatprep.subr.mxu0 0.0
      %3060 = vmatpush1.msra.mxu0 0.0
      %3061 = vmatprep.subr.mxu0 0.0
      %3062 = vmatpush1.msra.mxu0 0.0
      %3063 = vmatprep.subr.mxu0 0.0
      %3064 = vmatpush1.msra.mxu0 0.0
      %3065 = vmatprep.subr.mxu0 0.0
      %3066 = vmatpush1.msra.mxu0 0.0
      %3067 = vmatprep.subr.mxu0 0.0
      %3068 = vmatpush1.msra.mxu0 0.0
      %3069 = vmatprep.subr.mxu0 0.0
      %3070 = vmatpush1.msra.mxu0 0.0
      %3071 = vmatprep.subr.mxu0 0.0
      %3072 = vmatpush1.msra.mxu0 0.0
      %3073 = vmatprep.subr.mxu0 0.0
      %3074 = vmatpush1.msra.mxu0 0.0
      %3075 = vmatprep.subr.mxu0 0.0
      %3076 = vmatpush1.msra.mxu0 0.0
      %3077 = vmatprep.subr.mxu0 0.0
      %3078 = vmatpush1.msra.mxu0 0.0
      %3079 = vmatprep.mubr.f32.mxu0 0.0
      %v3080 = vand.u32 %v2598, 4294901760
      %3081 = vmatmul.mubr.f32.gmra.mrb[0].mxu0 %v3080
      %v3082 = vpop.f32.mrb[0].mxu0
      %v3083 = vadd.f32 %v3005, %v3082
      %v3084 = vpop.f32.mrb[0].mxu0
      %3085 = vmatprep.mubr.f32.mxu0 0.0
      %v3086 = vand.u32 %v2601, 4294901760
      %3087 = vmatmul.mubr.f32.gmra.mrb[0].mxu0 %v3086
      %v3088 = vpop.f32.mrb[0].mxu0
      %v3089 = vadd.f32 %v3011, %v3088
      %v3090 = vpop.f32.mrb[0].mxu0
      %3091 = vdwg.mxu0
      %v3092 = vadd.f32 %v3083, %v627
      %v3093 = vadd.f32 %v3089, %v628
      %v3094 = vmax.f32 %v3092, 0.0
      %v3095 = vmax.f32 %v3093, 0.0
      %v3096 = vld [vmem:[%s2] sm:$0xff]
      %v3097 = vld [vmem:[%s2 + $0x8] sm:$0xf]
      %v3098 = vld [vmem:[%s3] sm:$0xff]
      %v3099 = vld [vmem:[%s3 + $0x8] sm:$0xf]
      %3101 = vset.pattern.permute.xlu0 0
      %3102 = vperm.xlu0 %3101, %v3098
      %v3103 = vpop.permute.xlu0 %3102
      %3106 = vset.pattern.permute.xlu0 0
      %3107 = vperm.xlu0 %3106, %v3099
      %v3108 = vpop.permute.xlu0 %3107
      %v3111 = vsel %vm650, %v3096, 0
      %v3114 = vsel %vm650, %v3097, 0
      %v3116 = vand.u32 %v624, 4294901760
      %3117 = vmatprep.subr.mxu0 %v3116
      %v3118 = vand.u32 %v623, 4294901760
      %3119 = vmatpush1.msra.mxu0 %v3118
      %v3120 = vand.u32 %v626, 4294901760
      %3121 = vmatprep.subr.mxu0 %v3120
      %v3122 = vand.u32 %v625, 4294901760
      %3123 = vmatpush1.msra.mxu0 %v3122
      %3124 = vmatprep.subr.mxu0 0.0
      %3125 = vmatpush1.msra.mxu0 0.0
      %3126 = vmatprep.subr.mxu0 0.0
      %3127 = vmatpush1.msra.mxu0 0.0
      %3128 = vmatprep.subr.mxu0 0.0
      %3129 = vmatpush1.msra.mxu0 0.0
      %3130 = vmatprep.subr.mxu0 0.0
      %3131 = vmatpush1.msra.mxu0 0.0
      %3132 = vmatprep.subr.mxu0 0.0
      %3133 = vmatpush1.msra.mxu0 0.0
      %3134 = vmatprep.subr.mxu0 0.0
      %3135 = vmatpush1.msra.mxu0 0.0
      %3136 = vmatprep.subr.mxu0 0.0
      %3137 = vmatpush1.msra.mxu0 0.0
      %3138 = vmatprep.subr.mxu0 0.0
      %3139 = vmatpush1.msra.mxu0 0.0
      %3140 = vmatprep.subr.mxu0 0.0
      %3141 = vmatpush1.msra.mxu0 0.0
      %3142 = vmatprep.subr.mxu0 0.0
      %3143 = vmatpush1.msra.mxu0 0.0
      %3144 = vmatprep.subr.mxu0 0.0
      %3145 = vmatpush1.msra.mxu0 0.0
      %3146 = vmatprep.subr.mxu0 0.0
      %3147 = vmatpush1.msra.mxu0 0.0
      %3148 = vmatprep.subr.mxu0 0.0
      %3149 = vmatpush1.msra.mxu0 0.0
      %3150 = vmatprep.subr.mxu0 0.0
      %3151 = vmatpush1.msra.mxu0 0.0
      %3152 = vmatprep.subr.mxu0 0.0
      %3153 = vmatpush1.msra.mxu0 0.0
      %3154 = vmatprep.subr.mxu0 0.0
      %3155 = vmatpush1.msra.mxu0 0.0
      %3156 = vmatprep.subr.mxu0 0.0
      %3157 = vmatpush1.msra.mxu0 0.0
      %3158 = vmatprep.subr.mxu0 0.0
      %3159 = vmatpush1.msra.mxu0 0.0
      %3160 = vmatprep.subr.mxu0 0.0
      %3161 = vmatpush1.msra.mxu0 0.0
      %3162 = vmatprep.subr.mxu0 0.0
      %3163 = vmatpush1.msra.mxu0 0.0
      %3164 = vmatprep.subr.mxu0 0.0
      %3165 = vmatpush1.msra.mxu0 0.0
      %3166 = vmatprep.subr.mxu0 0.0
      %3167 = vmatpush1.msra.mxu0 0.0
      %3168 = vmatprep.subr.mxu0 0.0
      %3169 = vmatpush1.msra.mxu0 0.0
      %3170 = vmatprep.subr.mxu0 0.0
      %3171 = vmatpush1.msra.mxu0 0.0
      %3172 = vmatprep.subr.mxu0 0.0
      %3173 = vmatpush1.msra.mxu0 0.0
      %3174 = vmatprep.subr.mxu0 0.0
      %3175 = vmatpush1.msra.mxu0 0.0
      %3176 = vmatprep.subr.mxu0 0.0
      %3177 = vmatpush1.msra.mxu0 0.0
      %3178 = vmatprep.subr.mxu0 0.0
      %3179 = vmatpush1.msra.mxu0 0.0
      %3180 = vmatprep.subr.mxu0 0.0
      %3181 = vmatpush1.msra.mxu0 0.0
      %3182 = vmatprep.subr.mxu0 0.0
      %3183 = vmatpush1.msra.mxu0 0.0
      %3184 = vmatprep.mubr.f32.mxu0 0.0
      %v3185 = vand.u32 %v3111, 4294901760
      %v3186 = vsub.f32 %v3111, %v3185
      %v3187 = vand.u32 %v3186, 4294901760
      %v3188 = vsub.f32 %v3186, %v3187
      %v3189 = vand.u32 %v3188, 4294901760
      %3190 = vmatmul.mubr.f32.gmra.mrb[0].mxu0 %v3189
      %v3191 = vpop.f32.mrb[0].mxu0
      %v3192 = vadd.f32 %v3103, %v3191
      %v3193 = vpop.f32.mrb[0].mxu0
      %v3194 = vadd.f32 %v3103, %v3193
      %3195 = vmatprep.mubr.f32.mxu0 0.0
      %v3196 = vand.u32 %v3114, 4294901760
      %v3197 = vsub.f32 %v3114, %v3196
      %v3198 = vand.u32 %v3197, 4294901760
      %v3199 = vsub.f32 %v3197, %v3198
      %v3200 = vand.u32 %v3199, 4294901760
      %3201 = vmatmul.mubr.f32.gmra.mrb[0].mxu0 %v3200
      %v3202 = vpop.f32.mrb[0].mxu0
      %v3203 = vadd.f32 %v3108, %v3202
      %v3204 = vpop.f32.mrb[0].mxu0
      %v3205 = vadd.f32 %v3108, %v3204
      %3206 = vdwg.mxu0
      %v3207 = vand.u32 %v624, 4294901760
      %v3208 = vsub.f32 %v624, %v3207
      %v3209 = vand.u32 %v3208, 4294901760
      %v3210 = vsub.f32 %v3208, %v3209
      %v3211 = vand.u32 %v3210, 4294901760
      %3212 = vmatprep.subr.mxu0 %v3211
      %v3213 = vand.u32 %v623, 4294901760
      %v3214 = vsub.f32 %v623, %v3213
      %v3215 = vand.u32 %v3214, 4294901760
      %v3216 = vsub.f32 %v3214, %v3215
      %v3217 = vand.u32 %v3216, 4294901760
      %3218 = vmatpush1.msra.mxu0 %v3217
      %v3219 = vand.u32 %v626, 4294901760
      %v3220 = vsub.f32 %v626, %v3219
      %v3221 = vand.u32 %v3220, 4294901760
      %v3222 = vsub.f32 %v3220, %v3221
      %v3223 = vand.u32 %v3222, 4294901760
      %3224 = vmatprep.subr.mxu0 %v3223
      %v3225 = vand.u32 %v625, 4294901760
      %v3226 = vsub.f32 %v625, %v3225
      %v3227 = vand.u32 %v3226, 4294901760
      %v3228 = vsub.f32 %v3226, %v3227
      %v3229 = vand.u32 %v3228, 4294901760
      %3230 = vmatpush1.msra.mxu0 %v3229
      %3231 = vmatprep.subr.mxu0 0.0
      %3232 = vmatpush1.msra.mxu0 0.0
      %3233 = vmatprep.subr.mxu0 0.0
      %3234 = vmatpush1.msra.mxu0 0.0
      %3235 = vmatprep.subr.mxu0 0.0
      %3236 = vmatpush1.msra.mxu0 0.0
      %3237 = vmatprep.subr.mxu0 0.0
      %3238 = vmatpush1.msra.mxu0 0.0
      %3239 = vmatprep.subr.mxu0 0.0
      %3240 = vmatpush1.msra.mxu0 0.0
      %3241 = vmatprep.subr.mxu0 0.0
      %3242 = vmatpush1.msra.mxu0 0.0
      %3243 = vmatprep.subr.mxu0 0.0
      %3244 = vmatpush1.msra.mxu0 0.0
      %3245 = vmatprep.subr.mxu0 0.0
      %3246 = vmatpush1.msra.mxu0 0.0
      %3247 = vmatprep.subr.mxu0 0.0
      %3248 = vmatpush1.msra.mxu0 0.0
      %3249 = vmatprep.subr.mxu0 0.0
      %3250 = vmatpush1.msra.mxu0 0.0
      %3251 = vmatprep.subr.mxu0 0.0
      %3252 = vmatpush1.msra.mxu0 0.0
      %3253 = vmatprep.subr.mxu0 0.0
      %3254 = vmatpush1.msra.mxu0 0.0
      %3255 = vmatprep.subr.mxu0 0.0
      %3256 = vmatpush1.msra.mxu0 0.0
      %3257 = vmatprep.subr.mxu0 0.0
      %3258 = vmatpush1.msra.mxu0 0.0
      %3259 = vmatprep.subr.mxu0 0.0
      %3260 = vmatpush1.msra.mxu0 0.0
      %3261 = vmatprep.subr.mxu0 0.0
      %3262 = vmatpush1.msra.mxu0 0.0
      %3263 = vmatprep.subr.mxu0 0.0
      %3264 = vmatpush1.msra.mxu0 0.0
      %3265 = vmatprep.subr.mxu0 0.0
      %3266 = vmatpush1.msra.mxu0 0.0
      %3267 = vmatprep.subr.mxu0 0.0
      %3268 = vmatpush1.msra.mxu0 0.0
      %3269 = vmatprep.subr.mxu0 0.0
      %3270 = vmatpush1.msra.mxu0 0.0
      %3271 = vmatprep.subr.mxu0 0.0
      %3272 = vmatpush1.msra.mxu0 0.0
      %3273 = vmatprep.subr.mxu0 0.0
      %3274 = vmatpush1.msra.mxu0 0.0
      %3275 = vmatprep.subr.mxu0 0.0
      %3276 = vmatpush1.msra.mxu0 0.0
      %3277 = vmatprep.subr.mxu0 0.0
      %3278 = vmatpush1.msra.mxu0 0.0
      %3279 = vmatprep.subr.mxu0 0.0
      %3280 = vmatpush1.msra.mxu0 0.0
      %3281 = vmatprep.subr.mxu0 0.0
      %3282 = vmatpush1.msra.mxu0 0.0
      %3283 = vmatprep.subr.mxu0 0.0
      %3284 = vmatpush1.msra.mxu0 0.0
      %3285 = vmatprep.subr.mxu0 0.0
      %3286 = vmatpush1.msra.mxu0 0.0
      %3287 = vmatprep.subr.mxu0 0.0
      %3288 = vmatpush1.msra.mxu0 0.0
      %3289 = vmatprep.subr.mxu0 0.0
      %3290 = vmatpush1.msra.mxu0 0.0
      %3291 = vmatprep.mubr.f32.mxu0 0.0
      %v3292 = vand.u32 %v3111, 4294901760
      %3293 = vmatmul.mubr.f32.gmra.mrb[0].mxu0 %v3292
      %v3294 = vpop.f32.mrb[0].mxu0
      %v3295 = vadd.f32 %v3192, %v3294
      %v3296 = vpop.f32.mrb[0].mxu0
      %v3297 = vadd.f32 %v3194, %v3296
      %3298 = vmatprep.mubr.f32.mxu0 0.0
      %v3299 = vand.u32 %v3114, 4294901760
      %3300 = vmatmul.mubr.f32.gmra.mrb[0].mxu0 %v3299
      %v3301 = vpop.f32.mrb[0].mxu0
      %v3302 = vadd.f32 %v3203, %v3301
      %v3303 = vpop.f32.mrb[0].mxu0
      %v3304 = vadd.f32 %v3205, %v3303
      %3305 = vdwg.mxu0
      %v3306 = vand.u32 %v624, 4294901760
      %v3307 = vsub.f32 %v624, %v3306
      %3308 = vmatprep.subr.mxu0 %v3307
      %v3309 = vand.u32 %v623, 4294901760
      %v3310 = vsub.f32 %v623, %v3309
      %3311 = vmatpush1.msra.mxu0 %v3310
      %v3312 = vand.u32 %v626, 4294901760
      %v3313 = vsub.f32 %v626, %v3312
      %3314 = vmatprep.subr.mxu0 %v3313
      %v3315 = vand.u32 %v625, 4294901760
      %v3316 = vsub.f32 %v625, %v3315
      %3317 = vmatpush1.msra.mxu0 %v3316
      %3318 = vmatprep.subr.mxu0 0.0
      %3319 = vmatpush1.msra.mxu0 0.0
      %3320 = vmatprep.subr.mxu0 0.0
      %3321 = vmatpush1.msra.mxu0 0.0
      %3322 = vmatprep.subr.mxu0 0.0
      %3323 = vmatpush1.msra.mxu0 0.0
      %3324 = vmatprep.subr.mxu0 0.0
      %3325 = vmatpush1.msra.mxu0 0.0
      %3326 = vmatprep.subr.mxu0 0.0
      %3327 = vmatpush1.msra.mxu0 0.0
      %3328 = vmatprep.subr.mxu0 0.0
      %3329 = vmatpush1.msra.mxu0 0.0
      %3330 = vmatprep.subr.mxu0 0.0
      %3331 = vmatpush1.msra.mxu0 0.0
      %3332 = vmatprep.subr.mxu0 0.0
      %3333 = vmatpush1.msra.mxu0 0.0
      %3334 = vmatprep.subr.mxu0 0.0
      %3335 = vmatpush1.msra.mxu0 0.0
      %3336 = vmatprep.subr.mxu0 0.0
      %3337 = vmatpush1.msra.mxu0 0.0
      %3338 = vmatprep.subr.mxu0 0.0
      %3339 = vmatpush1.msra.mxu0 0.0
      %3340 = vmatprep.subr.mxu0 0.0
      %3341 = vmatpush1.msra.mxu0 0.0
      %3342 = vmatprep.subr.mxu0 0.0
      %3343 = vmatpush1.msra.mxu0 0.0
      %3344 = vmatprep.subr.mxu0 0.0
      %3345 = vmatpush1.msra.mxu0 0.0
      %3346 = vmatprep.subr.mxu0 0.0
      %3347 = vmatpush1.msra.mxu0 0.0
      %3348 = vmatprep.subr.mxu0 0.0
      %3349 = vmatpush1.msra.mxu0 0.0
      %3350 = vmatprep.subr.mxu0 0.0
      %3351 = vmatpush1.msra.mxu0 0.0
      %3352 = vmatprep.subr.mxu0 0.0
      %3353 = vmatpush1.msra.mxu0 0.0
      %3354 = vmatprep.subr.mxu0 0.0
      %3355 = vmatpush1.msra.mxu0 0.0
      %3356 = vmatprep.subr.mxu0 0.0
      %3357 = vmatpush1.msra.mxu0 0.0
      %3358 = vmatprep.subr.mxu0 0.0
      %3359 = vmatpush1.msra.mxu0 0.0
      %3360 = vmatprep.subr.mxu0 0.0
      %3361 = vmatpush1.msra.mxu0 0.0
      %3362 = vmatprep.subr.mxu0 0.0
      %3363 = vmatpush1.msra.mxu0 0.0
      %3364 = vmatprep.subr.mxu0 0.0
      %3365 = vmatpush1.msra.mxu0 0.0
      %3366 = vmatprep.subr.mxu0 0.0
      %3367 = vmatpush1.msra.mxu0 0.0
      %3368 = vmatprep.subr.mxu0 0.0
      %3369 = vmatpush1.msra.mxu0 0.0
      %3370 = vmatprep.subr.mxu0 0.0
      %3371 = vmatpush1.msra.mxu0 0.0
      %3372 = vmatprep.subr.mxu0 0.0
      %3373 = vmatpush1.msra.mxu0 0.0
      %3374 = vmatprep.subr.mxu0 0.0
      %3375 = vmatpush1.msra.mxu0 0.0
      %3376 = vmatprep.subr.mxu0 0.0
      %3377 = vmatpush1.msra.mxu0 0.0
      %3378 = vmatprep.mubr.f32.mxu0 0.0
      %v3379 = vand.u32 %v3111, 4294901760
      %v3380 = vsub.f32 %v3111, %v3379
      %3381 = vmatmul.mubr.f32.gmra.mrb[0].mxu0 %v3380
      %v3382 = vpop.f32.mrb[0].mxu0
      %v3383 = vadd.f32 %v3295, %v3382
      %v3384 = vpop.f32.mrb[0].mxu0
      %v3385 = vadd.f32 %v3297, %v3384
      %3386 = vmatprep.mubr.f32.mxu0 0.0
      %v3387 = vand.u32 %v3114, 4294901760
      %v3388 = vsub.f32 %v3114, %v3387
      %3389 = vmatmul.mubr.f32.gmra.mrb[0].mxu0 %v3388
      %v3390 = vpop.f32.mrb[0].mxu0
      %v3391 = vadd.f32 %v3302, %v3390
      %v3392 = vpop.f32.mrb[0].mxu0
      %v3393 = vadd.f32 %v3304, %v3392
      %3394 = vdwg.mxu0
      %v3395 = vand.u32 %v624, 4294901760
      %3396 = vmatprep.subr.mxu0 %v3395
      %v3397 = vand.u32 %v623, 4294901760
      %3398 = vmatpush1.msra.mxu0 %v3397
      %v3399 = vand.u32 %v626, 4294901760
      %3400 = vmatprep.subr.mxu0 %v3399
      %v3401 = vand.u32 %v625, 4294901760
      %3402 = vmatpush1.msra.mxu0 %v3401
      %3403 = vmatprep.subr.mxu0 0.0
      %3404 = vmatpush1.msra.mxu0 0.0
      %3405 = vmatprep.subr.mxu0 0.0
      %3406 = vmatpush1.msra.mxu0 0.0
      %3407 = vmatprep.subr.mxu0 0.0
      %3408 = vmatpush1.msra.mxu0 0.0
      %3409 = vmatprep.subr.mxu0 0.0
      %3410 = vmatpush1.msra.mxu0 0.0
      %3411 = vmatprep.subr.mxu0 0.0
      %3412 = vmatpush1.msra.mxu0 0.0
      %3413 = vmatprep.subr.mxu0 0.0
      %3414 = vmatpush1.msra.mxu0 0.0
      %3415 = vmatprep.subr.mxu0 0.0
      %3416 = vmatpush1.msra.mxu0 0.0
      %3417 = vmatprep.subr.mxu0 0.0
      %3418 = vmatpush1.msra.mxu0 0.0
      %3419 = vmatprep.subr.mxu0 0.0
      %3420 = vmatpush1.msra.mxu0 0.0
      %3421 = vmatprep.subr.mxu0 0.0
      %3422 = vmatpush1.msra.mxu0 0.0
      %3423 = vmatprep.subr.mxu0 0.0
      %3424 = vmatpush1.msra.mxu0 0.0
      %3425 = vmatprep.subr.mxu0 0.0
      %3426 = vmatpush1.msra.mxu0 0.0
      %3427 = vmatprep.subr.mxu0 0.0
      %3428 = vmatpush1.msra.mxu0 0.0
      %3429 = vmatprep.subr.mxu0 0.0
      %3430 = vmatpush1.msra.mxu0 0.0
      %3431 = vmatprep.subr.mxu0 0.0
      %3432 = vmatpush1.msra.mxu0 0.0
      %3433 = vmatprep.subr.mxu0 0.0
      %3434 = vmatpush1.msra.mxu0 0.0
      %3435 = vmatprep.subr.mxu0 0.0
      %3436 = vmatpush1.msra.mxu0 0.0
      %3437 = vmatprep.subr.mxu0 0.0
      %3438 = vmatpush1.msra.mxu0 0.0
      %3439 = vmatprep.subr.mxu0 0.0
      %3440 = vmatpush1.msra.mxu0 0.0
      %3441 = vmatprep.subr.mxu0 0.0
      %3442 = vmatpush1.msra.mxu0 0.0
      %3443 = vmatprep.subr.mxu0 0.0
      %3444 = vmatpush1.msra.mxu0 0.0
      %3445 = vmatprep.subr.mxu0 0.0
      %3446 = vmatpush1.msra.mxu0 0.0
      %3447 = vmatprep.subr.mxu0 0.0
      %3448 = vmatpush1.msra.mxu0 0.0
      %3449 = vmatprep.subr.mxu0 0.0
      %3450 = vmatpush1.msra.mxu0 0.0
      %3451 = vmatprep.subr.mxu0 0.0
      %3452 = vmatpush1.msra.mxu0 0.0
      %3453 = vmatprep.subr.mxu0 0.0
      %3454 = vmatpush1.msra.mxu0 0.0
      %3455 = vmatprep.subr.mxu0 0.0
      %3456 = vmatpush1.msra.mxu0 0.0
      %3457 = vmatprep.subr.mxu0 0.0
      %3458 = vmatpush1.msra.mxu0 0.0
      %3459 = vmatprep.subr.mxu0 0.0
      %3460 = vmatpush1.msra.mxu0 0.0
      %3461 = vmatprep.subr.mxu0 0.0
      %3462 = vmatpush1.msra.mxu0 0.0
      %3463 = vmatprep.mubr.f32.mxu0 0.0
      %v3464 = vand.u32 %v3111, 4294901760
      %v3465 = vsub.f32 %v3111, %v3464
      %v3466 = vand.u32 %v3465, 4294901760
      %3467 = vmatmul.mubr.f32.gmra.mrb[0].mxu0 %v3466
      %v3468 = vpop.f32.mrb[0].mxu0
      %v3469 = vadd.f32 %v3383, %v3468
      %v3470 = vpop.f32.mrb[0].mxu0
      %v3471 = vadd.f32 %v3385, %v3470
      %3472 = vmatprep.mubr.f32.mxu0 0.0
      %v3473 = vand.u32 %v3114, 4294901760
      %v3474 = vsub.f32 %v3114, %v3473
      %v3475 = vand.u32 %v3474, 4294901760
      %3476 = vmatmul.mubr.f32.gmra.mrb[0].mxu0 %v3475
      %v3477 = vpop.f32.mrb[0].mxu0
      %v3478 = vadd.f32 %v3391, %v3477
      %v3479 = vpop.f32.mrb[0].mxu0
      %v3480 = vadd.f32 %v3393, %v3479
      %3481 = vdwg.mxu0
      %v3482 = vand.u32 %v624, 4294901760
      %v3483 = vsub.f32 %v624, %v3482
      %v3484 = vand.u32 %v3483, 4294901760
      %3485 = vmatprep.subr.mxu0 %v3484
      %v3486 = vand.u32 %v623, 4294901760
      %v3487 = vsub.f32 %v623, %v3486
      %v3488 = vand.u32 %v3487, 4294901760
      %3489 = vmatpush1.msra.mxu0 %v3488
      %v3490 = vand.u32 %v626, 4294901760
      %v3491 = vsub.f32 %v626, %v3490
      %v3492 = vand.u32 %v3491, 4294901760
      %3493 = vmatprep.subr.mxu0 %v3492
      %v3494 = vand.u32 %v625, 4294901760
      %v3495 = vsub.f32 %v625, %v3494
      %v3496 = vand.u32 %v3495, 4294901760
      %3497 = vmatpush1.msra.mxu0 %v3496
      %3498 = vmatprep.subr.mxu0 0.0
      %3499 = vmatpush1.msra.mxu0 0.0
      %3500 = vmatprep.subr.mxu0 0.0
      %3501 = vmatpush1.msra.mxu0 0.0
      %3502 = vmatprep.subr.mxu0 0.0
      %3503 = vmatpush1.msra.mxu0 0.0
      %3504 = vmatprep.subr.mxu0 0.0
      %3505 = vmatpush1.msra.mxu0 0.0
      %3506 = vmatprep.subr.mxu0 0.0
      %3507 = vmatpush1.msra.mxu0 0.0
      %3508 = vmatprep.subr.mxu0 0.0
      %3509 = vmatpush1.msra.mxu0 0.0
      %3510 = vmatprep.subr.mxu0 0.0
      %3511 = vmatpush1.msra.mxu0 0.0
      %3512 = vmatprep.subr.mxu0 0.0
      %3513 = vmatpush1.msra.mxu0 0.0
      %3514 = vmatprep.subr.mxu0 0.0
      %3515 = vmatpush1.msra.mxu0 0.0
      %3516 = vmatprep.subr.mxu0 0.0
      %3517 = vmatpush1.msra.mxu0 0.0
      %3518 = vmatprep.subr.mxu0 0.0
      %3519 = vmatpush1.msra.mxu0 0.0
      %3520 = vmatprep.subr.mxu0 0.0
      %3521 = vmatpush1.msra.mxu0 0.0
      %3522 = vmatprep.subr.mxu0 0.0
      %3523 = vmatpush1.msra.mxu0 0.0
      %3524 = vmatprep.subr.mxu0 0.0
      %3525 = vmatpush1.msra.mxu0 0.0
      %3526 = vmatprep.subr.mxu0 0.0
      %3527 = vmatpush1.msra.mxu0 0.0
      %3528 = vmatprep.subr.mxu0 0.0
      %3529 = vmatpush1.msra.mxu0 0.0
      %3530 = vmatprep.subr.mxu0 0.0
      %3531 = vmatpush1.msra.mxu0 0.0
      %3532 = vmatprep.subr.mxu0 0.0
      %3533 = vmatpush1.msra.mxu0 0.0
      %3534 = vmatprep.subr.mxu0 0.0
      %3535 = vmatpush1.msra.mxu0 0.0
      %3536 = vmatprep.subr.mxu0 0.0
      %3537 = vmatpush1.msra.mxu0 0.0
      %3538 = vmatprep.subr.mxu0 0.0
      %3539 = vmatpush1.msra.mxu0 0.0
      %3540 = vmatprep.subr.mxu0 0.0
      %3541 = vmatpush1.msra.mxu0 0.0
      %3542 = vmatprep.subr.mxu0 0.0
      %3543 = vmatpush1.msra.mxu0 0.0
      %3544 = vmatprep.subr.mxu0 0.0
      %3545 = vmatpush1.msra.mxu0 0.0
      %3546 = vmatprep.subr.mxu0 0.0
      %3547 = vmatpush1.msra.mxu0 0.0
      %3548 = vmatprep.subr.mxu0 0.0
      %3549 = vmatpush1.msra.mxu0 0.0
      %3550 = vmatprep.subr.mxu0 0.0
      %3551 = vmatpush1.msra.mxu0 0.0
      %3552 = vmatprep.subr.mxu0 0.0
      %3553 = vmatpush1.msra.mxu0 0.0
      %3554 = vmatprep.subr.mxu0 0.0
      %3555 = vmatpush1.msra.mxu0 0.0
      %3556 = vmatprep.subr.mxu0 0.0
      %3557 = vmatpush1.msra.mxu0 0.0
      %3558 = vmatprep.mubr.f32.mxu0 0.0
      %v3559 = vand.u32 %v3111, 4294901760
      %3560 = vmatmul.mubr.f32.gmra.mrb[0].mxu0 %v3559
      %v3561 = vpop.f32.mrb[0].mxu0
      %v3562 = vadd.f32 %v3469, %v3561
      %v3563 = vpop.f32.mrb[0].mxu0
      %v3564 = vadd.f32 %v3471, %v3563
      %3565 = vmatprep.mubr.f32.mxu0 0.0
      %v3566 = vand.u32 %v3114, 4294901760
      %3567 = vmatmul.mubr.f32.gmra.mrb[0].mxu0 %v3566
      %v3568 = vpop.f32.mrb[0].mxu0
      %v3569 = vadd.f32 %v3478, %v3568
      %v3570 = vpop.f32.mrb[0].mxu0
      %v3571 = vadd.f32 %v3480, %v3570
      %3572 = vdwg.mxu0
      %v3573 = vand.u32 %v624, 4294901760
      %3574 = vmatprep.subr.mxu0 %v3573
      %v3575 = vand.u32 %v623, 4294901760
      %3576 = vmatpush1.msra.mxu0 %v3575
      %v3577 = vand.u32 %v626, 4294901760
      %3578 = vmatprep.subr.mxu0 %v3577
      %v3579 = vand.u32 %v625, 4294901760
      %3580 = vmatpush1.msra.mxu0 %v3579
      %3581 = vmatprep.subr.mxu0 0.0
      %3582 = vmatpush1.msra.mxu0 0.0
      %3583 = vmatprep.subr.mxu0 0.0
      %3584 = vmatpush1.msra.mxu0 0.0
      %3585 = vmatprep.subr.mxu0 0.0
      %3586 = vmatpush1.msra.mxu0 0.0
      %3587 = vmatprep.subr.mxu0 0.0
      %3588 = vmatpush1.msra.mxu0 0.0
      %3589 = vmatprep.subr.mxu0 0.0
      %3590 = vmatpush1.msra.mxu0 0.0
      %3591 = vmatprep.subr.mxu0 0.0
      %3592 = vmatpush1.msra.mxu0 0.0
      %3593 = vmatprep.subr.mxu0 0.0
      %3594 = vmatpush1.msra.mxu0 0.0
      %3595 = vmatprep.subr.mxu0 0.0
      %3596 = vmatpush1.msra.mxu0 0.0
      %3597 = vmatprep.subr.mxu0 0.0
      %3598 = vmatpush1.msra.mxu0 0.0
      %3599 = vmatprep.subr.mxu0 0.0
      %3600 = vmatpush1.msra.mxu0 0.0
      %3601 = vmatprep.subr.mxu0 0.0
      %3602 = vmatpush1.msra.mxu0 0.0
      %3603 = vmatprep.subr.mxu0 0.0
      %3604 = vmatpush1.msra.mxu0 0.0
      %3605 = vmatprep.subr.mxu0 0.0
      %3606 = vmatpush1.msra.mxu0 0.0
      %3607 = vmatprep.subr.mxu0 0.0
      %3608 = vmatpush1.msra.mxu0 0.0
      %3609 = vmatprep.subr.mxu0 0.0
      %3610 = vmatpush1.msra.mxu0 0.0
      %3611 = vmatprep.subr.mxu0 0.0
      %3612 = vmatpush1.msra.mxu0 0.0
      %3613 = vmatprep.subr.mxu0 0.0
      %3614 = vmatpush1.msra.mxu0 0.0
      %3615 = vmatprep.subr.mxu0 0.0
      %3616 = vmatpush1.msra.mxu0 0.0
      %3617 = vmatprep.subr.mxu0 0.0
      %3618 = vmatpush1.msra.mxu0 0.0
      %3619 = vmatprep.subr.mxu0 0.0
      %3620 = vmatpush1.msra.mxu0 0.0
      %3621 = vmatprep.subr.mxu0 0.0
      %3622 = vmatpush1.msra.mxu0 0.0
      %3623 = vmatprep.subr.mxu0 0.0
      %3624 = vmatpush1.msra.mxu0 0.0
      %3625 = vmatprep.subr.mxu0 0.0
      %3626 = vmatpush1.msra.mxu0 0.0
      %3627 = vmatprep.subr.mxu0 0.0
      %3628 = vmatpush1.msra.mxu0 0.0
      %3629 = vmatprep.subr.mxu0 0.0
      %3630 = vmatpush1.msra.mxu0 0.0
      %3631 = vmatprep.subr.mxu0 0.0
      %3632 = vmatpush1.msra.mxu0 0.0
      %3633 = vmatprep.subr.mxu0 0.0
      %3634 = vmatpush1.msra.mxu0 0.0
      %3635 = vmatprep.subr.mxu0 0.0
      %3636 = vmatpush1.msra.mxu0 0.0
      %3637 = vmatprep.subr.mxu0 0.0
      %3638 = vmatpush1.msra.mxu0 0.0
      %3639 = vmatprep.subr.mxu0 0.0
      %3640 = vmatpush1.msra.mxu0 0.0
      %3641 = vmatprep.mubr.f32.mxu0 0.0
      %v3642 = vand.u32 %v3111, 4294901760
      %3643 = vmatmul.mubr.f32.gmra.mrb[0].mxu0 %v3642
      %v3644 = vpop.f32.mrb[0].mxu0
      %v3645 = vadd.f32 %v3562, %v3644
      %v3646 = vpop.f32.mrb[0].mxu0
      %v3647 = vadd.f32 %v3564, %v3646
      %3648 = vmatprep.mubr.f32.mxu0 0.0
      %v3649 = vand.u32 %v3114, 4294901760
      %3650 = vmatmul.mubr.f32.gmra.mrb[0].mxu0 %v3649
      %v3651 = vpop.f32.mrb[0].mxu0
      %v3652 = vadd.f32 %v3569, %v3651
      %v3653 = vpop.f32.mrb[0].mxu0
      %v3654 = vadd.f32 %v3571, %v3653
      %3655 = vdwg.mxu0
      %v3656 = vand.u32 %v3654, 4294901760
      %3657 = vmatprep.subr.mxu0 %v3656
      %v3658 = vand.u32 %v3652, 4294901760
      %3659 = vmatpush1.xpose.msra.mxu0 %v3658
      %3660 = vmatprep.subr.mxu0 0.0
      %3661 = vmatpush1.xpose.msra.mxu0 0.0
      %3662 = vmatprep.subr.mxu0 0.0
      %3663 = vmatpush1.xpose.msra.mxu0 0.0
      %3664 = vmatprep.subr.mxu0 0.0
      %3665 = vmatpush1.xpose.msra.mxu0 0.0
      %3666 = vmatprep.subr.mxu0 0.0
      %3667 = vmatpush1.xpose.msra.mxu0 0.0
      %3668 = vmatprep.subr.mxu0 0.0
      %3669 = vmatpush1.xpose.msra.mxu0 0.0
      %3670 = vmatprep.subr.mxu0 0.0
      %3671 = vmatpush1.xpose.msra.mxu0 0.0
      %3672 = vmatprep.subr.mxu0 0.0
      %3673 = vmatpush1.xpose.msra.mxu0 0.0
      %3674 = vmatprep.subr.mxu0 0.0
      %3675 = vmatpush1.xpose.msra.mxu0 0.0
      %3676 = vmatprep.subr.mxu0 0.0
      %3677 = vmatpush1.xpose.msra.mxu0 0.0
      %3678 = vmatprep.subr.mxu0 0.0
      %3679 = vmatpush1.xpose.msra.mxu0 0.0
      %3680 = vmatprep.subr.mxu0 0.0
      %3681 = vmatpush1.xpose.msra.mxu0 0.0
      %3682 = vmatprep.subr.mxu0 0.0
      %3683 = vmatpush1.xpose.msra.mxu0 0.0
      %3684 = vmatprep.subr.mxu0 0.0
      %3685 = vmatpush1.xpose.msra.mxu0 0.0
      %3686 = vmatprep.subr.mxu0 0.0
      %3687 = vmatpush1.xpose.msra.mxu0 0.0
      %3688 = vmatprep.subr.mxu0 0.0
      %3689 = vmatpush1.xpose.msra.mxu0 0.0
      %3690 = vmatprep.subr.mxu0 0.0
      %3691 = vmatpush1.xpose.msra.mxu0 0.0
      %3692 = vmatprep.subr.mxu0 0.0
      %3693 = vmatpush1.xpose.msra.mxu0 0.0
      %3694 = vmatprep.subr.mxu0 0.0
      %3695 = vmatpush1.xpose.msra.mxu0 0.0
      %3696 = vmatprep.subr.mxu0 0.0
      %3697 = vmatpush1.xpose.msra.mxu0 0.0
      %3698 = vmatprep.subr.mxu0 0.0
      %3699 = vmatpush1.xpose.msra.mxu0 0.0
      %3700 = vmatprep.subr.mxu0 0.0
      %3701 = vmatpush1.xpose.msra.mxu0 0.0
      %3702 = vmatprep.subr.mxu0 0.0
      %3703 = vmatpush1.xpose.msra.mxu0 0.0
      %3704 = vmatprep.subr.mxu0 0.0
      %3705 = vmatpush1.xpose.msra.mxu0 0.0
      %3706 = vmatprep.subr.mxu0 0.0
      %3707 = vmatpush1.xpose.msra.mxu0 0.0
      %3708 = vmatprep.subr.mxu0 0.0
      %3709 = vmatpush1.xpose.msra.mxu0 0.0
      %3710 = vmatprep.subr.mxu0 0.0
      %3711 = vmatpush1.xpose.msra.mxu0 0.0
      %3712 = vmatprep.subr.mxu0 0.0
      %3713 = vmatpush1.xpose.msra.mxu0 0.0
      %3714 = vmatprep.subr.mxu0 0.0
      %3715 = vmatpush1.xpose.msra.mxu0 0.0
      %3716 = vmatprep.subr.mxu0 0.0
      %3717 = vmatpush1.xpose.msra.mxu0 0.0
      %3718 = vmatprep.subr.mxu0 0.0
      %3719 = vmatpush1.xpose.msra.mxu0 0.0
      %3720 = vmatprep.subr.mxu0 0.0
      %3721 = vmatpush1.xpose.msra.mxu0 0.0
      %v3722 = vand.u32 %v3647, 4294901760
      %v3723 = vsub.f32 %v3647, %v3722
      %v3724 = vand.u32 %v3723, 4294901760
      %v3725 = vsub.f32 %v3723, %v3724
      %v3726 = vand.u32 %v3725, 4294901760
      %3727 = vmatprep.mubr.f32.mxu0 %v3726
      %v3728 = vand.u32 %v3645, 4294901760
      %v3729 = vsub.f32 %v3645, %v3728
      %v3730 = vand.u32 %v3729, 4294901760
      %v3731 = vsub.f32 %v3729, %v3730
      %v3732 = vand.u32 %v3731, 4294901760
      %3733 = vmatmul.mubr.f32.gmra.mrb[0].mxu0 %v3732
      %v3734 = vpop.f32.mrb[0].mxu0
      %v3735 = vadd.f32 0.0, %v3734
      %v3736 = vpop.f32.mrb[0].mxu0
      %3737 = vdwg.mxu0
      %v3738 = vand.u32 %v3654, 4294901760
      %v3739 = vsub.f32 %v3654, %v3738
      %v3740 = vand.u32 %v3739, 4294901760
      %v3741 = vsub.f32 %v3739, %v3740
      %v3742 = vand.u32 %v3741, 4294901760
      %3743 = vmatprep.subr.mxu0 %v3742
      %v3744 = vand.u32 %v3652, 4294901760
      %v3745 = vsub.f32 %v3652, %v3744
      %v3746 = vand.u32 %v3745, 4294901760
      %v3747 = vsub.f32 %v3745, %v3746
      %v3748 = vand.u32 %v3747, 4294901760
      %3749 = vmatpush1.xpose.msra.mxu0 %v3748
      %3750 = vmatprep.subr.mxu0 0.0
      %3751 = vmatpush1.xpose.msra.mxu0 0.0
      %3752 = vmatprep.subr.mxu0 0.0
      %3753 = vmatpush1.xpose.msra.mxu0 0.0
      %3754 = vmatprep.subr.mxu0 0.0
      %3755 = vmatpush1.xpose.msra.mxu0 0.0
      %3756 = vmatprep.subr.mxu0 0.0
      %3757 = vmatpush1.xpose.msra.mxu0 0.0
      %3758 = vmatprep.subr.mxu0 0.0
      %3759 = vmatpush1.xpose.msra.mxu0 0.0
      %3760 = vmatprep.subr.mxu0 0.0
      %3761 = vmatpush1.xpose.msra.mxu0 0.0
      %3762 = vmatprep.subr.mxu0 0.0
      %3763 = vmatpush1.xpose.msra.mxu0 0.0
      %3764 = vmatprep.subr.mxu0 0.0
      %3765 = vmatpush1.xpose.msra.mxu0 0.0
      %3766 = vmatprep.subr.mxu0 0.0
      %3767 = vmatpush1.xpose.msra.mxu0 0.0
      %3768 = vmatprep.subr.mxu0 0.0
      %3769 = vmatpush1.xpose.msra.mxu0 0.0
      %3770 = vmatprep.subr.mxu0 0.0
      %3771 = vmatpush1.xpose.msra.mxu0 0.0
      %3772 = vmatprep.subr.mxu0 0.0
      %3773 = vmatpush1.xpose.msra.mxu0 0.0
      %3774 = vmatprep.subr.mxu0 0.0
      %3775 = vmatpush1.xpose.msra.mxu0 0.0
      %3776 = vmatprep.subr.mxu0 0.0
      %3777 = vmatpush1.xpose.msra.mxu0 0.0
      %3778 = vmatprep.subr.mxu0 0.0
      %3779 = vmatpush1.xpose.msra.mxu0 0.0
      %3780 = vmatprep.subr.mxu0 0.0
      %3781 = vmatpush1.xpose.msra.mxu0 0.0
      %3782 = vmatprep.subr.mxu0 0.0
      %3783 = vmatpush1.xpose.msra.mxu0 0.0
      %3784 = vmatprep.subr.mxu0 0.0
      %3785 = vmatpush1.xpose.msra.mxu0 0.0
      %3786 = vmatprep.subr.mxu0 0.0
      %3787 = vmatpush1.xpose.msra.mxu0 0.0
      %3788 = vmatprep.subr.mxu0 0.0
      %3789 = vmatpush1.xpose.msra.mxu0 0.0
      %3790 = vmatprep.subr.mxu0 0.0
      %3791 = vmatpush1.xpose.msra.mxu0 0.0
      %3792 = vmatprep.subr.mxu0 0.0
      %3793 = vmatpush1.xpose.msra.mxu0 0.0
      %3794 = vmatprep.subr.mxu0 0.0
      %3795 = vmatpush1.xpose.msra.mxu0 0.0
      %3796 = vmatprep.subr.mxu0 0.0
      %3797 = vmatpush1.xpose.msra.mxu0 0.0
      %3798 = vmatprep.subr.mxu0 0.0
      %3799 = vmatpush1.xpose.msra.mxu0 0.0
      %3800 = vmatprep.subr.mxu0 0.0
      %3801 = vmatpush1.xpose.msra.mxu0 0.0
      %3802 = vmatprep.subr.mxu0 0.0
      %3803 = vmatpush1.xpose.msra.mxu0 0.0
      %3804 = vmatprep.subr.mxu0 0.0
      %3805 = vmatpush1.xpose.msra.mxu0 0.0
      %3806 = vmatprep.subr.mxu0 0.0
      %3807 = vmatpush1.xpose.msra.mxu0 0.0
      %3808 = vmatprep.subr.mxu0 0.0
      %3809 = vmatpush1.xpose.msra.mxu0 0.0
      %3810 = vmatprep.subr.mxu0 0.0
      %3811 = vmatpush1.xpose.msra.mxu0 0.0
      %v3812 = vand.u32 %v3647, 4294901760
      %3813 = vmatprep.mubr.f32.mxu0 %v3812
      %v3814 = vand.u32 %v3645, 4294901760
      %3815 = vmatmul.mubr.f32.gmra.mrb[0].mxu0 %v3814
      %v3816 = vpop.f32.mrb[0].mxu0
      %v3817 = vadd.f32 %v3735, %v3816
      %v3818 = vpop.f32.mrb[0].mxu0
      %3819 = vdwg.mxu0
      %v3820 = vand.u32 %v3654, 4294901760
      %v3821 = vsub.f32 %v3654, %v3820
      %3822 = vmatprep.subr.mxu0 %v3821
      %v3823 = vand.u32 %v3652, 4294901760
      %v3824 = vsub.f32 %v3652, %v3823
      %3825 = vmatpush1.xpose.msra.mxu0 %v3824
      %3826 = vmatprep.subr.mxu0 0.0
      %3827 = vmatpush1.xpose.msra.mxu0 0.0
      %3828 = vmatprep.subr.mxu0 0.0
      %3829 = vmatpush1.xpose.msra.mxu0 0.0
      %3830 = vmatprep.subr.mxu0 0.0
      %3831 = vmatpush1.xpose.msra.mxu0 0.0
      %3832 = vmatprep.subr.mxu0 0.0
      %3833 = vmatpush1.xpose.msra.mxu0 0.0
      %3834 = vmatprep.subr.mxu0 0.0
      %3835 = vmatpush1.xpose.msra.mxu0 0.0
      %3836 = vmatprep.subr.mxu0 0.0
      %3837 = vmatpush1.xpose.msra.mxu0 0.0
      %3838 = vmatprep.subr.mxu0 0.0
      %3839 = vmatpush1.xpose.msra.mxu0 0.0
      %3840 = vmatprep.subr.mxu0 0.0
      %3841 = vmatpush1.xpose.msra.mxu0 0.0
      %3842 = vmatprep.subr.mxu0 0.0
      %3843 = vmatpush1.xpose.msra.mxu0 0.0
      %3844 = vmatprep.subr.mxu0 0.0
      %3845 = vmatpush1.xpose.msra.mxu0 0.0
      %3846 = vmatprep.subr.mxu0 0.0
      %3847 = vmatpush1.xpose.msra.mxu0 0.0
      %3848 = vmatprep.subr.mxu0 0.0
      %3849 = vmatpush1.xpose.msra.mxu0 0.0
      %3850 = vmatprep.subr.mxu0 0.0
      %3851 = vmatpush1.xpose.msra.mxu0 0.0
      %3852 = vmatprep.subr.mxu0 0.0
      %3853 = vmatpush1.xpose.msra.mxu0 0.0
      %3854 = vmatprep.subr.mxu0 0.0
      %3855 = vmatpush1.xpose.msra.mxu0 0.0
      %3856 = vmatprep.subr.mxu0 0.0
      %3857 = vmatpush1.xpose.msra.mxu0 0.0
      %3858 = vmatprep.subr.mxu0 0.0
      %3859 = vmatpush1.xpose.msra.mxu0 0.0
      %3860 = vmatprep.subr.mxu0 0.0
      %3861 = vmatpush1.xpose.msra.mxu0 0.0
      %3862 = vmatprep.subr.mxu0 0.0
      %3863 = vmatpush1.xpose.msra.mxu0 0.0
      %3864 = vmatprep.subr.mxu0 0.0
      %3865 = vmatpush1.xpose.msra.mxu0 0.0
      %3866 = vmatprep.subr.mxu0 0.0
      %3867 = vmatpush1.xpose.msra.mxu0 0.0
      %3868 = vmatprep.subr.mxu0 0.0
      %3869 = vmatpush1.xpose.msra.mxu0 0.0
      %3870 = vmatprep.subr.mxu0 0.0
      %3871 = vmatpush1.xpose.msra.mxu0 0.0
      %3872 = vmatprep.subr.mxu0 0.0
      %3873 = vmatpush1.xpose.msra.mxu0 0.0
      %3874 = vmatprep.subr.mxu0 0.0
      %3875 = vmatpush1.xpose.msra.mxu0 0.0
      %3876 = vmatprep.subr.mxu0 0.0
      %3877 = vmatpush1.xpose.msra.mxu0 0.0
      %3878 = vmatprep.subr.mxu0 0.0
      %3879 = vmatpush1.xpose.msra.mxu0 0.0
      %3880 = vmatprep.subr.mxu0 0.0
      %3881 = vmatpush1.xpose.msra.mxu0 0.0
      %3882 = vmatprep.subr.mxu0 0.0
      %3883 = vmatpush1.xpose.msra.mxu0 0.0
      %3884 = vmatprep.subr.mxu0 0.0
      %3885 = vmatpush1.xpose.msra.mxu0 0.0
      %3886 = vmatprep.subr.mxu0 0.0
      %3887 = vmatpush1.xpose.msra.mxu0 0.0
      %v3888 = vand.u32 %v3647, 4294901760
      %v3889 = vsub.f32 %v3647, %v3888
      %3890 = vmatprep.mubr.f32.mxu0 %v3889
      %v3891 = vand.u32 %v3645, 4294901760
      %v3892 = vsub.f32 %v3645, %v3891
      %3893 = vmatmul.mubr.f32.gmra.mrb[0].mxu0 %v3892
      %v3894 = vpop.f32.mrb[0].mxu0
      %v3895 = vadd.f32 %v3817, %v3894
      %v3896 = vpop.f32.mrb[0].mxu0
      %3897 = vdwg.mxu0
      %v3898 = vand.u32 %v3654, 4294901760
      %3899 = vmatprep.subr.mxu0 %v3898
      %v3900 = vand.u32 %v3652, 4294901760
      %3901 = vmatpush1.xpose.msra.mxu0 %v3900
      %3902 = vmatprep.subr.mxu0 0.0
      %3903 = vmatpush1.xpose.msra.mxu0 0.0
      %3904 = vmatprep.subr.mxu0 0.0
      %3905 = vmatpush1.xpose.msra.mxu0 0.0
      %3906 = vmatprep.subr.mxu0 0.0
      %3907 = vmatpush1.xpose.msra.mxu0 0.0
      %3908 = vmatprep.subr.mxu0 0.0
      %3909 = vmatpush1.xpose.msra.mxu0 0.0
      %3910 = vmatprep.subr.mxu0 0.0
      %3911 = vmatpush1.xpose.msra.mxu0 0.0
      %3912 = vmatprep.subr.mxu0 0.0
      %3913 = vmatpush1.xpose.msra.mxu0 0.0
      %3914 = vmatprep.subr.mxu0 0.0
      %3915 = vmatpush1.xpose.msra.mxu0 0.0
      %3916 = vmatprep.subr.mxu0 0.0
      %3917 = vmatpush1.xpose.msra.mxu0 0.0
      %3918 = vmatprep.subr.mxu0 0.0
      %3919 = vmatpush1.xpose.msra.mxu0 0.0
      %3920 = vmatprep.subr.mxu0 0.0
      %3921 = vmatpush1.xpose.msra.mxu0 0.0
      %3922 = vmatprep.subr.mxu0 0.0
      %3923 = vmatpush1.xpose.msra.mxu0 0.0
      %3924 = vmatprep.subr.mxu0 0.0
      %3925 = vmatpush1.xpose.msra.mxu0 0.0
      %3926 = vmatprep.subr.mxu0 0.0
      %3927 = vmatpush1.xpose.msra.mxu0 0.0
      %3928 = vmatprep.subr.mxu0 0.0
      %3929 = vmatpush1.xpose.msra.mxu0 0.0
      %3930 = vmatprep.subr.mxu0 0.0
      %3931 = vmatpush1.xpose.msra.mxu0 0.0
      %3932 = vmatprep.subr.mxu0 0.0
      %3933 = vmatpush1.xpose.msra.mxu0 0.0
      %3934 = vmatprep.subr.mxu0 0.0
      %3935 = vmatpush1.xpose.msra.mxu0 0.0
      %3936 = vmatprep.subr.mxu0 0.0
      %3937 = vmatpush1.xpose.msra.mxu0 0.0
      %3938 = vmatprep.subr.mxu0 0.0
      %3939 = vmatpush1.xpose.msra.mxu0 0.0
      %3940 = vmatprep.subr.mxu0 0.0
      %3941 = vmatpush1.xpose.msra.mxu0 0.0
      %3942 = vmatprep.subr.mxu0 0.0
      %3943 = vmatpush1.xpose.msra.mxu0 0.0
      %3944 = vmatprep.subr.mxu0 0.0
      %3945 = vmatpush1.xpose.msra.mxu0 0.0
      %3946 = vmatprep.subr.mxu0 0.0
      %3947 = vmatpush1.xpose.msra.mxu0 0.0
      %3948 = vmatprep.subr.mxu0 0.0
      %3949 = vmatpush1.xpose.msra.mxu0 0.0
      %3950 = vmatprep.subr.mxu0 0.0
      %3951 = vmatpush1.xpose.msra.mxu0 0.0
      %3952 = vmatprep.subr.mxu0 0.0
      %3953 = vmatpush1.xpose.msra.mxu0 0.0
      %3954 = vmatprep.subr.mxu0 0.0
      %3955 = vmatpush1.xpose.msra.mxu0 0.0
      %3956 = vmatprep.subr.mxu0 0.0
      %3957 = vmatpush1.xpose.msra.mxu0 0.0
      %3958 = vmatprep.subr.mxu0 0.0
      %3959 = vmatpush1.xpose.msra.mxu0 0.0
      %3960 = vmatprep.subr.mxu0 0.0
      %3961 = vmatpush1.xpose.msra.mxu0 0.0
      %3962 = vmatprep.subr.mxu0 0.0
      %3963 = vmatpush1.xpose.msra.mxu0 0.0
      %v3964 = vand.u32 %v3647, 4294901760
      %v3965 = vsub.f32 %v3647, %v3964
      %v3966 = vand.u32 %v3965, 4294901760
      %3967 = vmatprep.mubr.f32.mxu0 %v3966
      %v3968 = vand.u32 %v3645, 4294901760
      %v3969 = vsub.f32 %v3645, %v3968
      %v3970 = vand.u32 %v3969, 4294901760
      %3971 = vmatmul.mubr.f32.gmra.mrb[0].mxu0 %v3970
      %v3972 = vpop.f32.mrb[0].mxu0
      %v3973 = vadd.f32 %v3895, %v3972
      %v3974 = vpop.f32.mrb[0].mxu0
      %3975 = vdwg.mxu0
      %v3976 = vand.u32 %v3654, 4294901760
      %v3977 = vsub.f32 %v3654, %v3976
      %v3978 = vand.u32 %v3977, 4294901760
      %3979 = vmatprep.subr.mxu0 %v3978
      %v3980 = vand.u32 %v3652, 4294901760
      %v3981 = vsub.f32 %v3652, %v3980
      %v3982 = vand.u32 %v3981, 4294901760
      %3983 = vmatpush1.xpose.msra.mxu0 %v3982
      %3984 = vmatprep.subr.mxu0 0.0
      %3985 = vmatpush1.xpose.msra.mxu0 0.0
      %3986 = vmatprep.subr.mxu0 0.0
      %3987 = vmatpush1.xpose.msra.mxu0 0.0
      %3988 = vmatprep.subr.mxu0 0.0
      %3989 = vmatpush1.xpose.msra.mxu0 0.0
      %3990 = vmatprep.subr.mxu0 0.0
      %3991 = vmatpush1.xpose.msra.mxu0 0.0
      %3992 = vmatprep.subr.mxu0 0.0
      %3993 = vmatpush1.xpose.msra.mxu0 0.0
      %3994 = vmatprep.subr.mxu0 0.0
      %3995 = vmatpush1.xpose.msra.mxu0 0.0
      %3996 = vmatprep.subr.mxu0 0.0
      %3997 = vmatpush1.xpose.msra.mxu0 0.0
      %3998 = vmatprep.subr.mxu0 0.0
      %3999 = vmatpush1.xpose.msra.mxu0 0.0
      %4000 = vmatprep.subr.mxu0 0.0
      %4001 = vmatpush1.xpose.msra.mxu0 0.0
      %4002 = vmatprep.subr.mxu0 0.0
      %4003 = vmatpush1.xpose.msra.mxu0 0.0
      %4004 = vmatprep.subr.mxu0 0.0
      %4005 = vmatpush1.xpose.msra.mxu0 0.0
      %4006 = vmatprep.subr.mxu0 0.0
      %4007 = vmatpush1.xpose.msra.mxu0 0.0
      %4008 = vmatprep.subr.mxu0 0.0
      %4009 = vmatpush1.xpose.msra.mxu0 0.0
      %4010 = vmatprep.subr.mxu0 0.0
      %4011 = vmatpush1.xpose.msra.mxu0 0.0
      %4012 = vmatprep.subr.mxu0 0.0
      %4013 = vmatpush1.xpose.msra.mxu0 0.0
      %4014 = vmatprep.subr.mxu0 0.0
      %4015 = vmatpush1.xpose.msra.mxu0 0.0
      %4016 = vmatprep.subr.mxu0 0.0
      %4017 = vmatpush1.xpose.msra.mxu0 0.0
      %4018 = vmatprep.subr.mxu0 0.0
      %4019 = vmatpush1.xpose.msra.mxu0 0.0
      %4020 = vmatprep.subr.mxu0 0.0
      %4021 = vmatpush1.xpose.msra.mxu0 0.0
      %4022 = vmatprep.subr.mxu0 0.0
      %4023 = vmatpush1.xpose.msra.mxu0 0.0
      %4024 = vmatprep.subr.mxu0 0.0
      %4025 = vmatpush1.xpose.msra.mxu0 0.0
      %4026 = vmatprep.subr.mxu0 0.0
      %4027 = vmatpush1.xpose.msra.mxu0 0.0
      %4028 = vmatprep.subr.mxu0 0.0
      %4029 = vmatpush1.xpose.msra.mxu0 0.0
      %4030 = vmatprep.subr.mxu0 0.0
      %4031 = vmatpush1.xpose.msra.mxu0 0.0
      %4032 = vmatprep.subr.mxu0 0.0
      %4033 = vmatpush1.xpose.msra.mxu0 0.0
      %4034 = vmatprep.subr.mxu0 0.0
      %4035 = vmatpush1.xpose.msra.mxu0 0.0
      %4036 = vmatprep.subr.mxu0 0.0
      %4037 = vmatpush1.xpose.msra.mxu0 0.0
      %4038 = vmatprep.subr.mxu0 0.0
      %4039 = vmatpush1.xpose.msra.mxu0 0.0
      %4040 = vmatprep.subr.mxu0 0.0
      %4041 = vmatpush1.xpose.msra.mxu0 0.0
      %4042 = vmatprep.subr.mxu0 0.0
      %4043 = vmatpush1.xpose.msra.mxu0 0.0
      %4044 = vmatprep.subr.mxu0 0.0
      %4045 = vmatpush1.xpose.msra.mxu0 0.0
      %v4046 = vand.u32 %v3647, 4294901760
      %4047 = vmatprep.mubr.f32.mxu0 %v4046
      %v4048 = vand.u32 %v3645, 4294901760
      %4049 = vmatmul.mubr.f32.gmra.mrb[0].mxu0 %v4048
      %v4050 = vpop.f32.mrb[0].mxu0
      %v4051 = vadd.f32 %v3973, %v4050
      %v4052 = vpop.f32.mrb[0].mxu0
      %4053 = vdwg.mxu0
      %v4054 = vand.u32 %v3654, 4294901760
      %4055 = vmatprep.subr.mxu0 %v4054
      %v4056 = vand.u32 %v3652, 4294901760
      %4057 = vmatpush1.xpose.msra.mxu0 %v4056
      %4058 = vmatprep.subr.mxu0 0.0
      %4059 = vmatpush1.xpose.msra.mxu0 0.0
      %4060 = vmatprep.subr.mxu0 0.0
      %4061 = vmatpush1.xpose.msra.mxu0 0.0
      %4062 = vmatprep.subr.mxu0 0.0
      %4063 = vmatpush1.xpose.msra.mxu0 0.0
      %4064 = vmatprep.subr.mxu0 0.0
      %4065 = vmatpush1.xpose.msra.mxu0 0.0
      %4066 = vmatprep.subr.mxu0 0.0
      %4067 = vmatpush1.xpose.msra.mxu0 0.0
      %4068 = vmatprep.subr.mxu0 0.0
      %4069 = vmatpush1.xpose.msra.mxu0 0.0
      %4070 = vmatprep.subr.mxu0 0.0
      %4071 = vmatpush1.xpose.msra.mxu0 0.0
      %4072 = vmatprep.subr.mxu0 0.0
      %4073 = vmatpush1.xpose.msra.mxu0 0.0
      %4074 = vmatprep.subr.mxu0 0.0
      %4075 = vmatpush1.xpose.msra.mxu0 0.0
      %4076 = vmatprep.subr.mxu0 0.0
      %4077 = vmatpush1.xpose.msra.mxu0 0.0
      %4078 = vmatprep.subr.mxu0 0.0
      %4079 = vmatpush1.xpose.msra.mxu0 0.0
      %4080 = vmatprep.subr.mxu0 0.0
      %4081 = vmatpush1.xpose.msra.mxu0 0.0
      %4082 = vmatprep.subr.mxu0 0.0
      %4083 = vmatpush1.xpose.msra.mxu0 0.0
      %4084 = vmatprep.subr.mxu0 0.0
      %4085 = vmatpush1.xpose.msra.mxu0 0.0
      %4086 = vmatprep.subr.mxu0 0.0
      %4087 = vmatpush1.xpose.msra.mxu0 0.0
      %4088 = vmatprep.subr.mxu0 0.0
      %4089 = vmatpush1.xpose.msra.mxu0 0.0
      %4090 = vmatprep.subr.mxu0 0.0
      %4091 = vmatpush1.xpose.msra.mxu0 0.0
      %4092 = vmatprep.subr.mxu0 0.0
      %4093 = vmatpush1.xpose.msra.mxu0 0.0
      %4094 = vmatprep.subr.mxu0 0.0
      %4095 = vmatpush1.xpose.msra.mxu0 0.0
      %4096 = vmatprep.subr.mxu0 0.0
      %4097 = vmatpush1.xpose.msra.mxu0 0.0
      %4098 = vmatprep.subr.mxu0 0.0
      %4099 = vmatpush1.xpose.msra.mxu0 0.0
      %4100 = vmatprep.subr.mxu0 0.0
      %4101 = vmatpush1.xpose.msra.mxu0 0.0
      %4102 = vmatprep.subr.mxu0 0.0
      %4103 = vmatpush1.xpose.msra.mxu0 0.0
      %4104 = vmatprep.subr.mxu0 0.0
      %4105 = vmatpush1.xpose.msra.mxu0 0.0
      %4106 = vmatprep.subr.mxu0 0.0
      %4107 = vmatpush1.xpose.msra.mxu0 0.0
      %4108 = vmatprep.subr.mxu0 0.0
      %4109 = vmatpush1.xpose.msra.mxu0 0.0
      %4110 = vmatprep.subr.mxu0 0.0
      %4111 = vmatpush1.xpose.msra.mxu0 0.0
      %4112 = vmatprep.subr.mxu0 0.0
      %4113 = vmatpush1.xpose.msra.mxu0 0.0
      %4114 = vmatprep.subr.mxu0 0.0
      %4115 = vmatpush1.xpose.msra.mxu0 0.0
      %4116 = vmatprep.subr.mxu0 0.0
      %4117 = vmatpush1.xpose.msra.mxu0 0.0
      %4118 = vmatprep.subr.mxu0 0.0
      %4119 = vmatpush1.xpose.msra.mxu0 0.0
      %v4120 = vand.u32 %v3647, 4294901760
      %4121 = vmatprep.mubr.f32.mxu0 %v4120
      %v4122 = vand.u32 %v3645, 4294901760
      %4123 = vmatmul.mubr.f32.gmra.mrb[0].mxu0 %v4122
      %v4124 = vpop.f32.mrb[0].mxu0
      %v4125 = vadd.f32 %v4051, %v4124
      %v4126 = vpop.f32.mrb[0].mxu0
      %4127 = vdwg.mxu0
      %v4128 = vld [vmem:[%s4] sm:$0xf]
      %v4129 = vld [vmem:[%s5] sm:$0x1]
      %v4131 = vlaneseq
      %v4132 = vshrl.u32 %v4131, 7
      %v4133 = vsub.s32 0, %v4132
      %v4134 = vrot.slane %v4129, %v4133
      %v4137 = vsel %vm1205, %v4125, 0
      %v4140 = vsel %vm1205, %v4128, 0
      %4142 = vmatprep.subr.mxu0 0.0
      %v4143 = vand.u32 %v4140, 4294901760
      %4144 = vmatpush1.xpose.msra.mxu0 %v4143
      %4145 = vmatprep.subr.mxu0 0.0
      %4146 = vmatpush1.xpose.msra.mxu0 0.0
      %4147 = vmatprep.subr.mxu0 0.0
      %4148 = vmatpush1.xpose.msra.mxu0 0.0
      %4149 = vmatprep.subr.mxu0 0.0
      %4150 = vmatpush1.xpose.msra.mxu0 0.0
      %4151 = vmatprep.subr.mxu0 0.0
      %4152 = vmatpush1.xpose.msra.mxu0 0.0
      %4153 = vmatprep.subr.mxu0 0.0
      %4154 = vmatpush1.xpose.msra.mxu0 0.0
      %4155 = vmatprep.subr.mxu0 0.0
      %4156 = vmatpush1.xpose.msra.mxu0 0.0
      %4157 = vmatprep.subr.mxu0 0.0
      %4158 = vmatpush1.xpose.msra.mxu0 0.0
      %4159 = vmatprep.subr.mxu0 0.0
      %4160 = vmatpush1.xpose.msra.mxu0 0.0
      %4161 = vmatprep.subr.mxu0 0.0
      %4162 = vmatpush1.xpose.msra.mxu0 0.0
      %4163 = vmatprep.subr.mxu0 0.0
      %4164 = vmatpush1.xpose.msra.mxu0 0.0
      %4165 = vmatprep.subr.mxu0 0.0
      %4166 = vmatpush1.xpose.msra.mxu0 0.0
      %4167 = vmatprep.subr.mxu0 0.0
      %4168 = vmatpush1.xpose.msra.mxu0 0.0
      %4169 = vmatprep.subr.mxu0 0.0
      %4170 = vmatpush1.xpose.msra.mxu0 0.0
      %4171 = vmatprep.subr.mxu0 0.0
      %4172 = vmatpush1.xpose.msra.mxu0 0.0
      %4173 = vmatprep.subr.mxu0 0.0
      %4174 = vmatpush1.xpose.msra.mxu0 0.0
      %4175 = vmatprep.subr.mxu0 0.0
      %4176 = vmatpush1.xpose.msra.mxu0 0.0
      %4177 = vmatprep.subr.mxu0 0.0
      %4178 = vmatpush1.xpose.msra.mxu0 0.0
      %4179 = vmatprep.subr.mxu0 0.0
      %4180 = vmatpush1.xpose.msra.mxu0 0.0
      %4181 = vmatprep.subr.mxu0 0.0
      %4182 = vmatpush1.xpose.msra.mxu0 0.0
      %4183 = vmatprep.subr.mxu0 0.0
      %4184 = vmatpush1.xpose.msra.mxu0 0.0
      %4185 = vmatprep.subr.mxu0 0.0
      %4186 = vmatpush1.xpose.msra.mxu0 0.0
      %4187 = vmatprep.subr.mxu0 0.0
      %4188 = vmatpush1.xpose.msra.mxu0 0.0
      %4189 = vmatprep.subr.mxu0 0.0
      %4190 = vmatpush1.xpose.msra.mxu0 0.0
      %4191 = vmatprep.subr.mxu0 0.0
      %4192 = vmatpush1.xpose.msra.mxu0 0.0
      %4193 = vmatprep.subr.mxu0 0.0
      %4194 = vmatpush1.xpose.msra.mxu0 0.0
      %4195 = vmatprep.subr.mxu0 0.0
      %4196 = vmatpush1.xpose.msra.mxu0 0.0
      %4197 = vmatprep.subr.mxu0 0.0
      %4198 = vmatpush1.xpose.msra.mxu0 0.0
      %4199 = vmatprep.subr.mxu0 0.0
      %4200 = vmatpush1.xpose.msra.mxu0 0.0
      %4201 = vmatprep.subr.mxu0 0.0
      %4202 = vmatpush1.xpose.msra.mxu0 0.0
      %4203 = vmatprep.subr.mxu0 0.0
      %4204 = vmatpush1.xpose.msra.mxu0 0.0
      %4205 = vmatprep.subr.mxu0 0.0
      %4206 = vmatpush1.xpose.msra.mxu0 0.0
      %4207 = vmatprep.mubr.f32.mxu0 0.0
      %v4208 = vand.u32 %v4137, 4294901760
      %v4209 = vsub.f32 %v4137, %v4208
      %v4210 = vand.u32 %v4209, 4294901760
      %v4211 = vsub.f32 %v4209, %v4210
      %v4212 = vand.u32 %v4211, 4294901760
      %4213 = vmatmul.mubr.f32.gmra.mrb[0].mxu0 %v4212
      %v4214 = vpop.f32.mrb[0].mxu0
      %v4215 = vadd.f32 %v4134, %v4214
      %v4216 = vpop.f32.mrb[0].mxu0
      %4217 = vdwg.mxu0
      %4218 = vmatprep.subr.mxu0 0.0
      %v4219 = vand.u32 %v4140, 4294901760
      %v4220 = vsub.f32 %v4140, %v4219
      %v4221 = vand.u32 %v4220, 4294901760
      %v4222 = vsub.f32 %v4220, %v4221
      %v4223 = vand.u32 %v4222, 4294901760
      %4224 = vmatpush1.xpose.msra.mxu0 %v4223
      %4225 = vmatprep.subr.mxu0 0.0
      %4226 = vmatpush1.xpose.msra.mxu0 0.0
      %4227 = vmatprep.subr.mxu0 0.0
      %4228 = vmatpush1.xpose.msra.mxu0 0.0
      %4229 = vmatprep.subr.mxu0 0.0
      %4230 = vmatpush1.xpose.msra.mxu0 0.0
      %4231 = vmatprep.subr.mxu0 0.0
      %4232 = vmatpush1.xpose.msra.mxu0 0.0
      %4233 = vmatprep.subr.mxu0 0.0
      %4234 = vmatpush1.xpose.msra.mxu0 0.0
      %4235 = vmatprep.subr.mxu0 0.0
      %4236 = vmatpush1.xpose.msra.mxu0 0.0
      %4237 = vmatprep.subr.mxu0 0.0
      %4238 = vmatpush1.xpose.msra.mxu0 0.0
      %4239 = vmatprep.subr.mxu0 0.0
      %4240 = vmatpush1.xpose.msra.mxu0 0.0
      %4241 = vmatprep.subr.mxu0 0.0
      %4242 = vmatpush1.xpose.msra.mxu0 0.0
      %4243 = vmatprep.subr.mxu0 0.0
      %4244 = vmatpush1.xpose.msra.mxu0 0.0
      %4245 = vmatprep.subr.mxu0 0.0
      %4246 = vmatpush1.xpose.msra.mxu0 0.0
      %4247 = vmatprep.subr.mxu0 0.0
      %4248 = vmatpush1.xpose.msra.mxu0 0.0
      %4249 = vmatprep.subr.mxu0 0.0
      %4250 = vmatpush1.xpose.msra.mxu0 0.0
      %4251 = vmatprep.subr.mxu0 0.0
      %4252 = vmatpush1.xpose.msra.mxu0 0.0
      %4253 = vmatprep.subr.mxu0 0.0
      %4254 = vmatpush1.xpose.msra.mxu0 0.0
      %4255 = vmatprep.subr.mxu0 0.0
      %4256 = vmatpush1.xpose.msra.mxu0 0.0
      %4257 = vmatprep.subr.mxu0 0.0
      %4258 = vmatpush1.xpose.msra.mxu0 0.0
      %4259 = vmatprep.subr.mxu0 0.0
      %4260 = vmatpush1.xpose.msra.mxu0 0.0
      %4261 = vmatprep.subr.mxu0 0.0
      %4262 = vmatpush1.xpose.msra.mxu0 0.0
      %4263 = vmatprep.subr.mxu0 0.0
      %4264 = vmatpush1.xpose.msra.mxu0 0.0
      %4265 = vmatprep.subr.mxu0 0.0
      %4266 = vmatpush1.xpose.msra.mxu0 0.0
      %4267 = vmatprep.subr.mxu0 0.0
      %4268 = vmatpush1.xpose.msra.mxu0 0.0
      %4269 = vmatprep.subr.mxu0 0.0
      %4270 = vmatpush1.xpose.msra.mxu0 0.0
      %4271 = vmatprep.subr.mxu0 0.0
      %4272 = vmatpush1.xpose.msra.mxu0 0.0
      %4273 = vmatprep.subr.mxu0 0.0
      %4274 = vmatpush1.xpose.msra.mxu0 0.0
      %4275 = vmatprep.subr.mxu0 0.0
      %4276 = vmatpush1.xpose.msra.mxu0 0.0
      %4277 = vmatprep.subr.mxu0 0.0
      %4278 = vmatpush1.xpose.msra.mxu0 0.0
      %4279 = vmatprep.subr.mxu0 0.0
      %4280 = vmatpush1.xpose.msra.mxu0 0.0
      %4281 = vmatprep.subr.mxu0 0.0
      %4282 = vmatpush1.xpose.msra.mxu0 0.0
      %4283 = vmatprep.subr.mxu0 0.0
      %4284 = vmatpush1.xpose.msra.mxu0 0.0
      %4285 = vmatprep.subr.mxu0 0.0
      %4286 = vmatpush1.xpose.msra.mxu0 0.0
      %4287 = vmatprep.mubr.f32.mxu0 0.0
      %v4288 = vand.u32 %v4137, 4294901760
      %4289 = vmatmul.mubr.f32.gmra.mrb[0].mxu0 %v4288
      %v4290 = vpop.f32.mrb[0].mxu0
      %v4291 = vadd.f32 %v4215, %v4290
      %v4292 = vpop.f32.mrb[0].mxu0
      %4293 = vdwg.mxu0
      %4294 = vmatprep.subr.mxu0 0.0
      %v4295 = vand.u32 %v4140, 4294901760
      %v4296 = vsub.f32 %v4140, %v4295
      %4297 = vmatpush1.xpose.msra.mxu0 %v4296
      %4298 = vmatprep.subr.mxu0 0.0
      %4299 = vmatpush1.xpose.msra.mxu0 0.0
      %4300 = vmatprep.subr.mxu0 0.0
      %4301 = vmatpush1.xpose.msra.mxu0 0.0
      %4302 = vmatprep.subr.mxu0 0.0
      %4303 = vmatpush1.xpose.msra.mxu0 0.0
      %4304 = vmatprep.subr.mxu0 0.0
      %4305 = vmatpush1.xpose.msra.mxu0 0.0
      %4306 = vmatprep.subr.mxu0 0.0
      %4307 = vmatpush1.xpose.msra.mxu0 0.0
      %4308 = vmatprep.subr.mxu0 0.0
      %4309 = vmatpush1.xpose.msra.mxu0 0.0
      %4310 = vmatprep.subr.mxu0 0.0
      %4311 = vmatpush1.xpose.msra.mxu0 0.0
      %4312 = vmatprep.subr.mxu0 0.0
      %4313 = vmatpush1.xpose.msra.mxu0 0.0
      %4314 = vmatprep.subr.mxu0 0.0
      %4315 = vmatpush1.xpose.msra.mxu0 0.0
      %4316 = vmatprep.subr.mxu0 0.0
      %4317 = vmatpush1.xpose.msra.mxu0 0.0
      %4318 = vmatprep.subr.mxu0 0.0
      %4319 = vmatpush1.xpose.msra.mxu0 0.0
      %4320 = vmatprep.subr.mxu0 0.0
      %4321 = vmatpush1.xpose.msra.mxu0 0.0
      %4322 = vmatprep.subr.mxu0 0.0
      %4323 = vmatpush1.xpose.msra.mxu0 0.0
      %4324 = vmatprep.subr.mxu0 0.0
      %4325 = vmatpush1.xpose.msra.mxu0 0.0
      %4326 = vmatprep.subr.mxu0 0.0
      %4327 = vmatpush1.xpose.msra.mxu0 0.0
      %4328 = vmatprep.subr.mxu0 0.0
      %4329 = vmatpush1.xpose.msra.mxu0 0.0
      %4330 = vmatprep.subr.mxu0 0.0
      %4331 = vmatpush1.xpose.msra.mxu0 0.0
      %4332 = vmatprep.subr.mxu0 0.0
      %4333 = vmatpush1.xpose.msra.mxu0 0.0
      %4334 = vmatprep.subr.mxu0 0.0
      %4335 = vmatpush1.xpose.msra.mxu0 0.0
      %4336 = vmatprep.subr.mxu0 0.0
      %4337 = vmatpush1.xpose.msra.mxu0 0.0
      %4338 = vmatprep.subr.mxu0 0.0
      %4339 = vmatpush1.xpose.msra.mxu0 0.0
      %4340 = vmatprep.subr.mxu0 0.0
      %4341 = vmatpush1.xpose.msra.mxu0 0.0
      %4342 = vmatprep.subr.mxu0 0.0
      %4343 = vmatpush1.xpose.msra.mxu0 0.0
      %4344 = vmatprep.subr.mxu0 0.0
      %4345 = vmatpush1.xpose.msra.mxu0 0.0
      %4346 = vmatprep.subr.mxu0 0.0
      %4347 = vmatpush1.xpose.msra.mxu0 0.0
      %4348 = vmatprep.subr.mxu0 0.0
      %4349 = vmatpush1.xpose.msra.mxu0 0.0
      %4350 = vmatprep.subr.mxu0 0.0
      %4351 = vmatpush1.xpose.msra.mxu0 0.0
      %4352 = vmatprep.subr.mxu0 0.0
      %4353 = vmatpush1.xpose.msra.mxu0 0.0
      %4354 = vmatprep.subr.mxu0 0.0
      %4355 = vmatpush1.xpose.msra.mxu0 0.0
      %4356 = vmatprep.subr.mxu0 0.0
      %4357 = vmatpush1.xpose.msra.mxu0 0.0
      %4358 = vmatprep.subr.mxu0 0.0
      %4359 = vmatpush1.xpose.msra.mxu0 0.0
      %4360 = vmatprep.mubr.f32.mxu0 0.0
      %v4361 = vand.u32 %v4137, 4294901760
      %v4362 = vsub.f32 %v4137, %v4361
      %4363 = vmatmul.mubr.f32.gmra.mrb[0].mxu0 %v4362
      %v4364 = vpop.f32.mrb[0].mxu0
      %v4365 = vadd.f32 %v4291, %v4364
      %v4366 = vpop.f32.mrb[0].mxu0
      %4367 = vdwg.mxu0
      %4368 = vmatprep.subr.mxu0 0.0
      %v4369 = vand.u32 %v4140, 4294901760
      %4370 = vmatpush1.xpose.msra.mxu0 %v4369
      %4371 = vmatprep.subr.mxu0 0.0
      %4372 = vmatpush1.xpose.msra.mxu0 0.0
      %4373 = vmatprep.subr.mxu0 0.0
      %4374 = vmatpush1.xpose.msra.mxu0 0.0
      %4375 = vmatprep.subr.mxu0 0.0
      %4376 = vmatpush1.xpose.msra.mxu0 0.0
      %4377 = vmatprep.subr.mxu0 0.0
      %4378 = vmatpush1.xpose.msra.mxu0 0.0
      %4379 = vmatprep.subr.mxu0 0.0
      %4380 = vmatpush1.xpose.msra.mxu0 0.0
      %4381 = vmatprep.subr.mxu0 0.0
      %4382 = vmatpush1.xpose.msra.mxu0 0.0
      %4383 = vmatprep.subr.mxu0 0.0
      %4384 = vmatpush1.xpose.msra.mxu0 0.0
      %4385 = vmatprep.subr.mxu0 0.0
      %4386 = vmatpush1.xpose.msra.mxu0 0.0
      %4387 = vmatprep.subr.mxu0 0.0
      %4388 = vmatpush1.xpose.msra.mxu0 0.0
      %4389 = vmatprep.subr.mxu0 0.0
      %4390 = vmatpush1.xpose.msra.mxu0 0.0
      %4391 = vmatprep.subr.mxu0 0.0
      %4392 = vmatpush1.xpose.msra.mxu0 0.0
      %4393 = vmatprep.subr.mxu0 0.0
      %4394 = vmatpush1.xpose.msra.mxu0 0.0
      %4395 = vmatprep.subr.mxu0 0.0
      %4396 = vmatpush1.xpose.msra.mxu0 0.0
      %4397 = vmatprep.subr.mxu0 0.0
      %4398 = vmatpush1.xpose.msra.mxu0 0.0
      %4399 = vmatprep.subr.mxu0 0.0
      %4400 = vmatpush1.xpose.msra.mxu0 0.0
      %4401 = vmatprep.subr.mxu0 0.0
      %4402 = vmatpush1.xpose.msra.mxu0 0.0
      %4403 = vmatprep.subr.mxu0 0.0
      %4404 = vmatpush1.xpose.msra.mxu0 0.0
      %4405 = vmatprep.subr.mxu0 0.0
      %4406 = vmatpush1.xpose.msra.mxu0 0.0
      %4407 = vmatprep.subr.mxu0 0.0
      %4408 = vmatpush1.xpose.msra.mxu0 0.0
      %4409 = vmatprep.subr.mxu0 0.0
      %4410 = vmatpush1.xpose.msra.mxu0 0.0
      %4411 = vmatprep.subr.mxu0 0.0
      %4412 = vmatpush1.xpose.msra.mxu0 0.0
      %4413 = vmatprep.subr.mxu0 0.0
      %4414 = vmatpush1.xpose.msra.mxu0 0.0
      %4415 = vmatprep.subr.mxu0 0.0
      %4416 = vmatpush1.xpose.msra.mxu0 0.0
      %4417 = vmatprep.subr.mxu0 0.0
      %4418 = vmatpush1.xpose.msra.mxu0 0.0
      %4419 = vmatprep.subr.mxu0 0.0
      %4420 = vmatpush1.xpose.msra.mxu0 0.0
      %4421 = vmatprep.subr.mxu0 0.0
      %4422 = vmatpush1.xpose.msra.mxu0 0.0
      %4423 = vmatprep.subr.mxu0 0.0
      %4424 = vmatpush1.xpose.msra.mxu0 0.0
      %4425 = vmatprep.subr.mxu0 0.0
      %4426 = vmatpush1.xpose.msra.mxu0 0.0
      %4427 = vmatprep.subr.mxu0 0.0
      %4428 = vmatpush1.xpose.msra.mxu0 0.0
      %4429 = vmatprep.subr.mxu0 0.0
      %4430 = vmatpush1.xpose.msra.mxu0 0.0
      %4431 = vmatprep.subr.mxu0 0.0
      %4432 = vmatpush1.xpose.msra.mxu0 0.0
      %4433 = vmatprep.mubr.f32.mxu0 0.0
      %v4434 = vand.u32 %v4137, 4294901760
      %v4435 = vsub.f32 %v4137, %v4434
      %v4436 = vand.u32 %v4435, 4294901760
      %4437 = vmatmul.mubr.f32.gmra.mrb[0].mxu0 %v4436
      %v4438 = vpop.f32.mrb[0].mxu0
      %v4439 = vadd.f32 %v4365, %v4438
      %v4440 = vpop.f32.mrb[0].mxu0
      %4441 = vdwg.mxu0
      %4442 = vmatprep.subr.mxu0 0.0
      %v4443 = vand.u32 %v4140, 4294901760
      %v4444 = vsub.f32 %v4140, %v4443
      %v4445 = vand.u32 %v4444, 4294901760
      %4446 = vmatpush1.xpose.msra.mxu0 %v4445
      %4447 = vmatprep.subr.mxu0 0.0
      %4448 = vmatpush1.xpose.msra.mxu0 0.0
      %4449 = vmatprep.subr.mxu0 0.0
      %4450 = vmatpush1.xpose.msra.mxu0 0.0
      %4451 = vmatprep.subr.mxu0 0.0
      %4452 = vmatpush1.xpose.msra.mxu0 0.0
      %4453 = vmatprep.subr.mxu0 0.0
      %4454 = vmatpush1.xpose.msra.mxu0 0.0
      %4455 = vmatprep.subr.mxu0 0.0
      %4456 = vmatpush1.xpose.msra.mxu0 0.0
      %4457 = vmatprep.subr.mxu0 0.0
      %4458 = vmatpush1.xpose.msra.mxu0 0.0
      %4459 = vmatprep.subr.mxu0 0.0
      %4460 = vmatpush1.xpose.msra.mxu0 0.0
      %4461 = vmatprep.subr.mxu0 0.0
      %4462 = vmatpush1.xpose.msra.mxu0 0.0
      %4463 = vmatprep.subr.mxu0 0.0
      %4464 = vmatpush1.xpose.msra.mxu0 0.0
      %4465 = vmatprep.subr.mxu0 0.0
      %4466 = vmatpush1.xpose.msra.mxu0 0.0
      %4467 = vmatprep.subr.mxu0 0.0
      %4468 = vmatpush1.xpose.msra.mxu0 0.0
      %4469 = vmatprep.subr.mxu0 0.0
      %4470 = vmatpush1.xpose.msra.mxu0 0.0
      %4471 = vmatprep.subr.mxu0 0.0
      %4472 = vmatpush1.xpose.msra.mxu0 0.0
      %4473 = vmatprep.subr.mxu0 0.0
      %4474 = vmatpush1.xpose.msra.mxu0 0.0
      %4475 = vmatprep.subr.mxu0 0.0
      %4476 = vmatpush1.xpose.msra.mxu0 0.0
      %4477 = vmatprep.subr.mxu0 0.0
      %4478 = vmatpush1.xpose.msra.mxu0 0.0
      %4479 = vmatprep.subr.mxu0 0.0
      %4480 = vmatpush1.xpose.msra.mxu0 0.0
      %4481 = vmatprep.subr.mxu0 0.0
      %4482 = vmatpush1.xpose.msra.mxu0 0.0
      %4483 = vmatprep.subr.mxu0 0.0
      %4484 = vmatpush1.xpose.msra.mxu0 0.0
      %4485 = vmatprep.subr.mxu0 0.0
      %4486 = vmatpush1.xpose.msra.mxu0 0.0
      %4487 = vmatprep.subr.mxu0 0.0
      %4488 = vmatpush1.xpose.msra.mxu0 0.0
      %4489 = vmatprep.subr.mxu0 0.0
      %4490 = vmatpush1.xpose.msra.mxu0 0.0
      %4491 = vmatprep.subr.mxu0 0.0
      %4492 = vmatpush1.xpose.msra.mxu0 0.0
      %4493 = vmatprep.subr.mxu0 0.0
      %4494 = vmatpush1.xpose.msra.mxu0 0.0
      %4495 = vmatprep.subr.mxu0 0.0
      %4496 = vmatpush1.xpose.msra.mxu0 0.0
      %4497 = vmatprep.subr.mxu0 0.0
      %4498 = vmatpush1.xpose.msra.mxu0 0.0
      %4499 = vmatprep.subr.mxu0 0.0
      %4500 = vmatpush1.xpose.msra.mxu0 0.0
      %4501 = vmatprep.subr.mxu0 0.0
      %4502 = vmatpush1.xpose.msra.mxu0 0.0
      %4503 = vmatprep.subr.mxu0 0.0
      %4504 = vmatpush1.xpose.msra.mxu0 0.0
      %4505 = vmatprep.subr.mxu0 0.0
      %4506 = vmatpush1.xpose.msra.mxu0 0.0
      %4507 = vmatprep.subr.mxu0 0.0
      %4508 = vmatpush1.xpose.msra.mxu0 0.0
      %4509 = vmatprep.mubr.f32.mxu0 0.0
      %v4510 = vand.u32 %v4137, 4294901760
      %4511 = vmatmul.mubr.f32.gmra.mrb[0].mxu0 %v4510
      %v4512 = vpop.f32.mrb[0].mxu0
      %v4513 = vadd.f32 %v4439, %v4512
      %v4514 = vpop.f32.mrb[0].mxu0
      %4515 = vdwg.mxu0
      %4516 = vmatprep.subr.mxu0 0.0
      %v4517 = vand.u32 %v4140, 4294901760
      %4518 = vmatpush1.xpose.msra.mxu0 %v4517
      %4519 = vmatprep.subr.mxu0 0.0
      %4520 = vmatpush1.xpose.msra.mxu0 0.0
      %4521 = vmatprep.subr.mxu0 0.0
      %4522 = vmatpush1.xpose.msra.mxu0 0.0
      %4523 = vmatprep.subr.mxu0 0.0
      %4524 = vmatpush1.xpose.msra.mxu0 0.0
      %4525 = vmatprep.subr.mxu0 0.0
      %4526 = vmatpush1.xpose.msra.mxu0 0.0
      %4527 = vmatprep.subr.mxu0 0.0
      %4528 = vmatpush1.xpose.msra.mxu0 0.0
      %4529 = vmatprep.subr.mxu0 0.0
      %4530 = vmatpush1.xpose.msra.mxu0 0.0
      %4531 = vmatprep.subr.mxu0 0.0
      %4532 = vmatpush1.xpose.msra.mxu0 0.0
      %4533 = vmatprep.subr.mxu0 0.0
      %4534 = vmatpush1.xpose.msra.mxu0 0.0
      %4535 = vmatprep.subr.mxu0 0.0
      %4536 = vmatpush1.xpose.msra.mxu0 0.0
      %4537 = vmatprep.subr.mxu0 0.0
      %4538 = vmatpush1.xpose.msra.mxu0 0.0
      %4539 = vmatprep.subr.mxu0 0.0
      %4540 = vmatpush1.xpose.msra.mxu0 0.0
      %4541 = vmatprep.subr.mxu0 0.0
      %4542 = vmatpush1.xpose.msra.mxu0 0.0
      %4543 = vmatprep.subr.mxu0 0.0
      %4544 = vmatpush1.xpose.msra.mxu0 0.0
      %4545 = vmatprep.subr.mxu0 0.0
      %4546 = vmatpush1.xpose.msra.mxu0 0.0
      %4547 = vmatprep.subr.mxu0 0.0
      %4548 = vmatpush1.xpose.msra.mxu0 0.0
      %4549 = vmatprep.subr.mxu0 0.0
      %4550 = vmatpush1.xpose.msra.mxu0 0.0
      %4551 = vmatprep.subr.mxu0 0.0
      %4552 = vmatpush1.xpose.msra.mxu0 0.0
      %4553 = vmatprep.subr.mxu0 0.0
      %4554 = vmatpush1.xpose.msra.mxu0 0.0
      %4555 = vmatprep.subr.mxu0 0.0
      %4556 = vmatpush1.xpose.msra.mxu0 0.0
      %4557 = vmatprep.subr.mxu0 0.0
      %4558 = vmatpush1.xpose.msra.mxu0 0.0
      %4559 = vmatprep.subr.mxu0 0.0
      %4560 = vmatpush1.xpose.msra.mxu0 0.0
      %4561 = vmatprep.subr.mxu0 0.0
      %4562 = vmatpush1.xpose.msra.mxu0 0.0
      %4563 = vmatprep.subr.mxu0 0.0
      %4564 = vmatpush1.xpose.msra.mxu0 0.0
      %4565 = vmatprep.subr.mxu0 0.0
      %4566 = vmatpush1.xpose.msra.mxu0 0.0
      %4567 = vmatprep.subr.mxu0 0.0
      %4568 = vmatpush1.xpose.msra.mxu0 0.0
      %4569 = vmatprep.subr.mxu0 0.0
      %4570 = vmatpush1.xpose.msra.mxu0 0.0
      %4571 = vmatprep.subr.mxu0 0.0
      %4572 = vmatpush1.xpose.msra.mxu0 0.0
      %4573 = vmatprep.subr.mxu0 0.0
      %4574 = vmatpush1.xpose.msra.mxu0 0.0
      %4575 = vmatprep.subr.mxu0 0.0
      %4576 = vmatpush1.xpose.msra.mxu0 0.0
      %4577 = vmatprep.subr.mxu0 0.0
      %4578 = vmatpush1.xpose.msra.mxu0 0.0
      %4579 = vmatprep.subr.mxu0 0.0
      %4580 = vmatpush1.xpose.msra.mxu0 0.0
      %4581 = vmatprep.mubr.f32.mxu0 0.0
      %v4582 = vand.u32 %v4137, 4294901760
      %4583 = vmatmul.mubr.f32.gmra.mrb[0].mxu0 %v4582
      %v4584 = vpop.f32.mrb[0].mxu0
      %v4585 = vadd.f32 %v4513, %v4584
      %v4586 = vpop.f32.mrb[0].mxu0
      %4587 = vdwg.mxu0
      %v4588 = vadd.f32 %v4585, %v4125
      %v4589 = vld [vmem:[%s6] sm:$0xff]
      %v4590 = vld [vmem:[%s7] sm:$0xff]
      %4592 = vset.pattern.permute.xlu0 0
      %4593 = vperm.xlu0 %4592, %v4590
      %v4594 = vpop.permute.xlu0 %4593
      %v4597 = vsel %vm1658, %v4589, 0
      %4599 = vmatprep.subr.mxu0 0.0
      %v4600 = vand.u32 %v4588, 4294901760
      %4601 = vmatpush1.msra.mxu0 %v4600
      %4602 = vmatprep.subr.mxu0 0.0
      %4603 = vmatpush1.msra.mxu0 0.0
      %4604 = vmatprep.subr.mxu0 0.0
      %4605 = vmatpush1.msra.mxu0 0.0
      %4606 = vmatprep.subr.mxu0 0.0
      %4607 = vmatpush1.msra.mxu0 0.0
      %4608 = vmatprep.subr.mxu0 0.0
      %4609 = vmatpush1.msra.mxu0 0.0
      %4610 = vmatprep.subr.mxu0 0.0
      %4611 = vmatpush1.msra.mxu0 0.0
      %4612 = vmatprep.subr.mxu0 0.0
      %4613 = vmatpush1.msra.mxu0 0.0
      %4614 = vmatprep.subr.mxu0 0.0
      %4615 = vmatpush1.msra.mxu0 0.0
      %4616 = vmatprep.subr.mxu0 0.0
      %4617 = vmatpush1.msra.mxu0 0.0
      %4618 = vmatprep.subr.mxu0 0.0
      %4619 = vmatpush1.msra.mxu0 0.0
      %4620 = vmatprep.subr.mxu0 0.0
      %4621 = vmatpush1.msra.mxu0 0.0
      %4622 = vmatprep.subr.mxu0 0.0
      %4623 = vmatpush1.msra.mxu0 0.0
      %4624 = vmatprep.subr.mxu0 0.0
      %4625 = vmatpush1.msra.mxu0 0.0
      %4626 = vmatprep.subr.mxu0 0.0
      %4627 = vmatpush1.msra.mxu0 0.0
      %4628 = vmatprep.subr.mxu0 0.0
      %4629 = vmatpush1.msra.mxu0 0.0
      %4630 = vmatprep.subr.mxu0 0.0
      %4631 = vmatpush1.msra.mxu0 0.0
      %4632 = vmatprep.subr.mxu0 0.0
      %4633 = vmatpush1.msra.mxu0 0.0
      %4634 = vmatprep.subr.mxu0 0.0
      %4635 = vmatpush1.msra.mxu0 0.0
      %4636 = vmatprep.subr.mxu0 0.0
      %4637 = vmatpush1.msra.mxu0 0.0
      %4638 = vmatprep.subr.mxu0 0.0
      %4639 = vmatpush1.msra.mxu0 0.0
      %4640 = vmatprep.subr.mxu0 0.0
      %4641 = vmatpush1.msra.mxu0 0.0
      %4642 = vmatprep.subr.mxu0 0.0
      %4643 = vmatpush1.msra.mxu0 0.0
      %4644 = vmatprep.subr.mxu0 0.0
      %4645 = vmatpush1.msra.mxu0 0.0
      %4646 = vmatprep.subr.mxu0 0.0
      %4647 = vmatpush1.msra.mxu0 0.0
      %4648 = vmatprep.subr.mxu0 0.0
      %4649 = vmatpush1.msra.mxu0 0.0
      %4650 = vmatprep.subr.mxu0 0.0
      %4651 = vmatpush1.msra.mxu0 0.0
      %4652 = vmatprep.subr.mxu0 0.0
      %4653 = vmatpush1.msra.mxu0 0.0
      %4654 = vmatprep.subr.mxu0 0.0
      %4655 = vmatpush1.msra.mxu0 0.0
      %4656 = vmatprep.subr.mxu0 0.0
      %4657 = vmatpush1.msra.mxu0 0.0
      %4658 = vmatprep.subr.mxu0 0.0
      %4659 = vmatpush1.msra.mxu0 0.0
      %4660 = vmatprep.subr.mxu0 0.0
      %4661 = vmatpush1.msra.mxu0 0.0
      %4662 = vmatprep.subr.mxu0 0.0
      %4663 = vmatpush1.msra.mxu0 0.0
      %4664 = vmatprep.mubr.f32.mxu0 0.0
      %v4665 = vand.u32 %v4597, 4294901760
      %v4666 = vsub.f32 %v4597, %v4665
      %v4667 = vand.u32 %v4666, 4294901760
      %v4668 = vsub.f32 %v4666, %v4667
      %v4669 = vand.u32 %v4668, 4294901760
      %4670 = vmatmul.mubr.f32.gmra.mrb[0].mxu0 %v4669
      %v4671 = vpop.f32.mrb[0].mxu0
      %v4672 = vadd.f32 %v4594, %v4671
      %v4673 = vpop.f32.mrb[0].mxu0
      %4674 = vdwg.mxu0
      %4675 = vmatprep.subr.mxu0 0.0
      %v4676 = vand.u32 %v4588, 4294901760
      %v4677 = vsub.f32 %v4588, %v4676
      %v4678 = vand.u32 %v4677, 4294901760
      %v4679 = vsub.f32 %v4677, %v4678
      %v4680 = vand.u32 %v4679, 4294901760
      %4681 = vmatpush1.msra.mxu0 %v4680
      %4682 = vmatprep.subr.mxu0 0.0
      %4683 = vmatpush1.msra.mxu0 0.0
      %4684 = vmatprep.subr.mxu0 0.0
      %4685 = vmatpush1.msra.mxu0 0.0
      %4686 = vmatprep.subr.mxu0 0.0
      %4687 = vmatpush1.msra.mxu0 0.0
      %4688 = vmatprep.subr.mxu0 0.0
      %4689 = vmatpush1.msra.mxu0 0.0
      %4690 = vmatprep.subr.mxu0 0.0
      %4691 = vmatpush1.msra.mxu0 0.0
      %4692 = vmatprep.subr.mxu0 0.0
      %4693 = vmatpush1.msra.mxu0 0.0
      %4694 = vmatprep.subr.mxu0 0.0
      %4695 = vmatpush1.msra.mxu0 0.0
      %4696 = vmatprep.subr.mxu0 0.0
      %4697 = vmatpush1.msra.mxu0 0.0
      %4698 = vmatprep.subr.mxu0 0.0
      %4699 = vmatpush1.msra.mxu0 0.0
      %4700 = vmatprep.subr.mxu0 0.0
      %4701 = vmatpush1.msra.mxu0 0.0
      %4702 = vmatprep.subr.mxu0 0.0
      %4703 = vmatpush1.msra.mxu0 0.0
      %4704 = vmatprep.subr.mxu0 0.0
      %4705 = vmatpush1.msra.mxu0 0.0
      %4706 = vmatprep.subr.mxu0 0.0
      %4707 = vmatpush1.msra.mxu0 0.0
      %4708 = vmatprep.subr.mxu0 0.0
      %4709 = vmatpush1.msra.mxu0 0.0
      %4710 = vmatprep.subr.mxu0 0.0
      %4711 = vmatpush1.msra.mxu0 0.0
      %4712 = vmatprep.subr.mxu0 0.0
      %4713 = vmatpush1.msra.mxu0 0.0
      %4714 = vmatprep.subr.mxu0 0.0
      %4715 = vmatpush1.msra.mxu0 0.0
      %4716 = vmatprep.subr.mxu0 0.0
      %4717 = vmatpush1.msra.mxu0 0.0
      %4718 = vmatprep.subr.mxu0 0.0
      %4719 = vmatpush1.msra.mxu0 0.0
      %4720 = vmatprep.subr.mxu0 0.0
      %4721 = vmatpush1.msra.mxu0 0.0
      %4722 = vmatprep.subr.mxu0 0.0
      %4723 = vmatpush1.msra.mxu0 0.0
      %4724 = vmatprep.subr.mxu0 0.0
      %4725 = vmatpush1.msra.mxu0 0.0
      %4726 = vmatprep.subr.mxu0 0.0
      %4727 = vmatpush1.msra.mxu0 0.0
      %4728 = vmatprep.subr.mxu0 0.0
      %4729 = vmatpush1.msra.mxu0 0.0
      %4730 = vmatprep.subr.mxu0 0.0
      %4731 = vmatpush1.msra.mxu0 0.0
      %4732 = vmatprep.subr.mxu0 0.0
      %4733 = vmatpush1.msra.mxu0 0.0
      %4734 = vmatprep.subr.mxu0 0.0
      %4735 = vmatpush1.msra.mxu0 0.0
      %4736 = vmatprep.subr.mxu0 0.0
      %4737 = vmatpush1.msra.mxu0 0.0
      %4738 = vmatprep.subr.mxu0 0.0
      %4739 = vmatpush1.msra.mxu0 0.0
      %4740 = vmatprep.subr.mxu0 0.0
      %4741 = vmatpush1.msra.mxu0 0.0
      %4742 = vmatprep.subr.mxu0 0.0
      %4743 = vmatpush1.msra.mxu0 0.0
      %4744 = vmatprep.mubr.f32.mxu0 0.0
      %v4745 = vand.u32 %v4597, 4294901760
      %4746 = vmatmul.mubr.f32.gmra.mrb[0].mxu0 %v4745
      %v4747 = vpop.f32.mrb[0].mxu0
      %v4748 = vadd.f32 %v4672, %v4747
      %v4749 = vpop.f32.mrb[0].mxu0
      %4750 = vdwg.mxu0
      %4751 = vmatprep.subr.mxu0 0.0
      %v4752 = vand.u32 %v4588, 4294901760
      %v4753 = vsub.f32 %v4588, %v4752
      %4754 = vmatpush1.msra.mxu0 %v4753
      %4755 = vmatprep.subr.mxu0 0.0
      %4756 = vmatpush1.msra.mxu0 0.0
      %4757 = vmatprep.subr.mxu0 0.0
      %4758 = vmatpush1.msra.mxu0 0.0
      %4759 = vmatprep.subr.mxu0 0.0
      %4760 = vmatpush1.msra.mxu0 0.0
      %4761 = vmatprep.subr.mxu0 0.0
      %4762 = vmatpush1.msra.mxu0 0.0
      %4763 = vmatprep.subr.mxu0 0.0
      %4764 = vmatpush1.msra.mxu0 0.0
      %4765 = vmatprep.subr.mxu0 0.0
      %4766 = vmatpush1.msra.mxu0 0.0
      %4767 = vmatprep.subr.mxu0 0.0
      %4768 = vmatpush1.msra.mxu0 0.0
      %4769 = vmatprep.subr.mxu0 0.0
      %4770 = vmatpush1.msra.mxu0 0.0
      %4771 = vmatprep.subr.mxu0 0.0
      %4772 = vmatpush1.msra.mxu0 0.0
      %4773 = vmatprep.subr.mxu0 0.0
      %4774 = vmatpush1.msra.mxu0 0.0
      %4775 = vmatprep.subr.mxu0 0.0
      %4776 = vmatpush1.msra.mxu0 0.0
      %4777 = vmatprep.subr.mxu0 0.0
      %4778 = vmatpush1.msra.mxu0 0.0
      %4779 = vmatprep.subr.mxu0 0.0
      %4780 = vmatpush1.msra.mxu0 0.0
      %4781 = vmatprep.subr.mxu0 0.0
      %4782 = vmatpush1.msra.mxu0 0.0
      %4783 = vmatprep.subr.mxu0 0.0
      %4784 = vmatpush1.msra.mxu0 0.0
      %4785 = vmatprep.subr.mxu0 0.0
      %4786 = vmatpush1.msra.mxu0 0.0
      %4787 = vmatprep.subr.mxu0 0.0
      %4788 = vmatpush1.msra.mxu0 0.0
      %4789 = vmatprep.subr.mxu0 0.0
      %4790 = vmatpush1.msra.mxu0 0.0
      %4791 = vmatprep.subr.mxu0 0.0
      %4792 = vmatpush1.msra.mxu0 0.0
      %4793 = vmatprep.subr.mxu0 0.0
      %4794 = vmatpush1.msra.mxu0 0.0
      %4795 = vmatprep.subr.mxu0 0.0
      %4796 = vmatpush1.msra.mxu0 0.0
      %4797 = vmatprep.subr.mxu0 0.0
      %4798 = vmatpush1.msra.mxu0 0.0
      %4799 = vmatprep.subr.mxu0 0.0
      %4800 = vmatpush1.msra.mxu0 0.0
      %4801 = vmatprep.subr.mxu0 0.0
      %4802 = vmatpush1.msra.mxu0 0.0
      %4803 = vmatprep.subr.mxu0 0.0
      %4804 = vmatpush1.msra.mxu0 0.0
      %4805 = vmatprep.subr.mxu0 0.0
      %4806 = vmatpush1.msra.mxu0 0.0
      %4807 = vmatprep.subr.mxu0 0.0
      %4808 = vmatpush1.msra.mxu0 0.0
      %4809 = vmatprep.subr.mxu0 0.0
      %4810 = vmatpush1.msra.mxu0 0.0
      %4811 = vmatprep.subr.mxu0 0.0
      %4812 = vmatpush1.msra.mxu0 0.0
      %4813 = vmatprep.subr.mxu0 0.0
      %4814 = vmatpush1.msra.mxu0 0.0
      %4815 = vmatprep.subr.mxu0 0.0
      %4816 = vmatpush1.msra.mxu0 0.0
      %4817 = vmatprep.mubr.f32.mxu0 0.0
      %v4818 = vand.u32 %v4597, 4294901760
      %v4819 = vsub.f32 %v4597, %v4818
      %4820 = vmatmul.mubr.f32.gmra.mrb[0].mxu0 %v4819
      %v4821 = vpop.f32.mrb[0].mxu0
      %v4822 = vadd.f32 %v4748, %v4821
      %v4823 = vpop.f32.mrb[0].mxu0
      %4824 = vdwg.mxu0
      %4825 = vmatprep.subr.mxu0 0.0
      %v4826 = vand.u32 %v4588, 4294901760
      %4827 = vmatpush1.msra.mxu0 %v4826
      %4828 = vmatprep.subr.mxu0 0.0
      %4829 = vmatpush1.msra.mxu0 0.0
      %4830 = vmatprep.subr.mxu0 0.0
      %4831 = vmatpush1.msra.mxu0 0.0
      %4832 = vmatprep.subr.mxu0 0.0
      %4833 = vmatpush1.msra.mxu0 0.0
      %4834 = vmatprep.subr.mxu0 0.0
      %4835 = vmatpush1.msra.mxu0 0.0
      %4836 = vmatprep.subr.mxu0 0.0
      %4837 = vmatpush1.msra.mxu0 0.0
      %4838 = vmatprep.subr.mxu0 0.0
      %4839 = vmatpush1.msra.mxu0 0.0
      %4840 = vmatprep.subr.mxu0 0.0
      %4841 = vmatpush1.msra.mxu0 0.0
      %4842 = vmatprep.subr.mxu0 0.0
      %4843 = vmatpush1.msra.mxu0 0.0
      %4844 = vmatprep.subr.mxu0 0.0
      %4845 = vmatpush1.msra.mxu0 0.0
      %4846 = vmatprep.subr.mxu0 0.0
      %4847 = vmatpush1.msra.mxu0 0.0
      %4848 = vmatprep.subr.mxu0 0.0
      %4849 = vmatpush1.msra.mxu0 0.0
      %4850 = vmatprep.subr.mxu0 0.0
      %4851 = vmatpush1.msra.mxu0 0.0
      %4852 = vmatprep.subr.mxu0 0.0
      %4853 = vmatpush1.msra.mxu0 0.0
      %4854 = vmatprep.subr.mxu0 0.0
      %4855 = vmatpush1.msra.mxu0 0.0
      %4856 = vmatprep.subr.mxu0 0.0
      %4857 = vmatpush1.msra.mxu0 0.0
      %4858 = vmatprep.subr.mxu0 0.0
      %4859 = vmatpush1.msra.mxu0 0.0
      %4860 = vmatprep.subr.mxu0 0.0
      %4861 = vmatpush1.msra.mxu0 0.0
      %4862 = vmatprep.subr.mxu0 0.0
      %4863 = vmatpush1.msra.mxu0 0.0
      %4864 = vmatprep.subr.mxu0 0.0
      %4865 = vmatpush1.msra.mxu0 0.0
      %4866 = vmatprep.subr.mxu0 0.0
      %4867 = vmatpush1.msra.mxu0 0.0
      %4868 = vmatprep.subr.mxu0 0.0
      %4869 = vmatpush1.msra.mxu0 0.0
      %4870 = vmatprep.subr.mxu0 0.0
      %4871 = vmatpush1.msra.mxu0 0.0
      %4872 = vmatprep.subr.mxu0 0.0
      %4873 = vmatpush1.msra.mxu0 0.0
      %4874 = vmatprep.subr.mxu0 0.0
      %4875 = vmatpush1.msra.mxu0 0.0
      %4876 = vmatprep.subr.mxu0 0.0
      %4877 = vmatpush1.msra.mxu0 0.0
      %4878 = vmatprep.subr.mxu0 0.0
      %4879 = vmatpush1.msra.mxu0 0.0
      %4880 = vmatprep.subr.mxu0 0.0
      %4881 = vmatpush1.msra.mxu0 0.0
      %4882 = vmatprep.subr.mxu0 0.0
      %4883 = vmatpush1.msra.mxu0 0.0
      %4884 = vmatprep.subr.mxu0 0.0
      %4885 = vmatpush1.msra.mxu0 0.0
      %4886 = vmatprep.subr.mxu0 0.0
      %4887 = vmatpush1.msra.mxu0 0.0
      %4888 = vmatprep.subr.mxu0 0.0
      %4889 = vmatpush1.msra.mxu0 0.0
      %4890 = vmatprep.mubr.f32.mxu0 0.0
      %v4891 = vand.u32 %v4597, 4294901760
      %v4892 = vsub.f32 %v4597, %v4891
      %v4893 = vand.u32 %v4892, 4294901760
      %4894 = vmatmul.mubr.f32.gmra.mrb[0].mxu0 %v4893
      %v4895 = vpop.f32.mrb[0].mxu0
      %v4896 = vadd.f32 %v4822, %v4895
      %v4897 = vpop.f32.mrb[0].mxu0
      %4898 = vdwg.mxu0
      %4899 = vmatprep.subr.mxu0 0.0
      %v4900 = vand.u32 %v4588, 4294901760
      %v4901 = vsub.f32 %v4588, %v4900
      %v4902 = vand.u32 %v4901, 4294901760
      %4903 = vmatpush1.msra.mxu0 %v4902
      %4904 = vmatprep.subr.mxu0 0.0
      %4905 = vmatpush1.msra.mxu0 0.0
      %4906 = vmatprep.subr.mxu0 0.0
      %4907 = vmatpush1.msra.mxu0 0.0
      %4908 = vmatprep.subr.mxu0 0.0
      %4909 = vmatpush1.msra.mxu0 0.0
      %4910 = vmatprep.subr.mxu0 0.0
      %4911 = vmatpush1.msra.mxu0 0.0
      %4912 = vmatprep.subr.mxu0 0.0
      %4913 = vmatpush1.msra.mxu0 0.0
      %4914 = vmatprep.subr.mxu0 0.0
      %4915 = vmatpush1.msra.mxu0 0.0
      %4916 = vmatprep.subr.mxu0 0.0
      %4917 = vmatpush1.msra.mxu0 0.0
      %4918 = vmatprep.subr.mxu0 0.0
      %4919 = vmatpush1.msra.mxu0 0.0
      %4920 = vmatprep.subr.mxu0 0.0
      %4921 = vmatpush1.msra.mxu0 0.0
      %4922 = vmatprep.subr.mxu0 0.0
      %4923 = vmatpush1.msra.mxu0 0.0
      %4924 = vmatprep.subr.mxu0 0.0
      %4925 = vmatpush1.msra.mxu0 0.0
      %4926 = vmatprep.subr.mxu0 0.0
      %4927 = vmatpush1.msra.mxu0 0.0
      %4928 = vmatprep.subr.mxu0 0.0
      %4929 = vmatpush1.msra.mxu0 0.0
      %4930 = vmatprep.subr.mxu0 0.0
      %4931 = vmatpush1.msra.mxu0 0.0
      %4932 = vmatprep.subr.mxu0 0.0
      %4933 = vmatpush1.msra.mxu0 0.0
      %4934 = vmatprep.subr.mxu0 0.0
      %4935 = vmatpush1.msra.mxu0 0.0
      %4936 = vmatprep.subr.mxu0 0.0
      %4937 = vmatpush1.msra.mxu0 0.0
      %4938 = vmatprep.subr.mxu0 0.0
      %4939 = vmatpush1.msra.mxu0 0.0
      %4940 = vmatprep.subr.mxu0 0.0
      %4941 = vmatpush1.msra.mxu0 0.0
      %4942 = vmatprep.subr.mxu0 0.0
      %4943 = vmatpush1.msra.mxu0 0.0
      %4944 = vmatprep.subr.mxu0 0.0
      %4945 = vmatpush1.msra.mxu0 0.0
      %4946 = vmatprep.subr.mxu0 0.0
      %4947 = vmatpush1.msra.mxu0 0.0
      %4948 = vmatprep.subr.mxu0 0.0
      %4949 = vmatpush1.msra.mxu0 0.0
      %4950 = vmatprep.subr.mxu0 0.0
      %4951 = vmatpush1.msra.mxu0 0.0
      %4952 = vmatprep.subr.mxu0 0.0
      %4953 = vmatpush1.msra.mxu0 0.0
      %4954 = vmatprep.subr.mxu0 0.0
      %4955 = vmatpush1.msra.mxu0 0.0
      %4956 = vmatprep.subr.mxu0 0.0
      %4957 = vmatpush1.msra.mxu0 0.0
      %4958 = vmatprep.subr.mxu0 0.0
      %4959 = vmatpush1.msra.mxu0 0.0
      %4960 = vmatprep.subr.mxu0 0.0
      %4961 = vmatpush1.msra.mxu0 0.0
      %4962 = vmatprep.subr.mxu0 0.0
      %4963 = vmatpush1.msra.mxu0 0.0
      %4964 = vmatprep.subr.mxu0 0.0
      %4965 = vmatpush1.msra.mxu0 0.0
      %4966 = vmatprep.mubr.f32.mxu0 0.0
      %v4967 = vand.u32 %v4597, 4294901760
      %4968 = vmatmul.mubr.f32.gmra.mrb[0].mxu0 %v4967
      %v4969 = vpop.f32.mrb[0].mxu0
      %v4970 = vadd.f32 %v4896, %v4969
      %v4971 = vpop.f32.mrb[0].mxu0
      %4972 = vdwg.mxu0
      %4973 = vmatprep.subr.mxu0 0.0
      %v4974 = vand.u32 %v4588, 4294901760
      %4975 = vmatpush1.msra.mxu0 %v4974
      %4976 = vmatprep.subr.mxu0 0.0
      %4977 = vmatpush1.msra.mxu0 0.0
      %4978 = vmatprep.subr.mxu0 0.0
      %4979 = vmatpush1.msra.mxu0 0.0
      %4980 = vmatprep.subr.mxu0 0.0
      %4981 = vmatpush1.msra.mxu0 0.0
      %4982 = vmatprep.subr.mxu0 0.0
      %4983 = vmatpush1.msra.mxu0 0.0
      %4984 = vmatprep.subr.mxu0 0.0
      %4985 = vmatpush1.msra.mxu0 0.0
      %4986 = vmatprep.subr.mxu0 0.0
      %4987 = vmatpush1.msra.mxu0 0.0
      %4988 = vmatprep.subr.mxu0 0.0
      %4989 = vmatpush1.msra.mxu0 0.0
      %4990 = vmatprep.subr.mxu0 0.0
      %4991 = vmatpush1.msra.mxu0 0.0
      %4992 = vmatprep.subr.mxu0 0.0
      %4993 = vmatpush1.msra.mxu0 0.0
      %4994 = vmatprep.subr.mxu0 0.0
      %4995 = vmatpush1.msra.mxu0 0.0
      %4996 = vmatprep.subr.mxu0 0.0
      %4997 = vmatpush1.msra.mxu0 0.0
      %4998 = vmatprep.subr.mxu0 0.0
      %4999 = vmatpush1.msra.mxu0 0.0
      %5000 = vmatprep.subr.mxu0 0.0
      %5001 = vmatpush1.msra.mxu0 0.0
      %5002 = vmatprep.subr.mxu0 0.0
      %5003 = vmatpush1.msra.mxu0 0.0
      %5004 = vmatprep.subr.mxu0 0.0
      %5005 = vmatpush1.msra.mxu0 0.0
      %5006 = vmatprep.subr.mxu0 0.0
      %5007 = vmatpush1.msra.mxu0 0.0
      %5008 = vmatprep.subr.mxu0 0.0
      %5009 = vmatpush1.msra.mxu0 0.0
      %5010 = vmatprep.subr.mxu0 0.0
      %5011 = vmatpush1.msra.mxu0 0.0
      %5012 = vmatprep.subr.mxu0 0.0
      %5013 = vmatpush1.msra.mxu0 0.0
      %5014 = vmatprep.subr.mxu0 0.0
      %5015 = vmatpush1.msra.mxu0 0.0
      %5016 = vmatprep.subr.mxu0 0.0
      %5017 = vmatpush1.msra.mxu0 0.0
      %5018 = vmatprep.subr.mxu0 0.0
      %5019 = vmatpush1.msra.mxu0 0.0
      %5020 = vmatprep.subr.mxu0 0.0
      %5021 = vmatpush1.msra.mxu0 0.0
      %5022 = vmatprep.subr.mxu0 0.0
      %5023 = vmatpush1.msra.mxu0 0.0
      %5024 = vmatprep.subr.mxu0 0.0
      %5025 = vmatpush1.msra.mxu0 0.0
      %5026 = vmatprep.subr.mxu0 0.0
      %5027 = vmatpush1.msra.mxu0 0.0
      %5028 = vmatprep.subr.mxu0 0.0
      %5029 = vmatpush1.msra.mxu0 0.0
      %5030 = vmatprep.subr.mxu0 0.0
      %5031 = vmatpush1.msra.mxu0 0.0
      %5032 = vmatprep.subr.mxu0 0.0
      %5033 = vmatpush1.msra.mxu0 0.0
      %5034 = vmatprep.subr.mxu0 0.0
      %5035 = vmatpush1.msra.mxu0 0.0
      %5036 = vmatprep.subr.mxu0 0.0
      %5037 = vmatpush1.msra.mxu0 0.0
      %5038 = vmatprep.mubr.f32.mxu0 0.0
      %v5039 = vand.u32 %v4597, 4294901760
      %5040 = vmatmul.mubr.f32.gmra.mrb[0].mxu0 %v5039
      %v5041 = vpop.f32.mrb[0].mxu0
      %v5042 = vadd.f32 %v4970, %v5041
      %v5043 = vpop.f32.mrb[0].mxu0
      %5044 = vdwg.mxu0
      %v5045 = vld [vmem:[%s8] sm:$0xff]
      %v5046 = vld [vmem:[%s8 + $0x8] sm:$0xff]
      %v5048 = vsel %vm1658, %v5045, 0
      %v5051 = vsel %vm1658, %v5046, 0
      %5053 = vmatprep.subr.mxu0 0.0
      %v5054 = vand.u32 %v5042, 4294901760
      %5055 = vmatpush1.msra.mxu0 %v5054
      %5056 = vmatprep.subr.mxu0 0.0
      %5057 = vmatpush1.msra.mxu0 0.0
      %5058 = vmatprep.subr.mxu0 0.0
      %5059 = vmatpush1.msra.mxu0 0.0
      %5060 = vmatprep.subr.mxu0 0.0
      %5061 = vmatpush1.msra.mxu0 0.0
      %5062 = vmatprep.subr.mxu0 0.0
      %5063 = vmatpush1.msra.mxu0 0.0
      %5064 = vmatprep.subr.mxu0 0.0
      %5065 = vmatpush1.msra.mxu0 0.0
      %5066 = vmatprep.subr.mxu0 0.0
      %5067 = vmatpush1.msra.mxu0 0.0
      %5068 = vmatprep.subr.mxu0 0.0
      %5069 = vmatpush1.msra.mxu0 0.0
      %5070 = vmatprep.subr.mxu0 0.0
      %5071 = vmatpush1.msra.mxu0 0.0
      %5072 = vmatprep.subr.mxu0 0.0
      %5073 = vmatpush1.msra.mxu0 0.0
      %5074 = vmatprep.subr.mxu0 0.0
      %5075 = vmatpush1.msra.mxu0 0.0
      %5076 = vmatprep.subr.mxu0 0.0
      %5077 = vmatpush1.msra.mxu0 0.0
      %5078 = vmatprep.subr.mxu0 0.0
      %5079 = vmatpush1.msra.mxu0 0.0
      %5080 = vmatprep.subr.mxu0 0.0
      %5081 = vmatpush1.msra.mxu0 0.0
      %5082 = vmatprep.subr.mxu0 0.0
      %5083 = vmatpush1.msra.mxu0 0.0
      %5084 = vmatprep.subr.mxu0 0.0
      %5085 = vmatpush1.msra.mxu0 0.0
      %5086 = vmatprep.subr.mxu0 0.0
      %5087 = vmatpush1.msra.mxu0 0.0
      %5088 = vmatprep.subr.mxu0 0.0
      %5089 = vmatpush1.msra.mxu0 0.0
      %5090 = vmatprep.subr.mxu0 0.0
      %5091 = vmatpush1.msra.mxu0 0.0
      %5092 = vmatprep.subr.mxu0 0.0
      %5093 = vmatpush1.msra.mxu0 0.0
      %5094 = vmatprep.subr.mxu0 0.0
      %5095 = vmatpush1.msra.mxu0 0.0
      %5096 = vmatprep.subr.mxu0 0.0
      %5097 = vmatpush1.msra.mxu0 0.0
      %5098 = vmatprep.subr.mxu0 0.0
      %5099 = vmatpush1.msra.mxu0 0.0
      %5100 = vmatprep.subr.mxu0 0.0
      %5101 = vmatpush1.msra.mxu0 0.0
      %5102 = vmatprep.subr.mxu0 0.0
      %5103 = vmatpush1.msra.mxu0 0.0
      %5104 = vmatprep.subr.mxu0 0.0
      %5105 = vmatpush1.msra.mxu0 0.0
      %5106 = vmatprep.subr.mxu0 0.0
      %5107 = vmatpush1.msra.mxu0 0.0
      %5108 = vmatprep.subr.mxu0 0.0
      %5109 = vmatpush1.msra.mxu0 0.0
      %5110 = vmatprep.subr.mxu0 0.0
      %5111 = vmatpush1.msra.mxu0 0.0
      %5112 = vmatprep.subr.mxu0 0.0
      %5113 = vmatpush1.msra.mxu0 0.0
      %5114 = vmatprep.subr.mxu0 0.0
      %5115 = vmatpush1.msra.mxu0 0.0
      %5116 = vmatprep.subr.mxu0 0.0
      %5117 = vmatpush1.msra.mxu0 0.0
      %5118 = vmatprep.mubr.f32.mxu0 0.0
      %v5119 = vand.u32 %v5048, 4294901760
      %v5120 = vsub.f32 %v5048, %v5119
      %v5121 = vand.u32 %v5120, 4294901760
      %v5122 = vsub.f32 %v5120, %v5121
      %v5123 = vand.u32 %v5122, 4294901760
      %5124 = vmatmul.mubr.f32.gmra.mrb[0].mxu0 %v5123
      %v5125 = vpop.f32.mrb[0].mxu0
      %v5126 = vadd.f32 0.0, %v5125
      %v5127 = vpop.f32.mrb[0].mxu0
      %5128 = vmatprep.mubr.f32.mxu0 0.0
      %v5129 = vand.u32 %v5051, 4294901760
      %v5130 = vsub.f32 %v5051, %v5129
      %v5131 = vand.u32 %v5130, 4294901760
      %v5132 = vsub.f32 %v5130, %v5131
      %v5133 = vand.u32 %v5132, 4294901760
      %5134 = vmatmul.mubr.f32.gmra.mrb[0].mxu0 %v5133
      %v5135 = vpop.f32.mrb[0].mxu0
      %v5136 = vadd.f32 0.0, %v5135
      %v5137 = vpop.f32.mrb[0].mxu0
      %5138 = vdwg.mxu0
      %5139 = vmatprep.subr.mxu0 0.0
      %v5140 = vand.u32 %v5042, 4294901760
      %v5141 = vsub.f32 %v5042, %v5140
      %v5142 = vand.u32 %v5141, 4294901760
      %v5143 = vsub.f32 %v5141, %v5142
      %v5144 = vand.u32 %v5143, 4294901760
      %5145 = vmatpush1.msra.mxu0 %v5144
      %5146 = vmatprep.subr.mxu0 0.0
      %5147 = vmatpush1.msra.mxu0 0.0
      %5148 = vmatprep.subr.mxu0 0.0
      %5149 = vmatpush1.msra.mxu0 0.0
      %5150 = vmatprep.subr.mxu0 0.0
      %5151 = vmatpush1.msra.mxu0 0.0
      %5152 = vmatprep.subr.mxu0 0.0
      %5153 = vmatpush1.msra.mxu0 0.0
      %5154 = vmatprep.subr.mxu0 0.0
      %5155 = vmatpush1.msra.mxu0 0.0
      %5156 = vmatprep.subr.mxu0 0.0
      %5157 = vmatpush1.msra.mxu0 0.0
      %5158 = vmatprep.subr.mxu0 0.0
      %5159 = vmatpush1.msra.mxu0 0.0
      %5160 = vmatprep.subr.mxu0 0.0
      %5161 = vmatpush1.msra.mxu0 0.0
      %5162 = vmatprep.subr.mxu0 0.0
      %5163 = vmatpush1.msra.mxu0 0.0
      %5164 = vmatprep.subr.mxu0 0.0
      %5165 = vmatpush1.msra.mxu0 0.0
      %5166 = vmatprep.subr.mxu0 0.0
      %5167 = vmatpush1.msra.mxu0 0.0
      %5168 = vmatprep.subr.mxu0 0.0
      %5169 = vmatpush1.msra.mxu0 0.0
      %5170 = vmatprep.subr.mxu0 0.0
      %5171 = vmatpush1.msra.mxu0 0.0
      %5172 = vmatprep.subr.mxu0 0.0
      %5173 = vmatpush1.msra.mxu0 0.0
      %5174 = vmatprep.subr.mxu0 0.0
      %5175 = vmatpush1.msra.mxu0 0.0
      %5176 = vmatprep.subr.mxu0 0.0
      %5177 = vmatpush1.msra.mxu0 0.0
      %5178 = vmatprep.subr.mxu0 0.0
      %5179 = vmatpush1.msra.mxu0 0.0
      %5180 = vmatprep.subr.mxu0 0.0
      %5181 = vmatpush1.msra.mxu0 0.0
      %5182 = vmatprep.subr.mxu0 0.0
      %5183 = vmatpush1.msra.mxu0 0.0
      %5184 = vmatprep.subr.mxu0 0.0
      %5185 = vmatpush1.msra.mxu0 0.0
      %5186 = vmatprep.subr.mxu0 0.0
      %5187 = vmatpush1.msra.mxu0 0.0
      %5188 = vmatprep.subr.mxu0 0.0
      %5189 = vmatpush1.msra.mxu0 0.0
      %5190 = vmatprep.subr.mxu0 0.0
      %5191 = vmatpush1.msra.mxu0 0.0
      %5192 = vmatprep.subr.mxu0 0.0
      %5193 = vmatpush1.msra.mxu0 0.0
      %5194 = vmatprep.subr.mxu0 0.0
      %5195 = vmatpush1.msra.mxu0 0.0
      %5196 = vmatprep.subr.mxu0 0.0
      %5197 = vmatpush1.msra.mxu0 0.0
      %5198 = vmatprep.subr.mxu0 0.0
      %5199 = vmatpush1.msra.mxu0 0.0
      %5200 = vmatprep.subr.mxu0 0.0
      %5201 = vmatpush1.msra.mxu0 0.0
      %5202 = vmatprep.subr.mxu0 0.0
      %5203 = vmatpush1.msra.mxu0 0.0
      %5204 = vmatprep.subr.mxu0 0.0
      %5205 = vmatpush1.msra.mxu0 0.0
      %5206 = vmatprep.subr.mxu0 0.0
      %5207 = vmatpush1.msra.mxu0 0.0
      %5208 = vmatprep.mubr.f32.mxu0 0.0
      %v5209 = vand.u32 %v5048, 4294901760
      %5210 = vmatmul.mubr.f32.gmra.mrb[0].mxu0 %v5209
      %v5211 = vpop.f32.mrb[0].mxu0
      %v5212 = vadd.f32 %v5126, %v5211
      %v5213 = vpop.f32.mrb[0].mxu0
      %5214 = vmatprep.mubr.f32.mxu0 0.0
      %v5215 = vand.u32 %v5051, 4294901760
      %5216 = vmatmul.mubr.f32.gmra.mrb[0].mxu0 %v5215
      %v5217 = vpop.f32.mrb[0].mxu0
      %v5218 = vadd.f32 %v5136, %v5217
      %v5219 = vpop.f32.mrb[0].mxu0
      %5220 = vdwg.mxu0
      %5221 = vmatprep.subr.mxu0 0.0
      %v5222 = vand.u32 %v5042, 4294901760
      %v5223 = vsub.f32 %v5042, %v5222
      %5224 = vmatpush1.msra.mxu0 %v5223
      %5225 = vmatprep.subr.mxu0 0.0
      %5226 = vmatpush1.msra.mxu0 0.0
      %5227 = vmatprep.subr.mxu0 0.0
      %5228 = vmatpush1.msra.mxu0 0.0
      %5229 = vmatprep.subr.mxu0 0.0
      %5230 = vmatpush1.msra.mxu0 0.0
      %5231 = vmatprep.subr.mxu0 0.0
      %5232 = vmatpush1.msra.mxu0 0.0
      %5233 = vmatprep.subr.mxu0 0.0
      %5234 = vmatpush1.msra.mxu0 0.0
      %5235 = vmatprep.subr.mxu0 0.0
      %5236 = vmatpush1.msra.mxu0 0.0
      %5237 = vmatprep.subr.mxu0 0.0
      %5238 = vmatpush1.msra.mxu0 0.0
      %5239 = vmatprep.subr.mxu0 0.0
      %5240 = vmatpush1.msra.mxu0 0.0
      %5241 = vmatprep.subr.mxu0 0.0
      %5242 = vmatpush1.msra.mxu0 0.0
      %5243 = vmatprep.subr.mxu0 0.0
      %5244 = vmatpush1.msra.mxu0 0.0
      %5245 = vmatprep.subr.mxu0 0.0
      %5246 = vmatpush1.msra.mxu0 0.0
      %5247 = vmatprep.subr.mxu0 0.0
      %5248 = vmatpush1.msra.mxu0 0.0
      %5249 = vmatprep.subr.mxu0 0.0
      %5250 = vmatpush1.msra.mxu0 0.0
      %5251 = vmatprep.subr.mxu0 0.0
      %5252 = vmatpush1.msra.mxu0 0.0
      %5253 = vmatprep.subr.mxu0 0.0
      %5254 = vmatpush1.msra.mxu0 0.0
      %5255 = vmatprep.subr.mxu0 0.0
      %5256 = vmatpush1.msra.mxu0 0.0
      %5257 = vmatprep.subr.mxu0 0.0
      %5258 = vmatpush1.msra.mxu0 0.0
      %5259 = vmatprep.subr.mxu0 0.0
      %5260 = vmatpush1.msra.mxu0 0.0
      %5261 = vmatprep.subr.mxu0 0.0
      %5262 = vmatpush1.msra.mxu0 0.0
      %5263 = vmatprep.subr.mxu0 0.0
      %5264 = vmatpush1.msra.mxu0 0.0
      %5265 = vmatprep.subr.mxu0 0.0
      %5266 = vmatpush1.msra.mxu0 0.0
      %5267 = vmatprep.subr.mxu0 0.0
      %5268 = vmatpush1.msra.mxu0 0.0
      %5269 = vmatprep.subr.mxu0 0.0
      %5270 = vmatpush1.msra.mxu0 0.0
      %5271 = vmatprep.subr.mxu0 0.0
      %5272 = vmatpush1.msra.mxu0 0.0
      %5273 = vmatprep.subr.mxu0 0.0
      %5274 = vmatpush1.msra.mxu0 0.0
      %5275 = vmatprep.subr.mxu0 0.0
      %5276 = vmatpush1.msra.mxu0 0.0
      %5277 = vmatprep.subr.mxu0 0.0
      %5278 = vmatpush1.msra.mxu0 0.0
      %5279 = vmatprep.subr.mxu0 0.0
      %5280 = vmatpush1.msra.mxu0 0.0
      %5281 = vmatprep.subr.mxu0 0.0
      %5282 = vmatpush1.msra.mxu0 0.0
      %5283 = vmatprep.subr.mxu0 0.0
      %5284 = vmatpush1.msra.mxu0 0.0
      %5285 = vmatprep.subr.mxu0 0.0
      %5286 = vmatpush1.msra.mxu0 0.0
      %5287 = vmatprep.mubr.f32.mxu0 0.0
      %v5288 = vand.u32 %v5048, 4294901760
      %v5289 = vsub.f32 %v5048, %v5288
      %5290 = vmatmul.mubr.f32.gmra.mrb[0].mxu0 %v5289
      %v5291 = vpop.f32.mrb[0].mxu0
      %v5292 = vadd.f32 %v5212, %v5291
      %v5293 = vpop.f32.mrb[0].mxu0
      %5294 = vmatprep.mubr.f32.mxu0 0.0
      %v5295 = vand.u32 %v5051, 4294901760
      %v5296 = vsub.f32 %v5051, %v5295
      %5297 = vmatmul.mubr.f32.gmra.mrb[0].mxu0 %v5296
      %v5298 = vpop.f32.mrb[0].mxu0
      %v5299 = vadd.f32 %v5218, %v5298
      %v5300 = vpop.f32.mrb[0].mxu0
      %5301 = vdwg.mxu0
      %5302 = vmatprep.subr.mxu0 0.0
      %v5303 = vand.u32 %v5042, 4294901760
      %5304 = vmatpush1.msra.mxu0 %v5303
      %5305 = vmatprep.subr.mxu0 0.0
      %5306 = vmatpush1.msra.mxu0 0.0
      %5307 = vmatprep.subr.mxu0 0.0
      %5308 = vmatpush1.msra.mxu0 0.0
      %5309 = vmatprep.subr.mxu0 0.0
      %5310 = vmatpush1.msra.mxu0 0.0
      %5311 = vmatprep.subr.mxu0 0.0
      %5312 = vmatpush1.msra.mxu0 0.0
      %5313 = vmatprep.subr.mxu0 0.0
      %5314 = vmatpush1.msra.mxu0 0.0
      %5315 = vmatprep.subr.mxu0 0.0
      %5316 = vmatpush1.msra.mxu0 0.0
      %5317 = vmatprep.subr.mxu0 0.0
      %5318 = vmatpush1.msra.mxu0 0.0
      %5319 = vmatprep.subr.mxu0 0.0
      %5320 = vmatpush1.msra.mxu0 0.0
      %5321 = vmatprep.subr.mxu0 0.0
      %5322 = vmatpush1.msra.mxu0 0.0
      %5323 = vmatprep.subr.mxu0 0.0
      %5324 = vmatpush1.msra.mxu0 0.0
      %5325 = vmatprep.subr.mxu0 0.0
      %5326 = vmatpush1.msra.mxu0 0.0
      %5327 = vmatprep.subr.mxu0 0.0
      %5328 = vmatpush1.msra.mxu0 0.0
      %5329 = vmatprep.subr.mxu0 0.0
      %5330 = vmatpush1.msra.mxu0 0.0
      %5331 = vmatprep.subr.mxu0 0.0
      %5332 = vmatpush1.msra.mxu0 0.0
      %5333 = vmatprep.subr.mxu0 0.0
      %5334 = vmatpush1.msra.mxu0 0.0
      %5335 = vmatprep.subr.mxu0 0.0
      %5336 = vmatpush1.msra.mxu0 0.0
      %5337 = vmatprep.subr.mxu0 0.0
      %5338 = vmatpush1.msra.mxu0 0.0
      %5339 = vmatprep.subr.mxu0 0.0
      %5340 = vmatpush1.msra.mxu0 0.0
      %5341 = vmatprep.subr.mxu0 0.0
      %5342 = vmatpush1.msra.mxu0 0.0
      %5343 = vmatprep.subr.mxu0 0.0
      %5344 = vmatpush1.msra.mxu0 0.0
      %5345 = vmatprep.subr.mxu0 0.0
      %5346 = vmatpush1.msra.mxu0 0.0
      %5347 = vmatprep.subr.mxu0 0.0
      %5348 = vmatpush1.msra.mxu0 0.0
      %5349 = vmatprep.subr.mxu0 0.0
      %5350 = vmatpush1.msra.mxu0 0.0
      %5351 = vmatprep.subr.mxu0 0.0
      %5352 = vmatpush1.msra.mxu0 0.0
      %5353 = vmatprep.subr.mxu0 0.0
      %5354 = vmatpush1.msra.mxu0 0.0
      %5355 = vmatprep.subr.mxu0 0.0
      %5356 = vmatpush1.msra.mxu0 0.0
      %5357 = vmatprep.subr.mxu0 0.0
      %5358 = vmatpush1.msra.mxu0 0.0
      %5359 = vmatprep.subr.mxu0 0.0
      %5360 = vmatpush1.msra.mxu0 0.0
      %5361 = vmatprep.subr.mxu0 0.0
      %5362 = vmatpush1.msra.mxu0 0.0
      %5363 = vmatprep.subr.mxu0 0.0
      %5364 = vmatpush1.msra.mxu0 0.0
      %5365 = vmatprep.subr.mxu0 0.0
      %5366 = vmatpush1.msra.mxu0 0.0
      %5367 = vmatprep.mubr.f32.mxu0 0.0
      %v5368 = vand.u32 %v5048, 4294901760
      %v5369 = vsub.f32 %v5048, %v5368
      %v5370 = vand.u32 %v5369, 4294901760
      %5371 = vmatmul.mubr.f32.gmra.mrb[0].mxu0 %v5370
      %v5372 = vpop.f32.mrb[0].mxu0
      %v5373 = vadd.f32 %v5292, %v5372
      %v5374 = vpop.f32.mrb[0].mxu0
      %5375 = vmatprep.mubr.f32.mxu0 0.0
      %v5376 = vand.u32 %v5051, 4294901760
      %v5377 = vsub.f32 %v5051, %v5376
      %v5378 = vand.u32 %v5377, 4294901760
      %5379 = vmatmul.mubr.f32.gmra.mrb[0].mxu0 %v5378
      %v5380 = vpop.f32.mrb[0].mxu0
      %v5381 = vadd.f32 %v5299, %v5380
      %v5382 = vpop.f32.mrb[0].mxu0
      %5383 = vdwg.mxu0
      %5384 = vmatprep.subr.mxu0 0.0
      %v5385 = vand.u32 %v5042, 4294901760
      %v5386 = vsub.f32 %v5042, %v5385
      %v5387 = vand.u32 %v5386, 4294901760
      %5388 = vmatpush1.msra.mxu0 %v5387
      %5389 = vmatprep.subr.mxu0 0.0
      %5390 = vmatpush1.msra.mxu0 0.0
      %5391 = vmatprep.subr.mxu0 0.0
      %5392 = vmatpush1.msra.mxu0 0.0
      %5393 = vmatprep.subr.mxu0 0.0
      %5394 = vmatpush1.msra.mxu0 0.0
      %5395 = vmatprep.subr.mxu0 0.0
      %5396 = vmatpush1.msra.mxu0 0.0
      %5397 = vmatprep.subr.mxu0 0.0
      %5398 = vmatpush1.msra.mxu0 0.0
      %5399 = vmatprep.subr.mxu0 0.0
      %5400 = vmatpush1.msra.mxu0 0.0
      %5401 = vmatprep.subr.mxu0 0.0
      %5402 = vmatpush1.msra.mxu0 0.0
      %5403 = vmatprep.subr.mxu0 0.0
      %5404 = vmatpush1.msra.mxu0 0.0
      %5405 = vmatprep.subr.mxu0 0.0
      %5406 = vmatpush1.msra.mxu0 0.0
      %5407 = vmatprep.subr.mxu0 0.0
      %5408 = vmatpush1.msra.mxu0 0.0
      %5409 = vmatprep.subr.mxu0 0.0
      %5410 = vmatpush1.msra.mxu0 0.0
      %5411 = vmatprep.subr.mxu0 0.0
      %5412 = vmatpush1.msra.mxu0 0.0
      %5413 = vmatprep.subr.mxu0 0.0
      %5414 = vmatpush1.msra.mxu0 0.0
      %5415 = vmatprep.subr.mxu0 0.0
      %5416 = vmatpush1.msra.mxu0 0.0
      %5417 = vmatprep.subr.mxu0 0.0
      %5418 = vmatpush1.msra.mxu0 0.0
      %5419 = vmatprep.subr.mxu0 0.0
      %5420 = vmatpush1.msra.mxu0 0.0
      %5421 = vmatprep.subr.mxu0 0.0
      %5422 = vmatpush1.msra.mxu0 0.0
      %5423 = vmatprep.subr.mxu0 0.0
      %5424 = vmatpush1.msra.mxu0 0.0
      %5425 = vmatprep.subr.mxu0 0.0
      %5426 = vmatpush1.msra.mxu0 0.0
      %5427 = vmatprep.subr.mxu0 0.0
      %5428 = vmatpush1.msra.mxu0 0.0
      %5429 = vmatprep.subr.mxu0 0.0
      %5430 = vmatpush1.msra.mxu0 0.0
      %5431 = vmatprep.subr.mxu0 0.0
      %5432 = vmatpush1.msra.mxu0 0.0
      %5433 = vmatprep.subr.mxu0 0.0
      %5434 = vmatpush1.msra.mxu0 0.0
      %5435 = vmatprep.subr.mxu0 0.0
      %5436 = vmatpush1.msra.mxu0 0.0
      %5437 = vmatprep.subr.mxu0 0.0
      %5438 = vmatpush1.msra.mxu0 0.0
      %5439 = vmatprep.subr.mxu0 0.0
      %5440 = vmatpush1.msra.mxu0 0.0
      %5441 = vmatprep.subr.mxu0 0.0
      %5442 = vmatpush1.msra.mxu0 0.0
      %5443 = vmatprep.subr.mxu0 0.0
      %5444 = vmatpush1.msra.mxu0 0.0
      %5445 = vmatprep.subr.mxu0 0.0
      %5446 = vmatpush1.msra.mxu0 0.0
      %5447 = vmatprep.subr.mxu0 0.0
      %5448 = vmatpush1.msra.mxu0 0.0
      %5449 = vmatprep.subr.mxu0 0.0
      %5450 = vmatpush1.msra.mxu0 0.0
      %5451 = vmatprep.mubr.f32.mxu0 0.0
      %v5452 = vand.u32 %v5048, 4294901760
      %5453 = vmatmul.mubr.f32.gmra.mrb[0].mxu0 %v5452
      %v5454 = vpop.f32.mrb[0].mxu0
      %v5455 = vadd.f32 %v5373, %v5454
      %v5456 = vpop.f32.mrb[0].mxu0
      %5457 = vmatprep.mubr.f32.mxu0 0.0
      %v5458 = vand.u32 %v5051, 4294901760
      %5459 = vmatmul.mubr.f32.gmra.mrb[0].mxu0 %v5458
      %v5460 = vpop.f32.mrb[0].mxu0
      %v5461 = vadd.f32 %v5381, %v5460
      %v5462 = vpop.f32.mrb[0].mxu0
      %5463 = vdwg.mxu0
      %5464 = vmatprep.subr.mxu0 0.0
      %v5465 = vand.u32 %v5042, 4294901760
      %5466 = vmatpush1.msra.mxu0 %v5465
      %5467 = vmatprep.subr.mxu0 0.0
      %5468 = vmatpush1.msra.mxu0 0.0
      %5469 = vmatprep.subr.mxu0 0.0
      %5470 = vmatpush1.msra.mxu0 0.0
      %5471 = vmatprep.subr.mxu0 0.0
      %5472 = vmatpush1.msra.mxu0 0.0
      %5473 = vmatprep.subr.mxu0 0.0
      %5474 = vmatpush1.msra.mxu0 0.0
      %5475 = vmatprep.subr.mxu0 0.0
      %5476 = vmatpush1.msra.mxu0 0.0
      %5477 = vmatprep.subr.mxu0 0.0
      %5478 = vmatpush1.msra.mxu0 0.0
      %5479 = vmatprep.subr.mxu0 0.0
      %5480 = vmatpush1.msra.mxu0 0.0
      %5481 = vmatprep.subr.mxu0 0.0
      %5482 = vmatpush1.msra.mxu0 0.0
      %5483 = vmatprep.subr.mxu0 0.0
      %5484 = vmatpush1.msra.mxu0 0.0
      %5485 = vmatprep.subr.mxu0 0.0
      %5486 = vmatpush1.msra.mxu0 0.0
      %5487 = vmatprep.subr.mxu0 0.0
      %5488 = vmatpush1.msra.mxu0 0.0
      %5489 = vmatprep.subr.mxu0 0.0
      %5490 = vmatpush1.msra.mxu0 0.0
      %5491 = vmatprep.subr.mxu0 0.0
      %5492 = vmatpush1.msra.mxu0 0.0
      %5493 = vmatprep.subr.mxu0 0.0
      %5494 = vmatpush1.msra.mxu0 0.0
      %5495 = vmatprep.subr.mxu0 0.0
      %5496 = vmatpush1.msra.mxu0 0.0
      %5497 = vmatprep.subr.mxu0 0.0
      %5498 = vmatpush1.msra.mxu0 0.0
      %5499 = vmatprep.subr.mxu0 0.0
      %5500 = vmatpush1.msra.mxu0 0.0
      %5501 = vmatprep.subr.mxu0 0.0
      %5502 = vmatpush1.msra.mxu0 0.0
      %5503 = vmatprep.subr.mxu0 0.0
      %5504 = vmatpush1.msra.mxu0 0.0
      %5505 = vmatprep.subr.mxu0 0.0
      %5506 = vmatpush1.msra.mxu0 0.0
      %5507 = vmatprep.subr.mxu0 0.0
      %5508 = vmatpush1.msra.mxu0 0.0
      %5509 = vmatprep.subr.mxu0 0.0
      %5510 = vmatpush1.msra.mxu0 0.0
      %5511 = vmatprep.subr.mxu0 0.0
      %5512 = vmatpush1.msra.mxu0 0.0
      %5513 = vmatprep.subr.mxu0 0.0
      %5514 = vmatpush1.msra.mxu0 0.0
      %5515 = vmatprep.subr.mxu0 0.0
      %5516 = vmatpush1.msra.mxu0 0.0
      %5517 = vmatprep.subr.mxu0 0.0
      %5518 = vmatpush1.msra.mxu0 0.0
      %5519 = vmatprep.subr.mxu0 0.0
      %5520 = vmatpush1.msra.mxu0 0.0
      %5521 = vmatprep.subr.mxu0 0.0
      %5522 = vmatpush1.msra.mxu0 0.0
      %5523 = vmatprep.subr.mxu0 0.0
      %5524 = vmatpush1.msra.mxu0 0.0
      %5525 = vmatprep.subr.mxu0 0.0
      %5526 = vmatpush1.msra.mxu0 0.0
      %5527 = vmatprep.subr.mxu0 0.0
      %5528 = vmatpush1.msra.mxu0 0.0
      %5529 = vmatprep.mubr.f32.mxu0 0.0
      %v5530 = vand.u32 %v5048, 4294901760
      %5531 = vmatmul.mubr.f32.gmra.mrb[0].mxu0 %v5530
      %v5532 = vpop.f32.mrb[0].mxu0
      %v5533 = vadd.f32 %v5455, %v5532
      %v5534 = vpop.f32.mrb[0].mxu0
      %5535 = vmatprep.mubr.f32.mxu0 0.0
      %v5536 = vand.u32 %v5051, 4294901760
      %5537 = vmatmul.mubr.f32.gmra.mrb[0].mxu0 %v5536
      %v5538 = vpop.f32.mrb[0].mxu0
      %v5539 = vadd.f32 %v5461, %v5538
      %v5540 = vpop.f32.mrb[0].mxu0
      %5541 = vdwg.mxu0
      %v5542 = vld [vmem:[%s9] sm:$0xff]
      %v5543 = vld [vmem:[%s9 + $0x8] sm:$0xff]
      %5545 = vset.pattern.permute.xlu0 0
      %5546 = vperm.xlu0 %5545, %v5542
      %v5547 = vpop.permute.xlu0 %5546
      %5550 = vset.pattern.permute.xlu0 0
      %5551 = vperm.xlu0 %5550, %v5543
      %v5552 = vpop.permute.xlu0 %5551
      %v5555 = vsel %vm1205, %v5533, 0
      %v5558 = vsel %vm1205, %v5539, 0
      %vm5560 = vcmask 1043456
      %v5562 = vsel %vm5560, %v3652, 0
      %v5565 = vsel %vm5560, %v3654, 0
      %v5567 = vand.u32 %v5565, 4294901760
      %5568 = vmatprep.subr.mxu0 %v5567
      %v5569 = vand.u32 %v5562, 4294901760
      %5570 = vmatpush1.msra.mxu0 %v5569
      %5571 = vmatprep.subr.mxu0 0.0
      %5572 = vmatpush1.msra.mxu0 0.0
      %5573 = vmatprep.subr.mxu0 0.0
      %5574 = vmatpush1.msra.mxu0 0.0
      %5575 = vmatprep.subr.mxu0 0.0
      %5576 = vmatpush1.msra.mxu0 0.0
      %5577 = vmatprep.subr.mxu0 0.0
      %5578 = vmatpush1.msra.mxu0 0.0
      %5579 = vmatprep.subr.mxu0 0.0
      %5580 = vmatpush1.msra.mxu0 0.0
      %5581 = vmatprep.subr.mxu0 0.0
      %5582 = vmatpush1.msra.mxu0 0.0
      %5583 = vmatprep.subr.mxu0 0.0
      %5584 = vmatpush1.msra.mxu0 0.0
      %5585 = vmatprep.subr.mxu0 0.0
      %5586 = vmatpush1.msra.mxu0 0.0
      %5587 = vmatprep.subr.mxu0 0.0
      %5588 = vmatpush1.msra.mxu0 0.0
      %5589 = vmatprep.subr.mxu0 0.0
      %5590 = vmatpush1.msra.mxu0 0.0
      %5591 = vmatprep.subr.mxu0 0.0
      %5592 = vmatpush1.msra.mxu0 0.0
      %5593 = vmatprep.subr.mxu0 0.0
      %5594 = vmatpush1.msra.mxu0 0.0
      %5595 = vmatprep.subr.mxu0 0.0
      %5596 = vmatpush1.msra.mxu0 0.0
      %5597 = vmatprep.subr.mxu0 0.0
      %5598 = vmatpush1.msra.mxu0 0.0
      %5599 = vmatprep.subr.mxu0 0.0
      %5600 = vmatpush1.msra.mxu0 0.0
      %5601 = vmatprep.subr.mxu0 0.0
      %5602 = vmatpush1.msra.mxu0 0.0
      %5603 = vmatprep.subr.mxu0 0.0
      %5604 = vmatpush1.msra.mxu0 0.0
      %5605 = vmatprep.subr.mxu0 0.0
      %5606 = vmatpush1.msra.mxu0 0.0
      %5607 = vmatprep.subr.mxu0 0.0
      %5608 = vmatpush1.msra.mxu0 0.0
      %5609 = vmatprep.subr.mxu0 0.0
      %5610 = vmatpush1.msra.mxu0 0.0
      %5611 = vmatprep.subr.mxu0 0.0
      %5612 = vmatpush1.msra.mxu0 0.0
      %5613 = vmatprep.subr.mxu0 0.0
      %5614 = vmatpush1.msra.mxu0 0.0
      %5615 = vmatprep.subr.mxu0 0.0
      %5616 = vmatpush1.msra.mxu0 0.0
      %5617 = vmatprep.subr.mxu0 0.0
      %5618 = vmatpush1.msra.mxu0 0.0
      %5619 = vmatprep.subr.mxu0 0.0
      %5620 = vmatpush1.msra.mxu0 0.0
      %5621 = vmatprep.subr.mxu0 0.0
      %5622 = vmatpush1.msra.mxu0 0.0
      %5623 = vmatprep.subr.mxu0 0.0
      %5624 = vmatpush1.msra.mxu0 0.0
      %5625 = vmatprep.subr.mxu0 0.0
      %5626 = vmatpush1.msra.mxu0 0.0
      %5627 = vmatprep.subr.mxu0 0.0
      %5628 = vmatpush1.msra.mxu0 0.0
      %5629 = vmatprep.subr.mxu0 0.0
      %5630 = vmatpush1.msra.mxu0 0.0
      %5631 = vmatprep.subr.mxu0 0.0
      %5632 = vmatpush1.msra.mxu0 0.0
      %5633 = vmatprep.mubr.f32.mxu0 0.0
      %v5634 = vand.u32 %v5555, 4294901760
      %v5635 = vsub.f32 %v5555, %v5634
      %v5636 = vand.u32 %v5635, 4294901760
      %v5637 = vsub.f32 %v5635, %v5636
      %v5638 = vand.u32 %v5637, 4294901760
      %5639 = vmatmul.mubr.f32.gmra.mrb[0].mxu0 %v5638
      %v5640 = vpop.f32.mrb[0].mxu0
      %v5641 = vadd.f32 %v5547, %v5640
      %v5642 = vpop.f32.mrb[0].mxu0
      %v5643 = vadd.f32 %v5547, %v5642
      %5644 = vmatprep.mubr.f32.mxu0 0.0
      %v5645 = vand.u32 %v5558, 4294901760
      %v5646 = vsub.f32 %v5558, %v5645
      %v5647 = vand.u32 %v5646, 4294901760
      %v5648 = vsub.f32 %v5646, %v5647
      %v5649 = vand.u32 %v5648, 4294901760
      %5650 = vmatmul.mubr.f32.gmra.mrb[0].mxu0 %v5649
      %v5651 = vpop.f32.mrb[0].mxu0
      %v5652 = vadd.f32 %v5552, %v5651
      %v5653 = vpop.f32.mrb[0].mxu0
      %v5654 = vadd.f32 %v5552, %v5653
      %5655 = vdwg.mxu0
      %v5656 = vand.u32 %v5565, 4294901760
      %v5657 = vsub.f32 %v5565, %v5656
      %v5658 = vand.u32 %v5657, 4294901760
      %v5659 = vsub.f32 %v5657, %v5658
      %v5660 = vand.u32 %v5659, 4294901760
      %5661 = vmatprep.subr.mxu0 %v5660
      %v5662 = vand.u32 %v5562, 4294901760
      %v5663 = vsub.f32 %v5562, %v5662
      %v5664 = vand.u32 %v5663, 4294901760
      %v5665 = vsub.f32 %v5663, %v5664
      %v5666 = vand.u32 %v5665, 4294901760
      %5667 = vmatpush1.msra.mxu0 %v5666
      %5668 = vmatprep.subr.mxu0 0.0
      %5669 = vmatpush1.msra.mxu0 0.0
      %5670 = vmatprep.subr.mxu0 0.0
      %5671 = vmatpush1.msra.mxu0 0.0
      %5672 = vmatprep.subr.mxu0 0.0
      %5673 = vmatpush1.msra.mxu0 0.0
      %5674 = vmatprep.subr.mxu0 0.0
      %5675 = vmatpush1.msra.mxu0 0.0
      %5676 = vmatprep.subr.mxu0 0.0
      %5677 = vmatpush1.msra.mxu0 0.0
      %5678 = vmatprep.subr.mxu0 0.0
      %5679 = vmatpush1.msra.mxu0 0.0
      %5680 = vmatprep.subr.mxu0 0.0
      %5681 = vmatpush1.msra.mxu0 0.0
      %5682 = vmatprep.subr.mxu0 0.0
      %5683 = vmatpush1.msra.mxu0 0.0
      %5684 = vmatprep.subr.mxu0 0.0
      %5685 = vmatpush1.msra.mxu0 0.0
      %5686 = vmatprep.subr.mxu0 0.0
      %5687 = vmatpush1.msra.mxu0 0.0
      %5688 = vmatprep.subr.mxu0 0.0
      %5689 = vmatpush1.msra.mxu0 0.0
      %5690 = vmatprep.subr.mxu0 0.0
      %5691 = vmatpush1.msra.mxu0 0.0
      %5692 = vmatprep.subr.mxu0 0.0
      %5693 = vmatpush1.msra.mxu0 0.0
      %5694 = vmatprep.subr.mxu0 0.0
      %5695 = vmatpush1.msra.mxu0 0.0
      %5696 = vmatprep.subr.mxu0 0.0
      %5697 = vmatpush1.msra.mxu0 0.0
      %5698 = vmatprep.subr.mxu0 0.0
      %5699 = vmatpush1.msra.mxu0 0.0
      %5700 = vmatprep.subr.mxu0 0.0
      %5701 = vmatpush1.msra.mxu0 0.0
      %5702 = vmatprep.subr.mxu0 0.0
      %5703 = vmatpush1.msra.mxu0 0.0
      %5704 = vmatprep.subr.mxu0 0.0
      %5705 = vmatpush1.msra.mxu0 0.0
      %5706 = vmatprep.subr.mxu0 0.0
      %5707 = vmatpush1.msra.mxu0 0.0
      %5708 = vmatprep.subr.mxu0 0.0
      %5709 = vmatpush1.msra.mxu0 0.0
      %5710 = vmatprep.subr.mxu0 0.0
      %5711 = vmatpush1.msra.mxu0 0.0
      %5712 = vmatprep.subr.mxu0 0.0
      %5713 = vmatpush1.msra.mxu0 0.0
      %5714 = vmatprep.subr.mxu0 0.0
      %5715 = vmatpush1.msra.mxu0 0.0
      %5716 = vmatprep.subr.mxu0 0.0
      %5717 = vmatpush1.msra.mxu0 0.0
      %5718 = vmatprep.subr.mxu0 0.0
      %5719 = vmatpush1.msra.mxu0 0.0
      %5720 = vmatprep.subr.mxu0 0.0
      %5721 = vmatpush1.msra.mxu0 0.0
      %5722 = vmatprep.subr.mxu0 0.0
      %5723 = vmatpush1.msra.mxu0 0.0
      %5724 = vmatprep.subr.mxu0 0.0
      %5725 = vmatpush1.msra.mxu0 0.0
      %5726 = vmatprep.subr.mxu0 0.0
      %5727 = vmatpush1.msra.mxu0 0.0
      %5728 = vmatprep.subr.mxu0 0.0
      %5729 = vmatpush1.msra.mxu0 0.0
      %5730 = vmatprep.mubr.f32.mxu0 0.0
      %v5731 = vand.u32 %v5555, 4294901760
      %5732 = vmatmul.mubr.f32.gmra.mrb[0].mxu0 %v5731
      %v5733 = vpop.f32.mrb[0].mxu0
      %v5734 = vadd.f32 %v5641, %v5733
      %v5735 = vpop.f32.mrb[0].mxu0
      %v5736 = vadd.f32 %v5643, %v5735
      %5737 = vmatprep.mubr.f32.mxu0 0.0
      %v5738 = vand.u32 %v5558, 4294901760
      %5739 = vmatmul.mubr.f32.gmra.mrb[0].mxu0 %v5738
      %v5740 = vpop.f32.mrb[0].mxu0
      %v5741 = vadd.f32 %v5652, %v5740
      %v5742 = vpop.f32.mrb[0].mxu0
      %v5743 = vadd.f32 %v5654, %v5742
      %5744 = vdwg.mxu0
      %v5745 = vand.u32 %v5565, 4294901760
      %v5746 = vsub.f32 %v5565, %v5745
      %5747 = vmatprep.subr.mxu0 %v5746
      %v5748 = vand.u32 %v5562, 4294901760
      %v5749 = vsub.f32 %v5562, %v5748
      %5750 = vmatpush1.msra.mxu0 %v5749
      %5751 = vmatprep.subr.mxu0 0.0
      %5752 = vmatpush1.msra.mxu0 0.0
      %5753 = vmatprep.subr.mxu0 0.0
      %5754 = vmatpush1.msra.mxu0 0.0
      %5755 = vmatprep.subr.mxu0 0.0
      %5756 = vmatpush1.msra.mxu0 0.0
      %5757 = vmatprep.subr.mxu0 0.0
      %5758 = vmatpush1.msra.mxu0 0.0
      %5759 = vmatprep.subr.mxu0 0.0
      %5760 = vmatpush1.msra.mxu0 0.0
      %5761 = vmatprep.subr.mxu0 0.0
      %5762 = vmatpush1.msra.mxu0 0.0
      %5763 = vmatprep.subr.mxu0 0.0
      %5764 = vmatpush1.msra.mxu0 0.0
      %5765 = vmatprep.subr.mxu0 0.0
      %5766 = vmatpush1.msra.mxu0 0.0
      %5767 = vmatprep.subr.mxu0 0.0
      %5768 = vmatpush1.msra.mxu0 0.0
      %5769 = vmatprep.subr.mxu0 0.0
      %5770 = vmatpush1.msra.mxu0 0.0
      %5771 = vmatprep.subr.mxu0 0.0
      %5772 = vmatpush1.msra.mxu0 0.0
      %5773 = vmatprep.subr.mxu0 0.0
      %5774 = vmatpush1.msra.mxu0 0.0
      %5775 = vmatprep.subr.mxu0 0.0
      %5776 = vmatpush1.msra.mxu0 0.0
      %5777 = vmatprep.subr.mxu0 0.0
      %5778 = vmatpush1.msra.mxu0 0.0
      %5779 = vmatprep.subr.mxu0 0.0
      %5780 = vmatpush1.msra.mxu0 0.0
      %5781 = vmatprep.subr.mxu0 0.0
      %5782 = vmatpush1.msra.mxu0 0.0
      %5783 = vmatprep.subr.mxu0 0.0
      %5784 = vmatpush1.msra.mxu0 0.0
      %5785 = vmatprep.subr.mxu0 0.0
      %5786 = vmatpush1.msra.mxu0 0.0
      %5787 = vmatprep.subr.mxu0 0.0
      %5788 = vmatpush1.msra.mxu0 0.0
      %5789 = vmatprep.subr.mxu0 0.0
      %5790 = vmatpush1.msra.mxu0 0.0
      %5791 = vmatprep.subr.mxu0 0.0
      %5792 = vmatpush1.msra.mxu0 0.0
      %5793 = vmatprep.subr.mxu0 0.0
      %5794 = vmatpush1.msra.mxu0 0.0
      %5795 = vmatprep.subr.mxu0 0.0
      %5796 = vmatpush1.msra.mxu0 0.0
      %5797 = vmatprep.subr.mxu0 0.0
      %5798 = vmatpush1.msra.mxu0 0.0
      %5799 = vmatprep.subr.mxu0 0.0
      %5800 = vmatpush1.msra.mxu0 0.0
      %5801 = vmatprep.subr.mxu0 0.0
      %5802 = vmatpush1.msra.mxu0 0.0
      %5803 = vmatprep.subr.mxu0 0.0
      %5804 = vmatpush1.msra.mxu0 0.0
      %5805 = vmatprep.subr.mxu0 0.0
      %5806 = vmatpush1.msra.mxu0 0.0
      %5807 = vmatprep.subr.mxu0 0.0
      %5808 = vmatpush1.msra.mxu0 0.0
      %5809 = vmatprep.subr.mxu0 0.0
      %5810 = vmatpush1.msra.mxu0 0.0
      %5811 = vmatprep.subr.mxu0 0.0
      %5812 = vmatpush1.msra.mxu0 0.0
      %5813 = vmatprep.mubr.f32.mxu0 0.0
      %v5814 = vand.u32 %v5555, 4294901760
      %v5815 = vsub.f32 %v5555, %v5814
      %5816 = vmatmul.mubr.f32.gmra.mrb[0].mxu0 %v5815
      %v5817 = vpop.f32.mrb[0].mxu0
      %v5818 = vadd.f32 %v5734, %v5817
      %v5819 = vpop.f32.mrb[0].mxu0
      %v5820 = vadd.f32 %v5736, %v5819
      %5821 = vmatprep.mubr.f32.mxu0 0.0
      %v5822 = vand.u32 %v5558, 4294901760
      %v5823 = vsub.f32 %v5558, %v5822
      %5824 = vmatmul.mubr.f32.gmra.mrb[0].mxu0 %v5823
      %v5825 = vpop.f32.mrb[0].mxu0
      %v5826 = vadd.f32 %v5741, %v5825
      %v5827 = vpop.f32.mrb[0].mxu0
      %v5828 = vadd.f32 %v5743, %v5827
      %5829 = vdwg.mxu0
      %v5830 = vand.u32 %v5565, 4294901760
      %5831 = vmatprep.subr.mxu0 %v5830
      %v5832 = vand.u32 %v5562, 4294901760
      %5833 = vmatpush1.msra.mxu0 %v5832
      %5834 = vmatprep.subr.mxu0 0.0
      %5835 = vmatpush1.msra.mxu0 0.0
      %5836 = vmatprep.subr.mxu0 0.0
      %5837 = vmatpush1.msra.mxu0 0.0
      %5838 = vmatprep.subr.mxu0 0.0
      %5839 = vmatpush1.msra.mxu0 0.0
      %5840 = vmatprep.subr.mxu0 0.0
      %5841 = vmatpush1.msra.mxu0 0.0
      %5842 = vmatprep.subr.mxu0 0.0
      %5843 = vmatpush1.msra.mxu0 0.0
      %5844 = vmatprep.subr.mxu0 0.0
      %5845 = vmatpush1.msra.mxu0 0.0
      %5846 = vmatprep.subr.mxu0 0.0
      %5847 = vmatpush1.msra.mxu0 0.0
      %5848 = vmatprep.subr.mxu0 0.0
      %5849 = vmatpush1.msra.mxu0 0.0
      %5850 = vmatprep.subr.mxu0 0.0
      %5851 = vmatpush1.msra.mxu0 0.0
      %5852 = vmatprep.subr.mxu0 0.0
      %5853 = vmatpush1.msra.mxu0 0.0
      %5854 = vmatprep.subr.mxu0 0.0
      %5855 = vmatpush1.msra.mxu0 0.0
      %5856 = vmatprep.subr.mxu0 0.0
      %5857 = vmatpush1.msra.mxu0 0.0
      %5858 = vmatprep.subr.mxu0 0.0
      %5859 = vmatpush1.msra.mxu0 0.0
      %5860 = vmatprep.subr.mxu0 0.0
      %5861 = vmatpush1.msra.mxu0 0.0
      %5862 = vmatprep.subr.mxu0 0.0
      %5863 = vmatpush1.msra.mxu0 0.0
      %5864 = vmatprep.subr.mxu0 0.0
      %5865 = vmatpush1.msra.mxu0 0.0
      %5866 = vmatprep.subr.mxu0 0.0
      %5867 = vmatpush1.msra.mxu0 0.0
      %5868 = vmatprep.subr.mxu0 0.0
      %5869 = vmatpush1.msra.mxu0 0.0
      %5870 = vmatprep.subr.mxu0 0.0
      %5871 = vmatpush1.msra.mxu0 0.0
      %5872 = vmatprep.subr.mxu0 0.0
      %5873 = vmatpush1.msra.mxu0 0.0
      %5874 = vmatprep.subr.mxu0 0.0
      %5875 = vmatpush1.msra.mxu0 0.0
      %5876 = vmatprep.subr.mxu0 0.0
      %5877 = vmatpush1.msra.mxu0 0.0
      %5878 = vmatprep.subr.mxu0 0.0
      %5879 = vmatpush1.msra.mxu0 0.0
      %5880 = vmatprep.subr.mxu0 0.0
      %5881 = vmatpush1.msra.mxu0 0.0
      %5882 = vmatprep.subr.mxu0 0.0
      %5883 = vmatpush1.msra.mxu0 0.0
      %5884 = vmatprep.subr.mxu0 0.0
      %5885 = vmatpush1.msra.mxu0 0.0
      %5886 = vmatprep.subr.mxu0 0.0
      %5887 = vmatpush1.msra.mxu0 0.0
      %5888 = vmatprep.subr.mxu0 0.0
      %5889 = vmatpush1.msra.mxu0 0.0
      %5890 = vmatprep.subr.mxu0 0.0
      %5891 = vmatpush1.msra.mxu0 0.0
      %5892 = vmatprep.subr.mxu0 0.0
      %5893 = vmatpush1.msra.mxu0 0.0
      %5894 = vmatprep.subr.mxu0 0.0
      %5895 = vmatpush1.msra.mxu0 0.0
      %5896 = vmatprep.mubr.f32.mxu0 0.0
      %v5897 = vand.u32 %v5555, 4294901760
      %v5898 = vsub.f32 %v5555, %v5897
      %v5899 = vand.u32 %v5898, 4294901760
      %5900 = vmatmul.mubr.f32.gmra.mrb[0].mxu0 %v5899
      %v5901 = vpop.f32.mrb[0].mxu0
      %v5902 = vadd.f32 %v5818, %v5901
      %v5903 = vpop.f32.mrb[0].mxu0
      %v5904 = vadd.f32 %v5820, %v5903
      %5905 = vmatprep.mubr.f32.mxu0 0.0
      %v5906 = vand.u32 %v5558, 4294901760
      %v5907 = vsub.f32 %v5558, %v5906
      %v5908 = vand.u32 %v5907, 4294901760
      %5909 = vmatmul.mubr.f32.gmra.mrb[0].mxu0 %v5908
      %v5910 = vpop.f32.mrb[0].mxu0
      %v5911 = vadd.f32 %v5826, %v5910
      %v5912 = vpop.f32.mrb[0].mxu0
      %v5913 = vadd.f32 %v5828, %v5912
      %5914 = vdwg.mxu0
      %v5915 = vand.u32 %v5565, 4294901760
      %v5916 = vsub.f32 %v5565, %v5915
      %v5917 = vand.u32 %v5916, 4294901760
      %5918 = vmatprep.subr.mxu0 %v5917
      %v5919 = vand.u32 %v5562, 4294901760
      %v5920 = vsub.f32 %v5562, %v5919
      %v5921 = vand.u32 %v5920, 4294901760
      %5922 = vmatpush1.msra.mxu0 %v5921
      %5923 = vmatprep.subr.mxu0 0.0
      %5924 = vmatpush1.msra.mxu0 0.0
      %5925 = vmatprep.subr.mxu0 0.0
      %5926 = vmatpush1.msra.mxu0 0.0
      %5927 = vmatprep.subr.mxu0 0.0
      %5928 = vmatpush1.msra.mxu0 0.0
      %5929 = vmatprep.subr.mxu0 0.0
      %5930 = vmatpush1.msra.mxu0 0.0
      %5931 = vmatprep.subr.mxu0 0.0
      %5932 = vmatpush1.msra.mxu0 0.0
      %5933 = vmatprep.subr.mxu0 0.0
      %5934 = vmatpush1.msra.mxu0 0.0
      %5935 = vmatprep.subr.mxu0 0.0
      %5936 = vmatpush1.msra.mxu0 0.0
      %5937 = vmatprep.subr.mxu0 0.0
      %5938 = vmatpush1.msra.mxu0 0.0
      %5939 = vmatprep.subr.mxu0 0.0
      %5940 = vmatpush1.msra.mxu0 0.0
      %5941 = vmatprep.subr.mxu0 0.0
      %5942 = vmatpush1.msra.mxu0 0.0
      %5943 = vmatprep.subr.mxu0 0.0
      %5944 = vmatpush1.msra.mxu0 0.0
      %5945 = vmatprep.subr.mxu0 0.0
      %5946 = vmatpush1.msra.mxu0 0.0
      %5947 = vmatprep.subr.mxu0 0.0
      %5948 = vmatpush1.msra.mxu0 0.0
      %5949 = vmatprep.subr.mxu0 0.0
      %5950 = vmatpush1.msra.mxu0 0.0
      %5951 = vmatprep.subr.mxu0 0.0
      %5952 = vmatpush1.msra.mxu0 0.0
      %5953 = vmatprep.subr.mxu0 0.0
      %5954 = vmatpush1.msra.mxu0 0.0
      %5955 = vmatprep.subr.mxu0 0.0
      %5956 = vmatpush1.msra.mxu0 0.0
      %5957 = vmatprep.subr.mxu0 0.0
      %5958 = vmatpush1.msra.mxu0 0.0
      %5959 = vmatprep.subr.mxu0 0.0
      %5960 = vmatpush1.msra.mxu0 0.0
      %5961 = vmatprep.subr.mxu0 0.0
      %5962 = vmatpush1.msra.mxu0 0.0
      %5963 = vmatprep.subr.mxu0 0.0
      %5964 = vmatpush1.msra.mxu0 0.0
      %5965 = vmatprep.subr.mxu0 0.0
      %5966 = vmatpush1.msra.mxu0 0.0
      %5967 = vmatprep.subr.mxu0 0.0
      %5968 = vmatpush1.msra.mxu0 0.0
      %5969 = vmatprep.subr.mxu0 0.0
      %5970 = vmatpush1.msra.mxu0 0.0
      %5971 = vmatprep.subr.mxu0 0.0
      %5972 = vmatpush1.msra.mxu0 0.0
      %5973 = vmatprep.subr.mxu0 0.0
      %5974 = vmatpush1.msra.mxu0 0.0
      %5975 = vmatprep.subr.mxu0 0.0
      %5976 = vmatpush1.msra.mxu0 0.0
      %5977 = vmatprep.subr.mxu0 0.0
      %5978 = vmatpush1.msra.mxu0 0.0
      %5979 = vmatprep.subr.mxu0 0.0
      %5980 = vmatpush1.msra.mxu0 0.0
      %5981 = vmatprep.subr.mxu0 0.0
      %5982 = vmatpush1.msra.mxu0 0.0
      %5983 = vmatprep.subr.mxu0 0.0
      %5984 = vmatpush1.msra.mxu0 0.0
      %5985 = vmatprep.mubr.f32.mxu0 0.0
      %v5986 = vand.u32 %v5555, 4294901760
      %5987 = vmatmul.mubr.f32.gmra.mrb[0].mxu0 %v5986
      %v5988 = vpop.f32.mrb[0].mxu0
      %v5989 = vadd.f32 %v5902, %v5988
      %v5990 = vpop.f32.mrb[0].mxu0
      %v5991 = vadd.f32 %v5904, %v5990
      %5992 = vmatprep.mubr.f32.mxu0 0.0
      %v5993 = vand.u32 %v5558, 4294901760
      %5994 = vmatmul.mubr.f32.gmra.mrb[0].mxu0 %v5993
      %v5995 = vpop.f32.mrb[0].mxu0
      %v5996 = vadd.f32 %v5911, %v5995
      %v5997 = vpop.f32.mrb[0].mxu0
      %v5998 = vadd.f32 %v5913, %v5997
      %5999 = vdwg.mxu0
      %v6000 = vand.u32 %v5565, 4294901760
      %6001 = vmatprep.subr.mxu0 %v6000
      %v6002 = vand.u32 %v5562, 4294901760
      %6003 = vmatpush1.msra.mxu0 %v6002
      %6004 = vmatprep.subr.mxu0 0.0
      %6005 = vmatpush1.msra.mxu0 0.0
      %6006 = vmatprep.subr.mxu0 0.0
      %6007 = vmatpush1.msra.mxu0 0.0
      %6008 = vmatprep.subr.mxu0 0.0
      %6009 = vmatpush1.msra.mxu0 0.0
      %6010 = vmatprep.subr.mxu0 0.0
      %6011 = vmatpush1.msra.mxu0 0.0
      %6012 = vmatprep.subr.mxu0 0.0
      %6013 = vmatpush1.msra.mxu0 0.0
      %6014 = vmatprep.subr.mxu0 0.0
      %6015 = vmatpush1.msra.mxu0 0.0
      %6016 = vmatprep.subr.mxu0 0.0
      %6017 = vmatpush1.msra.mxu0 0.0
      %6018 = vmatprep.subr.mxu0 0.0
      %6019 = vmatpush1.msra.mxu0 0.0
      %6020 = vmatprep.subr.mxu0 0.0
      %6021 = vmatpush1.msra.mxu0 0.0
      %6022 = vmatprep.subr.mxu0 0.0
      %6023 = vmatpush1.msra.mxu0 0.0
      %6024 = vmatprep.subr.mxu0 0.0
      %6025 = vmatpush1.msra.mxu0 0.0
      %6026 = vmatprep.subr.mxu0 0.0
      %6027 = vmatpush1.msra.mxu0 0.0
      %6028 = vmatprep.subr.mxu0 0.0
      %6029 = vmatpush1.msra.mxu0 0.0
      %6030 = vmatprep.subr.mxu0 0.0
      %6031 = vmatpush1.msra.mxu0 0.0
      %6032 = vmatprep.subr.mxu0 0.0
      %6033 = vmatpush1.msra.mxu0 0.0
      %6034 = vmatprep.subr.mxu0 0.0
      %6035 = vmatpush1.msra.mxu0 0.0
      %6036 = vmatprep.subr.mxu0 0.0
      %6037 = vmatpush1.msra.mxu0 0.0
      %6038 = vmatprep.subr.mxu0 0.0
      %6039 = vmatpush1.msra.mxu0 0.0
      %6040 = vmatprep.subr.mxu0 0.0
      %6041 = vmatpush1.msra.mxu0 0.0
      %6042 = vmatprep.subr.mxu0 0.0
      %6043 = vmatpush1.msra.mxu0 0.0
      %6044 = vmatprep.subr.mxu0 0.0
      %6045 = vmatpush1.msra.mxu0 0.0
      %6046 = vmatprep.subr.mxu0 0.0
      %6047 = vmatpush1.msra.mxu0 0.0
      %6048 = vmatprep.subr.mxu0 0.0
      %6049 = vmatpush1.msra.mxu0 0.0
      %6050 = vmatprep.subr.mxu0 0.0
      %6051 = vmatpush1.msra.mxu0 0.0
      %6052 = vmatprep.subr.mxu0 0.0
      %6053 = vmatpush1.msra.mxu0 0.0
      %6054 = vmatprep.subr.mxu0 0.0
      %6055 = vmatpush1.msra.mxu0 0.0
      %6056 = vmatprep.subr.mxu0 0.0
      %6057 = vmatpush1.msra.mxu0 0.0
      %6058 = vmatprep.subr.mxu0 0.0
      %6059 = vmatpush1.msra.mxu0 0.0
      %6060 = vmatprep.subr.mxu0 0.0
      %6061 = vmatpush1.msra.mxu0 0.0
      %6062 = vmatprep.subr.mxu0 0.0
      %6063 = vmatpush1.msra.mxu0 0.0
      %6064 = vmatprep.subr.mxu0 0.0
      %6065 = vmatpush1.msra.mxu0 0.0
      %6066 = vmatprep.mubr.f32.mxu0 0.0
      %v6067 = vand.u32 %v5555, 4294901760
      %6068 = vmatmul.mubr.f32.gmra.mrb[0].mxu0 %v6067
      %v6069 = vpop.f32.mrb[0].mxu0
      %v6070 = vadd.f32 %v5989, %v6069
      %v6071 = vpop.f32.mrb[0].mxu0
      %v6072 = vadd.f32 %v5991, %v6071
      %6073 = vmatprep.mubr.f32.mxu0 0.0
      %v6074 = vand.u32 %v5558, 4294901760
      %6075 = vmatmul.mubr.f32.gmra.mrb[0].mxu0 %v6074
      %v6076 = vpop.f32.mrb[0].mxu0
      %v6077 = vadd.f32 %v5996, %v6076
      %v6078 = vpop.f32.mrb[0].mxu0
      %v6079 = vadd.f32 %v5998, %v6078
      %6080 = vdwg.mxu0
      %v6081 = vadd.f32 %v623, %v6070
      %v6082 = vadd.f32 %v624, %v6072
      %v6083 = vadd.f32 %v625, %v6077
      %v6084 = vadd.f32 %v626, %v6079
      %v6085 = vmax.f32 %v6081, 0.0
      %v6086 = vmax.f32 %v6082, 0.0
      %v6087 = vmax.f32 %v6083, 0.0
      %v6088 = vmax.f32 %v6084, 0.0
      %v6089 = vld [vmem:[%s16] sm:$0xff]
      %v6091 = vcombine.high %v6089, %v6089
      %v6093 = vsel %vm1205, %v3094, 0
      %v6096 = vsel %vm1205, %v3095, 0
      %v6098 = vsel %vm5560, %v6089, 0
      %v6100 = vsel %vm5560, %v6091, 0
      %v6102 = vand.u32 %v6100, 4294901760
      %6103 = vmatprep.subr.mxu0 %v6102
      %v6104 = vand.u32 %v6098, 4294901760
      %6105 = vmatpush1.msra.mxu0 %v6104
      %6106 = vmatprep.subr.mxu0 0.0
      %6107 = vmatpush1.msra.mxu0 0.0
      %6108 = vmatprep.subr.mxu0 0.0
      %6109 = vmatpush1.msra.mxu0 0.0
      %6110 = vmatprep.subr.mxu0 0.0
      %6111 = vmatpush1.msra.mxu0 0.0
      %6112 = vmatprep.subr.mxu0 0.0
      %6113 = vmatpush1.msra.mxu0 0.0
      %6114 = vmatprep.subr.mxu0 0.0
      %6115 = vmatpush1.msra.mxu0 0.0
      %6116 = vmatprep.subr.mxu0 0.0
      %6117 = vmatpush1.msra.mxu0 0.0
      %6118 = vmatprep.subr.mxu0 0.0
      %6119 = vmatpush1.msra.mxu0 0.0
      %6120 = vmatprep.subr.mxu0 0.0
      %6121 = vmatpush1.msra.mxu0 0.0
      %6122 = vmatprep.subr.mxu0 0.0
      %6123 = vmatpush1.msra.mxu0 0.0
      %6124 = vmatprep.subr.mxu0 0.0
      %6125 = vmatpush1.msra.mxu0 0.0
      %6126 = vmatprep.subr.mxu0 0.0
      %6127 = vmatpush1.msra.mxu0 0.0
      %6128 = vmatprep.subr.mxu0 0.0
      %6129 = vmatpush1.msra.mxu0 0.0
      %6130 = vmatprep.subr.mxu0 0.0
      %6131 = vmatpush1.msra.mxu0 0.0
      %6132 = vmatprep.subr.mxu0 0.0
      %6133 = vmatpush1.msra.mxu0 0.0
      %6134 = vmatprep.subr.mxu0 0.0
      %6135 = vmatpush1.msra.mxu0 0.0
      %6136 = vmatprep.subr.mxu0 0.0
      %6137 = vmatpush1.msra.mxu0 0.0
      %6138 = vmatprep.subr.mxu0 0.0
      %6139 = vmatpush1.msra.mxu0 0.0
      %6140 = vmatprep.subr.mxu0 0.0
      %6141 = vmatpush1.msra.mxu0 0.0
      %6142 = vmatprep.subr.mxu0 0.0
      %6143 = vmatpush1.msra.mxu0 0.0
      %6144 = vmatprep.subr.mxu0 0.0
      %6145 = vmatpush1.msra.mxu0 0.0
      %6146 = vmatprep.subr.mxu0 0.0
      %6147 = vmatpush1.msra.mxu0 0.0
      %6148 = vmatprep.subr.mxu0 0.0
      %6149 = vmatpush1.msra.mxu0 0.0
      %6150 = vmatprep.subr.mxu0 0.0
      %6151 = vmatpush1.msra.mxu0 0.0
      %6152 = vmatprep.subr.mxu0 0.0
      %6153 = vmatpush1.msra.mxu0 0.0
      %6154 = vmatprep.subr.mxu0 0.0
      %6155 = vmatpush1.msra.mxu0 0.0
      %6156 = vmatprep.subr.mxu0 0.0
      %6157 = vmatpush1.msra.mxu0 0.0
      %6158 = vmatprep.subr.mxu0 0.0
      %6159 = vmatpush1.msra.mxu0 0.0
      %6160 = vmatprep.subr.mxu0 0.0
      %6161 = vmatpush1.msra.mxu0 0.0
      %6162 = vmatprep.subr.mxu0 0.0
      %6163 = vmatpush1.msra.mxu0 0.0
      %6164 = vmatprep.subr.mxu0 0.0
      %6165 = vmatpush1.msra.mxu0 0.0
      %6166 = vmatprep.subr.mxu0 0.0
      %6167 = vmatpush1.msra.mxu0 0.0
      %6168 = vmatprep.mubr.f32.mxu0 0.0
      %v6169 = vand.u32 %v6093, 4294901760
      %v6170 = vsub.f32 %v6093, %v6169
      %v6171 = vand.u32 %v6170, 4294901760
      %v6172 = vsub.f32 %v6170, %v6171
      %v6173 = vand.u32 %v6172, 4294901760
      %6174 = vmatmul.mubr.f32.gmra.mrb[0].mxu0 %v6173
      %v6175 = vpop.f32.mrb[0].mxu0
      %v6176 = vadd.f32 0.0, %v6175
      %v6177 = vpop.f32.mrb[0].mxu0
      %v6178 = vadd.f32 0.0, %v6177
      %6179 = vmatprep.mubr.f32.mxu0 0.0
      %v6180 = vand.u32 %v6096, 4294901760
      %v6181 = vsub.f32 %v6096, %v6180
      %v6182 = vand.u32 %v6181, 4294901760
      %v6183 = vsub.f32 %v6181, %v6182
      %v6184 = vand.u32 %v6183, 4294901760
      %6185 = vmatmul.mubr.f32.gmra.mrb[0].mxu0 %v6184
      %v6186 = vpop.f32.mrb[0].mxu0
      %v6187 = vadd.f32 0.0, %v6186
      %v6188 = vpop.f32.mrb[0].mxu0
      %v6189 = vadd.f32 0.0, %v6188
      %6190 = vdwg.mxu0
      %v6191 = vand.u32 %v6100, 4294901760
      %v6192 = vsub.f32 %v6100, %v6191
      %v6193 = vand.u32 %v6192, 4294901760
      %v6194 = vsub.f32 %v6192, %v6193
      %v6195 = vand.u32 %v6194, 4294901760
      %6196 = vmatprep.subr.mxu0 %v6195
      %v6197 = vand.u32 %v6098, 4294901760
      %v6198 = vsub.f32 %v6098, %v6197
      %v6199 = vand.u32 %v6198, 4294901760
      %v6200 = vsub.f32 %v6198, %v6199
      %v6201 = vand.u32 %v6200, 4294901760
      %6202 = vmatpush1.msra.mxu0 %v6201
      %6203 = vmatprep.subr.mxu0 0.0
      %6204 = vmatpush1.msra.mxu0 0.0
      %6205 = vmatprep.subr.mxu0 0.0
      %6206 = vmatpush1.msra.mxu0 0.0
      %6207 = vmatprep.subr.mxu0 0.0
      %6208 = vmatpush1.msra.mxu0 0.0
      %6209 = vmatprep.subr.mxu0 0.0
      %6210 = vmatpush1.msra.mxu0 0.0
      %6211 = vmatprep.subr.mxu0 0.0
      %6212 = vmatpush1.msra.mxu0 0.0
      %6213 = vmatprep.subr.mxu0 0.0
      %6214 = vmatpush1.msra.mxu0 0.0
      %6215 = vmatprep.subr.mxu0 0.0
      %6216 = vmatpush1.msra.mxu0 0.0
      %6217 = vmatprep.subr.mxu0 0.0
      %6218 = vmatpush1.msra.mxu0 0.0
      %6219 = vmatprep.subr.mxu0 0.0
      %6220 = vmatpush1.msra.mxu0 0.0
      %6221 = vmatprep.subr.mxu0 0.0
      %6222 = vmatpush1.msra.mxu0 0.0
      %6223 = vmatprep.subr.mxu0 0.0
      %6224 = vmatpush1.msra.mxu0 0.0
      %6225 = vmatprep.subr.mxu0 0.0
      %6226 = vmatpush1.msra.mxu0 0.0
      %6227 = vmatprep.subr.mxu0 0.0
      %6228 = vmatpush1.msra.mxu0 0.0
      %6229 = vmatprep.subr.mxu0 0.0
      %6230 = vmatpush1.msra.mxu0 0.0
      %6231 = vmatprep.subr.mxu0 0.0
      %6232 = vmatpush1.msra.mxu0 0.0
      %6233 = vmatprep.subr.mxu0 0.0
      %6234 = vmatpush1.msra.mxu0 0.0
      %6235 = vmatprep.subr.mxu0 0.0
      %6236 = vmatpush1.msra.mxu0 0.0
      %6237 = vmatprep.subr.mxu0 0.0
      %6238 = vmatpush1.msra.mxu0 0.0
      %6239 = vmatprep.subr.mxu0 0.0
      %6240 = vmatpush1.msra.mxu0 0.0
      %6241 = vmatprep.subr.mxu0 0.0
      %6242 = vmatpush1.msra.mxu0 0.0
      %6243 = vmatprep.subr.mxu0 0.0
      %6244 = vmatpush1.msra.mxu0 0.0
      %6245 = vmatprep.subr.mxu0 0.0
      %6246 = vmatpush1.msra.mxu0 0.0
      %6247 = vmatprep.subr.mxu0 0.0
      %6248 = vmatpush1.msra.mxu0 0.0
      %6249 = vmatprep.subr.mxu0 0.0
      %6250 = vmatpush1.msra.mxu0 0.0
      %6251 = vmatprep.subr.mxu0 0.0
      %6252 = vmatpush1.msra.mxu0 0.0
      %6253 = vmatprep.subr.mxu0 0.0
      %6254 = vmatpush1.msra.mxu0 0.0
      %6255 = vmatprep.subr.mxu0 0.0
      %6256 = vmatpush1.msra.mxu0 0.0
      %6257 = vmatprep.subr.mxu0 0.0
      %6258 = vmatpush1.msra.mxu0 0.0
      %6259 = vmatprep.subr.mxu0 0.0
      %6260 = vmatpush1.msra.mxu0 0.0
      %6261 = vmatprep.subr.mxu0 0.0
      %6262 = vmatpush1.msra.mxu0 0.0
      %6263 = vmatprep.subr.mxu0 0.0
      %6264 = vmatpush1.msra.mxu0 0.0
      %6265 = vmatprep.mubr.f32.mxu0 0.0
      %v6266 = vand.u32 %v6093, 4294901760
      %6267 = vmatmul.mubr.f32.gmra.mrb[0].mxu0 %v6266
      %v6268 = vpop.f32.mrb[0].mxu0
      %v6269 = vadd.f32 %v6176, %v6268
      %v6270 = vpop.f32.mrb[0].mxu0
      %v6271 = vadd.f32 %v6178, %v6270
      %6272 = vmatprep.mubr.f32.mxu0 0.0
      %v6273 = vand.u32 %v6096, 4294901760
      %6274 = vmatmul.mubr.f32.gmra.mrb[0].mxu0 %v6273
      %v6275 = vpop.f32.mrb[0].mxu0
      %v6276 = vadd.f32 %v6187, %v6275
      %v6277 = vpop.f32.mrb[0].mxu0
      %v6278 = vadd.f32 %v6189, %v6277
      %6279 = vdwg.mxu0
      %v6280 = vand.u32 %v6100, 4294901760
      %v6281 = vsub.f32 %v6100, %v6280
      %6282 = vmatprep.subr.mxu0 %v6281
      %v6283 = vand.u32 %v6098, 4294901760
      %v6284 = vsub.f32 %v6098, %v6283
      %6285 = vmatpush1.msra.mxu0 %v6284
      %6286 = vmatprep.subr.mxu0 0.0
      %6287 = vmatpush1.msra.mxu0 0.0
      %6288 = vmatprep.subr.mxu0 0.0
      %6289 = vmatpush1.msra.mxu0 0.0
      %6290 = vmatprep.subr.mxu0 0.0
      %6291 = vmatpush1.msra.mxu0 0.0
      %6292 = vmatprep.subr.mxu0 0.0
      %6293 = vmatpush1.msra.mxu0 0.0
      %6294 = vmatprep.subr.mxu0 0.0
      %6295 = vmatpush1.msra.mxu0 0.0
      %6296 = vmatprep.subr.mxu0 0.0
      %6297 = vmatpush1.msra.mxu0 0.0
      %6298 = vmatprep.subr.mxu0 0.0
      %6299 = vmatpush1.msra.mxu0 0.0
      %6300 = vmatprep.subr.mxu0 0.0
      %6301 = vmatpush1.msra.mxu0 0.0
      %6302 = vmatprep.subr.mxu0 0.0
      %6303 = vmatpush1.msra.mxu0 0.0
      %6304 = vmatprep.subr.mxu0 0.0
      %6305 = vmatpush1.msra.mxu0 0.0
      %6306 = vmatprep.subr.mxu0 0.0
      %6307 = vmatpush1.msra.mxu0 0.0
      %6308 = vmatprep.subr.mxu0 0.0
      %6309 = vmatpush1.msra.mxu0 0.0
      %6310 = vmatprep.subr.mxu0 0.0
      %6311 = vmatpush1.msra.mxu0 0.0
      %6312 = vmatprep.subr.mxu0 0.0
      %6313 = vmatpush1.msra.mxu0 0.0
      %6314 = vmatprep.subr.mxu0 0.0
      %6315 = vmatpush1.msra.mxu0 0.0
      %6316 = vmatprep.subr.mxu0 0.0
      %6317 = vmatpush1.msra.mxu0 0.0
      %6318 = vmatprep.subr.mxu0 0.0
      %6319 = vmatpush1.msra.mxu0 0.0
      %6320 = vmatprep.subr.mxu0 0.0
      %6321 = vmatpush1.msra.mxu0 0.0
      %6322 = vmatprep.subr.mxu0 0.0
      %6323 = vmatpush1.msra.mxu0 0.0
      %6324 = vmatprep.subr.mxu0 0.0
      %6325 = vmatpush1.msra.mxu0 0.0
      %6326 = vmatprep.subr.mxu0 0.0
      %6327 = vmatpush1.msra.mxu0 0.0
      %6328 = vmatprep.subr.mxu0 0.0
      %6329 = vmatpush1.msra.mxu0 0.0
      %6330 = vmatprep.subr.mxu0 0.0
      %6331 = vmatpush1.msra.mxu0 0.0
      %6332 = vmatprep.subr.mxu0 0.0
      %6333 = vmatpush1.msra.mxu0 0.0
      %6334 = vmatprep.subr.mxu0 0.0
      %6335 = vmatpush1.msra.mxu0 0.0
      %6336 = vmatprep.subr.mxu0 0.0
      %6337 = vmatpush1.msra.mxu0 0.0
      %6338 = vmatprep.subr.mxu0 0.0
      %6339 = vmatpush1.msra.mxu0 0.0
      %6340 = vmatprep.subr.mxu0 0.0
      %6341 = vmatpush1.msra.mxu0 0.0
      %6342 = vmatprep.subr.mxu0 0.0
      %6343 = vmatpush1.msra.mxu0 0.0
      %6344 = vmatprep.subr.mxu0 0.0
      %6345 = vmatpush1.msra.mxu0 0.0
      %6346 = vmatprep.subr.mxu0 0.0
      %6347 = vmatpush1.msra.mxu0 0.0
      %6348 = vmatprep.mubr.f32.mxu0 0.0
      %v6349 = vand.u32 %v6093, 4294901760
      %v6350 = vsub.f32 %v6093, %v6349
      %6351 = vmatmul.mubr.f32.gmra.mrb[0].mxu0 %v6350
      %v6352 = vpop.f32.mrb[0].mxu0
      %v6353 = vadd.f32 %v6269, %v6352
      %v6354 = vpop.f32.mrb[0].mxu0
      %v6355 = vadd.f32 %v6271, %v6354
      %6356 = vmatprep.mubr.f32.mxu0 0.0
      %v6357 = vand.u32 %v6096, 4294901760
      %v6358 = vsub.f32 %v6096, %v6357
      %6359 = vmatmul.mubr.f32.gmra.mrb[0].mxu0 %v6358
      %v6360 = vpop.f32.mrb[0].mxu0
      %v6361 = vadd.f32 %v6276, %v6360
      %v6362 = vpop.f32.mrb[0].mxu0
      %v6363 = vadd.f32 %v6278, %v6362
      %6364 = vdwg.mxu0
      %v6365 = vand.u32 %v6100, 4294901760
      %6366 = vmatprep.subr.mxu0 %v6365
      %v6367 = vand.u32 %v6098, 4294901760
      %6368 = vmatpush1.msra.mxu0 %v6367
      %6369 = vmatprep.subr.mxu0 0.0
      %6370 = vmatpush1.msra.mxu0 0.0
      %6371 = vmatprep.subr.mxu0 0.0
      %6372 = vmatpush1.msra.mxu0 0.0
      %6373 = vmatprep.subr.mxu0 0.0
      %6374 = vmatpush1.msra.mxu0 0.0
      %6375 = vmatprep.subr.mxu0 0.0
      %6376 = vmatpush1.msra.mxu0 0.0
      %6377 = vmatprep.subr.mxu0 0.0
      %6378 = vmatpush1.msra.mxu0 0.0
      %6379 = vmatprep.subr.mxu0 0.0
      %6380 = vmatpush1.msra.mxu0 0.0
      %6381 = vmatprep.subr.mxu0 0.0
      %6382 = vmatpush1.msra.mxu0 0.0
      %6383 = vmatprep.subr.mxu0 0.0
      %6384 = vmatpush1.msra.mxu0 0.0
      %6385 = vmatprep.subr.mxu0 0.0
      %6386 = vmatpush1.msra.mxu0 0.0
      %6387 = vmatprep.subr.mxu0 0.0
      %6388 = vmatpush1.msra.mxu0 0.0
      %6389 = vmatprep.subr.mxu0 0.0
      %6390 = vmatpush1.msra.mxu0 0.0
      %6391 = vmatprep.subr.mxu0 0.0
      %6392 = vmatpush1.msra.mxu0 0.0
      %6393 = vmatprep.subr.mxu0 0.0
      %6394 = vmatpush1.msra.mxu0 0.0
      %6395 = vmatprep.subr.mxu0 0.0
      %6396 = vmatpush1.msra.mxu0 0.0
      %6397 = vmatprep.subr.mxu0 0.0
      %6398 = vmatpush1.msra.mxu0 0.0
      %6399 = vmatprep.subr.mxu0 0.0
      %6400 = vmatpush1.msra.mxu0 0.0
      %6401 = vmatprep.subr.mxu0 0.0
      %6402 = vmatpush1.msra.mxu0 0.0
      %6403 = vmatprep.subr.mxu0 0.0
      %6404 = vmatpush1.msra.mxu0 0.0
      %6405 = vmatprep.subr.mxu0 0.0
      %6406 = vmatpush1.msra.mxu0 0.0
      %6407 = vmatprep.subr.mxu0 0.0
      %6408 = vmatpush1.msra.mxu0 0.0
      %6409 = vmatprep.subr.mxu0 0.0
      %6410 = vmatpush1.msra.mxu0 0.0
      %6411 = vmatprep.subr.mxu0 0.0
      %6412 = vmatpush1.msra.mxu0 0.0
      %6413 = vmatprep.subr.mxu0 0.0
      %6414 = vmatpush1.msra.mxu0 0.0
      %6415 = vmatprep.subr.mxu0 0.0
      %6416 = vmatpush1.msra.mxu0 0.0
      %6417 = vmatprep.subr.mxu0 0.0
      %6418 = vmatpush1.msra.mxu0 0.0
      %6419 = vmatprep.subr.mxu0 0.0
      %6420 = vmatpush1.msra.mxu0 0.0
      %6421 = vmatprep.subr.mxu0 0.0
      %6422 = vmatpush1.msra.mxu0 0.0
      %6423 = vmatprep.subr.mxu0 0.0
      %6424 = vmatpush1.msra.mxu0 0.0
      %6425 = vmatprep.subr.mxu0 0.0
      %6426 = vmatpush1.msra.mxu0 0.0
      %6427 = vmatprep.subr.mxu0 0.0
      %6428 = vmatpush1.msra.mxu0 0.0
      %6429 = vmatprep.subr.mxu0 0.0
      %6430 = vmatpush1.msra.mxu0 0.0
      %6431 = vmatprep.mubr.f32.mxu0 0.0
      %v6432 = vand.u32 %v6093, 4294901760
      %v6433 = vsub.f32 %v6093, %v6432
      %v6434 = vand.u32 %v6433, 4294901760
      %6435 = vmatmul.mubr.f32.gmra.mrb[0].mxu0 %v6434
      %v6436 = vpop.f32.mrb[0].mxu0
      %v6437 = vadd.f32 %v6353, %v6436
      %v6438 = vpop.f32.mrb[0].mxu0
      %v6439 = vadd.f32 %v6355, %v6438
      %6440 = vmatprep.mubr.f32.mxu0 0.0
      %v6441 = vand.u32 %v6096, 4294901760
      %v6442 = vsub.f32 %v6096, %v6441
      %v6443 = vand.u32 %v6442, 4294901760
      %6444 = vmatmul.mubr.f32.gmra.mrb[0].mxu0 %v6443
      %v6445 = vpop.f32.mrb[0].mxu0
      %v6446 = vadd.f32 %v6361, %v6445
      %v6447 = vpop.f32.mrb[0].mxu0
      %v6448 = vadd.f32 %v6363, %v6447
      %6449 = vdwg.mxu0
      %v6450 = vand.u32 %v6100, 4294901760
      %v6451 = vsub.f32 %v6100, %v6450
      %v6452 = vand.u32 %v6451, 4294901760
      %6453 = vmatprep.subr.mxu0 %v6452
      %v6454 = vand.u32 %v6098, 4294901760
      %v6455 = vsub.f32 %v6098, %v6454
      %v6456 = vand.u32 %v6455, 4294901760
      %6457 = vmatpush1.msra.mxu0 %v6456
      %6458 = vmatprep.subr.mxu0 0.0
      %6459 = vmatpush1.msra.mxu0 0.0
      %6460 = vmatprep.subr.mxu0 0.0
      %6461 = vmatpush1.msra.mxu0 0.0
      %6462 = vmatprep.subr.mxu0 0.0
      %6463 = vmatpush1.msra.mxu0 0.0
      %6464 = vmatprep.subr.mxu0 0.0
      %6465 = vmatpush1.msra.mxu0 0.0
      %6466 = vmatprep.subr.mxu0 0.0
      %6467 = vmatpush1.msra.mxu0 0.0
      %6468 = vmatprep.subr.mxu0 0.0
      %6469 = vmatpush1.msra.mxu0 0.0
      %6470 = vmatprep.subr.mxu0 0.0
      %6471 = vmatpush1.msra.mxu0 0.0
      %6472 = vmatprep.subr.mxu0 0.0
      %6473 = vmatpush1.msra.mxu0 0.0
      %6474 = vmatprep.subr.mxu0 0.0
      %6475 = vmatpush1.msra.mxu0 0.0
      %6476 = vmatprep.subr.mxu0 0.0
      %6477 = vmatpush1.msra.mxu0 0.0
      %6478 = vmatprep.subr.mxu0 0.0
      %6479 = vmatpush1.msra.mxu0 0.0
      %6480 = vmatprep.subr.mxu0 0.0
      %6481 = vmatpush1.msra.mxu0 0.0
      %6482 = vmatprep.subr.mxu0 0.0
      %6483 = vmatpush1.msra.mxu0 0.0
      %6484 = vmatprep.subr.mxu0 0.0
      %6485 = vmatpush1.msra.mxu0 0.0
      %6486 = vmatprep.subr.mxu0 0.0
      %6487 = vmatpush1.msra.mxu0 0.0
      %6488 = vmatprep.subr.mxu0 0.0
      %6489 = vmatpush1.msra.mxu0 0.0
      %6490 = vmatprep.subr.mxu0 0.0
      %6491 = vmatpush1.msra.mxu0 0.0
      %6492 = vmatprep.subr.mxu0 0.0
      %6493 = vmatpush1.msra.mxu0 0.0
      %6494 = vmatprep.subr.mxu0 0.0
      %6495 = vmatpush1.msra.mxu0 0.0
      %6496 = vmatprep.subr.mxu0 0.0
      %6497 = vmatpush1.msra.mxu0 0.0
      %6498 = vmatprep.subr.mxu0 0.0
      %6499 = vmatpush1.msra.mxu0 0.0
      %6500 = vmatprep.subr.mxu0 0.0
      %6501 = vmatpush1.msra.mxu0 0.0
      %6502 = vmatprep.subr.mxu0 0.0
      %6503 = vmatpush1.msra.mxu0 0.0
      %6504 = vmatprep.subr.mxu0 0.0
      %6505 = vmatpush1.msra.mxu0 0.0
      %6506 = vmatprep.subr.mxu0 0.0
      %6507 = vmatpush1.msra.mxu0 0.0
      %6508 = vmatprep.subr.mxu0 0.0
      %6509 = vmatpush1.msra.mxu0 0.0
      %6510 = vmatprep.subr.mxu0 0.0
      %6511 = vmatpush1.msra.mxu0 0.0
      %6512 = vmatprep.subr.mxu0 0.0
      %6513 = vmatpush1.msra.mxu0 0.0
      %6514 = vmatprep.subr.mxu0 0.0
      %6515 = vmatpush1.msra.mxu0 0.0
      %6516 = vmatprep.subr.mxu0 0.0
      %6517 = vmatpush1.msra.mxu0 0.0
      %6518 = vmatprep.subr.mxu0 0.0
      %6519 = vmatpush1.msra.mxu0 0.0
      %6520 = vmatprep.mubr.f32.mxu0 0.0
      %v6521 = vand.u32 %v6093, 4294901760
      %6522 = vmatmul.mubr.f32.gmra.mrb[0].mxu0 %v6521
      %v6523 = vpop.f32.mrb[0].mxu0
      %v6524 = vadd.f32 %v6437, %v6523
      %v6525 = vpop.f32.mrb[0].mxu0
      %v6526 = vadd.f32 %v6439, %v6525
      %6527 = vmatprep.mubr.f32.mxu0 0.0
      %v6528 = vand.u32 %v6096, 4294901760
      %6529 = vmatmul.mubr.f32.gmra.mrb[0].mxu0 %v6528
      %v6530 = vpop.f32.mrb[0].mxu0
      %v6531 = vadd.f32 %v6446, %v6530
      %v6532 = vpop.f32.mrb[0].mxu0
      %v6533 = vadd.f32 %v6448, %v6532
      %6534 = vdwg.mxu0
      %v6535 = vand.u32 %v6100, 4294901760
      %6536 = vmatprep.subr.mxu0 %v6535
      %v6537 = vand.u32 %v6098, 4294901760
      %6538 = vmatpush1.msra.mxu0 %v6537
      %6539 = vmatprep.subr.mxu0 0.0
      %6540 = vmatpush1.msra.mxu0 0.0
      %6541 = vmatprep.subr.mxu0 0.0
      %6542 = vmatpush1.msra.mxu0 0.0
      %6543 = vmatprep.subr.mxu0 0.0
      %6544 = vmatpush1.msra.mxu0 0.0
      %6545 = vmatprep.subr.mxu0 0.0
      %6546 = vmatpush1.msra.mxu0 0.0
      %6547 = vmatprep.subr.mxu0 0.0
      %6548 = vmatpush1.msra.mxu0 0.0
      %6549 = vmatprep.subr.mxu0 0.0
      %6550 = vmatpush1.msra.mxu0 0.0
      %6551 = vmatprep.subr.mxu0 0.0
      %6552 = vmatpush1.msra.mxu0 0.0
      %6553 = vmatprep.subr.mxu0 0.0
      %6554 = vmatpush1.msra.mxu0 0.0
      %6555 = vmatprep.subr.mxu0 0.0
      %6556 = vmatpush1.msra.mxu0 0.0
      %6557 = vmatprep.subr.mxu0 0.0
      %6558 = vmatpush1.msra.mxu0 0.0
      %6559 = vmatprep.subr.mxu0 0.0
      %6560 = vmatpush1.msra.mxu0 0.0
      %6561 = vmatprep.subr.mxu0 0.0
      %6562 = vmatpush1.msra.mxu0 0.0
      %6563 = vmatprep.subr.mxu0 0.0
      %6564 = vmatpush1.msra.mxu0 0.0
      %6565 = vmatprep.subr.mxu0 0.0
      %6566 = vmatpush1.msra.mxu0 0.0
      %6567 = vmatprep.subr.mxu0 0.0
      %6568 = vmatpush1.msra.mxu0 0.0
      %6569 = vmatprep.subr.mxu0 0.0
      %6570 = vmatpush1.msra.mxu0 0.0
      %6571 = vmatprep.subr.mxu0 0.0
      %6572 = vmatpush1.msra.mxu0 0.0
      %6573 = vmatprep.subr.mxu0 0.0
      %6574 = vmatpush1.msra.mxu0 0.0
      %6575 = vmatprep.subr.mxu0 0.0
      %6576 = vmatpush1.msra.mxu0 0.0
      %6577 = vmatprep.subr.mxu0 0.0
      %6578 = vmatpush1.msra.mxu0 0.0
      %6579 = vmatprep.subr.mxu0 0.0
      %6580 = vmatpush1.msra.mxu0 0.0
      %6581 = vmatprep.subr.mxu0 0.0
      %6582 = vmatpush1.msra.mxu0 0.0
      %6583 = vmatprep.subr.mxu0 0.0
      %6584 = vmatpush1.msra.mxu0 0.0
      %6585 = vmatprep.subr.mxu0 0.0
      %6586 = vmatpush1.msra.mxu0 0.0
      %6587 = vmatprep.subr.mxu0 0.0
      %6588 = vmatpush1.msra.mxu0 0.0
      %6589 = vmatprep.subr.mxu0 0.0
      %6590 = vmatpush1.msra.mxu0 0.0
      %6591 = vmatprep.subr.mxu0 0.0
      %6592 = vmatpush1.msra.mxu0 0.0
      %6593 = vmatprep.subr.mxu0 0.0
      %6594 = vmatpush1.msra.mxu0 0.0
      %6595 = vmatprep.subr.mxu0 0.0
      %6596 = vmatpush1.msra.mxu0 0.0
      %6597 = vmatprep.subr.mxu0 0.0
      %6598 = vmatpush1.msra.mxu0 0.0
      %6599 = vmatprep.subr.mxu0 0.0
      %6600 = vmatpush1.msra.mxu0 0.0
      %6601 = vmatprep.mubr.f32.mxu0 0.0
      %v6602 = vand.u32 %v6093, 4294901760
      %6603 = vmatmul.mubr.f32.gmra.mrb[0].mxu0 %v6602
      %v6604 = vpop.f32.mrb[0].mxu0
      %v6605 = vadd.f32 %v6524, %v6604
      %v6606 = vpop.f32.mrb[0].mxu0
      %v6607 = vadd.f32 %v6526, %v6606
      %6608 = vmatprep.mubr.f32.mxu0 0.0
      %v6609 = vand.u32 %v6096, 4294901760
      %6610 = vmatmul.mubr.f32.gmra.mrb[0].mxu0 %v6609
      %v6611 = vpop.f32.mrb[0].mxu0
      %v6612 = vadd.f32 %v6531, %v6611
      %v6613 = vpop.f32.mrb[0].mxu0
      %v6614 = vadd.f32 %v6533, %v6613
      %6615 = vdwg.mxu0
      %v6616 = vmul.f32 %v623, %v6605
      %v6617 = vmul.f32 %v624, %v6607
      %v6618 = vmul.f32 %v625, %v6612
      %v6619 = vmul.f32 %v626, %v6614
      %v6620 = vadd.f32 %v6616, %v623
      %v6621 = vadd.f32 %v6617, %v624
      %v6622 = vadd.f32 %v6618, %v625
      %v6623 = vadd.f32 %v6619, %v626
      %6624 = vst [vmem:[#allocation2] sm:$0xff] %v6620
      %6625 = vst [vmem:[#allocation2 + $0x8] sm:$0xff] %v6621
      %6626 = vst [vmem:[#allocation2 + $0x10] sm:$0xff] %v6622
      %6627 = vst [vmem:[#allocation2 + $0x18] sm:$0xff] %v6623
      %6628 = vst [vmem:[#allocation2 + $0x20] sm:$0xff] %v6085
      %6629 = vst [vmem:[#allocation2 + $0x28] sm:$0xff] %v6086
      %6630 = vst [vmem:[#allocation2 + $0x30] sm:$0xff] %v6087
      %6631 = vst [vmem:[#allocation2 + $0x38] sm:$0xff] %v6088
      %v6632 = vld [vmem:[%s17] sm:$0xff]
      %v6633 = vld [vmem:[%s17 + $0x8] sm:$0xff]
      %v6634 = vld [vmem:[#allocation2] sm:$0xff]
      %v6635 = vld [vmem:[#allocation2 + $0x8] sm:$0xff]
      %v6636 = vld [vmem:[#allocation2 + $0x10] sm:$0xff]
      %v6637 = vld [vmem:[#allocation2 + $0x18] sm:$0xff]
      %v6638 = vld [vmem:[#allocation2 + $0x20] sm:$0xff]
      %v6639 = vld [vmem:[#allocation2 + $0x28] sm:$0xff]
      %v6640 = vld [vmem:[#allocation2 + $0x30] sm:$0xff]
      %v6641 = vld [vmem:[#allocation2 + $0x38] sm:$0xff]
      %v6642 = vld [vmem:[%s18] sm:$0xff]
      %v6643 = vld [vmem:[%s18 + $0x8] sm:$0xff]
      %6645 = vset.pattern.permute.xlu0 0
      %6646 = vperm.xlu0 %6645, %v6642
      %v6647 = vpop.permute.xlu0 %6646
      %6650 = vset.pattern.permute.xlu0 0
      %6651 = vperm.xlu0 %6650, %v6643
      %v6652 = vpop.permute.xlu0 %6651
      %vm6654 = vcmask 261120
      %v6656 = vsel %vm6654, %v6632, 0
      %v6659 = vsel %vm6654, %v6633, 0
      %v6661 = vand.u32 %v6635, 4294901760
      %6662 = vmatprep.subr.mxu0 %v6661
      %v6663 = vand.u32 %v6634, 4294901760
      %6664 = vmatpush1.msra.mxu0 %v6663
      %v6665 = vand.u32 %v6637, 4294901760
      %6666 = vmatprep.subr.mxu0 %v6665
      %v6667 = vand.u32 %v6636, 4294901760
      %6668 = vmatpush1.msra.mxu0 %v6667
      %v6669 = vand.u32 %v6639, 4294901760
      %6670 = vmatprep.subr.mxu0 %v6669
      %v6671 = vand.u32 %v6638, 4294901760
      %6672 = vmatpush1.msra.mxu0 %v6671
      %v6673 = vand.u32 %v6641, 4294901760
      %6674 = vmatprep.subr.mxu0 %v6673
      %v6675 = vand.u32 %v6640, 4294901760
      %6676 = vmatpush1.msra.mxu0 %v6675
      %6677 = vmatprep.subr.mxu0 0.0
      %6678 = vmatpush1.msra.mxu0 0.0
      %6679 = vmatprep.subr.mxu0 0.0
      %6680 = vmatpush1.msra.mxu0 0.0
      %6681 = vmatprep.subr.mxu0 0.0
      %6682 = vmatpush1.msra.mxu0 0.0
      %6683 = vmatprep.subr.mxu0 0.0
      %6684 = vmatpush1.msra.mxu0 0.0
      %6685 = vmatprep.subr.mxu0 0.0
      %6686 = vmatpush1.msra.mxu0 0.0
      %6687 = vmatprep.subr.mxu0 0.0
      %6688 = vmatpush1.msra.mxu0 0.0
      %6689 = vmatprep.subr.mxu0 0.0
      %6690 = vmatpush1.msra.mxu0 0.0
      %6691 = vmatprep.subr.mxu0 0.0
      %6692 = vmatpush1.msra.mxu0 0.0
      %6693 = vmatprep.subr.mxu0 0.0
      %6694 = vmatpush1.msra.mxu0 0.0
      %6695 = vmatprep.subr.mxu0 0.0
      %6696 = vmatpush1.msra.mxu0 0.0
      %6697 = vmatprep.subr.mxu0 0.0
      %6698 = vmatpush1.msra.mxu0 0.0
      %6699 = vmatprep.subr.mxu0 0.0
      %6700 = vmatpush1.msra.mxu0 0.0
      %6701 = vmatprep.subr.mxu0 0.0
      %6702 = vmatpush1.msra.mxu0 0.0
      %6703 = vmatprep.subr.mxu0 0.0
      %6704 = vmatpush1.msra.mxu0 0.0
      %6705 = vmatprep.subr.mxu0 0.0
      %6706 = vmatpush1.msra.mxu0 0.0
      %6707 = vmatprep.subr.mxu0 0.0
      %6708 = vmatpush1.msra.mxu0 0.0
      %6709 = vmatprep.subr.mxu0 0.0
      %6710 = vmatpush1.msra.mxu0 0.0
      %6711 = vmatprep.subr.mxu0 0.0
      %6712 = vmatpush1.msra.mxu0 0.0
      %6713 = vmatprep.subr.mxu0 0.0
      %6714 = vmatpush1.msra.mxu0 0.0
      %6715 = vmatprep.subr.mxu0 0.0
      %6716 = vmatpush1.msra.mxu0 0.0
      %6717 = vmatprep.subr.mxu0 0.0
      %6718 = vmatpush1.msra.mxu0 0.0
      %6719 = vmatprep.subr.mxu0 0.0
      %6720 = vmatpush1.msra.mxu0 0.0
      %6721 = vmatprep.subr.mxu0 0.0
      %6722 = vmatpush1.msra.mxu0 0.0
      %6723 = vmatprep.subr.mxu0 0.0
      %6724 = vmatpush1.msra.mxu0 0.0
      %6725 = vmatprep.subr.mxu0 0.0
      %6726 = vmatpush1.msra.mxu0 0.0
      %6727 = vmatprep.subr.mxu0 0.0
      %6728 = vmatpush1.msra.mxu0 0.0
      %6729 = vmatprep.subr.mxu0 0.0
      %6730 = vmatpush1.msra.mxu0 0.0
      %6731 = vmatprep.subr.mxu0 0.0
      %6732 = vmatpush1.msra.mxu0 0.0
      %6733 = vmatprep.mubr.f32.mxu0 0.0
      %v6734 = vand.u32 %v6656, 4294901760
      %v6735 = vsub.f32 %v6656, %v6734
      %v6736 = vand.u32 %v6735, 4294901760
      %v6737 = vsub.f32 %v6735, %v6736
      %v6738 = vand.u32 %v6737, 4294901760
      %6739 = vmatmul.mubr.f32.gmra.mrb[0].mxu0 %v6738
      %v6740 = vpop.f32.mrb[0].mxu0
      %v6741 = vadd.f32 %v6647, %v6740
      %v6742 = vpop.f32.mrb[0].mxu0
      %v6743 = vadd.f32 %v6647, %v6742
      %6744 = vmatprep.mubr.f32.mxu0 0.0
      %v6745 = vand.u32 %v6659, 4294901760
      %v6746 = vsub.f32 %v6659, %v6745
      %v6747 = vand.u32 %v6746, 4294901760
      %v6748 = vsub.f32 %v6746, %v6747
      %v6749 = vand.u32 %v6748, 4294901760
      %6750 = vmatmul.mubr.f32.gmra.mrb[0].mxu0 %v6749
      %v6751 = vpop.f32.mrb[0].mxu0
      %v6752 = vadd.f32 %v6652, %v6751
      %v6753 = vpop.f32.mrb[0].mxu0
      %v6754 = vadd.f32 %v6652, %v6753
      %6755 = vdwg.mxu0
      %v6756 = vand.u32 %v6635, 4294901760
      %v6757 = vsub.f32 %v6635, %v6756
      %v6758 = vand.u32 %v6757, 4294901760
      %v6759 = vsub.f32 %v6757, %v6758
      %v6760 = vand.u32 %v6759, 4294901760
      %6761 = vmatprep.subr.mxu0 %v6760
      %v6762 = vand.u32 %v6634, 4294901760
      %v6763 = vsub.f32 %v6634, %v6762
      %v6764 = vand.u32 %v6763, 4294901760
      %v6765 = vsub.f32 %v6763, %v6764
      %v6766 = vand.u32 %v6765, 4294901760
      %6767 = vmatpush1.msra.mxu0 %v6766
      %v6768 = vand.u32 %v6637, 4294901760
      %v6769 = vsub.f32 %v6637, %v6768
      %v6770 = vand.u32 %v6769, 4294901760
      %v6771 = vsub.f32 %v6769, %v6770
      %v6772 = vand.u32 %v6771, 4294901760
      %6773 = vmatprep.subr.mxu0 %v6772
      %v6774 = vand.u32 %v6636, 4294901760
      %v6775 = vsub.f32 %v6636, %v6774
      %v6776 = vand.u32 %v6775, 4294901760
      %v6777 = vsub.f32 %v6775, %v6776
      %v6778 = vand.u32 %v6777, 4294901760
      %6779 = vmatpush1.msra.mxu0 %v6778
      %v6780 = vand.u32 %v6639, 4294901760
      %v6781 = vsub.f32 %v6639, %v6780
      %v6782 = vand.u32 %v6781, 4294901760
      %v6783 = vsub.f32 %v6781, %v6782
      %v6784 = vand.u32 %v6783, 4294901760
      %6785 = vmatprep.subr.mxu0 %v6784
      %v6786 = vand.u32 %v6638, 4294901760
      %v6787 = vsub.f32 %v6638, %v6786
      %v6788 = vand.u32 %v6787, 4294901760
      %v6789 = vsub.f32 %v6787, %v6788
      %v6790 = vand.u32 %v6789, 4294901760
      %6791 = vmatpush1.msra.mxu0 %v6790
      %v6792 = vand.u32 %v6641, 4294901760
      %v6793 = vsub.f32 %v6641, %v6792
      %v6794 = vand.u32 %v6793, 4294901760
      %v6795 = vsub.f32 %v6793, %v6794
      %v6796 = vand.u32 %v6795, 4294901760
      %6797 = vmatprep.subr.mxu0 %v6796
      %v6798 = vand.u32 %v6640, 4294901760
      %v6799 = vsub.f32 %v6640, %v6798
      %v6800 = vand.u32 %v6799, 4294901760
      %v6801 = vsub.f32 %v6799, %v6800
      %v6802 = vand.u32 %v6801, 4294901760
      %6803 = vmatpush1.msra.mxu0 %v6802
      %6804 = vmatprep.subr.mxu0 0.0
      %6805 = vmatpush1.msra.mxu0 0.0
      %6806 = vmatprep.subr.mxu0 0.0
      %6807 = vmatpush1.msra.mxu0 0.0
      %6808 = vmatprep.subr.mxu0 0.0
      %6809 = vmatpush1.msra.mxu0 0.0
      %6810 = vmatprep.subr.mxu0 0.0
      %6811 = vmatpush1.msra.mxu0 0.0
      %6812 = vmatprep.subr.mxu0 0.0
      %6813 = vmatpush1.msra.mxu0 0.0
      %6814 = vmatprep.subr.mxu0 0.0
      %6815 = vmatpush1.msra.mxu0 0.0
      %6816 = vmatprep.subr.mxu0 0.0
      %6817 = vmatpush1.msra.mxu0 0.0
      %6818 = vmatprep.subr.mxu0 0.0
      %6819 = vmatpush1.msra.mxu0 0.0
      %6820 = vmatprep.subr.mxu0 0.0
      %6821 = vmatpush1.msra.mxu0 0.0
      %6822 = vmatprep.subr.mxu0 0.0
      %6823 = vmatpush1.msra.mxu0 0.0
      %6824 = vmatprep.subr.mxu0 0.0
      %6825 = vmatpush1.msra.mxu0 0.0
      %6826 = vmatprep.subr.mxu0 0.0
      %6827 = vmatpush1.msra.mxu0 0.0
      %6828 = vmatprep.subr.mxu0 0.0
      %6829 = vmatpush1.msra.mxu0 0.0
      %6830 = vmatprep.subr.mxu0 0.0
      %6831 = vmatpush1.msra.mxu0 0.0
      %6832 = vmatprep.subr.mxu0 0.0
      %6833 = vmatpush1.msra.mxu0 0.0
      %6834 = vmatprep.subr.mxu0 0.0
      %6835 = vmatpush1.msra.mxu0 0.0
      %6836 = vmatprep.subr.mxu0 0.0
      %6837 = vmatpush1.msra.mxu0 0.0
      %6838 = vmatprep.subr.mxu0 0.0
      %6839 = vmatpush1.msra.mxu0 0.0
      %6840 = vmatprep.subr.mxu0 0.0
      %6841 = vmatpush1.msra.mxu0 0.0
      %6842 = vmatprep.subr.mxu0 0.0
      %6843 = vmatpush1.msra.mxu0 0.0
      %6844 = vmatprep.subr.mxu0 0.0
      %6845 = vmatpush1.msra.mxu0 0.0
      %6846 = vmatprep.subr.mxu0 0.0
      %6847 = vmatpush1.msra.mxu0 0.0
      %6848 = vmatprep.subr.mxu0 0.0
      %6849 = vmatpush1.msra.mxu0 0.0
      %6850 = vmatprep.subr.mxu0 0.0
      %6851 = vmatpush1.msra.mxu0 0.0
      %6852 = vmatprep.subr.mxu0 0.0
      %6853 = vmatpush1.msra.mxu0 0.0
      %6854 = vmatprep.subr.mxu0 0.0
      %6855 = vmatpush1.msra.mxu0 0.0
      %6856 = vmatprep.subr.mxu0 0.0
      %6857 = vmatpush1.msra.mxu0 0.0
      %6858 = vmatprep.subr.mxu0 0.0
      %6859 = vmatpush1.msra.mxu0 0.0
      %6860 = vmatprep.mubr.f32.mxu0 0.0
      %v6861 = vand.u32 %v6656, 4294901760
      %6862 = vmatmul.mubr.f32.gmra.mrb[0].mxu0 %v6861
      %v6863 = vpop.f32.mrb[0].mxu0
      %v6864 = vadd.f32 %v6741, %v6863
      %v6865 = vpop.f32.mrb[0].mxu0
      %v6866 = vadd.f32 %v6743, %v6865
      %6867 = vmatprep.mubr.f32.mxu0 0.0
      %v6868 = vand.u32 %v6659, 4294901760
      %6869 = vmatmul.mubr.f32.gmra.mrb[0].mxu0 %v6868
      %v6870 = vpop.f32.mrb[0].mxu0
      %v6871 = vadd.f32 %v6752, %v6870
      %v6872 = vpop.f32.mrb[0].mxu0
      %v6873 = vadd.f32 %v6754, %v6872
      %6874 = vdwg.mxu0
      %v6875 = vand.u32 %v6635, 4294901760
      %v6876 = vsub.f32 %v6635, %v6875
      %6877 = vmatprep.subr.mxu0 %v6876
      %v6878 = vand.u32 %v6634, 4294901760
      %v6879 = vsub.f32 %v6634, %v6878
      %6880 = vmatpush1.msra.mxu0 %v6879
      %v6881 = vand.u32 %v6637, 4294901760
      %v6882 = vsub.f32 %v6637, %v6881
      %6883 = vmatprep.subr.mxu0 %v6882
      %v6884 = vand.u32 %v6636, 4294901760
      %v6885 = vsub.f32 %v6636, %v6884
      %6886 = vmatpush1.msra.mxu0 %v6885
      %v6887 = vand.u32 %v6639, 4294901760
      %v6888 = vsub.f32 %v6639, %v6887
      %6889 = vmatprep.subr.mxu0 %v6888
      %v6890 = vand.u32 %v6638, 4294901760
      %v6891 = vsub.f32 %v6638, %v6890
      %6892 = vmatpush1.msra.mxu0 %v6891
      %v6893 = vand.u32 %v6641, 4294901760
      %v6894 = vsub.f32 %v6641, %v6893
      %6895 = vmatprep.subr.mxu0 %v6894
      %v6896 = vand.u32 %v6640, 4294901760
      %v6897 = vsub.f32 %v6640, %v6896
      %6898 = vmatpush1.msra.mxu0 %v6897
      %6899 = vmatprep.subr.mxu0 0.0
      %6900 = vmatpush1.msra.mxu0 0.0
      %6901 = vmatprep.subr.mxu0 0.0
      %6902 = vmatpush1.msra.mxu0 0.0
      %6903 = vmatprep.subr.mxu0 0.0
      %6904 = vmatpush1.msra.mxu0 0.0
      %6905 = vmatprep.subr.mxu0 0.0
      %6906 = vmatpush1.msra.mxu0 0.0
      %6907 = vmatprep.subr.mxu0 0.0
      %6908 = vmatpush1.msra.mxu0 0.0
      %6909 = vmatprep.subr.mxu0 0.0
      %6910 = vmatpush1.msra.mxu0 0.0
      %6911 = vmatprep.subr.mxu0 0.0
      %6912 = vmatpush1.msra.mxu0 0.0
      %6913 = vmatprep.subr.mxu0 0.0
      %6914 = vmatpush1.msra.mxu0 0.0
      %6915 = vmatprep.subr.mxu0 0.0
      %6916 = vmatpush1.msra.mxu0 0.0
      %6917 = vmatprep.subr.mxu0 0.0
      %6918 = vmatpush1.msra.mxu0 0.0
      %6919 = vmatprep.subr.mxu0 0.0
      %6920 = vmatpush1.msra.mxu0 0.0
      %6921 = vmatprep.subr.mxu0 0.0
      %6922 = vmatpush1.msra.mxu0 0.0
      %6923 = vmatprep.subr.mxu0 0.0
      %6924 = vmatpush1.msra.mxu0 0.0
      %6925 = vmatprep.subr.mxu0 0.0
      %6926 = vmatpush1.msra.mxu0 0.0
      %6927 = vmatprep.subr.mxu0 0.0
      %6928 = vmatpush1.msra.mxu0 0.0
      %6929 = vmatprep.subr.mxu0 0.0
      %6930 = vmatpush1.msra.mxu0 0.0
      %6931 = vmatprep.subr.mxu0 0.0
      %6932 = vmatpush1.msra.mxu0 0.0
      %6933 = vmatprep.subr.mxu0 0.0
      %6934 = vmatpush1.msra.mxu0 0.0
      %6935 = vmatprep.subr.mxu0 0.0
      %6936 = vmatpush1.msra.mxu0 0.0
      %6937 = vmatprep.subr.mxu0 0.0
      %6938 = vmatpush1.msra.mxu0 0.0
      %6939 = vmatprep.subr.mxu0 0.0
      %6940 = vmatpush1.msra.mxu0 0.0
      %6941 = vmatprep.subr.mxu0 0.0
      %6942 = vmatpush1.msra.mxu0 0.0
      %6943 = vmatprep.subr.mxu0 0.0
      %6944 = vmatpush1.msra.mxu0 0.0
      %6945 = vmatprep.subr.mxu0 0.0
      %6946 = vmatpush1.msra.mxu0 0.0
      %6947 = vmatprep.subr.mxu0 0.0
      %6948 = vmatpush1.msra.mxu0 0.0
      %6949 = vmatprep.subr.mxu0 0.0
      %6950 = vmatpush1.msra.mxu0 0.0
      %6951 = vmatprep.subr.mxu0 0.0
      %6952 = vmatpush1.msra.mxu0 0.0
      %6953 = vmatprep.subr.mxu0 0.0
      %6954 = vmatpush1.msra.mxu0 0.0
      %6955 = vmatprep.mubr.f32.mxu0 0.0
      %v6956 = vand.u32 %v6656, 4294901760
      %v6957 = vsub.f32 %v6656, %v6956
      %6958 = vmatmul.mubr.f32.gmra.mrb[0].mxu0 %v6957
      %v6959 = vpop.f32.mrb[0].mxu0
      %v6960 = vadd.f32 %v6864, %v6959
      %v6961 = vpop.f32.mrb[0].mxu0
      %v6962 = vadd.f32 %v6866, %v6961
      %6963 = vmatprep.mubr.f32.mxu0 0.0
      %v6964 = vand.u32 %v6659, 4294901760
      %v6965 = vsub.f32 %v6659, %v6964
      %6966 = vmatmul.mubr.f32.gmra.mrb[0].mxu0 %v6965
      %v6967 = vpop.f32.mrb[0].mxu0
      %v6968 = vadd.f32 %v6871, %v6967
      %v6969 = vpop.f32.mrb[0].mxu0
      %v6970 = vadd.f32 %v6873, %v6969
      %6971 = vdwg.mxu0
      %v6972 = vand.u32 %v6635, 4294901760
      %6973 = vmatprep.subr.mxu0 %v6972
      %v6974 = vand.u32 %v6634, 4294901760
      %6975 = vmatpush1.msra.mxu0 %v6974
      %v6976 = vand.u32 %v6637, 4294901760
      %6977 = vmatprep.subr.mxu0 %v6976
      %v6978 = vand.u32 %v6636, 4294901760
      %6979 = vmatpush1.msra.mxu0 %v6978
      %v6980 = vand.u32 %v6639, 4294901760
      %6981 = vmatprep.subr.mxu0 %v6980
      %v6982 = vand.u32 %v6638, 4294901760
      %6983 = vmatpush1.msra.mxu0 %v6982
      %v6984 = vand.u32 %v6641, 4294901760
      %6985 = vmatprep.subr.mxu0 %v6984
      %v6986 = vand.u32 %v6640, 4294901760
      %6987 = vmatpush1.msra.mxu0 %v6986
      %6988 = vmatprep.subr.mxu0 0.0
      %6989 = vmatpush1.msra.mxu0 0.0
      %6990 = vmatprep.subr.mxu0 0.0
      %6991 = vmatpush1.msra.mxu0 0.0
      %6992 = vmatprep.subr.mxu0 0.0
      %6993 = vmatpush1.msra.mxu0 0.0
      %6994 = vmatprep.subr.mxu0 0.0
      %6995 = vmatpush1.msra.mxu0 0.0
      %6996 = vmatprep.subr.mxu0 0.0
      %6997 = vmatpush1.msra.mxu0 0.0
      %6998 = vmatprep.subr.mxu0 0.0
      %6999 = vmatpush1.msra.mxu0 0.0
      %7000 = vmatprep.subr.mxu0 0.0
      %7001 = vmatpush1.msra.mxu0 0.0
      %7002 = vmatprep.subr.mxu0 0.0
      %7003 = vmatpush1.msra.mxu0 0.0
      %7004 = vmatprep.subr.mxu0 0.0
      %7005 = vmatpush1.msra.mxu0 0.0
      %7006 = vmatprep.subr.mxu0 0.0
      %7007 = vmatpush1.msra.mxu0 0.0
      %7008 = vmatprep.subr.mxu0 0.0
      %7009 = vmatpush1.msra.mxu0 0.0
      %7010 = vmatprep.subr.mxu0 0.0
      %7011 = vmatpush1.msra.mxu0 0.0
      %7012 = vmatprep.subr.mxu0 0.0
      %7013 = vmatpush1.msra.mxu0 0.0
      %7014 = vmatprep.subr.mxu0 0.0
      %7015 = vmatpush1.msra.mxu0 0.0
      %7016 = vmatprep.subr.mxu0 0.0
      %7017 = vmatpush1.msra.mxu0 0.0
      %7018 = vmatprep.subr.mxu0 0.0
      %7019 = vmatpush1.msra.mxu0 0.0
      %7020 = vmatprep.subr.mxu0 0.0
      %7021 = vmatpush1.msra.mxu0 0.0
      %7022 = vmatprep.subr.mxu0 0.0
      %7023 = vmatpush1.msra.mxu0 0.0
      %7024 = vmatprep.subr.mxu0 0.0
      %7025 = vmatpush1.msra.mxu0 0.0
      %7026 = vmatprep.subr.mxu0 0.0
      %7027 = vmatpush1.msra.mxu0 0.0
      %7028 = vmatprep.subr.mxu0 0.0
      %7029 = vmatpush1.msra.mxu0 0.0
      %7030 = vmatprep.subr.mxu0 0.0
      %7031 = vmatpush1.msra.mxu0 0.0
      %7032 = vmatprep.subr.mxu0 0.0
      %7033 = vmatpush1.msra.mxu0 0.0
      %7034 = vmatprep.subr.mxu0 0.0
      %7035 = vmatpush1.msra.mxu0 0.0
      %7036 = vmatprep.subr.mxu0 0.0
      %7037 = vmatpush1.msra.mxu0 0.0
      %7038 = vmatprep.subr.mxu0 0.0
      %7039 = vmatpush1.msra.mxu0 0.0
      %7040 = vmatprep.subr.mxu0 0.0
      %7041 = vmatpush1.msra.mxu0 0.0
      %7042 = vmatprep.subr.mxu0 0.0
      %7043 = vmatpush1.msra.mxu0 0.0
      %7044 = vmatprep.mubr.f32.mxu0 0.0
      %v7045 = vand.u32 %v6656, 4294901760
      %v7046 = vsub.f32 %v6656, %v7045
      %v7047 = vand.u32 %v7046, 4294901760
      %7048 = vmatmul.mubr.f32.gmra.mrb[0].mxu0 %v7047
      %v7049 = vpop.f32.mrb[0].mxu0
      %v7050 = vadd.f32 %v6960, %v7049
      %v7051 = vpop.f32.mrb[0].mxu0
      %v7052 = vadd.f32 %v6962, %v7051
      %7053 = vmatprep.mubr.f32.mxu0 0.0
      %v7054 = vand.u32 %v6659, 4294901760
      %v7055 = vsub.f32 %v6659, %v7054
      %v7056 = vand.u32 %v7055, 4294901760
      %7057 = vmatmul.mubr.f32.gmra.mrb[0].mxu0 %v7056
      %v7058 = vpop.f32.mrb[0].mxu0
      %v7059 = vadd.f32 %v6968, %v7058
      %v7060 = vpop.f32.mrb[0].mxu0
      %v7061 = vadd.f32 %v6970, %v7060
      %7062 = vdwg.mxu0
      %v7063 = vand.u32 %v6635, 4294901760
      %v7064 = vsub.f32 %v6635, %v7063
      %v7065 = vand.u32 %v7064, 4294901760
      %7066 = vmatprep.subr.mxu0 %v7065
      %v7067 = vand.u32 %v6634, 4294901760
      %v7068 = vsub.f32 %v6634, %v7067
      %v7069 = vand.u32 %v7068, 4294901760
      %7070 = vmatpush1.msra.mxu0 %v7069
      %v7071 = vand.u32 %v6637, 4294901760
      %v7072 = vsub.f32 %v6637, %v7071
      %v7073 = vand.u32 %v7072, 4294901760
      %7074 = vmatprep.subr.mxu0 %v7073
      %v7075 = vand.u32 %v6636, 4294901760
      %v7076 = vsub.f32 %v6636, %v7075
      %v7077 = vand.u32 %v7076, 4294901760
      %7078 = vmatpush1.msra.mxu0 %v7077
      %v7079 = vand.u32 %v6639, 4294901760
      %v7080 = vsub.f32 %v6639, %v7079
      %v7081 = vand.u32 %v7080, 4294901760
      %7082 = vmatprep.subr.mxu0 %v7081
      %v7083 = vand.u32 %v6638, 4294901760
      %v7084 = vsub.f32 %v6638, %v7083
      %v7085 = vand.u32 %v7084, 4294901760
      %7086 = vmatpush1.msra.mxu0 %v7085
      %v7087 = vand.u32 %v6641, 4294901760
      %v7088 = vsub.f32 %v6641, %v7087
      %v7089 = vand.u32 %v7088, 4294901760
      %7090 = vmatprep.subr.mxu0 %v7089
      %v7091 = vand.u32 %v6640, 4294901760
      %v7092 = vsub.f32 %v6640, %v7091
      %v7093 = vand.u32 %v7092, 4294901760
      %7094 = vmatpush1.msra.mxu0 %v7093
      %7095 = vmatprep.subr.mxu0 0.0
      %7096 = vmatpush1.msra.mxu0 0.0
      %7097 = vmatprep.subr.mxu0 0.0
      %7098 = vmatpush1.msra.mxu0 0.0
      %7099 = vmatprep.subr.mxu0 0.0
      %7100 = vmatpush1.msra.mxu0 0.0
      %7101 = vmatprep.subr.mxu0 0.0
      %7102 = vmatpush1.msra.mxu0 0.0
      %7103 = vmatprep.subr.mxu0 0.0
      %7104 = vmatpush1.msra.mxu0 0.0
      %7105 = vmatprep.subr.mxu0 0.0
      %7106 = vmatpush1.msra.mxu0 0.0
      %7107 = vmatprep.subr.mxu0 0.0
      %7108 = vmatpush1.msra.mxu0 0.0
      %7109 = vmatprep.subr.mxu0 0.0
      %7110 = vmatpush1.msra.mxu0 0.0
      %7111 = vmatprep.subr.mxu0 0.0
      %7112 = vmatpush1.msra.mxu0 0.0
      %7113 = vmatprep.subr.mxu0 0.0
      %7114 = vmatpush1.msra.mxu0 0.0
      %7115 = vmatprep.subr.mxu0 0.0
      %7116 = vmatpush1.msra.mxu0 0.0
      %7117 = vmatprep.subr.mxu0 0.0
      %7118 = vmatpush1.msra.mxu0 0.0
      %7119 = vmatprep.subr.mxu0 0.0
      %7120 = vmatpush1.msra.mxu0 0.0
      %7121 = vmatprep.subr.mxu0 0.0
      %7122 = vmatpush1.msra.mxu0 0.0
      %7123 = vmatprep.subr.mxu0 0.0
      %7124 = vmatpush1.msra.mxu0 0.0
      %7125 = vmatprep.subr.mxu0 0.0
      %7126 = vmatpush1.msra.mxu0 0.0
      %7127 = vmatprep.subr.mxu0 0.0
      %7128 = vmatpush1.msra.mxu0 0.0
      %7129 = vmatprep.subr.mxu0 0.0
      %7130 = vmatpush1.msra.mxu0 0.0
      %7131 = vmatprep.subr.mxu0 0.0
      %7132 = vmatpush1.msra.mxu0 0.0
      %7133 = vmatprep.subr.mxu0 0.0
      %7134 = vmatpush1.msra.mxu0 0.0
      %7135 = vmatprep.subr.mxu0 0.0
      %7136 = vmatpush1.msra.mxu0 0.0
      %7137 = vmatprep.subr.mxu0 0.0
      %7138 = vmatpush1.msra.mxu0 0.0
      %7139 = vmatprep.subr.mxu0 0.0
      %7140 = vmatpush1.msra.mxu0 0.0
      %7141 = vmatprep.subr.mxu0 0.0
      %7142 = vmatpush1.msra.mxu0 0.0
      %7143 = vmatprep.subr.mxu0 0.0
      %7144 = vmatpush1.msra.mxu0 0.0
      %7145 = vmatprep.subr.mxu0 0.0
      %7146 = vmatpush1.msra.mxu0 0.0
      %7147 = vmatprep.subr.mxu0 0.0
      %7148 = vmatpush1.msra.mxu0 0.0
      %7149 = vmatprep.subr.mxu0 0.0
      %7150 = vmatpush1.msra.mxu0 0.0
      %7151 = vmatprep.mubr.f32.mxu0 0.0
      %v7152 = vand.u32 %v6656, 4294901760
      %7153 = vmatmul.mubr.f32.gmra.mrb[0].mxu0 %v7152
      %v7154 = vpop.f32.mrb[0].mxu0
      %v7155 = vadd.f32 %v7050, %v7154
      %v7156 = vpop.f32.mrb[0].mxu0
      %v7157 = vadd.f32 %v7052, %v7156
      %7158 = vmatprep.mubr.f32.mxu0 0.0
      %v7159 = vand.u32 %v6659, 4294901760
      %7160 = vmatmul.mubr.f32.gmra.mrb[0].mxu0 %v7159
      %v7161 = vpop.f32.mrb[0].mxu0
      %v7162 = vadd.f32 %v7059, %v7161
      %v7163 = vpop.f32.mrb[0].mxu0
      %v7164 = vadd.f32 %v7061, %v7163
      %7165 = vdwg.mxu0
      %v7166 = vand.u32 %v6635, 4294901760
      %7167 = vmatprep.subr.mxu0 %v7166
      %v7168 = vand.u32 %v6634, 4294901760
      %7169 = vmatpush1.msra.mxu0 %v7168
      %v7170 = vand.u32 %v6637, 4294901760
      %7171 = vmatprep.subr.mxu0 %v7170
      %v7172 = vand.u32 %v6636, 4294901760
      %7173 = vmatpush1.msra.mxu0 %v7172
      %v7174 = vand.u32 %v6639, 4294901760
      %7175 = vmatprep.subr.mxu0 %v7174
      %v7176 = vand.u32 %v6638, 4294901760
      %7177 = vmatpush1.msra.mxu0 %v7176
      %v7178 = vand.u32 %v6641, 4294901760
      %7179 = vmatprep.subr.mxu0 %v7178
      %v7180 = vand.u32 %v6640, 4294901760
      %7181 = vmatpush1.msra.mxu0 %v7180
      %7182 = vmatprep.subr.mxu0 0.0
      %7183 = vmatpush1.msra.mxu0 0.0
      %7184 = vmatprep.subr.mxu0 0.0
      %7185 = vmatpush1.msra.mxu0 0.0
      %7186 = vmatprep.subr.mxu0 0.0
      %7187 = vmatpush1.msra.mxu0 0.0
      %7188 = vmatprep.subr.mxu0 0.0
      %7189 = vmatpush1.msra.mxu0 0.0
      %7190 = vmatprep.subr.mxu0 0.0
      %7191 = vmatpush1.msra.mxu0 0.0
      %7192 = vmatprep.subr.mxu0 0.0
      %7193 = vmatpush1.msra.mxu0 0.0
      %7194 = vmatprep.subr.mxu0 0.0
      %7195 = vmatpush1.msra.mxu0 0.0
      %7196 = vmatprep.subr.mxu0 0.0
      %7197 = vmatpush1.msra.mxu0 0.0
      %7198 = vmatprep.subr.mxu0 0.0
      %7199 = vmatpush1.msra.mxu0 0.0
      %7200 = vmatprep.subr.mxu0 0.0
      %7201 = vmatpush1.msra.mxu0 0.0
      %7202 = vmatprep.subr.mxu0 0.0
      %7203 = vmatpush1.msra.mxu0 0.0
      %7204 = vmatprep.subr.mxu0 0.0
      %7205 = vmatpush1.msra.mxu0 0.0
      %7206 = vmatprep.subr.mxu0 0.0
      %7207 = vmatpush1.msra.mxu0 0.0
      %7208 = vmatprep.subr.mxu0 0.0
      %7209 = vmatpush1.msra.mxu0 0.0
      %7210 = vmatprep.subr.mxu0 0.0
      %7211 = vmatpush1.msra.mxu0 0.0
      %7212 = vmatprep.subr.mxu0 0.0
      %7213 = vmatpush1.msra.mxu0 0.0
      %7214 = vmatprep.subr.mxu0 0.0
      %7215 = vmatpush1.msra.mxu0 0.0
      %7216 = vmatprep.subr.mxu0 0.0
      %7217 = vmatpush1.msra.mxu0 0.0
      %7218 = vmatprep.subr.mxu0 0.0
      %7219 = vmatpush1.msra.mxu0 0.0
      %7220 = vmatprep.subr.mxu0 0.0
      %7221 = vmatpush1.msra.mxu0 0.0
      %7222 = vmatprep.subr.mxu0 0.0
      %7223 = vmatpush1.msra.mxu0 0.0
      %7224 = vmatprep.subr.mxu0 0.0
      %7225 = vmatpush1.msra.mxu0 0.0
      %7226 = vmatprep.subr.mxu0 0.0
      %7227 = vmatpush1.msra.mxu0 0.0
      %7228 = vmatprep.subr.mxu0 0.0
      %7229 = vmatpush1.msra.mxu0 0.0
      %7230 = vmatprep.subr.mxu0 0.0
      %7231 = vmatpush1.msra.mxu0 0.0
      %7232 = vmatprep.subr.mxu0 0.0
      %7233 = vmatpush1.msra.mxu0 0.0
      %7234 = vmatprep.subr.mxu0 0.0
      %7235 = vmatpush1.msra.mxu0 0.0
      %7236 = vmatprep.subr.mxu0 0.0
      %7237 = vmatpush1.msra.mxu0 0.0
      %7238 = vmatprep.mubr.f32.mxu0 0.0
      %v7239 = vand.u32 %v6656, 4294901760
      %7240 = vmatmul.mubr.f32.gmra.mrb[0].mxu0 %v7239
      %v7241 = vpop.f32.mrb[0].mxu0
      %v7242 = vadd.f32 %v7155, %v7241
      %v7243 = vpop.f32.mrb[0].mxu0
      %v7244 = vadd.f32 %v7157, %v7243
      %7245 = vmatprep.mubr.f32.mxu0 0.0
      %v7246 = vand.u32 %v6659, 4294901760
      %7247 = vmatmul.mubr.f32.gmra.mrb[0].mxu0 %v7246
      %v7248 = vpop.f32.mrb[0].mxu0
      %v7249 = vadd.f32 %v7162, %v7248
      %v7250 = vpop.f32.mrb[0].mxu0
      %v7251 = vadd.f32 %v7164, %v7250
      %7252 = vdwg.mxu0
      %7253 = vst [vmem:[%s622] sm:$0xff] %v7242
      %7254 = vst [vmem:[%s622 + $0x8] sm:$0xff] %v7244
      %7255 = vst [vmem:[%s622 + $0x10] sm:$0xff] %v7249
      %7256 = vst [vmem:[%s622 + $0x18] sm:$0xff] %v7251
      %p7257 = scmp.lt.s32.totalorder %s30, 1
      %s7258 = scalar_select %p7257, %s30, 1
      %s7259 = smul.addr %s7258, 4
      %s7260 = smul.addr %s7259, 8
      %s7261 = scalar_lea.vmem %s19, %s7260
      // Predicated region
      $region97: #{dualgcn_forward.1} parent=95 // pred_check
        %p7262 = pneg %p457
      $region98: #{dualgcn_forward.1} parent=95 // pred_check_branch
        %7264 = sbr.rel (%p7262) target = $region100
      $region99: #{dualgcn_forward.1} parent=95 // pred_region
        _
      $region100: #{dualgcn_forward.1} parent=95 // pred_fallthru
        _
    $region96: #{dualgcn_forward.1} parent=5 // pred_fallthru
      _
    %p7265 = scmp.le.s32.totalorder 2, %s25
    // Predicated region
    $region101: #{dualgcn_forward.1} parent=5 // pred_check
      %p7266 = pneg %p7265
    $region102: #{dualgcn_forward.1} parent=5 // pred_check_branch
      %7268 = sbr.rel (%p7266) target = $region104
    $region103: #{dualgcn_forward.1} parent=5 // pred_region
      %s7269 = ssub.s32 %s25, 2
      // Predicated region
      $region105: #{dualgcn_forward.1} parent=103 // pred_check
        %p7270 = pneg %p463
      $region106: #{dualgcn_forward.1} parent=103 // pred_check_branch
        %7272 = sbr.rel (%p7270) target = $region108
      $region107: #{dualgcn_forward.1} parent=103 // pred_region
        %p7273 = scmp.lt.s32.totalorder %s31, 1
        %s7274 = scalar_select %p7273, %s31, 1
        %s7275 = smul.addr %s7274, 4
        %s7276 = smul.addr %s7275, 8
        %s7277 = scalar_lea.vmem %s19, %s7276
      $region108: #{dualgcn_forward.1} parent=103 // pred_fallthru
        _
    $region104: #{dualgcn_forward.1} parent=5 // pred_fallthru
      _
  $region6: #{dualgcn_forward.1} parent=0 // loop_footer
    %s29 = sadd.s32 1, %s25
  $region7: #{dualgcn_forward.1} parent=0 // loop_footer_branch
    %24 = sbr.rel target = $region3
  $region8: #{dualgcn_forward.1} parent=0 // loop_exit
    _

</llo_original>
